<compile_context>
chip_gen: v6e
topology: v6e:2x2x1
jax: 0.10.0
libtpu: 0.0.40
codegen_flags: <defaults>
</compile_context>

<pallas_src>
import functools
import numpy as np
import jax
import jax.numpy as jnp
from jax.experimental import pallas as pl
from jax.experimental.pallas import tpu as pltpu


_LEAKY_SLOPE = 0.01          # PyTorch nn.LeakyReLU default negative_slope
_K = 5                       # every decoder conv is 5x5, stride 2, pad 2, output_pad 1
_GEMM_DTYPE = jnp.bfloat16   # MXU-native operand dtype; accumulation stays f32


# ----------------------------- Pallas GEMM kernel ---------------------------

def _gemm_bias_act_kernel(w_ref, c_ref, b_ref, o_ref, *, leaky_slope):
    # w_ref: (1, O, K)  c_ref: (1, K, TM)  b_ref: (1, O, 1)  o_ref: (1, O, TM)
    acc = jnp.dot(w_ref[0], c_ref[0], preferred_element_type=jnp.float32)
    acc = acc + b_ref[0]                       # bias broadcast along lanes
    if leaky_slope is not None:                # fused LeakyReLU epilogue
        acc = jnp.where(acc > 0.0, acc, acc * leaky_slope)
    o_ref[0] = acc.astype(o_ref.dtype)


def dual_branch_gemm(w2, cols2, b2, leaky_slope, out_dtype, tm_cap=1024):
    """out[s] = act(w2[s] @ cols2[s] + b2[s]) for s in {0,1} (left / right branch).

    w2:    [2, O, K]  (bf16)  pre-transformed weights (lane dim = K, VMEM resident)
    cols2: [2, K, M]  (bf16)  im2col matrix, lane dim = M (big)  -> lane-dense output
    b2:    [2, O, 1]  (f32)
    returns [2, O, M] in `out_dtype`.
    """
    S, O, K = w2.shape
    M = cols2.shape[-1]
    assert S == 2 and cols2.shape == (2, K, M) and b2.shape == (2, O, 1)
    assert O % 8 == 0

    # Big lane tiles (multiple of 128) amortize the ~0.35us per-grid-step cost and
    # keep stores unmasked; no host-side padding of the big operand is required.
    TM = M if M <= tm_cap else tm_cap
    grid = (2, pl.cdiv(M, TM))

    in_isz = jnp.dtype(w2.dtype).itemsize
    out_isz = jnp.dtype(out_dtype).itemsize
    # double-buffered input tiles + output tile (+bias), with generous headroom;
    # explicit so the same config stays safely inside v7x's 64 MiB physical VMEM.
    vmem_need = 2 * (K * TM + O * K) * in_isz + 2 * O * TM * out_isz + 2 * O * 4
    vmem_limit = int(min(max(8 * vmem_need, 16 * 2**20), 48 * 2**20))

    return pl.pallas_call(
        functools.partial(_gemm_bias_act_kernel, leaky_slope=leaky_slope),
        out_shape=jax.ShapeDtypeStruct((2, O, M), out_dtype),
        grid=grid,
        in_specs=[
            pl.BlockSpec((1, O, K), lambda s, m: (s, 0, 0)),    # per-branch weights
            pl.BlockSpec((1, K, TM), lambda s, m: (s, 0, m)),   # im2col lane tile
            pl.BlockSpec((1, O, 1), lambda s, m: (s, 0, 0)),    # per-branch bias
        ],
        out_specs=pl.BlockSpec((1, O, TM), lambda s, m: (s, 0, m)),
        compiler_params=pltpu.CompilerParams(
            dimension_semantics=("parallel", "parallel"),
            vmem_limit_bytes=vmem_limit,
        ),
    )(w2, cols2, b2)


# -------------------------- conv-transpose glue (plain JAX) -----------------

def _convT_cols(x, k=_K, stride=2, pad=2, output_pad=1):
    """x: [2, C, Nb, H, W] branch-stacked, channel-major activations.

    Returns the im2col matrix [2, C*k*k, Nb*OH*OW] of the stride-1 convolution that
    is equivalent to ConvTranspose2d(k=5, s=2, p=2, op=1) (input dilated by the
    stride, padded by (k-1-p, k-1-p+op)), plus (OH, OW).
    K is ordered (c, i, j); M is ordered (n, oh, ow)."""
    S, C, Nb, H, W = x.shape
    oh, ow = stride * H, stride * W              # (H-1)*s - 2p + k + op
    lo, hi = k - 1 - pad, k - 1 - pad + output_pad
    xd = jnp.zeros((S, C, Nb, (H - 1) * stride + 1, (W - 1) * stride + 1), x.dtype)
    xd = xd.at[..., ::stride, ::stride].set(x)
    xp = jnp.pad(xd, ((0, 0), (0, 0), (0, 0), (lo, hi), (lo, hi)))
    patches = [xp[..., i:i + oh, j:j + ow] for i in range(k) for j in range(k)]
    cols = jnp.stack(patches, axis=2)            # [2, C, k*k, Nb, oh, ow]
    return cols.reshape(S, C * k * k, Nb * oh * ow), oh, ow


def _dec_layer(layer, out_c, x, leaky_slope, out_dtype):
    # x: [2, C, Nb, H, W]  ->  [2, out_c, Nb, 2H, 2W]
    Nb = x.shape[2]
    cols, oh, ow = _convT_cols(x.astype(_GEMM_DTYPE))
    out = dual_branch_gemm(layer["w"], cols, layer["b"], leaky_slope, out_dtype)
    return out[:, :out_c].reshape(2, out_c, Nb, oh, ow)


def make_dec_forward(M1):
    out_channels = (M1, M1, M1, 3)
    slopes = (_LEAKY_SLOPE, _LEAKY_SLOPE, _LEAKY_SLOPE, None)   # conv4 has no activation

    def dec_forward(prep, x_l, x_r):
        # Internal layout: [2(branch), C, Nb, H, W]. The lane-dense GEMM output
        # [O, Nb*OH*OW] then feeds the next layer's im2col with no big transpose.
        x = jnp.stack([x_l, x_r], axis=0).transpose(0, 2, 1, 3, 4)
        for li, name in enumerate(("conv1", "conv2", "conv3", "conv4")):
            out_dt = jnp.float32 if li == 3 else _GEMM_DTYPE
            x = _dec_layer(prep[name], out_channels[li], x, slopes[li], out_dt)
        x4 = jnp.transpose(x[0], (1, 0, 2, 3))    # back to NCHW
        x4r = jnp.transpose(x[1], (1, 0, 2, 3))
        return x4, x4r

    return dec_forward


# ------------------------------ parameters ----------------------------------

def _convT_init(key, in_c, out_c, k=_K):
    # TODO(synk): approximates PyTorch's default reset_parameters (uniform +-1/sqrt(fan_in)).
    k1, k2 = jax.random.split(key)
    bound = 1.0 / np.sqrt(out_c * k * k)
    w = jax.random.uniform(k1, (in_c, out_c, k, k), jnp.float32, -bound, bound)
    b = jax.random.uniform(k2, (out_c,), jnp.float32, -bound, bound)
    return w, b


def init_params(key, M1=16, N=4):
    layers = {
        "conv1": (N, M1), "conv2": (M1, M1), "conv3": (M1, M1), "conv4": (M1, 3),
        "conv1r": (N, M1), "conv2r": (M1, M1), "conv3r": (M1, M1), "conv4r": (M1, 3),
    }
    p = {}
    for i, (name, (ci, co)) in enumerate(layers.items()):
        w, b = _convT_init(jax.random.fold_in(key, i), ci, co)
        p[name + "_w"], p[name + "_b"] = w, b
    return p


def _convT_weight_to_gemm(w_t):
    # PyTorch ConvTranspose2d weight: [C_in, C_out, kh, kw]. Equivalent stride-1 conv
    # (on the dilated+padded input) uses the spatially flipped kernel with in/out
    # swapped: w_conv[o, c, i, j] = w_t[c, o, kh-1-i, kw-1-j].
    w_conv = jnp.transpose(jnp.flip(w_t, axis=(2, 3)), (1, 0, 2, 3))   # [O, C, kh, kw]
    return w_conv.reshape(w_conv.shape[0], -1)                         # [O, C*kh*kw]


def preprocess_params(params):
    """One-time weight transform (flip + transpose + reshape + pad-to-8 + bf16 cast) and
    left/right branch stacking -- keeps all weight manipulation out of the forward path."""
    prep = {}
    for name in ("conv1", "conv2", "conv3", "conv4"):
        w2 = jnp.stack([_convT_weight_to_gemm(params[name + "_w"]),
                        _convT_weight_to_gemm(params[name + "r_w"])], axis=0)  # [2,O,K]
        b2 = jnp.stack([params[name + "_b"], params[name + "r_b"]], axis=0)    # [2,O]
        O = w2.shape[1]
        O_pad = ((O + 7) // 8) * 8
        if O_pad != O:   # pad the tiny O dim (conv4: 3 -> 8) so sublanes stay aligned
            w2 = jnp.pad(w2, ((0, 0), (0, O_pad - O), (0, 0)))
            b2 = jnp.pad(b2, ((0, 0), (0, O_pad - O)))
        prep[name] = {
            "w": w2.astype(_GEMM_DTYPE),
            "b": b2.reshape(2, O_pad, 1).astype(jnp.float32),
        }
    return prep


# ----------------------------------- main ------------------------------------

if __name__ == "__main__":
    key = jax.random.PRNGKey(0)
    M1, N = 16, 4                     # Dec(num_features, M1=16, N=4)

    params = init_params(jax.random.fold_in(key, 1), M1=M1, N=N)
    prep = preprocess_params(params)  # one-time, outside the jitted forward

    B, H, W = 2, 8, 8                 # small latent input; each layer doubles H, W
    x_l = jax.random.normal(jax.random.fold_in(key, 2), (B, N, H, W), jnp.float32)
    x_r = jax.random.normal(jax.random.fold_in(key, 3), (B, N, H, W), jnp.float32)

    fwd = jax.jit(make_dec_forward(M1))
    x4, x4r = fwd(prep, x_l, x_r)
    jax.block_until_ready((x4, x4r))

    assert x4.shape == (B, 3, 16 * H, 16 * W)
    assert x4r.shape == (B, 3, 16 * H, 16 * W)
    assert x4.dtype == jnp.float32 and x4r.dtype == jnp.float32
    assert bool(jnp.all(jnp.isfinite(x4))) and bool(jnp.all(jnp.isfinite(x4r)))
    print("KERNEL_OK")
</pallas_src>

<mosaic_0001>
module attributes {stable_mosaic.version = 11 : i64} {
  func.func @_gemm_bias_act_kernel(%arg0: i32, %arg1: i32, %arg2: memref<1x16x100xbf16, #tpu.memory_space<vmem>>, %arg3: memref<1x100x512xbf16, #tpu.memory_space<vmem>>, %arg4: memref<1x16x1xf32, #tpu.memory_space<vmem>>, %arg5: memref<1x16x512xbf16, #tpu.memory_space<vmem>>) attributes {dimension_semantics = [#tpu.dimension_semantics<parallel>, #tpu.dimension_semantics<parallel>], iteration_bounds = array<i64: 2, 1>, scalar_prefetch = 0 : i64, scratch_operands = 0 : i64, tpu.core_type = #tpu.core_type<tc>, window_params = [{transform_indices = @transform_0, window_bounds = array<i64: 1, 16, 100>}, {transform_indices = @transform_1, window_bounds = array<i64: 1, 100, 512>}, {transform_indices = @transform_2, window_bounds = array<i64: 1, 16, 1>}, {transform_indices = @transform_3, window_bounds = array<i64: 1, 16, 512>}]} {
    %c0 = arith.constant 0 : index
    %c0_0 = arith.constant 0 : index
    %c0_1 = arith.constant 0 : index
    %0 = vector.load %arg2[%c0, %c0_0, %c0_1] : memref<1x16x100xbf16, #tpu.memory_space<vmem>>, vector<1x16x100xbf16>
    %1 = vector.shape_cast %0 : vector<1x16x100xbf16> to vector<16x100xbf16>
    %c0_2 = arith.constant 0 : index
    %c0_3 = arith.constant 0 : index
    %c0_4 = arith.constant 0 : index
    %2 = vector.load %arg3[%c0_2, %c0_3, %c0_4] : memref<1x100x512xbf16, #tpu.memory_space<vmem>>, vector<1x100x512xbf16>
    %3 = vector.shape_cast %2 : vector<1x100x512xbf16> to vector<100x512xbf16>
    %cst = arith.constant dense<0.000000e+00> : vector<16x512xf32>
    %4 = tpu.matmul %1, %3, %cst {dimension_numbers = #tpu.dot_dimension_numbers<[1], [0], [0], [1], [0, 0, 1, 1], [], []>} : vector<16x100xbf16>, vector<100x512xbf16>, vector<16x512xf32> -> vector<16x512xf32>
    %c0_5 = arith.constant 0 : index
    %c0_6 = arith.constant 0 : index
    %c0_7 = arith.constant 0 : index
    %5 = vector.load %arg4[%c0_5, %c0_6, %c0_7] : memref<1x16x1xf32, #tpu.memory_space<vmem>>, vector<1x16x1xf32>
    %6 = vector.shape_cast %5 : vector<1x16x1xf32> to vector<16x1xf32>
    %7 = vector.broadcast %6 : vector<16x1xf32> to vector<16x512xf32>
    %8 = arith.addf %4, %7 : vector<16x512xf32>
    %cst_8 = arith.constant 0.000000e+00 : f32
    %9 = vector.broadcast %cst_8 : f32 to vector<16x512xf32>
    %10 = arith.cmpf ogt, %8, %9 : vector<16x512xf32>
    %cst_9 = arith.constant 0.00999999977 : f32
    %11 = vector.broadcast %cst_9 : f32 to vector<16x512xf32>
    %12 = arith.mulf %8, %11 : vector<16x512xf32>
    %13 = arith.select %10, %8, %12 : vector<16x512xi1>, vector<16x512xf32>
    %14 = arith.truncf %13 : vector<16x512xf32> to vector<16x512xbf16>
    %c0_10 = arith.constant 0 : index
    %c0_11 = arith.constant 0 : index
    %c0_12 = arith.constant 0 : index
    %15 = vector.load %arg5[%c0_10, %c0_11, %c0_12] : memref<1x16x512xbf16, #tpu.memory_space<vmem>>, vector<1x16x512xbf16>
    %16 = vector.shape_cast %15 : vector<1x16x512xbf16> to vector<16x512xbf16>
    %17 = vector.shape_cast %14 : vector<16x512xbf16> to vector<1x16x512xbf16>
    tpu.vector_store %arg5[%c0_10, %c0_11, %c0_12], %17 {strides = array<i32>} : memref<1x16x512xbf16, #tpu.memory_space<vmem>>, vector<1x16x512xbf16>,
    return
  }
  func.func @transform_0(%arg0: i32, %arg1: i32) -> (i32, i32, i32) {
    %c0_i32 = arith.constant 0 : i32
    %c0_i32_0 = arith.constant 0 : i32
    %c0_i32_1 = arith.constant 0 : i32
    return %arg0, %c0_i32, %c0_i32_0 : i32, i32, i32
  }
  func.func @transform_1(%arg0: i32, %arg1: i32) -> (i32, i32, i32) {
    %c0_i32 = arith.constant 0 : i32
    %c0_i32_0 = arith.constant 0 : i32
    return %arg0, %c0_i32, %arg1 : i32, i32, i32
  }
  func.func @transform_2(%arg0: i32, %arg1: i32) -> (i32, i32, i32) {
    %c0_i32 = arith.constant 0 : i32
    %c0_i32_0 = arith.constant 0 : i32
    %c0_i32_1 = arith.constant 0 : i32
    return %arg0, %c0_i32, %c0_i32_0 : i32, i32, i32
  }
  func.func @transform_3(%arg0: i32, %arg1: i32) -> (i32, i32, i32) {
    %c0_i32 = arith.constant 0 : i32
    %c0_i32_0 = arith.constant 0 : i32
    return %arg0, %c0_i32, %arg1 : i32, i32, i32
  }
}

module attributes {stable_mosaic.version = 11 : i64} {
  func.func @_gemm_bias_act_kernel(%arg0: i32, %arg1: i32, %arg2: memref<1x16x400xbf16, #tpu.memory_space<vmem>>, %arg3: memref<1x400x1024xbf16, #tpu.memory_space<vmem>>, %arg4: memref<1x16x1xf32, #tpu.memory_space<vmem>>, %arg5: memref<1x16x1024xbf16, #tpu.memory_space<vmem>>) attributes {dimension_semantics = [#tpu.dimension_semantics<parallel>, #tpu.dimension_semantics<parallel>], iteration_bounds = array<i64: 2, 2>, scalar_prefetch = 0 : i64, scratch_operands = 0 : i64, tpu.core_type = #tpu.core_type<tc>, window_params = [{transform_indices = @transform_0, window_bounds = array<i64: 1, 16, 400>}, {transform_indices = @transform_1, window_bounds = array<i64: 1, 400, 1024>}, {transform_indices = @transform_2, window_bounds = array<i64: 1, 16, 1>}, {transform_indices = @transform_3, window_bounds = array<i64: 1, 16, 1024>}]} {
    %c0 = arith.constant 0 : index
    %c0_0 = arith.constant 0 : index
    %c0_1 = arith.constant 0 : index
    %0 = vector.load %arg2[%c0, %c0_0, %c0_1] : memref<1x16x400xbf16, #tpu.memory_space<vmem>>, vector<1x16x400xbf16>
    %1 = vector.shape_cast %0 : vector<1x16x400xbf16> to vector<16x400xbf16>
    %c0_2 = arith.constant 0 : index
    %c0_3 = arith.constant 0 : index
    %c0_4 = arith.constant 0 : index
    %2 = vector.load %arg3[%c0_2, %c0_3, %c0_4] : memref<1x400x1024xbf16, #tpu.memory_space<vmem>>, vector<1x400x1024xbf16>
    %3 = vector.shape_cast %2 : vector<1x400x1024xbf16> to vector<400x1024xbf16>
    %cst = arith.constant dense<0.000000e+00> : vector<16x1024xf32>
    %4 = tpu.matmul %1, %3, %cst {dimension_numbers = #tpu.dot_dimension_numbers<[1], [0], [0], [1], [0, 0, 1, 1], [], []>} : vector<16x400xbf16>, vector<400x1024xbf16>, vector<16x1024xf32> -> vector<16x1024xf32>
    %c0_5 = arith.constant 0 : index
    %c0_6 = arith.constant 0 : index
    %c0_7 = arith.constant 0 : index
    %5 = vector.load %arg4[%c0_5, %c0_6, %c0_7] : memref<1x16x1xf32, #tpu.memory_space<vmem>>, vector<1x16x1xf32>
    %6 = vector.shape_cast %5 : vector<1x16x1xf32> to vector<16x1xf32>
    %7 = vector.broadcast %6 : vector<16x1xf32> to vector<16x1024xf32>
    %8 = arith.addf %4, %7 : vector<16x1024xf32>
    %cst_8 = arith.constant 0.000000e+00 : f32
    %9 = vector.broadcast %cst_8 : f32 to vector<16x1024xf32>
    %10 = arith.cmpf ogt, %8, %9 : vector<16x1024xf32>
    %cst_9 = arith.constant 0.00999999977 : f32
    %11 = vector.broadcast %cst_9 : f32 to vector<16x1024xf32>
    %12 = arith.mulf %8, %11 : vector<16x1024xf32>
    %13 = arith.select %10, %8, %12 : vector<16x1024xi1>, vector<16x1024xf32>
    %14 = arith.truncf %13 : vector<16x1024xf32> to vector<16x1024xbf16>
    %c0_10 = arith.constant 0 : index
    %c0_11 = arith.constant 0 : index
    %c0_12 = arith.constant 0 : index
    %15 = vector.load %arg5[%c0_10, %c0_11, %c0_12] : memref<1x16x1024xbf16, #tpu.memory_space<vmem>>, vector<1x16x1024xbf16>
    %16 = vector.shape_cast %15 : vector<1x16x1024xbf16> to vector<16x1024xbf16>
    %17 = vector.shape_cast %14 : vector<16x1024xbf16> to vector<1x16x1024xbf16>
    tpu.vector_store %arg5[%c0_10, %c0_11, %c0_12], %17 {strides = array<i32>} : memref<1x16x1024xbf16, #tpu.memory_space<vmem>>, vector<1x16x1024xbf16>,
    return
  }
  func.func @transform_0(%arg0: i32, %arg1: i32) -> (i32, i32, i32) {
    %c0_i32 = arith.constant 0 : i32
    %c0_i32_0 = arith.constant 0 : i32
    %c0_i32_1 = arith.constant 0 : i32
    return %arg0, %c0_i32, %c0_i32_0 : i32, i32, i32
  }
  func.func @transform_1(%arg0: i32, %arg1: i32) -> (i32, i32, i32) {
    %c0_i32 = arith.constant 0 : i32
    %c0_i32_0 = arith.constant 0 : i32
    return %arg0, %c0_i32, %arg1 : i32, i32, i32
  }
  func.func @transform_2(%arg0: i32, %arg1: i32) -> (i32, i32, i32) {
    %c0_i32 = arith.constant 0 : i32
    %c0_i32_0 = arith.constant 0 : i32
    %c0_i32_1 = arith.constant 0 : i32
    return %arg0, %c0_i32, %c0_i32_0 : i32, i32, i32
  }
  func.func @transform_3(%arg0: i32, %arg1: i32) -> (i32, i32, i32) {
    %c0_i32 = arith.constant 0 : i32
    %c0_i32_0 = arith.constant 0 : i32
    return %arg0, %c0_i32, %arg1 : i32, i32, i32
  }
}

module attributes {stable_mosaic.version = 11 : i64} {
  func.func @_gemm_bias_act_kernel(%arg0: i32, %arg1: i32, %arg2: memref<1x16x400xbf16, #tpu.memory_space<vmem>>, %arg3: memref<1x400x1024xbf16, #tpu.memory_space<vmem>>, %arg4: memref<1x16x1xf32, #tpu.memory_space<vmem>>, %arg5: memref<1x16x1024xbf16, #tpu.memory_space<vmem>>) attributes {dimension_semantics = [#tpu.dimension_semantics<parallel>, #tpu.dimension_semantics<parallel>], iteration_bounds = array<i64: 2, 8>, scalar_prefetch = 0 : i64, scratch_operands = 0 : i64, tpu.core_type = #tpu.core_type<tc>, window_params = [{transform_indices = @transform_0, window_bounds = array<i64: 1, 16, 400>}, {transform_indices = @transform_1, window_bounds = array<i64: 1, 400, 1024>}, {transform_indices = @transform_2, window_bounds = array<i64: 1, 16, 1>}, {transform_indices = @transform_3, window_bounds = array<i64: 1, 16, 1024>}]} {
    %c0 = arith.constant 0 : index
    %c0_0 = arith.constant 0 : index
    %c0_1 = arith.constant 0 : index
    %0 = vector.load %arg2[%c0, %c0_0, %c0_1] : memref<1x16x400xbf16, #tpu.memory_space<vmem>>, vector<1x16x400xbf16>
    %1 = vector.shape_cast %0 : vector<1x16x400xbf16> to vector<16x400xbf16>
    %c0_2 = arith.constant 0 : index
    %c0_3 = arith.constant 0 : index
    %c0_4 = arith.constant 0 : index
    %2 = vector.load %arg3[%c0_2, %c0_3, %c0_4] : memref<1x400x1024xbf16, #tpu.memory_space<vmem>>, vector<1x400x1024xbf16>
    %3 = vector.shape_cast %2 : vector<1x400x1024xbf16> to vector<400x1024xbf16>
    %cst = arith.constant dense<0.000000e+00> : vector<16x1024xf32>
    %4 = tpu.matmul %1, %3, %cst {dimension_numbers = #tpu.dot_dimension_numbers<[1], [0], [0], [1], [0, 0, 1, 1], [], []>} : vector<16x400xbf16>, vector<400x1024xbf16>, vector<16x1024xf32> -> vector<16x1024xf32>
    %c0_5 = arith.constant 0 : index
    %c0_6 = arith.constant 0 : index
    %c0_7 = arith.constant 0 : index
    %5 = vector.load %arg4[%c0_5, %c0_6, %c0_7] : memref<1x16x1xf32, #tpu.memory_space<vmem>>, vector<1x16x1xf32>
    %6 = vector.shape_cast %5 : vector<1x16x1xf32> to vector<16x1xf32>
    %7 = vector.broadcast %6 : vector<16x1xf32> to vector<16x1024xf32>
    %8 = arith.addf %4, %7 : vector<16x1024xf32>
    %cst_8 = arith.constant 0.000000e+00 : f32
    %9 = vector.broadcast %cst_8 : f32 to vector<16x1024xf32>
    %10 = arith.cmpf ogt, %8, %9 : vector<16x1024xf32>
    %cst_9 = arith.constant 0.00999999977 : f32
    %11 = vector.broadcast %cst_9 : f32 to vector<16x1024xf32>
    %12 = arith.mulf %8, %11 : vector<16x1024xf32>
    %13 = arith.select %10, %8, %12 : vector<16x1024xi1>, vector<16x1024xf32>
    %14 = arith.truncf %13 : vector<16x1024xf32> to vector<16x1024xbf16>
    %c0_10 = arith.constant 0 : index
    %c0_11 = arith.constant 0 : index
    %c0_12 = arith.constant 0 : index
    %15 = vector.load %arg5[%c0_10, %c0_11, %c0_12] : memref<1x16x1024xbf16, #tpu.memory_space<vmem>>, vector<1x16x1024xbf16>
    %16 = vector.shape_cast %15 : vector<1x16x1024xbf16> to vector<16x1024xbf16>
    %17 = vector.shape_cast %14 : vector<16x1024xbf16> to vector<1x16x1024xbf16>
    tpu.vector_store %arg5[%c0_10, %c0_11, %c0_12], %17 {strides = array<i32>} : memref<1x16x1024xbf16, #tpu.memory_space<vmem>>, vector<1x16x1024xbf16>,
    return
  }
  func.func @transform_0(%arg0: i32, %arg1: i32) -> (i32, i32, i32) {
    %c0_i32 = arith.constant 0 : i32
    %c0_i32_0 = arith.constant 0 : i32
    %c0_i32_1 = arith.constant 0 : i32
    return %arg0, %c0_i32, %c0_i32_0 : i32, i32, i32
  }
  func.func @transform_1(%arg0: i32, %arg1: i32) -> (i32, i32, i32) {
    %c0_i32 = arith.constant 0 : i32
    %c0_i32_0 = arith.constant 0 : i32
    return %arg0, %c0_i32, %arg1 : i32, i32, i32
  }
  func.func @transform_2(%arg0: i32, %arg1: i32) -> (i32, i32, i32) {
    %c0_i32 = arith.constant 0 : i32
    %c0_i32_0 = arith.constant 0 : i32
    %c0_i32_1 = arith.constant 0 : i32
    return %arg0, %c0_i32, %c0_i32_0 : i32, i32, i32
  }
  func.func @transform_3(%arg0: i32, %arg1: i32) -> (i32, i32, i32) {
    %c0_i32 = arith.constant 0 : i32
    %c0_i32_0 = arith.constant 0 : i32
    return %arg0, %c0_i32, %arg1 : i32, i32, i32
  }
}

module attributes {stable_mosaic.version = 11 : i64} {
  func.func @_gemm_bias_act_kernel(%arg0: i32, %arg1: i32, %arg2: memref<1x8x400xbf16, #tpu.memory_space<vmem>>, %arg3: memref<1x400x1024xbf16, #tpu.memory_space<vmem>>, %arg4: memref<1x8x1xf32, #tpu.memory_space<vmem>>, %arg5: memref<1x8x1024xf32, #tpu.memory_space<vmem>>) attributes {dimension_semantics = [#tpu.dimension_semantics<parallel>, #tpu.dimension_semantics<parallel>], iteration_bounds = array<i64: 2, 32>, scalar_prefetch = 0 : i64, scratch_operands = 0 : i64, tpu.core_type = #tpu.core_type<tc>, window_params = [{transform_indices = @transform_0, window_bounds = array<i64: 1, 8, 400>}, {transform_indices = @transform_1, window_bounds = array<i64: 1, 400, 1024>}, {transform_indices = @transform_2, window_bounds = array<i64: 1, 8, 1>}, {transform_indices = @transform_3, window_bounds = array<i64: 1, 8, 1024>}]} {
    %c0 = arith.constant 0 : index
    %c0_0 = arith.constant 0 : index
    %c0_1 = arith.constant 0 : index
    %0 = vector.load %arg2[%c0, %c0_0, %c0_1] : memref<1x8x400xbf16, #tpu.memory_space<vmem>>, vector<1x8x400xbf16>
    %1 = vector.shape_cast %0 : vector<1x8x400xbf16> to vector<8x400xbf16>
    %c0_2 = arith.constant 0 : index
    %c0_3 = arith.constant 0 : index
    %c0_4 = arith.constant 0 : index
    %2 = vector.load %arg3[%c0_2, %c0_3, %c0_4] : memref<1x400x1024xbf16, #tpu.memory_space<vmem>>, vector<1x400x1024xbf16>
    %3 = vector.shape_cast %2 : vector<1x400x1024xbf16> to vector<400x1024xbf16>
    %cst = arith.constant dense<0.000000e+00> : vector<8x1024xf32>
    %4 = tpu.matmul %1, %3, %cst {dimension_numbers = #tpu.dot_dimension_numbers<[1], [0], [0], [1], [0, 0, 1, 1], [], []>} : vector<8x400xbf16>, vector<400x1024xbf16>, vector<8x1024xf32> -> vector<8x1024xf32>
    %c0_5 = arith.constant 0 : index
    %c0_6 = arith.constant 0 : index
    %c0_7 = arith.constant 0 : index
    %5 = vector.load %arg4[%c0_5, %c0_6, %c0_7] : memref<1x8x1xf32, #tpu.memory_space<vmem>>, vector<1x8x1xf32>
    %6 = vector.shape_cast %5 : vector<1x8x1xf32> to vector<8x1xf32>
    %7 = vector.broadcast %6 : vector<8x1xf32> to vector<8x1024xf32>
    %8 = arith.addf %4, %7 : vector<8x1024xf32>
    %c0_8 = arith.constant 0 : index
    %c0_9 = arith.constant 0 : index
    %c0_10 = arith.constant 0 : index
    %9 = vector.load %arg5[%c0_8, %c0_9, %c0_10] : memref<1x8x1024xf32, #tpu.memory_space<vmem>>, vector<1x8x1024xf32>
    %10 = vector.shape_cast %9 : vector<1x8x1024xf32> to vector<8x1024xf32>
    %11 = vector.shape_cast %8 : vector<8x1024xf32> to vector<1x8x1024xf32>
    tpu.vector_store %arg5[%c0_8, %c0_9, %c0_10], %11 {strides = array<i32>} : memref<1x8x1024xf32, #tpu.memory_space<vmem>>, vector<1x8x1024xf32>,
    return
  }
  func.func @transform_0(%arg0: i32, %arg1: i32) -> (i32, i32, i32) {
    %c0_i32 = arith.constant 0 : i32
    %c0_i32_0 = arith.constant 0 : i32
    %c0_i32_1 = arith.constant 0 : i32
    return %arg0, %c0_i32, %c0_i32_0 : i32, i32, i32
  }
  func.func @transform_1(%arg0: i32, %arg1: i32) -> (i32, i32, i32) {
    %c0_i32 = arith.constant 0 : i32
    %c0_i32_0 = arith.constant 0 : i32
    return %arg0, %c0_i32, %arg1 : i32, i32, i32
  }
  func.func @transform_2(%arg0: i32, %arg1: i32) -> (i32, i32, i32) {
    %c0_i32 = arith.constant 0 : i32
    %c0_i32_0 = arith.constant 0 : i32
    %c0_i32_1 = arith.constant 0 : i32
    return %arg0, %c0_i32, %c0_i32_0 : i32, i32, i32
  }
  func.func @transform_3(%arg0: i32, %arg1: i32) -> (i32, i32, i32) {
    %c0_i32 = arith.constant 0 : i32
    %c0_i32_0 = arith.constant 0 : i32
    return %arg0, %c0_i32, %arg1 : i32, i32, i32
  }
}

</mosaic_0001>

<llo_original>
// kernel: dec_forward.4
$region0: #{dec_forward.4}
  #allocation0 [shape = 'u32[]', space=smem, size = 0x4, offset = 0x4, fixed_abs, tag = 'smem constant byte address 0x4 - core index']
  #allocation1 [shape = 'u32[144,128]{1,0:T(1,128)}', space=vmem, size = 0x12000, scoped, tag = 'internal scratch']
  %s0 = inlined_call_operand.hbm [shape: bf16[2,16,100], index: 0, kind: input, shape index: {}]
  %s1 = inlined_call_operand.vmem [shape: bf16[2,100,512], index: 1, kind: input, shape index: {}]
  %s2 = inlined_call_operand.vmem [shape: f32[2,16,1], index: 2, kind: input, shape index: {}]
  %s3 = inlined_call_operand.vmem [shape: bf16[2,16,512], index: 3, kind: output, shape index: {}]
  %s4 = sld [smem:[#allocation0]]
  $region49: #{dec_forward.4} parent=0
    _
  %s6 = ssub.s32 1, %s4
  %s7 = scalar_select 0, %s6, %s4
  $region1: #{dec_forward.4} parent=0
    #allocation2 [shape = 'u8[8192]{0}', space=vmem, size = 0x2000, scoped, tag = 'input window, operand 0']
    #allocation3 [shape = 's32[2]{0}', space=sflag, size = 0x8, scoped, tag = 'scoped memory for dec_forward.4']
    %8 = vsyncpa [#allocation3], 0
    %s9 = scalar_lea.sflag [#allocation3], 1
    %10 = vsyncpa %s9, 0
    loop: start=0, step=1, limit=4
    $region2: #{dec_forward.4} parent=1 // loop_pre_header
      _
    $region3: #{dec_forward.4} parent=1 // loop_header
      %s12 = sphi 0, %s16
      %p13 = scmp.ge.s32.totalorder %s12, 4
      %s19 = sphi 0, %s31
      %s20 = sphi 0, %s27
      %s21 = sphi 0, %s19
      %s22 = sphi 0, %s20
      %s23 = sphi 0, %s21
      %s24 = sphi 0, %s22
      %s34 = sphi 0, %s36
      %s37 = sphi 0, %s34
      %s38 = sphi 0, %s37
      %s54 = sphi 0, %s38
      %s62 = sphi 0, %s64
      %s65 = sphi 0, %s62
      %s66 = sphi 0, %s65
      %s82 = sphi 0, %s66
      %s88 = sphi 0, %s90
      %s91 = sphi 0, %s88
      %s92 = sphi 0, %s91
      %s108 = sphi 0, %s92
      %s116 = sphi 0, %s118
      %s119 = sphi 0, %s116
      %s120 = sphi 0, %s119
      %s136 = sphi 0, %s120
    $region4: #{dec_forward.4} parent=1 // loop_header_branch
      %15 = sbr.rel (%p13) target = $region8
    $region5: #{dec_forward.4} parent=1 // loop_body
      %s17 = ssub.s32 %s12, 1
      %s18 = ssub.s32 %s12, 2
      %s25 = sadd.s32 1, %s20
      %p26 = scmp.ge.s32.totalorder %s25, 1
      %s27 = scalar_select %p26, 0, %s25
      %s28 = sadd.s32 1, %s19
      %s29 = scalar_select %p26, %s28, %s19
      %p30 = scmp.ge.s32.totalorder %s29, 2
      %s31 = scalar_select %p30, 0, %s29
      %s32 = ssub.s32 %s19, %s31
      %p33 = scmp.eq.s32.totalorder %s32, 0
      %s35 = sadd.s32 %s34, 1
      %s36 = scalar_select %p33, %s34, %s35
      %p39 = pneg %p33
      %p40 = scmp.eq.s32.totalorder %s12, 1
      %p41 = por %p39, %p40
      %p42 = scmp.ne.s32.totalorder %s34, %s37
      %p43 = scmp.eq.s32.totalorder %s12, 0
      %p44 = por %p42, %p43
      %p45 = scmp.ne.s32.totalorder %s34, %s37
      %p46 = scmp.eq.s32.totalorder %s17, 1
      %p47 = por %p45, %p46
      %p48 = scmp.ne.s32.totalorder %s37, %s38
      %p49 = scmp.eq.s32.totalorder %s17, 0
      %p50 = por %p48, %p49
      %p51 = scmp.ne.s32.totalorder %s37, %s38
      %p52 = scmp.eq.s32.totalorder %s18, 1
      %p53 = por %p51, %p52
      %p55 = scmp.ne.s32.totalorder %s38, %s54
      %p56 = scmp.eq.s32.totalorder %s18, 0
      %p57 = por %p55, %p56
      %s58 = ssub.s32 %s19, %s31
      %s59 = ssub.s32 %s20, %s27
      %s60 = sor.u32 %s58, %s59
      %p61 = scmp.eq.s32.totalorder %s60, 0
      %s63 = sadd.s32 %s62, 1
      %s64 = scalar_select %p61, %s62, %s63
      %p67 = pneg %p61
      %p68 = scmp.eq.s32.totalorder %s12, 1
      %p69 = por %p67, %p68
      %p70 = scmp.ne.s32.totalorder %s62, %s65
      %p71 = scmp.eq.s32.totalorder %s12, 0
      %p72 = por %p70, %p71
      %p73 = scmp.ne.s32.totalorder %s62, %s65
      %p74 = scmp.eq.s32.totalorder %s17, 1
      %p75 = por %p73, %p74
      %p76 = scmp.ne.s32.totalorder %s65, %s66
      %p77 = scmp.eq.s32.totalorder %s17, 0
      %p78 = por %p76, %p77
      %p79 = scmp.ne.s32.totalorder %s65, %s66
      %p80 = scmp.eq.s32.totalorder %s18, 1
      %p81 = por %p79, %p80
      %p83 = scmp.ne.s32.totalorder %s66, %s82
      %p84 = scmp.eq.s32.totalorder %s18, 0
      %p85 = por %p83, %p84
      %s86 = ssub.s32 %s19, %s31
      %p87 = scmp.eq.s32.totalorder %s86, 0
      %s89 = sadd.s32 %s88, 1
      %s90 = scalar_select %p87, %s88, %s89
      %p93 = pneg %p87
      %p94 = scmp.eq.s32.totalorder %s12, 1
      %p95 = por %p93, %p94
      %p96 = scmp.ne.s32.totalorder %s88, %s91
      %p97 = scmp.eq.s32.totalorder %s12, 0
      %p98 = por %p96, %p97
      %p99 = scmp.ne.s32.totalorder %s88, %s91
      %p100 = scmp.eq.s32.totalorder %s17, 1
      %p101 = por %p99, %p100
      %p102 = scmp.ne.s32.totalorder %s91, %s92
      %p103 = scmp.eq.s32.totalorder %s17, 0
      %p104 = por %p102, %p103
      %p105 = scmp.ne.s32.totalorder %s91, %s92
      %p106 = scmp.eq.s32.totalorder %s18, 1
      %p107 = por %p105, %p106
      %p109 = scmp.ne.s32.totalorder %s92, %s108
      %p110 = scmp.eq.s32.totalorder %s18, 0
      %p111 = por %p109, %p110
      %s112 = ssub.s32 %s19, %s31
      %s113 = ssub.s32 %s20, %s27
      %s114 = sor.u32 %s112, %s113
      %p115 = scmp.eq.s32.totalorder %s114, 0
      %s117 = sadd.s32 %s116, 1
      %s118 = scalar_select %p115, %s116, %s117
      %p121 = pneg %p115
      %p122 = scmp.eq.s32.totalorder %s12, 1
      %p123 = por %p121, %p122
      %p124 = scmp.ne.s32.totalorder %s116, %s119
      %p125 = scmp.eq.s32.totalorder %s12, 0
      %p126 = por %p124, %p125
      %p127 = scmp.ne.s32.totalorder %s116, %s119
      %p128 = scmp.eq.s32.totalorder %s17, 1
      %p129 = por %p127, %p128
      %p130 = scmp.ne.s32.totalorder %s119, %s120
      %p131 = scmp.eq.s32.totalorder %s17, 0
      %p132 = por %p130, %p131
      %p133 = scmp.ne.s32.totalorder %s119, %s120
      %p134 = scmp.eq.s32.totalorder %s18, 1
      %p135 = por %p133, %p134
      %p137 = scmp.ne.s32.totalorder %s120, %s136
      %p138 = scmp.eq.s32.totalorder %s18, 0
      %p139 = por %p137, %p138
      %p140 = scmp.le.s32.totalorder 1, %s12
      %p141 = scmp.lt.s32.totalorder %s12, 3
      %p142 = pnand %p140, %p141
      %p143 = pneg %p142
      // Predicated region
      $region9: #{dec_forward.4} parent=5 // pred_check
        _
      $region10: #{dec_forward.4} parent=5 // pred_check_branch
        %145 = sbr.rel (%p142) target = $region12
      $region11: #{dec_forward.4} parent=5 // pred_region
        %s146 = ssub.s32 %s12, 1
      $region12: #{dec_forward.4} parent=5 // pred_fallthru
        _
      %p147 = scmp.lt.s32.totalorder %s12, 2
      // Predicated region
      $region13: #{dec_forward.4} parent=5 // pred_check
        %p148 = pneg %p147
      $region14: #{dec_forward.4} parent=5 // pred_check_branch
        %150 = sbr.rel (%p148) target = $region16
      $region15: #{dec_forward.4} parent=5 // pred_region
        // Predicated region
        $region17: #{dec_forward.4} parent=15 // pred_check
          %p151 = pneg %p44
        $region18: #{dec_forward.4} parent=15 // pred_check_branch
          %153 = sbr.rel (%p151) target = $region20
        $region19: #{dec_forward.4} parent=15 // pred_region
          %s154 = sand.u32 %s34, 1
          %s155 = scalar_lea.sflag [#allocation3], %s154
          %s156 = sand.u32 %s34, 1
          %s157 = smul.addr %s156, 8
          %s158 = scalar_lea.vmem [#allocation2], %s157
          %s160 = ssub.s32 128, 128
          %161 = vsyncadd %s155, %s160
          %s162 = smul.addr %s19, 2
          %s163 = smul.addr %s162, 64
          %s164 = scalar_lea.hbm %s0, %s163
          %s165 = sshll.u32 %s158, 4
          %s166 = int_to_ptr.vmem [resolvable:$true] %s165
          %171 = dma.hbm_to_vmem [thread:$0]  %s164, 128, %s166, %s155, 64, 64, 4
        $region20: #{dec_forward.4} parent=15 // pred_fallthru
          _
        // Predicated region
        $region21: #{dec_forward.4} parent=15 // pred_check
          %p172 = pneg %p72
        $region22: #{dec_forward.4} parent=15 // pred_check_branch
          %174 = sbr.rel (%p172) target = $region24
        $region23: #{dec_forward.4} parent=15 // pred_region
          %s175 = smul.u32 4, %s20
          %p176 = scmp.lt.s32.totalorder %s19, 1
          %s177 = scalar_select %p176, %s19, 1
          %p178 = scmp.lt.s32.totalorder %s175, 3
          %s179 = scalar_select %p178, %s175, 3
          %s180 = smul.addr %s177, 52
          %s181 = sadd.s32 %s179, %s180
          %s182 = smul.addr %s181, 4
          %s183 = scalar_lea.vmem %s1, %s182
          %s184 = smul.u32 4, %s20
        $region24: #{dec_forward.4} parent=15 // pred_fallthru
          _
        // Predicated region
        $region25: #{dec_forward.4} parent=15 // pred_check
          %p185 = pneg %p98
        $region26: #{dec_forward.4} parent=15 // pred_check_branch
          %187 = sbr.rel (%p185) target = $region28
        $region27: #{dec_forward.4} parent=15 // pred_region
          %p188 = scmp.lt.s32.totalorder %s19, 1
          %s189 = scalar_select %p188, %s19, 1
          %s190 = smul.addr %s189, 2
          %s191 = smul.addr %s190, 8
          %s192 = scalar_lea.vmem %s2, %s191
        $region28: #{dec_forward.4} parent=15 // pred_fallthru
          _
      $region16: #{dec_forward.4} parent=5 // pred_fallthru
        _
      %p193 = scmp.le.s32.totalorder 1, %s12
      %p194 = scmp.lt.s32.totalorder %s12, 3
      %p195 = pnand %p193, %p194
      %p196 = pneg %p195
      // Predicated region
      $region29: #{dec_forward.4} parent=5 // pred_check
        _
      $region30: #{dec_forward.4} parent=5 // pred_check_branch
        %198 = sbr.rel (%p195) target = $region32
      $region31: #{dec_forward.4} parent=5 // pred_region
        %s199 = ssub.s32 %s12, 1
        %s200 = sand.u32 %s37, 1
        %s201 = scalar_lea.sflag [#allocation3], %s200
        %s202 = sand.u32 %s37, 1
        %s203 = smul.addr %s202, 8
        %s204 = scalar_lea.vmem [#allocation2], %s203
        // Predicated region
        $region33: #{dec_forward.4} parent=31 // pred_check
          %p205 = pneg %p50
        $region34: #{dec_forward.4} parent=31 // pred_check_branch
          %207 = sbr.rel (%p205) target = $region36
        $region35: #{dec_forward.4} parent=31 // pred_region
          %208 = dma.done %s201, 128
        $region36: #{dec_forward.4} parent=31 // pred_fallthru
          _
        %s209 = sand.u32 %s37, 1
        %s210 = scalar_lea.sflag [#allocation3], %s209
        %s211 = sand.u32 %s37, 1
        %s212 = smul.addr %s211, 8
        %s213 = scalar_lea.vmem [#allocation2], %s212
        %p214 = pneg %p50
        %p215 = pneg %p47
        %s216 = smul.u32 4, %s22
        %p217 = scmp.lt.s32.totalorder %s21, 1
        %s218 = scalar_select %p217, %s21, 1
        %p219 = scmp.lt.s32.totalorder %s216, 3
        %s220 = scalar_select %p219, %s216, 3
        %s221 = smul.addr %s218, 52
        %s222 = sadd.s32 %s220, %s221
        %s223 = smul.addr %s222, 4
        %s224 = scalar_lea.vmem %s1, %s223
        %p225 = pneg %p78
        %p226 = pneg %p75
        %p227 = scmp.lt.s32.totalorder %s21, 1
        %s228 = scalar_select %p227, %s21, 1
        %s229 = smul.addr %s228, 2
        %s230 = smul.addr %s229, 8
        %s231 = scalar_lea.vmem %s2, %s230
        %p232 = pneg %p104
        %p233 = pneg %p101
        %p234 = pneg %p132
        %p235 = pneg %p129
        %s236 = smul.u32 4, %s22
        %p237 = scmp.lt.s32.totalorder %s21, 1
        %s238 = scalar_select %p237, %s21, 1
        %p239 = scmp.lt.s32.totalorder %s236, 3
        %s240 = scalar_select %p239, %s236, 3
        %s241 = smul.addr %s238, 8
        %s242 = sadd.s32 %s240, %s241
        %s243 = smul.addr %s242, 4
        %s244 = scalar_lea.vmem %s3, %s243
        %s245 = smul.u32 4, %s22
        %p246 = scmp.lt.s32.totalorder %s21, 1
        %s247 = scalar_select %p246, %s21, 1
        %p248 = scmp.lt.s32.totalorder %s245, 3
        %s249 = scalar_select %p248, %s245, 3
        %s250 = smul.addr %s247, 52
        %s251 = sadd.s32 %s249, %s250
        %s252 = smul.addr %s251, 4
        %s253 = scalar_lea.vmem %s1, %s252
        %s254 = smul.u32 4, %s22
        %p255 = scmp.lt.s32.totalorder %s21, 1
        %s256 = scalar_select %p255, %s21, 1
        %s257 = smul.addr %s256, 2
        %s258 = smul.addr %s257, 8
        %s259 = scalar_lea.vmem %s2, %s258
        %s260 = smul.u32 4, %s22
        %p261 = scmp.lt.s32.totalorder %s21, 1
        %s262 = scalar_select %p261, %s21, 1
        %p263 = scmp.lt.s32.totalorder %s260, 3
        %s264 = scalar_select %p263, %s260, 3
        %s265 = smul.addr %s262, 8
        %s266 = sadd.s32 %s264, %s265
        %s267 = smul.addr %s266, 4
        %s268 = scalar_lea.vmem %s3, %s267
        %s269 = smul.u32 4, %s22
        %v271 = vld [vmem:[%s204] sm:$0xf]
        %v272 = vld [vmem:[%s204 + $0x4] sm:$0xf]
        %v273 = vld [vmem:[%s253] sm:$0xff]
        %v274 = vld [vmem:[%s253 + $0x8] sm:$0xff]
        %v275 = vld [vmem:[%s253 + $0x10] sm:$0xff]
        %v276 = vld [vmem:[%s253 + $0x18] sm:$0xff]
        %v277 = vld [vmem:[%s253 + $0x20] sm:$0xff]
        %v278 = vld [vmem:[%s253 + $0x28] sm:$0xff]
        %v279 = vld [vmem:[%s253 + $0x30] sm:$0xff]
        %v280 = vld [vmem:[%s253 + $0x38] sm:$0xff]
        %v281 = vld [vmem:[%s253 + $0x40] sm:$0xff]
        %v282 = vld [vmem:[%s253 + $0x48] sm:$0xff]
        %v283 = vld [vmem:[%s253 + $0x50] sm:$0xff]
        %v284 = vld [vmem:[%s253 + $0x58] sm:$0xff]
        %v285 = vld [vmem:[%s253 + $0x60] sm:$0xff]
        %v286 = vld [vmem:[%s253 + $0x68] sm:$0xff]
        %v287 = vld [vmem:[%s253 + $0x70] sm:$0xff]
        %v288 = vld [vmem:[%s253 + $0x78] sm:$0xff]
        %v289 = vld [vmem:[%s253 + $0x80] sm:$0xff]
        %v290 = vld [vmem:[%s253 + $0x88] sm:$0xff]
        %v291 = vld [vmem:[%s253 + $0x90] sm:$0xff]
        %v292 = vld [vmem:[%s253 + $0x98] sm:$0xff]
        %v293 = vld [vmem:[%s253 + $0xa0] sm:$0xff]
        %v294 = vld [vmem:[%s253 + $0xa8] sm:$0xff]
        %v295 = vld [vmem:[%s253 + $0xb0] sm:$0xff]
        %v296 = vld [vmem:[%s253 + $0xb8] sm:$0xff]
        %v297 = vld [vmem:[%s253 + $0xc0] sm:$0x33]
        %v298 = vld [vmem:[%s253 + $0xc8] sm:$0x33]
        %v299 = vld [vmem:[%s259] sm:$0xff]
        %v300 = vld [vmem:[%s259 + $0x8] sm:$0xff]
        %302 = vset.pattern.permute.xlu0 0
        %303 = vperm.xlu0 %302, %v299
        %v304 = vpop.permute.xlu0 %303
        %307 = vset.pattern.permute.xlu0 0
        %308 = vperm.xlu0 %307, %v300
        %v309 = vpop.permute.xlu0 %308
        %v313 = vunpack.c.l.b16 %v271
        %v314 = vunpack.c.l.b16 %v272
        %v315 = vpack.c.b16 %v314, %v313
        %v342 = vunpack.c.l.b16 %v273
        %v343 = vunpack.c.h.b16 %v273
        %v344 = vunpack.c.l.b16 %v274
        %v345 = vunpack.c.h.b16 %v274
        %v346 = vunpack.c.l.b16 %v275
        %v347 = vunpack.c.h.b16 %v275
        %v348 = vunpack.c.l.b16 %v276
        %v349 = vunpack.c.h.b16 %v276
        %v350 = vunpack.c.l.b16 %v277
        %v351 = vunpack.c.h.b16 %v277
        %v352 = vunpack.c.l.b16 %v278
        %v353 = vunpack.c.h.b16 %v278
        %v354 = vunpack.c.l.b16 %v279
        %v355 = vunpack.c.h.b16 %v279
        %v356 = vunpack.c.l.b16 %v280
        %v357 = vunpack.c.h.b16 %v280
        %v358 = vunpack.c.l.b16 %v281
        %v359 = vunpack.c.h.b16 %v281
        %v360 = vunpack.c.l.b16 %v282
        %v361 = vunpack.c.h.b16 %v282
        %v362 = vunpack.c.l.b16 %v283
        %v363 = vunpack.c.h.b16 %v283
        %v364 = vunpack.c.l.b16 %v284
        %v365 = vunpack.c.h.b16 %v284
        %v366 = vunpack.c.l.b16 %v285
        %v367 = vunpack.c.h.b16 %v285
        %v368 = vunpack.c.l.b16 %v286
        %v369 = vunpack.c.h.b16 %v286
        %v370 = vunpack.c.l.b16 %v287
        %v371 = vunpack.c.h.b16 %v287
        %v372 = vunpack.c.l.b16 %v288
        %v373 = vunpack.c.h.b16 %v288
        %v374 = vunpack.c.l.b16 %v289
        %v375 = vunpack.c.h.b16 %v289
        %v376 = vunpack.c.l.b16 %v290
        %v377 = vunpack.c.h.b16 %v290
        %v378 = vunpack.c.l.b16 %v291
        %v379 = vunpack.c.h.b16 %v291
        %v380 = vunpack.c.l.b16 %v292
        %v381 = vunpack.c.h.b16 %v292
        %v382 = vunpack.c.l.b16 %v293
        %v383 = vunpack.c.h.b16 %v293
        %v384 = vunpack.c.l.b16 %v294
        %v385 = vunpack.c.h.b16 %v294
        %v386 = vunpack.c.l.b16 %v295
        %v387 = vunpack.c.h.b16 %v295
        %v388 = vunpack.c.l.b16 %v296
        %v389 = vunpack.c.h.b16 %v296
        %v390 = vunpack.c.l.b16 %v297
        %v391 = vunpack.c.h.b16 %v297
        %v392 = vunpack.c.l.b16 %v298
        %v393 = vunpack.c.h.b16 %v298
        %v394 = vpack.c.b16 %v346, %v342
        %v395 = vpack.c.b16 %v347, %v343
        %v396 = vpack.c.b16 %v348, %v344
        %v397 = vpack.c.b16 %v349, %v345
        %v398 = vpack.c.b16 %v354, %v350
        %v399 = vpack.c.b16 %v355, %v351
        %v400 = vpack.c.b16 %v356, %v352
        %v401 = vpack.c.b16 %v357, %v353
        %v402 = vpack.c.b16 %v362, %v358
        %v403 = vpack.c.b16 %v363, %v359
        %v404 = vpack.c.b16 %v364, %v360
        %v405 = vpack.c.b16 %v365, %v361
        %v406 = vpack.c.b16 %v370, %v366
        %v407 = vpack.c.b16 %v371, %v367
        %v408 = vpack.c.b16 %v372, %v368
        %v409 = vpack.c.b16 %v373, %v369
        %v410 = vpack.c.b16 %v378, %v374
        %v411 = vpack.c.b16 %v379, %v375
        %v412 = vpack.c.b16 %v380, %v376
        %v413 = vpack.c.b16 %v381, %v377
        %v414 = vpack.c.b16 %v386, %v382
        %v415 = vpack.c.b16 %v387, %v383
        %v416 = vpack.c.b16 %v388, %v384
        %v417 = vpack.c.b16 %v389, %v385
        %v418 = vpack.c.b16 %v390, %v390
        %v419 = vpack.c.b16 %v391, %v391
        %v420 = vpack.c.b16 %v392, %v392
        %v421 = vpack.c.b16 %v393, %v393
        %vm446 = vcmask 818176
        %v448 = vsel %vm446, %v315, 0
        %vm450 = vcmask 1041408
        %v452 = vsel %vm450, %v418, 0
        %v455 = vsel %vm450, %v419, 0
        %v458 = vsel %vm450, %v420, 0
        %v461 = vsel %vm450, %v421, 0
        %463 = vmatprep.subr.bf16.mxu0 0
        %464 = vmatpush1.bf16.msra.mxu0 0
        %465 = vmatprep.subr.bf16.mxu0 %v455
        %466 = vmatpush1.bf16.msra.mxu0 %v452
        %467 = vmatprep.subr.bf16.mxu0 %v415
        %468 = vmatpush1.bf16.msra.mxu0 %v414
        %469 = vmatprep.subr.bf16.mxu0 %v411
        %470 = vmatpush1.bf16.msra.mxu0 %v410
        %471 = vmatprep.subr.bf16.mxu0 %v407
        %472 = vmatpush1.bf16.msra.mxu0 %v406
        %473 = vmatprep.subr.bf16.mxu0 %v403
        %474 = vmatpush1.bf16.msra.mxu0 %v402
        %475 = vmatprep.subr.bf16.mxu0 %v399
        %476 = vmatpush1.bf16.msra.mxu0 %v398
        %477 = vmatprep.subr.bf16.mxu0 %v395
        %478 = vmatpush1.bf16.msra.mxu0 %v394
        %479 = vmatprep.subr.bf16.mxu0 0
        %480 = vmatpush2.bf16.msra.mxu0 0
        %481 = vmatprep.subr.bf16.mxu0 0
        %482 = vmatpush2.bf16.msra.mxu0 0
        %483 = vmatprep.subr.bf16.mxu0 0
        %484 = vmatpush2.bf16.msra.mxu0 0
        %485 = vmatprep.subr.bf16.mxu0 0
        %486 = vmatpush2.bf16.msra.mxu0 0
        %487 = vmatprep.subr.bf16.mxu0 0
        %488 = vmatpush2.bf16.msra.mxu0 0
        %489 = vmatprep.subr.bf16.mxu0 0
        %490 = vmatpush2.bf16.msra.mxu0 0
        %491 = vmatprep.subr.bf16.mxu0 0
        %492 = vmatpush2.bf16.msra.mxu0 0
        %493 = vmatprep.subr.bf16.mxu0 0
        %494 = vmatpush2.bf16.msra.mxu0 0
        %495 = vmatprep.mubr.bf16.mxu0 0
        %496 = vmatmul.mubr.bf16.gmra.mxu0 %v448
        %v497 = vpop.f32.mrf.mxu0
        %v498 = vadd.f32 %v304, %v497
        %v499 = vpop.f32.mrf.mxu0
        %v500 = vadd.f32 %v304, %v499
        %v501 = vpop.f32.mrf.mxu0
        %v502 = vadd.f32 %v309, %v501
        %v503 = vpop.f32.mrf.mxu0
        %v504 = vadd.f32 %v309, %v503
        %505 = vdwg.mxu0
        %506 = vmatprep.subr.bf16.mxu0 0
        %507 = vmatpush1.bf16.msra.mxu0 0
        %508 = vmatprep.subr.bf16.mxu0 %v461
        %509 = vmatpush1.bf16.msra.mxu0 %v458
        %510 = vmatprep.subr.bf16.mxu0 %v417
        %511 = vmatpush1.bf16.msra.mxu0 %v416
        %512 = vmatprep.subr.bf16.mxu0 %v413
        %513 = vmatpush1.bf16.msra.mxu0 %v412
        %514 = vmatprep.subr.bf16.mxu0 %v409
        %515 = vmatpush1.bf16.msra.mxu0 %v408
        %516 = vmatprep.subr.bf16.mxu0 %v405
        %517 = vmatpush1.bf16.msra.mxu0 %v404
        %518 = vmatprep.subr.bf16.mxu0 %v401
        %519 = vmatpush1.bf16.msra.mxu0 %v400
        %520 = vmatprep.subr.bf16.mxu0 %v397
        %521 = vmatpush1.bf16.msra.mxu0 %v396
        %522 = vmatprep.subr.bf16.mxu0 0
        %523 = vmatpush2.bf16.msra.mxu0 0
        %524 = vmatprep.subr.bf16.mxu0 0
        %525 = vmatpush2.bf16.msra.mxu0 0
        %526 = vmatprep.subr.bf16.mxu0 0
        %527 = vmatpush2.bf16.msra.mxu0 0
        %528 = vmatprep.subr.bf16.mxu0 0
        %529 = vmatpush2.bf16.msra.mxu0 0
        %530 = vmatprep.subr.bf16.mxu0 0
        %531 = vmatpush2.bf16.msra.mxu0 0
        %532 = vmatprep.subr.bf16.mxu0 0
        %533 = vmatpush2.bf16.msra.mxu0 0
        %534 = vmatprep.subr.bf16.mxu0 0
        %535 = vmatpush2.bf16.msra.mxu0 0
        %536 = vmatprep.subr.bf16.mxu0 0
        %537 = vmatpush2.bf16.msra.mxu0 0
        %538 = vmatprep.mubr.bf16.mxu0 0
        %539 = vmatmul.mubr.bf16.gmra.mxu0 %v448
        %v540 = vpop.f32.mrf.mxu0
        %v541 = vadd.f32 %v304, %v540
        %v542 = vpop.f32.mrf.mxu0
        %v543 = vadd.f32 %v304, %v542
        %v544 = vpop.f32.mrf.mxu0
        %v545 = vadd.f32 %v309, %v544
        %v546 = vpop.f32.mrf.mxu0
        %v547 = vadd.f32 %v309, %v546
        %548 = vdwg.mxu0
        %vm549 = vcmp.gt.f32.partialorder %v498, 0.0
        %vm550 = vcmp.gt.f32.partialorder %v500, 0.0
        %vm551 = vcmp.gt.f32.partialorder %v541, 0.0
        %vm552 = vcmp.gt.f32.partialorder %v543, 0.0
        %vm553 = vcmp.gt.f32.partialorder %v502, 0.0
        %vm554 = vcmp.gt.f32.partialorder %v504, 0.0
        %vm555 = vcmp.gt.f32.partialorder %v545, 0.0
        %vm556 = vcmp.gt.f32.partialorder %v547, 0.0
        %v557 = vmul.f32 %v498, 0.01
        %v558 = vmul.f32 %v500, 0.01
        %v559 = vmul.f32 %v541, 0.01
        %v560 = vmul.f32 %v543, 0.01
        %v561 = vmul.f32 %v502, 0.01
        %v562 = vmul.f32 %v504, 0.01
        %v563 = vmul.f32 %v545, 0.01
        %v564 = vmul.f32 %v547, 0.01
        %v565 = vsel %vm549, %v498, %v557
        %v566 = vsel %vm550, %v500, %v558
        %v567 = vsel %vm551, %v541, %v559
        %v568 = vsel %vm552, %v543, %v560
        %v569 = vsel %vm553, %v502, %v561
        %v570 = vsel %vm554, %v504, %v562
        %v571 = vsel %vm555, %v545, %v563
        %v572 = vsel %vm556, %v547, %v564
        %v573 = vpack.c.bf16 %v569, %v565
        %v574 = vpack.c.bf16 %v570, %v566
        %v575 = vpack.c.bf16 %v571, %v567
        %v576 = vpack.c.bf16 %v572, %v568
        %v581 = vunpack.c.l.b16 %v573
        %v582 = vunpack.c.l.b16 %v574
        %v583 = vunpack.c.l.b16 %v575
        %v584 = vunpack.c.l.b16 %v576
        %v585 = vunpack.c.h.b16 %v573
        %v586 = vunpack.c.h.b16 %v574
        %v587 = vunpack.c.h.b16 %v575
        %v588 = vunpack.c.h.b16 %v576
        %v589 = vpack.c.b16 %v582, %v581
        %v590 = vpack.c.b16 %v584, %v583
        %v591 = vpack.c.b16 %v586, %v585
        %v592 = vpack.c.b16 %v588, %v587
        %597 = vst [vmem:[%s268] sm:$0xff] %v589
        %598 = vst [vmem:[%s268 + $0x8] sm:$0xff] %v590
        %599 = vst [vmem:[%s268 + $0x10] sm:$0xff] %v591
        %600 = vst [vmem:[%s268 + $0x18] sm:$0xff] %v592
        %s601 = smul.u32 4, %s22
        %p602 = scmp.lt.s32.totalorder %s21, 1
        %s603 = scalar_select %p602, %s21, 1
        %p604 = scmp.lt.s32.totalorder %s601, 3
        %s605 = scalar_select %p604, %s601, 3
        %s606 = smul.addr %s603, 8
        %s607 = sadd.s32 %s605, %s606
        %s608 = smul.addr %s607, 4
        %s609 = scalar_lea.vmem %s3, %s608
        // Predicated region
        $region37: #{dec_forward.4} parent=31 // pred_check
          %p610 = pneg %p129
        $region38: #{dec_forward.4} parent=31 // pred_check_branch
          %612 = sbr.rel (%p610) target = $region40
        $region39: #{dec_forward.4} parent=31 // pred_region
          %s613 = smul.u32 4, %s22
        $region40: #{dec_forward.4} parent=31 // pred_fallthru
          _
      $region32: #{dec_forward.4} parent=5 // pred_fallthru
        _
      %p614 = scmp.le.s32.totalorder 2, %s12
      // Predicated region
      $region41: #{dec_forward.4} parent=5 // pred_check
        %p615 = pneg %p614
      $region42: #{dec_forward.4} parent=5 // pred_check_branch
        %617 = sbr.rel (%p615) target = $region44
      $region43: #{dec_forward.4} parent=5 // pred_region
        %s618 = ssub.s32 %s12, 2
        // Predicated region
        $region45: #{dec_forward.4} parent=43 // pred_check
          %p619 = pneg %p135
        $region46: #{dec_forward.4} parent=43 // pred_check_branch
          %621 = sbr.rel (%p619) target = $region48
        $region47: #{dec_forward.4} parent=43 // pred_region
          %s622 = smul.u32 4, %s24
          %p623 = scmp.lt.s32.totalorder %s23, 1
          %s624 = scalar_select %p623, %s23, 1
          %p625 = scmp.lt.s32.totalorder %s622, 3
          %s626 = scalar_select %p625, %s622, 3
          %s627 = smul.addr %s624, 8
          %s628 = sadd.s32 %s626, %s627
          %s629 = smul.addr %s628, 4
          %s630 = scalar_lea.vmem %s3, %s629
        $region48: #{dec_forward.4} parent=43 // pred_fallthru
          _
      $region44: #{dec_forward.4} parent=5 // pred_fallthru
        _
    $region6: #{dec_forward.4} parent=1 // loop_footer
      %s16 = sadd.s32 1, %s12
    $region7: #{dec_forward.4} parent=1 // loop_footer_branch
      %11 = sbr.rel target = $region3
    $region8: #{dec_forward.4} parent=1 // loop_exit
      _
    %631 = vsyncpa [#allocation3], 1
    %s632 = scalar_lea.sflag [#allocation3], 1
    %633 = vsyncpa %s632, 1

// kernel: dec_forward.5
$region0: #{dec_forward.5}
  #allocation0 [shape = 'u32[]', space=smem, size = 0x4, offset = 0x4, fixed_abs, tag = 'smem constant byte address 0x4 - core index']
  #allocation1 [shape = 'u32[144,128]{1,0:T(1,128)}', space=vmem, size = 0x12000, scoped, tag = 'internal scratch']
  %s0 = inlined_call_operand.vmem [shape: bf16[2,16,400], index: 0, kind: input, shape index: {}]
  %s1 = inlined_call_operand.vmem [shape: bf16[2,400,2048], index: 1, kind: input, shape index: {}]
  %s2 = inlined_call_operand.vmem [shape: f32[2,16,1], index: 2, kind: input, shape index: {}]
  %s3 = inlined_call_operand.vmem [shape: bf16[2,16,2048], index: 3, kind: output, shape index: {}]
  %s4 = sld [smem:[#allocation0]]
  $region87: #{dec_forward.5} parent=0
    _
  %s6 = ssub.s32 1, %s4
  %s7 = scalar_select 0, %s6, %s4
  $region1: #{dec_forward.5} parent=0
    #allocation2 [shape = 'u8[1638400]{0}', space=vmem, size = 0x190000, scoped, tag = 'input window, operand 1']
    #allocation3 [shape = 'u8[65536]{0}', space=vmem, size = 0x10000, scoped, tag = 'output window, operand 0']
    loop: start=0, step=1, limit=6
    $region2: #{dec_forward.5} parent=1 // loop_pre_header
      _
    $region3: #{dec_forward.5} parent=1 // loop_header
      %s9 = sphi 0, %s13
      %p10 = scmp.ge.s32.totalorder %s9, 6
      %s16 = sphi 0, %s28
      %s17 = sphi 0, %s24
      %s18 = sphi 0, %s16
      %s19 = sphi 0, %s17
      %s20 = sphi 0, %s18
      %s21 = sphi 0, %s19
      %s31 = sphi 0, %s33
      %s34 = sphi 0, %s31
      %s35 = sphi 0, %s34
      %s51 = sphi 0, %s35
      %s59 = sphi 0, %s61
      %s62 = sphi 0, %s59
      %s63 = sphi 0, %s62
      %s79 = sphi 0, %s63
      %s85 = sphi 0, %s87
      %s88 = sphi 0, %s85
      %s89 = sphi 0, %s88
      %s105 = sphi 0, %s89
      %s113 = sphi 0, %s115
      %s116 = sphi 0, %s113
      %s117 = sphi 0, %s116
      %s133 = sphi 0, %s117
    $region4: #{dec_forward.5} parent=1 // loop_header_branch
      %12 = sbr.rel (%p10) target = $region8
    $region5: #{dec_forward.5} parent=1 // loop_body
      %s14 = ssub.s32 %s9, 1
      %s15 = ssub.s32 %s9, 2
      %s22 = sadd.s32 1, %s17
      %p23 = scmp.ge.s32.totalorder %s22, 2
      %s24 = scalar_select %p23, 0, %s22
      %s25 = sadd.s32 1, %s16
      %s26 = scalar_select %p23, %s25, %s16
      %p27 = scmp.ge.s32.totalorder %s26, 2
      %s28 = scalar_select %p27, 0, %s26
      %s29 = ssub.s32 %s16, %s28
      %p30 = scmp.eq.s32.totalorder %s29, 0
      %s32 = sadd.s32 %s31, 1
      %s33 = scalar_select %p30, %s31, %s32
      %p36 = pneg %p30
      %p37 = scmp.eq.s32.totalorder %s9, 3
      %p38 = por %p36, %p37
      %p39 = scmp.ne.s32.totalorder %s31, %s34
      %p40 = scmp.eq.s32.totalorder %s9, 0
      %p41 = por %p39, %p40
      %p42 = scmp.ne.s32.totalorder %s31, %s34
      %p43 = scmp.eq.s32.totalorder %s14, 3
      %p44 = por %p42, %p43
      %p45 = scmp.ne.s32.totalorder %s34, %s35
      %p46 = scmp.eq.s32.totalorder %s14, 0
      %p47 = por %p45, %p46
      %p48 = scmp.ne.s32.totalorder %s34, %s35
      %p49 = scmp.eq.s32.totalorder %s15, 3
      %p50 = por %p48, %p49
      %p52 = scmp.ne.s32.totalorder %s35, %s51
      %p53 = scmp.eq.s32.totalorder %s15, 0
      %p54 = por %p52, %p53
      %s55 = ssub.s32 %s16, %s28
      %s56 = ssub.s32 %s17, %s24
      %s57 = sor.u32 %s55, %s56
      %p58 = scmp.eq.s32.totalorder %s57, 0
      %s60 = sadd.s32 %s59, 1
      %s61 = scalar_select %p58, %s59, %s60
      %p64 = pneg %p58
      %p65 = scmp.eq.s32.totalorder %s9, 3
      %p66 = por %p64, %p65
      %p67 = scmp.ne.s32.totalorder %s59, %s62
      %p68 = scmp.eq.s32.totalorder %s9, 0
      %p69 = por %p67, %p68
      %p70 = scmp.ne.s32.totalorder %s59, %s62
      %p71 = scmp.eq.s32.totalorder %s14, 3
      %p72 = por %p70, %p71
      %p73 = scmp.ne.s32.totalorder %s62, %s63
      %p74 = scmp.eq.s32.totalorder %s14, 0
      %p75 = por %p73, %p74
      %p76 = scmp.ne.s32.totalorder %s62, %s63
      %p77 = scmp.eq.s32.totalorder %s15, 3
      %p78 = por %p76, %p77
      %p80 = scmp.ne.s32.totalorder %s63, %s79
      %p81 = scmp.eq.s32.totalorder %s15, 0
      %p82 = por %p80, %p81
      %s83 = ssub.s32 %s16, %s28
      %p84 = scmp.eq.s32.totalorder %s83, 0
      %s86 = sadd.s32 %s85, 1
      %s87 = scalar_select %p84, %s85, %s86
      %p90 = pneg %p84
      %p91 = scmp.eq.s32.totalorder %s9, 3
      %p92 = por %p90, %p91
      %p93 = scmp.ne.s32.totalorder %s85, %s88
      %p94 = scmp.eq.s32.totalorder %s9, 0
      %p95 = por %p93, %p94
      %p96 = scmp.ne.s32.totalorder %s85, %s88
      %p97 = scmp.eq.s32.totalorder %s14, 3
      %p98 = por %p96, %p97
      %p99 = scmp.ne.s32.totalorder %s88, %s89
      %p100 = scmp.eq.s32.totalorder %s14, 0
      %p101 = por %p99, %p100
      %p102 = scmp.ne.s32.totalorder %s88, %s89
      %p103 = scmp.eq.s32.totalorder %s15, 3
      %p104 = por %p102, %p103
      %p106 = scmp.ne.s32.totalorder %s89, %s105
      %p107 = scmp.eq.s32.totalorder %s15, 0
      %p108 = por %p106, %p107
      %s109 = ssub.s32 %s16, %s28
      %s110 = ssub.s32 %s17, %s24
      %s111 = sor.u32 %s109, %s110
      %p112 = scmp.eq.s32.totalorder %s111, 0
      %s114 = sadd.s32 %s113, 1
      %s115 = scalar_select %p112, %s113, %s114
      %p118 = pneg %p112
      %p119 = scmp.eq.s32.totalorder %s9, 3
      %p120 = por %p118, %p119
      %p121 = scmp.ne.s32.totalorder %s113, %s116
      %p122 = scmp.eq.s32.totalorder %s9, 0
      %p123 = por %p121, %p122
      %p124 = scmp.ne.s32.totalorder %s113, %s116
      %p125 = scmp.eq.s32.totalorder %s14, 3
      %p126 = por %p124, %p125
      %p127 = scmp.ne.s32.totalorder %s116, %s117
      %p128 = scmp.eq.s32.totalorder %s14, 0
      %p129 = por %p127, %p128
      %p130 = scmp.ne.s32.totalorder %s116, %s117
      %p131 = scmp.eq.s32.totalorder %s15, 3
      %p132 = por %p130, %p131
      %p134 = scmp.ne.s32.totalorder %s117, %s133
      %p135 = scmp.eq.s32.totalorder %s15, 0
      %p136 = por %p134, %p135
      %p137 = scmp.le.s32.totalorder 1, %s9
      %p138 = scmp.lt.s32.totalorder %s9, 5
      %p139 = pnand %p137, %p138
      %p140 = pneg %p139
      // Predicated region
      $region9: #{dec_forward.5} parent=5 // pred_check
        _
      $region10: #{dec_forward.5} parent=5 // pred_check_branch
        %142 = sbr.rel (%p139) target = $region12
      $region11: #{dec_forward.5} parent=5 // pred_region
        %s143 = ssub.s32 %s9, 1
      $region12: #{dec_forward.5} parent=5 // pred_fallthru
        _
      %p144 = scmp.lt.s32.totalorder %s9, 4
      // Predicated region
      $region13: #{dec_forward.5} parent=5 // pred_check
        %p145 = pneg %p144
      $region14: #{dec_forward.5} parent=5 // pred_check_branch
        %147 = sbr.rel (%p145) target = $region16
      $region15: #{dec_forward.5} parent=5 // pred_region
        // Predicated region
        $region17: #{dec_forward.5} parent=15 // pred_check
          %p148 = pneg %p41
        $region18: #{dec_forward.5} parent=15 // pred_check_branch
          %150 = sbr.rel (%p148) target = $region20
        $region19: #{dec_forward.5} parent=15 // pred_region
          %p151 = scmp.lt.s32.totalorder %s16, 1
          %s152 = scalar_select %p151, %s16, 1
          %s153 = smul.addr %s152, 8
          %s154 = smul.addr %s153, 4
          %s155 = scalar_lea.vmem %s0, %s154
        $region20: #{dec_forward.5} parent=15 // pred_fallthru
          _
        // Predicated region
        $region21: #{dec_forward.5} parent=15 // pred_check
          %p156 = pneg %p69
        $region22: #{dec_forward.5} parent=15 // pred_check_branch
          %158 = sbr.rel (%p156) target = $region24
        $region23: #{dec_forward.5} parent=15 // pred_region
          %s159 = sand.u32 %s59, 1
          %s160 = sand.u32 %s59, 1
          %s161 = smul.addr %s160, 1600
          %s162 = scalar_lea.vmem [#allocation2], %s161
          %s163 = smul.u32 8, %s17
          %s164 = smul.addr %s16, 800
          %s165 = sadd.s32 %s163, %s164
          %s166 = smul.addr %s165, 4
          %s167 = scalar_lea.vmem %s1, %s166
          // Predicated region
          $region25: #{dec_forward.5} parent=23 // pred_check
            _
          $region26: #{dec_forward.5} parent=23 // pred_check_branch
            %169 = sbr.rel (0) target = $region28
          $region27: #{dec_forward.5} parent=23 // pred_region
            // Predicated region
            $region29: #{dec_forward.5} parent=27 // pred_check
              _
            $region30: #{dec_forward.5} parent=27 // pred_check_branch
              %171 = sbr.rel (0) target = $region32
            $region31: #{dec_forward.5} parent=27 // pred_region
              loop: start=0, step=1, limit=1
              $region33: #{dec_forward.5} parent=31 // loop_pre_header
                _
              $region34: #{dec_forward.5} parent=31 // loop_header
                %s173 = sphi 0, %s177
                %p174 = scmp.ge.s32.totalorder %s173, 1
                %s178 = sphi %s167, %s167
                %s179 = sphi %s162, %s162
              $region35: #{dec_forward.5} parent=31 // loop_header_branch
                %176 = sbr.rel (%p174) target = $region39
              $region36: #{dec_forward.5} parent=31 // loop_body
                %v180 = vld [vmem:[%s178] sm:$0xff]
                %181 = vst [vmem:[%s179] sm:$0xff] %v180
                %v182 = vld [vmem:[%s178 + $0x8] sm:$0xff]
                %183 = vst [vmem:[%s179 + $0x8] sm:$0xff] %v182
                %v184 = vld [vmem:[%s178 + $0x10] sm:$0xff]
                %185 = vst [vmem:[%s179 + $0x10] sm:$0xff] %v184
                %v186 = vld [vmem:[%s178 + $0x18] sm:$0xff]
                %187 = vst [vmem:[%s179 + $0x18] sm:$0xff] %v186
                %v188 = vld [vmem:[%s178 + $0x40] sm:$0xff]
                %189 = vst [vmem:[%s179 + $0x20] sm:$0xff] %v188
                %v190 = vld [vmem:[%s178 + $0x48] sm:$0xff]
                %191 = vst [vmem:[%s179 + $0x28] sm:$0xff] %v190
                %v192 = vld [vmem:[%s178 + $0x50] sm:$0xff]
                %193 = vst [vmem:[%s179 + $0x30] sm:$0xff] %v192
                %v194 = vld [vmem:[%s178 + $0x58] sm:$0xff]
                %195 = vst [vmem:[%s179 + $0x38] sm:$0xff] %v194
                %v196 = vld [vmem:[%s178 + $0x80] sm:$0xff]
                %197 = vst [vmem:[%s179 + $0x40] sm:$0xff] %v196
                %v198 = vld [vmem:[%s178 + $0x88] sm:$0xff]
                %199 = vst [vmem:[%s179 + $0x48] sm:$0xff] %v198
                %v200 = vld [vmem:[%s178 + $0x90] sm:$0xff]
                %201 = vst [vmem:[%s179 + $0x50] sm:$0xff] %v200
                %v202 = vld [vmem:[%s178 + $0x98] sm:$0xff]
                %203 = vst [vmem:[%s179 + $0x58] sm:$0xff] %v202
                %v204 = vld [vmem:[%s178 + $0xc0] sm:$0xff]
                %205 = vst [vmem:[%s179 + $0x60] sm:$0xff] %v204
                %v206 = vld [vmem:[%s178 + $0xc8] sm:$0xff]
                %207 = vst [vmem:[%s179 + $0x68] sm:$0xff] %v206
                %v208 = vld [vmem:[%s178 + $0xd0] sm:$0xff]
                %209 = vst [vmem:[%s179 + $0x70] sm:$0xff] %v208
                %v210 = vld [vmem:[%s178 + $0xd8] sm:$0xff]
                %211 = vst [vmem:[%s179 + $0x78] sm:$0xff] %v210
                %v212 = vld [vmem:[%s178 + $0x100] sm:$0xff]
                %213 = vst [vmem:[%s179 + $0x80] sm:$0xff] %v212
                %v214 = vld [vmem:[%s178 + $0x108] sm:$0xff]
                %215 = vst [vmem:[%s179 + $0x88] sm:$0xff] %v214
                %v216 = vld [vmem:[%s178 + $0x110] sm:$0xff]
                %217 = vst [vmem:[%s179 + $0x90] sm:$0xff] %v216
                %v218 = vld [vmem:[%s178 + $0x118] sm:$0xff]
                %219 = vst [vmem:[%s179 + $0x98] sm:$0xff] %v218
                %v220 = vld [vmem:[%s178 + $0x140] sm:$0xff]
                %221 = vst [vmem:[%s179 + $0xa0] sm:$0xff] %v220
                %v222 = vld [vmem:[%s178 + $0x148] sm:$0xff]
                %223 = vst [vmem:[%s179 + $0xa8] sm:$0xff] %v222
                %v224 = vld [vmem:[%s178 + $0x150] sm:$0xff]
                %225 = vst [vmem:[%s179 + $0xb0] sm:$0xff] %v224
                %v226 = vld [vmem:[%s178 + $0x158] sm:$0xff]
                %227 = vst [vmem:[%s179 + $0xb8] sm:$0xff] %v226
                %v228 = vld [vmem:[%s178 + $0x180] sm:$0xff]
                %229 = vst [vmem:[%s179 + $0xc0] sm:$0xff] %v228
                %v230 = vld [vmem:[%s178 + $0x188] sm:$0xff]
                %231 = vst [vmem:[%s179 + $0xc8] sm:$0xff] %v230
                %v232 = vld [vmem:[%s178 + $0x190] sm:$0xff]
                %233 = vst [vmem:[%s179 + $0xd0] sm:$0xff] %v232
                %v234 = vld [vmem:[%s178 + $0x198] sm:$0xff]
                %235 = vst [vmem:[%s179 + $0xd8] sm:$0xff] %v234
                %v236 = vld [vmem:[%s178 + $0x1c0] sm:$0xff]
                %237 = vst [vmem:[%s179 + $0xe0] sm:$0xff] %v236
                %v238 = vld [vmem:[%s178 + $0x1c8] sm:$0xff]
                %239 = vst [vmem:[%s179 + $0xe8] sm:$0xff] %v238
                %v240 = vld [vmem:[%s178 + $0x1d0] sm:$0xff]
                %241 = vst [vmem:[%s179 + $0xf0] sm:$0xff] %v240
                %v242 = vld [vmem:[%s178 + $0x1d8] sm:$0xff]
                %243 = vst [vmem:[%s179 + $0xf8] sm:$0xff] %v242
                %v244 = vld [vmem:[%s178 + $0x200] sm:$0xff]
                %245 = vst [vmem:[%s179 + $0x100] sm:$0xff] %v244
                %v246 = vld [vmem:[%s178 + $0x208] sm:$0xff]
                %247 = vst [vmem:[%s179 + $0x108] sm:$0xff] %v246
                %v248 = vld [vmem:[%s178 + $0x210] sm:$0xff]
                %249 = vst [vmem:[%s179 + $0x110] sm:$0xff] %v248
                %v250 = vld [vmem:[%s178 + $0x218] sm:$0xff]
                %251 = vst [vmem:[%s179 + $0x118] sm:$0xff] %v250
                %v252 = vld [vmem:[%s178 + $0x240] sm:$0xff]
                %253 = vst [vmem:[%s179 + $0x120] sm:$0xff] %v252
                %v254 = vld [vmem:[%s178 + $0x248] sm:$0xff]
                %255 = vst [vmem:[%s179 + $0x128] sm:$0xff] %v254
                %v256 = vld [vmem:[%s178 + $0x250] sm:$0xff]
                %257 = vst [vmem:[%s179 + $0x130] sm:$0xff] %v256
                %v258 = vld [vmem:[%s178 + $0x258] sm:$0xff]
                %259 = vst [vmem:[%s179 + $0x138] sm:$0xff] %v258
                %v260 = vld [vmem:[%s178 + $0x280] sm:$0xff]
                %261 = vst [vmem:[%s179 + $0x140] sm:$0xff] %v260
                %v262 = vld [vmem:[%s178 + $0x288] sm:$0xff]
                %263 = vst [vmem:[%s179 + $0x148] sm:$0xff] %v262
                %v264 = vld [vmem:[%s178 + $0x290] sm:$0xff]
                %265 = vst [vmem:[%s179 + $0x150] sm:$0xff] %v264
                %v266 = vld [vmem:[%s178 + $0x298] sm:$0xff]
                %267 = vst [vmem:[%s179 + $0x158] sm:$0xff] %v266
                %v268 = vld [vmem:[%s178 + $0x2c0] sm:$0xff]
                %269 = vst [vmem:[%s179 + $0x160] sm:$0xff] %v268
                %v270 = vld [vmem:[%s178 + $0x2c8] sm:$0xff]
                %271 = vst [vmem:[%s179 + $0x168] sm:$0xff] %v270
                %v272 = vld [vmem:[%s178 + $0x2d0] sm:$0xff]
                %273 = vst [vmem:[%s179 + $0x170] sm:$0xff] %v272
                %v274 = vld [vmem:[%s178 + $0x2d8] sm:$0xff]
                %275 = vst [vmem:[%s179 + $0x178] sm:$0xff] %v274
                %v276 = vld [vmem:[%s178 + $0x300] sm:$0xff]
                %277 = vst [vmem:[%s179 + $0x180] sm:$0xff] %v276
                %v278 = vld [vmem:[%s178 + $0x308] sm:$0xff]
                %279 = vst [vmem:[%s179 + $0x188] sm:$0xff] %v278
                %v280 = vld [vmem:[%s178 + $0x310] sm:$0xff]
                %281 = vst [vmem:[%s179 + $0x190] sm:$0xff] %v280
                %v282 = vld [vmem:[%s178 + $0x318] sm:$0xff]
                %283 = vst [vmem:[%s179 + $0x198] sm:$0xff] %v282
                %v284 = vld [vmem:[%s178 + $0x340] sm:$0xff]
                %285 = vst [vmem:[%s179 + $0x1a0] sm:$0xff] %v284
                %v286 = vld [vmem:[%s178 + $0x348] sm:$0xff]
                %287 = vst [vmem:[%s179 + $0x1a8] sm:$0xff] %v286
                %v288 = vld [vmem:[%s178 + $0x350] sm:$0xff]
                %289 = vst [vmem:[%s179 + $0x1b0] sm:$0xff] %v288
                %v290 = vld [vmem:[%s178 + $0x358] sm:$0xff]
                %291 = vst [vmem:[%s179 + $0x1b8] sm:$0xff] %v290
                %v292 = vld [vmem:[%s178 + $0x380] sm:$0xff]
                %293 = vst [vmem:[%s179 + $0x1c0] sm:$0xff] %v292
                %v294 = vld [vmem:[%s178 + $0x388] sm:$0xff]
                %295 = vst [vmem:[%s179 + $0x1c8] sm:$0xff] %v294
                %v296 = vld [vmem:[%s178 + $0x390] sm:$0xff]
                %297 = vst [vmem:[%s179 + $0x1d0] sm:$0xff] %v296
                %v298 = vld [vmem:[%s178 + $0x398] sm:$0xff]
                %299 = vst [vmem:[%s179 + $0x1d8] sm:$0xff] %v298
                %v300 = vld [vmem:[%s178 + $0x3c0] sm:$0xff]
                %301 = vst [vmem:[%s179 + $0x1e0] sm:$0xff] %v300
                %v302 = vld [vmem:[%s178 + $0x3c8] sm:$0xff]
                %303 = vst [vmem:[%s179 + $0x1e8] sm:$0xff] %v302
                %v304 = vld [vmem:[%s178 + $0x3d0] sm:$0xff]
                %305 = vst [vmem:[%s179 + $0x1f0] sm:$0xff] %v304
                %v306 = vld [vmem:[%s178 + $0x3d8] sm:$0xff]
                %307 = vst [vmem:[%s179 + $0x1f8] sm:$0xff] %v306
                %v308 = vld [vmem:[%s178 + $0x400] sm:$0xff]
                %309 = vst [vmem:[%s179 + $0x200] sm:$0xff] %v308
                %v310 = vld [vmem:[%s178 + $0x408] sm:$0xff]
                %311 = vst [vmem:[%s179 + $0x208] sm:$0xff] %v310
                %v312 = vld [vmem:[%s178 + $0x410] sm:$0xff]
                %313 = vst [vmem:[%s179 + $0x210] sm:$0xff] %v312
                %v314 = vld [vmem:[%s178 + $0x418] sm:$0xff]
                %315 = vst [vmem:[%s179 + $0x218] sm:$0xff] %v314
                %v316 = vld [vmem:[%s178 + $0x440] sm:$0xff]
                %317 = vst [vmem:[%s179 + $0x220] sm:$0xff] %v316
                %v318 = vld [vmem:[%s178 + $0x448] sm:$0xff]
                %319 = vst [vmem:[%s179 + $0x228] sm:$0xff] %v318
                %v320 = vld [vmem:[%s178 + $0x450] sm:$0xff]
                %321 = vst [vmem:[%s179 + $0x230] sm:$0xff] %v320
                %v322 = vld [vmem:[%s178 + $0x458] sm:$0xff]
                %323 = vst [vmem:[%s179 + $0x238] sm:$0xff] %v322
                %v324 = vld [vmem:[%s178 + $0x480] sm:$0xff]
                %325 = vst [vmem:[%s179 + $0x240] sm:$0xff] %v324
                %v326 = vld [vmem:[%s178 + $0x488] sm:$0xff]
                %327 = vst [vmem:[%s179 + $0x248] sm:$0xff] %v326
                %v328 = vld [vmem:[%s178 + $0x490] sm:$0xff]
                %329 = vst [vmem:[%s179 + $0x250] sm:$0xff] %v328
                %v330 = vld [vmem:[%s178 + $0x498] sm:$0xff]
                %331 = vst [vmem:[%s179 + $0x258] sm:$0xff] %v330
                %v332 = vld [vmem:[%s178 + $0x4c0] sm:$0xff]
                %333 = vst [vmem:[%s179 + $0x260] sm:$0xff] %v332
                %v334 = vld [vmem:[%s178 + $0x4c8] sm:$0xff]
                %335 = vst [vmem:[%s179 + $0x268] sm:$0xff] %v334
                %v336 = vld [vmem:[%s178 + $0x4d0] sm:$0xff]
                %337 = vst [vmem:[%s179 + $0x270] sm:$0xff] %v336
                %v338 = vld [vmem:[%s178 + $0x4d8] sm:$0xff]
                %339 = vst [vmem:[%s179 + $0x278] sm:$0xff] %v338
                %v340 = vld [vmem:[%s178 + $0x500] sm:$0xff]
                %341 = vst [vmem:[%s179 + $0x280] sm:$0xff] %v340
                %v342 = vld [vmem:[%s178 + $0x508] sm:$0xff]
                %343 = vst [vmem:[%s179 + $0x288] sm:$0xff] %v342
                %v344 = vld [vmem:[%s178 + $0x510] sm:$0xff]
                %345 = vst [vmem:[%s179 + $0x290] sm:$0xff] %v344
                %v346 = vld [vmem:[%s178 + $0x518] sm:$0xff]
                %347 = vst [vmem:[%s179 + $0x298] sm:$0xff] %v346
                %v348 = vld [vmem:[%s178 + $0x540] sm:$0xff]
                %349 = vst [vmem:[%s179 + $0x2a0] sm:$0xff] %v348
                %v350 = vld [vmem:[%s178 + $0x548] sm:$0xff]
                %351 = vst [vmem:[%s179 + $0x2a8] sm:$0xff] %v350
                %v352 = vld [vmem:[%s178 + $0x550] sm:$0xff]
                %353 = vst [vmem:[%s179 + $0x2b0] sm:$0xff] %v352
                %v354 = vld [vmem:[%s178 + $0x558] sm:$0xff]
                %355 = vst [vmem:[%s179 + $0x2b8] sm:$0xff] %v354
                %v356 = vld [vmem:[%s178 + $0x580] sm:$0xff]
                %357 = vst [vmem:[%s179 + $0x2c0] sm:$0xff] %v356
                %v358 = vld [vmem:[%s178 + $0x588] sm:$0xff]
                %359 = vst [vmem:[%s179 + $0x2c8] sm:$0xff] %v358
                %v360 = vld [vmem:[%s178 + $0x590] sm:$0xff]
                %361 = vst [vmem:[%s179 + $0x2d0] sm:$0xff] %v360
                %v362 = vld [vmem:[%s178 + $0x598] sm:$0xff]
                %363 = vst [vmem:[%s179 + $0x2d8] sm:$0xff] %v362
                %v364 = vld [vmem:[%s178 + $0x5c0] sm:$0xff]
                %365 = vst [vmem:[%s179 + $0x2e0] sm:$0xff] %v364
                %v366 = vld [vmem:[%s178 + $0x5c8] sm:$0xff]
                %367 = vst [vmem:[%s179 + $0x2e8] sm:$0xff] %v366
                %v368 = vld [vmem:[%s178 + $0x5d0] sm:$0xff]
                %369 = vst [vmem:[%s179 + $0x2f0] sm:$0xff] %v368
                %v370 = vld [vmem:[%s178 + $0x5d8] sm:$0xff]
                %371 = vst [vmem:[%s179 + $0x2f8] sm:$0xff] %v370
                %v372 = vld [vmem:[%s178 + $0x600] sm:$0xff]
                %373 = vst [vmem:[%s179 + $0x300] sm:$0xff] %v372
                %v374 = vld [vmem:[%s178 + $0x608] sm:$0xff]
                %375 = vst [vmem:[%s179 + $0x308] sm:$0xff] %v374
                %v376 = vld [vmem:[%s178 + $0x610] sm:$0xff]
                %377 = vst [vmem:[%s179 + $0x310] sm:$0xff] %v376
                %v378 = vld [vmem:[%s178 + $0x618] sm:$0xff]
                %379 = vst [vmem:[%s179 + $0x318] sm:$0xff] %v378
                %v380 = vld [vmem:[%s178 + $0x640] sm:$0xff]
                %381 = vst [vmem:[%s179 + $0x320] sm:$0xff] %v380
                %v382 = vld [vmem:[%s178 + $0x648] sm:$0xff]
                %383 = vst [vmem:[%s179 + $0x328] sm:$0xff] %v382
                %v384 = vld [vmem:[%s178 + $0x650] sm:$0xff]
                %385 = vst [vmem:[%s179 + $0x330] sm:$0xff] %v384
                %v386 = vld [vmem:[%s178 + $0x658] sm:$0xff]
                %387 = vst [vmem:[%s179 + $0x338] sm:$0xff] %v386
                %v388 = vld [vmem:[%s178 + $0x680] sm:$0xff]
                %389 = vst [vmem:[%s179 + $0x340] sm:$0xff] %v388
                %v390 = vld [vmem:[%s178 + $0x688] sm:$0xff]
                %391 = vst [vmem:[%s179 + $0x348] sm:$0xff] %v390
                %v392 = vld [vmem:[%s178 + $0x690] sm:$0xff]
                %393 = vst [vmem:[%s179 + $0x350] sm:$0xff] %v392
                %v394 = vld [vmem:[%s178 + $0x698] sm:$0xff]
                %395 = vst [vmem:[%s179 + $0x358] sm:$0xff] %v394
                %v396 = vld [vmem:[%s178 + $0x6c0] sm:$0xff]
                %397 = vst [vmem:[%s179 + $0x360] sm:$0xff] %v396
                %v398 = vld [vmem:[%s178 + $0x6c8] sm:$0xff]
                %399 = vst [vmem:[%s179 + $0x368] sm:$0xff] %v398
                %v400 = vld [vmem:[%s178 + $0x6d0] sm:$0xff]
                %401 = vst [vmem:[%s179 + $0x370] sm:$0xff] %v400
                %v402 = vld [vmem:[%s178 + $0x6d8] sm:$0xff]
                %403 = vst [vmem:[%s179 + $0x378] sm:$0xff] %v402
                %v404 = vld [vmem:[%s178 + $0x700] sm:$0xff]
                %405 = vst [vmem:[%s179 + $0x380] sm:$0xff] %v404
                %v406 = vld [vmem:[%s178 + $0x708] sm:$0xff]
                %407 = vst [vmem:[%s179 + $0x388] sm:$0xff] %v406
                %v408 = vld [vmem:[%s178 + $0x710] sm:$0xff]
                %409 = vst [vmem:[%s179 + $0x390] sm:$0xff] %v408
                %v410 = vld [vmem:[%s178 + $0x718] sm:$0xff]
                %411 = vst [vmem:[%s179 + $0x398] sm:$0xff] %v410
                %v412 = vld [vmem:[%s178 + $0x740] sm:$0xff]
                %413 = vst [vmem:[%s179 + $0x3a0] sm:$0xff] %v412
                %v414 = vld [vmem:[%s178 + $0x748] sm:$0xff]
                %415 = vst [vmem:[%s179 + $0x3a8] sm:$0xff] %v414
                %v416 = vld [vmem:[%s178 + $0x750] sm:$0xff]
                %417 = vst [vmem:[%s179 + $0x3b0] sm:$0xff] %v416
                %v418 = vld [vmem:[%s178 + $0x758] sm:$0xff]
                %419 = vst [vmem:[%s179 + $0x3b8] sm:$0xff] %v418
                %v420 = vld [vmem:[%s178 + $0x780] sm:$0xff]
                %421 = vst [vmem:[%s179 + $0x3c0] sm:$0xff] %v420
                %v422 = vld [vmem:[%s178 + $0x788] sm:$0xff]
                %423 = vst [vmem:[%s179 + $0x3c8] sm:$0xff] %v422
                %v424 = vld [vmem:[%s178 + $0x790] sm:$0xff]
                %425 = vst [vmem:[%s179 + $0x3d0] sm:$0xff] %v424
                %v426 = vld [vmem:[%s178 + $0x798] sm:$0xff]
                %427 = vst [vmem:[%s179 + $0x3d8] sm:$0xff] %v426
                %v428 = vld [vmem:[%s178 + $0x7c0] sm:$0xff]
                %429 = vst [vmem:[%s179 + $0x3e0] sm:$0xff] %v428
                %v430 = vld [vmem:[%s178 + $0x7c8] sm:$0xff]
                %431 = vst [vmem:[%s179 + $0x3e8] sm:$0xff] %v430
                %v432 = vld [vmem:[%s178 + $0x7d0] sm:$0xff]
                %433 = vst [vmem:[%s179 + $0x3f0] sm:$0xff] %v432
                %v434 = vld [vmem:[%s178 + $0x7d8] sm:$0xff]
                %435 = vst [vmem:[%s179 + $0x3f8] sm:$0xff] %v434
                %v436 = vld [vmem:[%s178 + $0x800] sm:$0xff]
                %437 = vst [vmem:[%s179 + $0x400] sm:$0xff] %v436
                %v438 = vld [vmem:[%s178 + $0x808] sm:$0xff]
                %439 = vst [vmem:[%s179 + $0x408] sm:$0xff] %v438
                %v440 = vld [vmem:[%s178 + $0x810] sm:$0xff]
                %441 = vst [vmem:[%s179 + $0x410] sm:$0xff] %v440
                %v442 = vld [vmem:[%s178 + $0x818] sm:$0xff]
                %443 = vst [vmem:[%s179 + $0x418] sm:$0xff] %v442
                %v444 = vld [vmem:[%s178 + $0x840] sm:$0xff]
                %445 = vst [vmem:[%s179 + $0x420] sm:$0xff] %v444
                %v446 = vld [vmem:[%s178 + $0x848] sm:$0xff]
                %447 = vst [vmem:[%s179 + $0x428] sm:$0xff] %v446
                %v448 = vld [vmem:[%s178 + $0x850] sm:$0xff]
                %449 = vst [vmem:[%s179 + $0x430] sm:$0xff] %v448
                %v450 = vld [vmem:[%s178 + $0x858] sm:$0xff]
                %451 = vst [vmem:[%s179 + $0x438] sm:$0xff] %v450
                %v452 = vld [vmem:[%s178 + $0x880] sm:$0xff]
                %453 = vst [vmem:[%s179 + $0x440] sm:$0xff] %v452
                %v454 = vld [vmem:[%s178 + $0x888] sm:$0xff]
                %455 = vst [vmem:[%s179 + $0x448] sm:$0xff] %v454
                %v456 = vld [vmem:[%s178 + $0x890] sm:$0xff]
                %457 = vst [vmem:[%s179 + $0x450] sm:$0xff] %v456
                %v458 = vld [vmem:[%s178 + $0x898] sm:$0xff]
                %459 = vst [vmem:[%s179 + $0x458] sm:$0xff] %v458
                %v460 = vld [vmem:[%s178 + $0x8c0] sm:$0xff]
                %461 = vst [vmem:[%s179 + $0x460] sm:$0xff] %v460
                %v462 = vld [vmem:[%s178 + $0x8c8] sm:$0xff]
                %463 = vst [vmem:[%s179 + $0x468] sm:$0xff] %v462
                %v464 = vld [vmem:[%s178 + $0x8d0] sm:$0xff]
                %465 = vst [vmem:[%s179 + $0x470] sm:$0xff] %v464
                %v466 = vld [vmem:[%s178 + $0x8d8] sm:$0xff]
                %467 = vst [vmem:[%s179 + $0x478] sm:$0xff] %v466
                %v468 = vld [vmem:[%s178 + $0x900] sm:$0xff]
                %469 = vst [vmem:[%s179 + $0x480] sm:$0xff] %v468
                %v470 = vld [vmem:[%s178 + $0x908] sm:$0xff]
                %471 = vst [vmem:[%s179 + $0x488] sm:$0xff] %v470
                %v472 = vld [vmem:[%s178 + $0x910] sm:$0xff]
                %473 = vst [vmem:[%s179 + $0x490] sm:$0xff] %v472
                %v474 = vld [vmem:[%s178 + $0x918] sm:$0xff]
                %475 = vst [vmem:[%s179 + $0x498] sm:$0xff] %v474
                %v476 = vld [vmem:[%s178 + $0x940] sm:$0xff]
                %477 = vst [vmem:[%s179 + $0x4a0] sm:$0xff] %v476
                %v478 = vld [vmem:[%s178 + $0x948] sm:$0xff]
                %479 = vst [vmem:[%s179 + $0x4a8] sm:$0xff] %v478
                %v480 = vld [vmem:[%s178 + $0x950] sm:$0xff]
                %481 = vst [vmem:[%s179 + $0x4b0] sm:$0xff] %v480
                %v482 = vld [vmem:[%s178 + $0x958] sm:$0xff]
                %483 = vst [vmem:[%s179 + $0x4b8] sm:$0xff] %v482
                %v484 = vld [vmem:[%s178 + $0x980] sm:$0xff]
                %485 = vst [vmem:[%s179 + $0x4c0] sm:$0xff] %v484
                %v486 = vld [vmem:[%s178 + $0x988] sm:$0xff]
                %487 = vst [vmem:[%s179 + $0x4c8] sm:$0xff] %v486
                %v488 = vld [vmem:[%s178 + $0x990] sm:$0xff]
                %489 = vst [vmem:[%s179 + $0x4d0] sm:$0xff] %v488
                %v490 = vld [vmem:[%s178 + $0x998] sm:$0xff]
                %491 = vst [vmem:[%s179 + $0x4d8] sm:$0xff] %v490
                %v492 = vld [vmem:[%s178 + $0x9c0] sm:$0xff]
                %493 = vst [vmem:[%s179 + $0x4e0] sm:$0xff] %v492
                %v494 = vld [vmem:[%s178 + $0x9c8] sm:$0xff]
                %495 = vst [vmem:[%s179 + $0x4e8] sm:$0xff] %v494
                %v496 = vld [vmem:[%s178 + $0x9d0] sm:$0xff]
                %497 = vst [vmem:[%s179 + $0x4f0] sm:$0xff] %v496
                %v498 = vld [vmem:[%s178 + $0x9d8] sm:$0xff]
                %499 = vst [vmem:[%s179 + $0x4f8] sm:$0xff] %v498
                %v500 = vld [vmem:[%s178 + $0xa00] sm:$0xff]
                %501 = vst [vmem:[%s179 + $0x500] sm:$0xff] %v500
                %v502 = vld [vmem:[%s178 + $0xa08] sm:$0xff]
                %503 = vst [vmem:[%s179 + $0x508] sm:$0xff] %v502
                %v504 = vld [vmem:[%s178 + $0xa10] sm:$0xff]
                %505 = vst [vmem:[%s179 + $0x510] sm:$0xff] %v504
                %v506 = vld [vmem:[%s178 + $0xa18] sm:$0xff]
                %507 = vst [vmem:[%s179 + $0x518] sm:$0xff] %v506
                %v508 = vld [vmem:[%s178 + $0xa40] sm:$0xff]
                %509 = vst [vmem:[%s179 + $0x520] sm:$0xff] %v508
                %v510 = vld [vmem:[%s178 + $0xa48] sm:$0xff]
                %511 = vst [vmem:[%s179 + $0x528] sm:$0xff] %v510
                %v512 = vld [vmem:[%s178 + $0xa50] sm:$0xff]
                %513 = vst [vmem:[%s179 + $0x530] sm:$0xff] %v512
                %v514 = vld [vmem:[%s178 + $0xa58] sm:$0xff]
                %515 = vst [vmem:[%s179 + $0x538] sm:$0xff] %v514
                %v516 = vld [vmem:[%s178 + $0xa80] sm:$0xff]
                %517 = vst [vmem:[%s179 + $0x540] sm:$0xff] %v516
                %v518 = vld [vmem:[%s178 + $0xa88] sm:$0xff]
                %519 = vst [vmem:[%s179 + $0x548] sm:$0xff] %v518
                %v520 = vld [vmem:[%s178 + $0xa90] sm:$0xff]
                %521 = vst [vmem:[%s179 + $0x550] sm:$0xff] %v520
                %v522 = vld [vmem:[%s178 + $0xa98] sm:$0xff]
                %523 = vst [vmem:[%s179 + $0x558] sm:$0xff] %v522
                %v524 = vld [vmem:[%s178 + $0xac0] sm:$0xff]
                %525 = vst [vmem:[%s179 + $0x560] sm:$0xff] %v524
                %v526 = vld [vmem:[%s178 + $0xac8] sm:$0xff]
                %527 = vst [vmem:[%s179 + $0x568] sm:$0xff] %v526
                %v528 = vld [vmem:[%s178 + $0xad0] sm:$0xff]
                %529 = vst [vmem:[%s179 + $0x570] sm:$0xff] %v528
                %v530 = vld [vmem:[%s178 + $0xad8] sm:$0xff]
                %531 = vst [vmem:[%s179 + $0x578] sm:$0xff] %v530
                %v532 = vld [vmem:[%s178 + $0xb00] sm:$0xff]
                %533 = vst [vmem:[%s179 + $0x580] sm:$0xff] %v532
                %v534 = vld [vmem:[%s178 + $0xb08] sm:$0xff]
                %535 = vst [vmem:[%s179 + $0x588] sm:$0xff] %v534
                %v536 = vld [vmem:[%s178 + $0xb10] sm:$0xff]
                %537 = vst [vmem:[%s179 + $0x590] sm:$0xff] %v536
                %v538 = vld [vmem:[%s178 + $0xb18] sm:$0xff]
                %539 = vst [vmem:[%s179 + $0x598] sm:$0xff] %v538
                %v540 = vld [vmem:[%s178 + $0xb40] sm:$0xff]
                %541 = vst [vmem:[%s179 + $0x5a0] sm:$0xff] %v540
                %v542 = vld [vmem:[%s178 + $0xb48] sm:$0xff]
                %543 = vst [vmem:[%s179 + $0x5a8] sm:$0xff] %v542
                %v544 = vld [vmem:[%s178 + $0xb50] sm:$0xff]
                %545 = vst [vmem:[%s179 + $0x5b0] sm:$0xff] %v544
                %v546 = vld [vmem:[%s178 + $0xb58] sm:$0xff]
                %547 = vst [vmem:[%s179 + $0x5b8] sm:$0xff] %v546
                %v548 = vld [vmem:[%s178 + $0xb80] sm:$0xff]
                %549 = vst [vmem:[%s179 + $0x5c0] sm:$0xff] %v548
                %v550 = vld [vmem:[%s178 + $0xb88] sm:$0xff]
                %551 = vst [vmem:[%s179 + $0x5c8] sm:$0xff] %v550
                %v552 = vld [vmem:[%s178 + $0xb90] sm:$0xff]
                %553 = vst [vmem:[%s179 + $0x5d0] sm:$0xff] %v552
                %v554 = vld [vmem:[%s178 + $0xb98] sm:$0xff]
                %555 = vst [vmem:[%s179 + $0x5d8] sm:$0xff] %v554
                %v556 = vld [vmem:[%s178 + $0xbc0] sm:$0xff]
                %557 = vst [vmem:[%s179 + $0x5e0] sm:$0xff] %v556
                %v558 = vld [vmem:[%s178 + $0xbc8] sm:$0xff]
                %559 = vst [vmem:[%s179 + $0x5e8] sm:$0xff] %v558
                %v560 = vld [vmem:[%s178 + $0xbd0] sm:$0xff]
                %561 = vst [vmem:[%s179 + $0x5f0] sm:$0xff] %v560
                %v562 = vld [vmem:[%s178 + $0xbd8] sm:$0xff]
                %563 = vst [vmem:[%s179 + $0x5f8] sm:$0xff] %v562
                %v564 = vld [vmem:[%s178 + $0xc00] sm:$0xff]
                %565 = vst [vmem:[%s179 + $0x600] sm:$0xff] %v564
                %v566 = vld [vmem:[%s178 + $0xc08] sm:$0xff]
                %567 = vst [vmem:[%s179 + $0x608] sm:$0xff] %v566
                %v568 = vld [vmem:[%s178 + $0xc10] sm:$0xff]
                %569 = vst [vmem:[%s179 + $0x610] sm:$0xff] %v568
                %v570 = vld [vmem:[%s178 + $0xc18] sm:$0xff]
                %571 = vst [vmem:[%s179 + $0x618] sm:$0xff] %v570
                %v572 = vld [vmem:[%s178 + $0xc40] sm:$0xff]
                %573 = vst [vmem:[%s179 + $0x620] sm:$0xff] %v572
                %v574 = vld [vmem:[%s178 + $0xc48] sm:$0xff]
                %575 = vst [vmem:[%s179 + $0x628] sm:$0xff] %v574
                %v576 = vld [vmem:[%s178 + $0xc50] sm:$0xff]
                %577 = vst [vmem:[%s179 + $0x630] sm:$0xff] %v576
                %v578 = vld [vmem:[%s178 + $0xc58] sm:$0xff]
                %579 = vst [vmem:[%s179 + $0x638] sm:$0xff] %v578
              $region37: #{dec_forward.5} parent=31 // loop_footer
                %s177 = sadd.s32 1, %s173
              $region38: #{dec_forward.5} parent=31 // loop_footer_branch
                %172 = sbr.rel target = $region34
              $region39: #{dec_forward.5} parent=31 // loop_exit
                _
            $region32: #{dec_forward.5} parent=27 // pred_fallthru
              _
            // Predicated region
            $region40: #{dec_forward.5} parent=27 // pred_check
              _
            $region41: #{dec_forward.5} parent=27 // pred_check_branch
              %581 = sbr.rel target = $region43
            $region42: #{dec_forward.5} parent=27 // pred_region
              _
            $region43: #{dec_forward.5} parent=27 // pred_fallthru
              _
          $region28: #{dec_forward.5} parent=23 // pred_fallthru
            _
          %582 = vnop
        $region24: #{dec_forward.5} parent=15 // pred_fallthru
          _
        // Predicated region
        $region44: #{dec_forward.5} parent=15 // pred_check
          %p583 = pneg %p95
        $region45: #{dec_forward.5} parent=15 // pred_check_branch
          %585 = sbr.rel (%p583) target = $region47
        $region46: #{dec_forward.5} parent=15 // pred_region
          %p586 = scmp.lt.s32.totalorder %s16, 1
          %s587 = scalar_select %p586, %s16, 1
          %s588 = smul.addr %s587, 2
          %s589 = smul.addr %s588, 8
          %s590 = scalar_lea.vmem %s2, %s589
        $region47: #{dec_forward.5} parent=15 // pred_fallthru
          _
      $region16: #{dec_forward.5} parent=5 // pred_fallthru
        _
      %p591 = scmp.le.s32.totalorder 1, %s9
      %p592 = scmp.lt.s32.totalorder %s9, 5
      %p593 = pnand %p591, %p592
      %p594 = pneg %p593
      // Predicated region
      $region48: #{dec_forward.5} parent=5 // pred_check
        _
      $region49: #{dec_forward.5} parent=5 // pred_check_branch
        %596 = sbr.rel (%p593) target = $region51
      $region50: #{dec_forward.5} parent=5 // pred_region
        %s597 = ssub.s32 %s9, 1
        %s598 = sand.u32 %s62, 1
        %s599 = sand.u32 %s62, 1
        %s600 = smul.addr %s599, 1600
        %s601 = scalar_lea.vmem [#allocation2], %s600
        // Predicated region
        $region52: #{dec_forward.5} parent=50 // pred_check
          %p602 = pneg %p75
        $region53: #{dec_forward.5} parent=50 // pred_check_branch
          %604 = sbr.rel (%p602) target = $region55
        $region54: #{dec_forward.5} parent=50 // pred_region
          _
        $region55: #{dec_forward.5} parent=50 // pred_fallthru
          _
        %p605 = scmp.lt.s32.totalorder %s18, 1
        %s606 = scalar_select %p605, %s18, 1
        %s607 = smul.addr %s606, 8
        %s608 = smul.addr %s607, 4
        %s609 = scalar_lea.vmem %s0, %s608
        %p610 = pneg %p47
        %p611 = pneg %p44
        %s612 = sand.u32 %s62, 1
        %s613 = sand.u32 %s62, 1
        %s614 = smul.addr %s613, 1600
        %s615 = scalar_lea.vmem [#allocation2], %s614
        %p616 = pneg %p75
        %p617 = pneg %p72
        %p618 = scmp.lt.s32.totalorder %s18, 1
        %s619 = scalar_select %p618, %s18, 1
        %s620 = smul.addr %s619, 2
        %s621 = smul.addr %s620, 8
        %s622 = scalar_lea.vmem %s2, %s621
        %p623 = pneg %p101
        %p624 = pneg %p98
        %p625 = pneg %p129
        %p626 = pneg %p126
        %s627 = sand.u32 %s116, 1
        %s628 = sand.u32 %s116, 1
        %s629 = smul.addr %s628, 64
        %s630 = scalar_lea.vmem [#allocation3], %s629
        %p631 = scmp.lt.s32.totalorder %s18, 1
        %s632 = scalar_select %p631, %s18, 1
        %s633 = smul.addr %s632, 8
        %s634 = smul.addr %s633, 4
        %s635 = scalar_lea.vmem %s0, %s634
        %s636 = smul.u32 8, %s19
        %p637 = scmp.lt.s32.totalorder %s18, 1
        %s638 = scalar_select %p637, %s18, 1
        %s639 = smul.addr %s638, 2
        %s640 = smul.addr %s639, 8
        %s641 = scalar_lea.vmem %s2, %s640
        %s642 = smul.u32 8, %s19
        %v644 = vld [vmem:[%s635] sm:$0xff]
        %v645 = vld [vmem:[%s635 + $0x8] sm:$0xff]
        %v646 = vld [vmem:[%s635 + $0x10] sm:$0xff]
        %v647 = vld [vmem:[%s635 + $0x18] sm:$0xff]
        %v648 = vld [vmem:[%s601] sm:$0xff]
        %v649 = vld [vmem:[%s601 + $0x8] sm:$0xff]
        %v650 = vld [vmem:[%s601 + $0x10] sm:$0xff]
        %v651 = vld [vmem:[%s601 + $0x18] sm:$0xff]
        %v652 = vld [vmem:[%s601 + $0x20] sm:$0xff]
        %v653 = vld [vmem:[%s601 + $0x28] sm:$0xff]
        %v654 = vld [vmem:[%s601 + $0x30] sm:$0xff]
        %v655 = vld [vmem:[%s601 + $0x38] sm:$0xff]
        %v656 = vld [vmem:[%s601 + $0x40] sm:$0xff]
        %v657 = vld [vmem:[%s601 + $0x48] sm:$0xff]
        %v658 = vld [vmem:[%s601 + $0x50] sm:$0xff]
        %v659 = vld [vmem:[%s601 + $0x58] sm:$0xff]
        %v660 = vld [vmem:[%s601 + $0x60] sm:$0xff]
        %v661 = vld [vmem:[%s601 + $0x68] sm:$0xff]
        %v662 = vld [vmem:[%s601 + $0x70] sm:$0xff]
        %v663 = vld [vmem:[%s601 + $0x78] sm:$0xff]
        %v664 = vld [vmem:[%s601 + $0x80] sm:$0xff]
        %v665 = vld [vmem:[%s601 + $0x88] sm:$0xff]
        %v666 = vld [vmem:[%s601 + $0x90] sm:$0xff]
        %v667 = vld [vmem:[%s601 + $0x98] sm:$0xff]
        %v668 = vld [vmem:[%s601 + $0xa0] sm:$0xff]
        %v669 = vld [vmem:[%s601 + $0xa8] sm:$0xff]
        %v670 = vld [vmem:[%s601 + $0xb0] sm:$0xff]
        %v671 = vld [vmem:[%s601 + $0xb8] sm:$0xff]
        %v672 = vld [vmem:[%s601 + $0xc0] sm:$0xff]
        %v673 = vld [vmem:[%s601 + $0xc8] sm:$0xff]
        %v674 = vld [vmem:[%s601 + $0xd0] sm:$0xff]
        %v675 = vld [vmem:[%s601 + $0xd8] sm:$0xff]
        %v676 = vld [vmem:[%s601 + $0xe0] sm:$0xff]
        %v677 = vld [vmem:[%s601 + $0xe8] sm:$0xff]
        %v678 = vld [vmem:[%s601 + $0xf0] sm:$0xff]
        %v679 = vld [vmem:[%s601 + $0xf8] sm:$0xff]
        %v680 = vld [vmem:[%s601 + $0x100] sm:$0xff]
        %v681 = vld [vmem:[%s601 + $0x108] sm:$0xff]
        %v682 = vld [vmem:[%s601 + $0x110] sm:$0xff]
        %v683 = vld [vmem:[%s601 + $0x118] sm:$0xff]
        %v684 = vld [vmem:[%s601 + $0x120] sm:$0xff]
        %v685 = vld [vmem:[%s601 + $0x128] sm:$0xff]
        %v686 = vld [vmem:[%s601 + $0x130] sm:$0xff]
        %v687 = vld [vmem:[%s601 + $0x138] sm:$0xff]
        %v688 = vld [vmem:[%s601 + $0x140] sm:$0xff]
        %v689 = vld [vmem:[%s601 + $0x148] sm:$0xff]
        %v690 = vld [vmem:[%s601 + $0x150] sm:$0xff]
        %v691 = vld [vmem:[%s601 + $0x158] sm:$0xff]
        %v692 = vld [vmem:[%s601 + $0x160] sm:$0xff]
        %v693 = vld [vmem:[%s601 + $0x168] sm:$0xff]
        %v694 = vld [vmem:[%s601 + $0x170] sm:$0xff]
        %v695 = vld [vmem:[%s601 + $0x178] sm:$0xff]
        %v696 = vld [vmem:[%s601 + $0x180] sm:$0xff]
        %v697 = vld [vmem:[%s601 + $0x188] sm:$0xff]
        %v698 = vld [vmem:[%s601 + $0x190] sm:$0xff]
        %v699 = vld [vmem:[%s601 + $0x198] sm:$0xff]
        %v700 = vld [vmem:[%s601 + $0x1a0] sm:$0xff]
        %v701 = vld [vmem:[%s601 + $0x1a8] sm:$0xff]
        %v702 = vld [vmem:[%s601 + $0x1b0] sm:$0xff]
        %v703 = vld [vmem:[%s601 + $0x1b8] sm:$0xff]
        %v704 = vld [vmem:[%s601 + $0x1c0] sm:$0xff]
        %v705 = vld [vmem:[%s601 + $0x1c8] sm:$0xff]
        %v706 = vld [vmem:[%s601 + $0x1d0] sm:$0xff]
        %v707 = vld [vmem:[%s601 + $0x1d8] sm:$0xff]
        %v708 = vld [vmem:[%s601 + $0x1e0] sm:$0xff]
        %v709 = vld [vmem:[%s601 + $0x1e8] sm:$0xff]
        %v710 = vld [vmem:[%s601 + $0x1f0] sm:$0xff]
        %v711 = vld [vmem:[%s601 + $0x1f8] sm:$0xff]
        %v712 = vld [vmem:[%s601 + $0x200] sm:$0xff]
        %v713 = vld [vmem:[%s601 + $0x208] sm:$0xff]
        %v714 = vld [vmem:[%s601 + $0x210] sm:$0xff]
        %v715 = vld [vmem:[%s601 + $0x218] sm:$0xff]
        %v716 = vld [vmem:[%s601 + $0x220] sm:$0xff]
        %v717 = vld [vmem:[%s601 + $0x228] sm:$0xff]
        %v718 = vld [vmem:[%s601 + $0x230] sm:$0xff]
        %v719 = vld [vmem:[%s601 + $0x238] sm:$0xff]
        %v720 = vld [vmem:[%s601 + $0x240] sm:$0xff]
        %v721 = vld [vmem:[%s601 + $0x248] sm:$0xff]
        %v722 = vld [vmem:[%s601 + $0x250] sm:$0xff]
        %v723 = vld [vmem:[%s601 + $0x258] sm:$0xff]
        %v724 = vld [vmem:[%s601 + $0x260] sm:$0xff]
        %v725 = vld [vmem:[%s601 + $0x268] sm:$0xff]
        %v726 = vld [vmem:[%s601 + $0x270] sm:$0xff]
        %v727 = vld [vmem:[%s601 + $0x278] sm:$0xff]
        %v728 = vld [vmem:[%s601 + $0x280] sm:$0xff]
        %v729 = vld [vmem:[%s601 + $0x288] sm:$0xff]
        %v730 = vld [vmem:[%s601 + $0x290] sm:$0xff]
        %v731 = vld [vmem:[%s601 + $0x298] sm:$0xff]
        %v732 = vld [vmem:[%s601 + $0x2a0] sm:$0xff]
        %v733 = vld [vmem:[%s601 + $0x2a8] sm:$0xff]
        %v734 = vld [vmem:[%s601 + $0x2b0] sm:$0xff]
        %v735 = vld [vmem:[%s601 + $0x2b8] sm:$0xff]
        %v736 = vld [vmem:[%s601 + $0x2c0] sm:$0xff]
        %v737 = vld [vmem:[%s601 + $0x2c8] sm:$0xff]
        %v738 = vld [vmem:[%s601 + $0x2d0] sm:$0xff]
        %v739 = vld [vmem:[%s601 + $0x2d8] sm:$0xff]
        %v740 = vld [vmem:[%s601 + $0x2e0] sm:$0xff]
        %v741 = vld [vmem:[%s601 + $0x2e8] sm:$0xff]
        %v742 = vld [vmem:[%s601 + $0x2f0] sm:$0xff]
        %v743 = vld [vmem:[%s601 + $0x2f8] sm:$0xff]
        %v744 = vld [vmem:[%s601 + $0x300] sm:$0xff]
        %v745 = vld [vmem:[%s601 + $0x308] sm:$0xff]
        %v746 = vld [vmem:[%s601 + $0x310] sm:$0xff]
        %v747 = vld [vmem:[%s601 + $0x318] sm:$0xff]
        %v748 = vld [vmem:[%s601 + $0x320] sm:$0xff]
        %v749 = vld [vmem:[%s601 + $0x328] sm:$0xff]
        %v750 = vld [vmem:[%s601 + $0x330] sm:$0xff]
        %v751 = vld [vmem:[%s601 + $0x338] sm:$0xff]
        %v752 = vld [vmem:[%s601 + $0x340] sm:$0xff]
        %v753 = vld [vmem:[%s601 + $0x348] sm:$0xff]
        %v754 = vld [vmem:[%s601 + $0x350] sm:$0xff]
        %v755 = vld [vmem:[%s601 + $0x358] sm:$0xff]
        %v756 = vld [vmem:[%s601 + $0x360] sm:$0xff]
        %v757 = vld [vmem:[%s601 + $0x368] sm:$0xff]
        %v758 = vld [vmem:[%s601 + $0x370] sm:$0xff]
        %v759 = vld [vmem:[%s601 + $0x378] sm:$0xff]
        %v760 = vld [vmem:[%s601 + $0x380] sm:$0xff]
        %v761 = vld [vmem:[%s601 + $0x388] sm:$0xff]
        %v762 = vld [vmem:[%s601 + $0x390] sm:$0xff]
        %v763 = vld [vmem:[%s601 + $0x398] sm:$0xff]
        %v764 = vld [vmem:[%s601 + $0x3a0] sm:$0xff]
        %v765 = vld [vmem:[%s601 + $0x3a8] sm:$0xff]
        %v766 = vld [vmem:[%s601 + $0x3b0] sm:$0xff]
        %v767 = vld [vmem:[%s601 + $0x3b8] sm:$0xff]
        %v768 = vld [vmem:[%s601 + $0x3c0] sm:$0xff]
        %v769 = vld [vmem:[%s601 + $0x3c8] sm:$0xff]
        %v770 = vld [vmem:[%s601 + $0x3d0] sm:$0xff]
        %v771 = vld [vmem:[%s601 + $0x3d8] sm:$0xff]
        %v772 = vld [vmem:[%s601 + $0x3e0] sm:$0xff]
        %v773 = vld [vmem:[%s601 + $0x3e8] sm:$0xff]
        %v774 = vld [vmem:[%s601 + $0x3f0] sm:$0xff]
        %v775 = vld [vmem:[%s601 + $0x3f8] sm:$0xff]
        %v776 = vld [vmem:[%s601 + $0x400] sm:$0xff]
        %v777 = vld [vmem:[%s601 + $0x408] sm:$0xff]
        %v778 = vld [vmem:[%s601 + $0x410] sm:$0xff]
        %v779 = vld [vmem:[%s601 + $0x418] sm:$0xff]
        %v780 = vld [vmem:[%s601 + $0x420] sm:$0xff]
        %v781 = vld [vmem:[%s601 + $0x428] sm:$0xff]
        %v782 = vld [vmem:[%s601 + $0x430] sm:$0xff]
        %v783 = vld [vmem:[%s601 + $0x438] sm:$0xff]
        %v784 = vld [vmem:[%s601 + $0x440] sm:$0xff]
        %v785 = vld [vmem:[%s601 + $0x448] sm:$0xff]
        %v786 = vld [vmem:[%s601 + $0x450] sm:$0xff]
        %v787 = vld [vmem:[%s601 + $0x458] sm:$0xff]
        %v788 = vld [vmem:[%s601 + $0x460] sm:$0xff]
        %v789 = vld [vmem:[%s601 + $0x468] sm:$0xff]
        %v790 = vld [vmem:[%s601 + $0x470] sm:$0xff]
        %v791 = vld [vmem:[%s601 + $0x478] sm:$0xff]
        %v792 = vld [vmem:[%s601 + $0x480] sm:$0xff]
        %v793 = vld [vmem:[%s601 + $0x488] sm:$0xff]
        %v794 = vld [vmem:[%s601 + $0x490] sm:$0xff]
        %v795 = vld [vmem:[%s601 + $0x498] sm:$0xff]
        %v796 = vld [vmem:[%s601 + $0x4a0] sm:$0xff]
        %v797 = vld [vmem:[%s601 + $0x4a8] sm:$0xff]
        %v798 = vld [vmem:[%s601 + $0x4b0] sm:$0xff]
        %v799 = vld [vmem:[%s601 + $0x4b8] sm:$0xff]
        %v800 = vld [vmem:[%s601 + $0x4c0] sm:$0xff]
        %v801 = vld [vmem:[%s601 + $0x4c8] sm:$0xff]
        %v802 = vld [vmem:[%s601 + $0x4d0] sm:$0xff]
        %v803 = vld [vmem:[%s601 + $0x4d8] sm:$0xff]
        %v804 = vld [vmem:[%s601 + $0x4e0] sm:$0xff]
        %v805 = vld [vmem:[%s601 + $0x4e8] sm:$0xff]
        %v806 = vld [vmem:[%s601 + $0x4f0] sm:$0xff]
        %v807 = vld [vmem:[%s601 + $0x4f8] sm:$0xff]
        %v808 = vld [vmem:[%s601 + $0x500] sm:$0xff]
        %v809 = vld [vmem:[%s601 + $0x508] sm:$0xff]
        %v810 = vld [vmem:[%s601 + $0x510] sm:$0xff]
        %v811 = vld [vmem:[%s601 + $0x518] sm:$0xff]
        %v812 = vld [vmem:[%s601 + $0x520] sm:$0xff]
        %v813 = vld [vmem:[%s601 + $0x528] sm:$0xff]
        %v814 = vld [vmem:[%s601 + $0x530] sm:$0xff]
        %v815 = vld [vmem:[%s601 + $0x538] sm:$0xff]
        %v816 = vld [vmem:[%s601 + $0x540] sm:$0xff]
        %v817 = vld [vmem:[%s601 + $0x548] sm:$0xff]
        %v818 = vld [vmem:[%s601 + $0x550] sm:$0xff]
        %v819 = vld [vmem:[%s601 + $0x558] sm:$0xff]
        %v820 = vld [vmem:[%s601 + $0x560] sm:$0xff]
        %v821 = vld [vmem:[%s601 + $0x568] sm:$0xff]
        %v822 = vld [vmem:[%s601 + $0x570] sm:$0xff]
        %v823 = vld [vmem:[%s601 + $0x578] sm:$0xff]
        %v824 = vld [vmem:[%s601 + $0x580] sm:$0xff]
        %v825 = vld [vmem:[%s601 + $0x588] sm:$0xff]
        %v826 = vld [vmem:[%s601 + $0x590] sm:$0xff]
        %v827 = vld [vmem:[%s601 + $0x598] sm:$0xff]
        %v828 = vld [vmem:[%s601 + $0x5a0] sm:$0xff]
        %v829 = vld [vmem:[%s601 + $0x5a8] sm:$0xff]
        %v830 = vld [vmem:[%s601 + $0x5b0] sm:$0xff]
        %v831 = vld [vmem:[%s601 + $0x5b8] sm:$0xff]
        %v832 = vld [vmem:[%s601 + $0x5c0] sm:$0xff]
        %v833 = vld [vmem:[%s601 + $0x5c8] sm:$0xff]
        %v834 = vld [vmem:[%s601 + $0x5d0] sm:$0xff]
        %v835 = vld [vmem:[%s601 + $0x5d8] sm:$0xff]
        %v836 = vld [vmem:[%s601 + $0x5e0] sm:$0xff]
        %v837 = vld [vmem:[%s601 + $0x5e8] sm:$0xff]
        %v838 = vld [vmem:[%s601 + $0x5f0] sm:$0xff]
        %v839 = vld [vmem:[%s601 + $0x5f8] sm:$0xff]
        %v840 = vld [vmem:[%s601 + $0x600] sm:$0xff]
        %v841 = vld [vmem:[%s601 + $0x608] sm:$0xff]
        %v842 = vld [vmem:[%s601 + $0x610] sm:$0xff]
        %v843 = vld [vmem:[%s601 + $0x618] sm:$0xff]
        %v844 = vld [vmem:[%s601 + $0x620] sm:$0xff]
        %v845 = vld [vmem:[%s601 + $0x628] sm:$0xff]
        %v846 = vld [vmem:[%s601 + $0x630] sm:$0xff]
        %v847 = vld [vmem:[%s601 + $0x638] sm:$0xff]
        %v848 = vld [vmem:[%s641] sm:$0xff]
        %v849 = vld [vmem:[%s641 + $0x8] sm:$0xff]
        %851 = vset.pattern.permute.xlu0 0
        %852 = vperm.xlu0 %851, %v848
        %v853 = vpop.permute.xlu0 %852
        %856 = vset.pattern.permute.xlu0 0
        %857 = vperm.xlu0 %856, %v849
        %v858 = vpop.permute.xlu0 %857
        %v864 = vunpack.c.l.b16 %v644
        %v865 = vunpack.c.h.b16 %v644
        %v866 = vunpack.c.l.b16 %v645
        %v867 = vunpack.c.h.b16 %v645
        %v868 = vunpack.c.l.b16 %v646
        %v869 = vunpack.c.h.b16 %v646
        %v870 = vunpack.c.l.b16 %v647
        %v871 = vunpack.c.h.b16 %v647
        %v872 = vpack.c.b16 %v868, %v864
        %v873 = vpack.c.b16 %v869, %v865
        %v874 = vpack.c.b16 %v870, %v866
        %v875 = vpack.c.b16 %v871, %v867
        %v1079 = vunpack.c.l.b16 %v648
        %v1080 = vunpack.c.h.b16 %v648
        %v1081 = vunpack.c.l.b16 %v649
        %v1082 = vunpack.c.h.b16 %v649
        %v1083 = vunpack.c.l.b16 %v650
        %v1084 = vunpack.c.h.b16 %v650
        %v1085 = vunpack.c.l.b16 %v651
        %v1086 = vunpack.c.h.b16 %v651
        %v1087 = vunpack.c.l.b16 %v652
        %v1088 = vunpack.c.h.b16 %v652
        %v1089 = vunpack.c.l.b16 %v653
        %v1090 = vunpack.c.h.b16 %v653
        %v1091 = vunpack.c.l.b16 %v654
        %v1092 = vunpack.c.h.b16 %v654
        %v1093 = vunpack.c.l.b16 %v655
        %v1094 = vunpack.c.h.b16 %v655
        %v1095 = vunpack.c.l.b16 %v656
        %v1096 = vunpack.c.h.b16 %v656
        %v1097 = vunpack.c.l.b16 %v657
        %v1098 = vunpack.c.h.b16 %v657
        %v1099 = vunpack.c.l.b16 %v658
        %v1100 = vunpack.c.h.b16 %v658
        %v1101 = vunpack.c.l.b16 %v659
        %v1102 = vunpack.c.h.b16 %v659
        %v1103 = vunpack.c.l.b16 %v660
        %v1104 = vunpack.c.h.b16 %v660
        %v1105 = vunpack.c.l.b16 %v661
        %v1106 = vunpack.c.h.b16 %v661
        %v1107 = vunpack.c.l.b16 %v662
        %v1108 = vunpack.c.h.b16 %v662
        %v1109 = vunpack.c.l.b16 %v663
        %v1110 = vunpack.c.h.b16 %v663
        %v1111 = vunpack.c.l.b16 %v664
        %v1112 = vunpack.c.h.b16 %v664
        %v1113 = vunpack.c.l.b16 %v665
        %v1114 = vunpack.c.h.b16 %v665
        %v1115 = vunpack.c.l.b16 %v666
        %v1116 = vunpack.c.h.b16 %v666
        %v1117 = vunpack.c.l.b16 %v667
        %v1118 = vunpack.c.h.b16 %v667
        %v1119 = vunpack.c.l.b16 %v668
        %v1120 = vunpack.c.h.b16 %v668
        %v1121 = vunpack.c.l.b16 %v669
        %v1122 = vunpack.c.h.b16 %v669
        %v1123 = vunpack.c.l.b16 %v670
        %v1124 = vunpack.c.h.b16 %v670
        %v1125 = vunpack.c.l.b16 %v671
        %v1126 = vunpack.c.h.b16 %v671
        %v1127 = vunpack.c.l.b16 %v672
        %v1128 = vunpack.c.h.b16 %v672
        %v1129 = vunpack.c.l.b16 %v673
        %v1130 = vunpack.c.h.b16 %v673
        %v1131 = vunpack.c.l.b16 %v674
        %v1132 = vunpack.c.h.b16 %v674
        %v1133 = vunpack.c.l.b16 %v675
        %v1134 = vunpack.c.h.b16 %v675
        %v1135 = vunpack.c.l.b16 %v676
        %v1136 = vunpack.c.h.b16 %v676
        %v1137 = vunpack.c.l.b16 %v677
        %v1138 = vunpack.c.h.b16 %v677
        %v1139 = vunpack.c.l.b16 %v678
        %v1140 = vunpack.c.h.b16 %v678
        %v1141 = vunpack.c.l.b16 %v679
        %v1142 = vunpack.c.h.b16 %v679
        %v1143 = vunpack.c.l.b16 %v680
        %v1144 = vunpack.c.h.b16 %v680
        %v1145 = vunpack.c.l.b16 %v681
        %v1146 = vunpack.c.h.b16 %v681
        %v1147 = vunpack.c.l.b16 %v682
        %v1148 = vunpack.c.h.b16 %v682
        %v1149 = vunpack.c.l.b16 %v683
        %v1150 = vunpack.c.h.b16 %v683
        %v1151 = vunpack.c.l.b16 %v684
        %v1152 = vunpack.c.h.b16 %v684
        %v1153 = vunpack.c.l.b16 %v685
        %v1154 = vunpack.c.h.b16 %v685
        %v1155 = vunpack.c.l.b16 %v686
        %v1156 = vunpack.c.h.b16 %v686
        %v1157 = vunpack.c.l.b16 %v687
        %v1158 = vunpack.c.h.b16 %v687
        %v1159 = vunpack.c.l.b16 %v688
        %v1160 = vunpack.c.h.b16 %v688
        %v1161 = vunpack.c.l.b16 %v689
        %v1162 = vunpack.c.h.b16 %v689
        %v1163 = vunpack.c.l.b16 %v690
        %v1164 = vunpack.c.h.b16 %v690
        %v1165 = vunpack.c.l.b16 %v691
        %v1166 = vunpack.c.h.b16 %v691
        %v1167 = vunpack.c.l.b16 %v692
        %v1168 = vunpack.c.h.b16 %v692
        %v1169 = vunpack.c.l.b16 %v693
        %v1170 = vunpack.c.h.b16 %v693
        %v1171 = vunpack.c.l.b16 %v694
        %v1172 = vunpack.c.h.b16 %v694
        %v1173 = vunpack.c.l.b16 %v695
        %v1174 = vunpack.c.h.b16 %v695
        %v1175 = vunpack.c.l.b16 %v696
        %v1176 = vunpack.c.h.b16 %v696
        %v1177 = vunpack.c.l.b16 %v697
        %v1178 = vunpack.c.h.b16 %v697
        %v1179 = vunpack.c.l.b16 %v698
        %v1180 = vunpack.c.h.b16 %v698
        %v1181 = vunpack.c.l.b16 %v699
        %v1182 = vunpack.c.h.b16 %v699
        %v1183 = vunpack.c.l.b16 %v700
        %v1184 = vunpack.c.h.b16 %v700
        %v1185 = vunpack.c.l.b16 %v701
        %v1186 = vunpack.c.h.b16 %v701
        %v1187 = vunpack.c.l.b16 %v702
        %v1188 = vunpack.c.h.b16 %v702
        %v1189 = vunpack.c.l.b16 %v703
        %v1190 = vunpack.c.h.b16 %v703
        %v1191 = vunpack.c.l.b16 %v704
        %v1192 = vunpack.c.h.b16 %v704
        %v1193 = vunpack.c.l.b16 %v705
        %v1194 = vunpack.c.h.b16 %v705
        %v1195 = vunpack.c.l.b16 %v706
        %v1196 = vunpack.c.h.b16 %v706
        %v1197 = vunpack.c.l.b16 %v707
        %v1198 = vunpack.c.h.b16 %v707
        %v1199 = vunpack.c.l.b16 %v708
        %v1200 = vunpack.c.h.b16 %v708
        %v1201 = vunpack.c.l.b16 %v709
        %v1202 = vunpack.c.h.b16 %v709
        %v1203 = vunpack.c.l.b16 %v710
        %v1204 = vunpack.c.h.b16 %v710
        %v1205 = vunpack.c.l.b16 %v711
        %v1206 = vunpack.c.h.b16 %v711
        %v1207 = vunpack.c.l.b16 %v712
        %v1208 = vunpack.c.h.b16 %v712
        %v1209 = vunpack.c.l.b16 %v713
        %v1210 = vunpack.c.h.b16 %v713
        %v1211 = vunpack.c.l.b16 %v714
        %v1212 = vunpack.c.h.b16 %v714
        %v1213 = vunpack.c.l.b16 %v715
        %v1214 = vunpack.c.h.b16 %v715
        %v1215 = vunpack.c.l.b16 %v716
        %v1216 = vunpack.c.h.b16 %v716
        %v1217 = vunpack.c.l.b16 %v717
        %v1218 = vunpack.c.h.b16 %v717
        %v1219 = vunpack.c.l.b16 %v718
        %v1220 = vunpack.c.h.b16 %v718
        %v1221 = vunpack.c.l.b16 %v719
        %v1222 = vunpack.c.h.b16 %v719
        %v1223 = vunpack.c.l.b16 %v720
        %v1224 = vunpack.c.h.b16 %v720
        %v1225 = vunpack.c.l.b16 %v721
        %v1226 = vunpack.c.h.b16 %v721
        %v1227 = vunpack.c.l.b16 %v722
        %v1228 = vunpack.c.h.b16 %v722
        %v1229 = vunpack.c.l.b16 %v723
        %v1230 = vunpack.c.h.b16 %v723
        %v1231 = vunpack.c.l.b16 %v724
        %v1232 = vunpack.c.h.b16 %v724
        %v1233 = vunpack.c.l.b16 %v725
        %v1234 = vunpack.c.h.b16 %v725
        %v1235 = vunpack.c.l.b16 %v726
        %v1236 = vunpack.c.h.b16 %v726
        %v1237 = vunpack.c.l.b16 %v727
        %v1238 = vunpack.c.h.b16 %v727
        %v1239 = vunpack.c.l.b16 %v728
        %v1240 = vunpack.c.h.b16 %v728
        %v1241 = vunpack.c.l.b16 %v729
        %v1242 = vunpack.c.h.b16 %v729
        %v1243 = vunpack.c.l.b16 %v730
        %v1244 = vunpack.c.h.b16 %v730
        %v1245 = vunpack.c.l.b16 %v731
        %v1246 = vunpack.c.h.b16 %v731
        %v1247 = vunpack.c.l.b16 %v732
        %v1248 = vunpack.c.h.b16 %v732
        %v1249 = vunpack.c.l.b16 %v733
        %v1250 = vunpack.c.h.b16 %v733
        %v1251 = vunpack.c.l.b16 %v734
        %v1252 = vunpack.c.h.b16 %v734
        %v1253 = vunpack.c.l.b16 %v735
        %v1254 = vunpack.c.h.b16 %v735
        %v1255 = vunpack.c.l.b16 %v736
        %v1256 = vunpack.c.h.b16 %v736
        %v1257 = vunpack.c.l.b16 %v737
        %v1258 = vunpack.c.h.b16 %v737
        %v1259 = vunpack.c.l.b16 %v738
        %v1260 = vunpack.c.h.b16 %v738
        %v1261 = vunpack.c.l.b16 %v739
        %v1262 = vunpack.c.h.b16 %v739
        %v1263 = vunpack.c.l.b16 %v740
        %v1264 = vunpack.c.h.b16 %v740
        %v1265 = vunpack.c.l.b16 %v741
        %v1266 = vunpack.c.h.b16 %v741
        %v1267 = vunpack.c.l.b16 %v742
        %v1268 = vunpack.c.h.b16 %v742
        %v1269 = vunpack.c.l.b16 %v743
        %v1270 = vunpack.c.h.b16 %v743
        %v1271 = vunpack.c.l.b16 %v744
        %v1272 = vunpack.c.h.b16 %v744
        %v1273 = vunpack.c.l.b16 %v745
        %v1274 = vunpack.c.h.b16 %v745
        %v1275 = vunpack.c.l.b16 %v746
        %v1276 = vunpack.c.h.b16 %v746
        %v1277 = vunpack.c.l.b16 %v747
        %v1278 = vunpack.c.h.b16 %v747
        %v1279 = vunpack.c.l.b16 %v748
        %v1280 = vunpack.c.h.b16 %v748
        %v1281 = vunpack.c.l.b16 %v749
        %v1282 = vunpack.c.h.b16 %v749
        %v1283 = vunpack.c.l.b16 %v750
        %v1284 = vunpack.c.h.b16 %v750
        %v1285 = vunpack.c.l.b16 %v751
        %v1286 = vunpack.c.h.b16 %v751
        %v1287 = vunpack.c.l.b16 %v752
        %v1288 = vunpack.c.h.b16 %v752
        %v1289 = vunpack.c.l.b16 %v753
        %v1290 = vunpack.c.h.b16 %v753
        %v1291 = vunpack.c.l.b16 %v754
        %v1292 = vunpack.c.h.b16 %v754
        %v1293 = vunpack.c.l.b16 %v755
        %v1294 = vunpack.c.h.b16 %v755
        %v1295 = vunpack.c.l.b16 %v756
        %v1296 = vunpack.c.h.b16 %v756
        %v1297 = vunpack.c.l.b16 %v757
        %v1298 = vunpack.c.h.b16 %v757
        %v1299 = vunpack.c.l.b16 %v758
        %v1300 = vunpack.c.h.b16 %v758
        %v1301 = vunpack.c.l.b16 %v759
        %v1302 = vunpack.c.h.b16 %v759
        %v1303 = vunpack.c.l.b16 %v760
        %v1304 = vunpack.c.h.b16 %v760
        %v1305 = vunpack.c.l.b16 %v761
        %v1306 = vunpack.c.h.b16 %v761
        %v1307 = vunpack.c.l.b16 %v762
        %v1308 = vunpack.c.h.b16 %v762
        %v1309 = vunpack.c.l.b16 %v763
        %v1310 = vunpack.c.h.b16 %v763
        %v1311 = vunpack.c.l.b16 %v764
        %v1312 = vunpack.c.h.b16 %v764
        %v1313 = vunpack.c.l.b16 %v765
        %v1314 = vunpack.c.h.b16 %v765
        %v1315 = vunpack.c.l.b16 %v766
        %v1316 = vunpack.c.h.b16 %v766
        %v1317 = vunpack.c.l.b16 %v767
        %v1318 = vunpack.c.h.b16 %v767
        %v1319 = vunpack.c.l.b16 %v768
        %v1320 = vunpack.c.h.b16 %v768
        %v1321 = vunpack.c.l.b16 %v769
        %v1322 = vunpack.c.h.b16 %v769
        %v1323 = vunpack.c.l.b16 %v770
        %v1324 = vunpack.c.h.b16 %v770
        %v1325 = vunpack.c.l.b16 %v771
        %v1326 = vunpack.c.h.b16 %v771
        %v1327 = vunpack.c.l.b16 %v772
        %v1328 = vunpack.c.h.b16 %v772
        %v1329 = vunpack.c.l.b16 %v773
        %v1330 = vunpack.c.h.b16 %v773
        %v1331 = vunpack.c.l.b16 %v774
        %v1332 = vunpack.c.h.b16 %v774
        %v1333 = vunpack.c.l.b16 %v775
        %v1334 = vunpack.c.h.b16 %v775
        %v1335 = vunpack.c.l.b16 %v776
        %v1336 = vunpack.c.h.b16 %v776
        %v1337 = vunpack.c.l.b16 %v777
        %v1338 = vunpack.c.h.b16 %v777
        %v1339 = vunpack.c.l.b16 %v778
        %v1340 = vunpack.c.h.b16 %v778
        %v1341 = vunpack.c.l.b16 %v779
        %v1342 = vunpack.c.h.b16 %v779
        %v1343 = vunpack.c.l.b16 %v780
        %v1344 = vunpack.c.h.b16 %v780
        %v1345 = vunpack.c.l.b16 %v781
        %v1346 = vunpack.c.h.b16 %v781
        %v1347 = vunpack.c.l.b16 %v782
        %v1348 = vunpack.c.h.b16 %v782
        %v1349 = vunpack.c.l.b16 %v783
        %v1350 = vunpack.c.h.b16 %v783
        %v1351 = vunpack.c.l.b16 %v784
        %v1352 = vunpack.c.h.b16 %v784
        %v1353 = vunpack.c.l.b16 %v785
        %v1354 = vunpack.c.h.b16 %v785
        %v1355 = vunpack.c.l.b16 %v786
        %v1356 = vunpack.c.h.b16 %v786
        %v1357 = vunpack.c.l.b16 %v787
        %v1358 = vunpack.c.h.b16 %v787
        %v1359 = vunpack.c.l.b16 %v788
        %v1360 = vunpack.c.h.b16 %v788
        %v1361 = vunpack.c.l.b16 %v789
        %v1362 = vunpack.c.h.b16 %v789
        %v1363 = vunpack.c.l.b16 %v790
        %v1364 = vunpack.c.h.b16 %v790
        %v1365 = vunpack.c.l.b16 %v791
        %v1366 = vunpack.c.h.b16 %v791
        %v1367 = vunpack.c.l.b16 %v792
        %v1368 = vunpack.c.h.b16 %v792
        %v1369 = vunpack.c.l.b16 %v793
        %v1370 = vunpack.c.h.b16 %v793
        %v1371 = vunpack.c.l.b16 %v794
        %v1372 = vunpack.c.h.b16 %v794
        %v1373 = vunpack.c.l.b16 %v795
        %v1374 = vunpack.c.h.b16 %v795
        %v1375 = vunpack.c.l.b16 %v796
        %v1376 = vunpack.c.h.b16 %v796
        %v1377 = vunpack.c.l.b16 %v797
        %v1378 = vunpack.c.h.b16 %v797
        %v1379 = vunpack.c.l.b16 %v798
        %v1380 = vunpack.c.h.b16 %v798
        %v1381 = vunpack.c.l.b16 %v799
        %v1382 = vunpack.c.h.b16 %v799
        %v1383 = vunpack.c.l.b16 %v800
        %v1384 = vunpack.c.h.b16 %v800
        %v1385 = vunpack.c.l.b16 %v801
        %v1386 = vunpack.c.h.b16 %v801
        %v1387 = vunpack.c.l.b16 %v802
        %v1388 = vunpack.c.h.b16 %v802
        %v1389 = vunpack.c.l.b16 %v803
        %v1390 = vunpack.c.h.b16 %v803
        %v1391 = vunpack.c.l.b16 %v804
        %v1392 = vunpack.c.h.b16 %v804
        %v1393 = vunpack.c.l.b16 %v805
        %v1394 = vunpack.c.h.b16 %v805
        %v1395 = vunpack.c.l.b16 %v806
        %v1396 = vunpack.c.h.b16 %v806
        %v1397 = vunpack.c.l.b16 %v807
        %v1398 = vunpack.c.h.b16 %v807
        %v1399 = vunpack.c.l.b16 %v808
        %v1400 = vunpack.c.h.b16 %v808
        %v1401 = vunpack.c.l.b16 %v809
        %v1402 = vunpack.c.h.b16 %v809
        %v1403 = vunpack.c.l.b16 %v810
        %v1404 = vunpack.c.h.b16 %v810
        %v1405 = vunpack.c.l.b16 %v811
        %v1406 = vunpack.c.h.b16 %v811
        %v1407 = vunpack.c.l.b16 %v812
        %v1408 = vunpack.c.h.b16 %v812
        %v1409 = vunpack.c.l.b16 %v813
        %v1410 = vunpack.c.h.b16 %v813
        %v1411 = vunpack.c.l.b16 %v814
        %v1412 = vunpack.c.h.b16 %v814
        %v1413 = vunpack.c.l.b16 %v815
        %v1414 = vunpack.c.h.b16 %v815
        %v1415 = vunpack.c.l.b16 %v816
        %v1416 = vunpack.c.h.b16 %v816
        %v1417 = vunpack.c.l.b16 %v817
        %v1418 = vunpack.c.h.b16 %v817
        %v1419 = vunpack.c.l.b16 %v818
        %v1420 = vunpack.c.h.b16 %v818
        %v1421 = vunpack.c.l.b16 %v819
        %v1422 = vunpack.c.h.b16 %v819
        %v1423 = vunpack.c.l.b16 %v820
        %v1424 = vunpack.c.h.b16 %v820
        %v1425 = vunpack.c.l.b16 %v821
        %v1426 = vunpack.c.h.b16 %v821
        %v1427 = vunpack.c.l.b16 %v822
        %v1428 = vunpack.c.h.b16 %v822
        %v1429 = vunpack.c.l.b16 %v823
        %v1430 = vunpack.c.h.b16 %v823
        %v1431 = vunpack.c.l.b16 %v824
        %v1432 = vunpack.c.h.b16 %v824
        %v1433 = vunpack.c.l.b16 %v825
        %v1434 = vunpack.c.h.b16 %v825
        %v1435 = vunpack.c.l.b16 %v826
        %v1436 = vunpack.c.h.b16 %v826
        %v1437 = vunpack.c.l.b16 %v827
        %v1438 = vunpack.c.h.b16 %v827
        %v1439 = vunpack.c.l.b16 %v828
        %v1440 = vunpack.c.h.b16 %v828
        %v1441 = vunpack.c.l.b16 %v829
        %v1442 = vunpack.c.h.b16 %v829
        %v1443 = vunpack.c.l.b16 %v830
        %v1444 = vunpack.c.h.b16 %v830
        %v1445 = vunpack.c.l.b16 %v831
        %v1446 = vunpack.c.h.b16 %v831
        %v1447 = vunpack.c.l.b16 %v832
        %v1448 = vunpack.c.h.b16 %v832
        %v1449 = vunpack.c.l.b16 %v833
        %v1450 = vunpack.c.h.b16 %v833
        %v1451 = vunpack.c.l.b16 %v834
        %v1452 = vunpack.c.h.b16 %v834
        %v1453 = vunpack.c.l.b16 %v835
        %v1454 = vunpack.c.h.b16 %v835
        %v1455 = vunpack.c.l.b16 %v836
        %v1456 = vunpack.c.h.b16 %v836
        %v1457 = vunpack.c.l.b16 %v837
        %v1458 = vunpack.c.h.b16 %v837
        %v1459 = vunpack.c.l.b16 %v838
        %v1460 = vunpack.c.h.b16 %v838
        %v1461 = vunpack.c.l.b16 %v839
        %v1462 = vunpack.c.h.b16 %v839
        %v1463 = vunpack.c.l.b16 %v840
        %v1464 = vunpack.c.h.b16 %v840
        %v1465 = vunpack.c.l.b16 %v841
        %v1466 = vunpack.c.h.b16 %v841
        %v1467 = vunpack.c.l.b16 %v842
        %v1468 = vunpack.c.h.b16 %v842
        %v1469 = vunpack.c.l.b16 %v843
        %v1470 = vunpack.c.h.b16 %v843
        %v1471 = vunpack.c.l.b16 %v844
        %v1472 = vunpack.c.h.b16 %v844
        %v1473 = vunpack.c.l.b16 %v845
        %v1474 = vunpack.c.h.b16 %v845
        %v1475 = vunpack.c.l.b16 %v846
        %v1476 = vunpack.c.h.b16 %v846
        %v1477 = vunpack.c.l.b16 %v847
        %v1478 = vunpack.c.h.b16 %v847
        %v1479 = vpack.c.b16 %v1087, %v1079
        %v1480 = vpack.c.b16 %v1088, %v1080
        %v1481 = vpack.c.b16 %v1089, %v1081
        %v1482 = vpack.c.b16 %v1090, %v1082
        %v1483 = vpack.c.b16 %v1091, %v1083
        %v1484 = vpack.c.b16 %v1092, %v1084
        %v1485 = vpack.c.b16 %v1093, %v1085
        %v1486 = vpack.c.b16 %v1094, %v1086
        %v1487 = vpack.c.b16 %v1103, %v1095
        %v1488 = vpack.c.b16 %v1104, %v1096
        %v1489 = vpack.c.b16 %v1105, %v1097
        %v1490 = vpack.c.b16 %v1106, %v1098
        %v1491 = vpack.c.b16 %v1107, %v1099
        %v1492 = vpack.c.b16 %v1108, %v1100
        %v1493 = vpack.c.b16 %v1109, %v1101
        %v1494 = vpack.c.b16 %v1110, %v1102
        %v1495 = vpack.c.b16 %v1119, %v1111
        %v1496 = vpack.c.b16 %v1120, %v1112
        %v1497 = vpack.c.b16 %v1121, %v1113
        %v1498 = vpack.c.b16 %v1122, %v1114
        %v1499 = vpack.c.b16 %v1123, %v1115
        %v1500 = vpack.c.b16 %v1124, %v1116
        %v1501 = vpack.c.b16 %v1125, %v1117
        %v1502 = vpack.c.b16 %v1126, %v1118
        %v1503 = vpack.c.b16 %v1135, %v1127
        %v1504 = vpack.c.b16 %v1136, %v1128
        %v1505 = vpack.c.b16 %v1137, %v1129
        %v1506 = vpack.c.b16 %v1138, %v1130
        %v1507 = vpack.c.b16 %v1139, %v1131
        %v1508 = vpack.c.b16 %v1140, %v1132
        %v1509 = vpack.c.b16 %v1141, %v1133
        %v1510 = vpack.c.b16 %v1142, %v1134
        %v1511 = vpack.c.b16 %v1151, %v1143
        %v1512 = vpack.c.b16 %v1152, %v1144
        %v1513 = vpack.c.b16 %v1153, %v1145
        %v1514 = vpack.c.b16 %v1154, %v1146
        %v1515 = vpack.c.b16 %v1155, %v1147
        %v1516 = vpack.c.b16 %v1156, %v1148
        %v1517 = vpack.c.b16 %v1157, %v1149
        %v1518 = vpack.c.b16 %v1158, %v1150
        %v1519 = vpack.c.b16 %v1167, %v1159
        %v1520 = vpack.c.b16 %v1168, %v1160
        %v1521 = vpack.c.b16 %v1169, %v1161
        %v1522 = vpack.c.b16 %v1170, %v1162
        %v1523 = vpack.c.b16 %v1171, %v1163
        %v1524 = vpack.c.b16 %v1172, %v1164
        %v1525 = vpack.c.b16 %v1173, %v1165
        %v1526 = vpack.c.b16 %v1174, %v1166
        %v1527 = vpack.c.b16 %v1183, %v1175
        %v1528 = vpack.c.b16 %v1184, %v1176
        %v1529 = vpack.c.b16 %v1185, %v1177
        %v1530 = vpack.c.b16 %v1186, %v1178
        %v1531 = vpack.c.b16 %v1187, %v1179
        %v1532 = vpack.c.b16 %v1188, %v1180
        %v1533 = vpack.c.b16 %v1189, %v1181
        %v1534 = vpack.c.b16 %v1190, %v1182
        %v1535 = vpack.c.b16 %v1199, %v1191
        %v1536 = vpack.c.b16 %v1200, %v1192
        %v1537 = vpack.c.b16 %v1201, %v1193
        %v1538 = vpack.c.b16 %v1202, %v1194
        %v1539 = vpack.c.b16 %v1203, %v1195
        %v1540 = vpack.c.b16 %v1204, %v1196
        %v1541 = vpack.c.b16 %v1205, %v1197
        %v1542 = vpack.c.b16 %v1206, %v1198
        %v1543 = vpack.c.b16 %v1215, %v1207
        %v1544 = vpack.c.b16 %v1216, %v1208
        %v1545 = vpack.c.b16 %v1217, %v1209
        %v1546 = vpack.c.b16 %v1218, %v1210
        %v1547 = vpack.c.b16 %v1219, %v1211
        %v1548 = vpack.c.b16 %v1220, %v1212
        %v1549 = vpack.c.b16 %v1221, %v1213
        %v1550 = vpack.c.b16 %v1222, %v1214
        %v1551 = vpack.c.b16 %v1231, %v1223
        %v1552 = vpack.c.b16 %v1232, %v1224
        %v1553 = vpack.c.b16 %v1233, %v1225
        %v1554 = vpack.c.b16 %v1234, %v1226
        %v1555 = vpack.c.b16 %v1235, %v1227
        %v1556 = vpack.c.b16 %v1236, %v1228
        %v1557 = vpack.c.b16 %v1237, %v1229
        %v1558 = vpack.c.b16 %v1238, %v1230
        %v1559 = vpack.c.b16 %v1247, %v1239
        %v1560 = vpack.c.b16 %v1248, %v1240
        %v1561 = vpack.c.b16 %v1249, %v1241
        %v1562 = vpack.c.b16 %v1250, %v1242
        %v1563 = vpack.c.b16 %v1251, %v1243
        %v1564 = vpack.c.b16 %v1252, %v1244
        %v1565 = vpack.c.b16 %v1253, %v1245
        %v1566 = vpack.c.b16 %v1254, %v1246
        %v1567 = vpack.c.b16 %v1263, %v1255
        %v1568 = vpack.c.b16 %v1264, %v1256
        %v1569 = vpack.c.b16 %v1265, %v1257
        %v1570 = vpack.c.b16 %v1266, %v1258
        %v1571 = vpack.c.b16 %v1267, %v1259
        %v1572 = vpack.c.b16 %v1268, %v1260
        %v1573 = vpack.c.b16 %v1269, %v1261
        %v1574 = vpack.c.b16 %v1270, %v1262
        %v1575 = vpack.c.b16 %v1279, %v1271
        %v1576 = vpack.c.b16 %v1280, %v1272
        %v1577 = vpack.c.b16 %v1281, %v1273
        %v1578 = vpack.c.b16 %v1282, %v1274
        %v1579 = vpack.c.b16 %v1283, %v1275
        %v1580 = vpack.c.b16 %v1284, %v1276
        %v1581 = vpack.c.b16 %v1285, %v1277
        %v1582 = vpack.c.b16 %v1286, %v1278
        %v1583 = vpack.c.b16 %v1295, %v1287
        %v1584 = vpack.c.b16 %v1296, %v1288
        %v1585 = vpack.c.b16 %v1297, %v1289
        %v1586 = vpack.c.b16 %v1298, %v1290
        %v1587 = vpack.c.b16 %v1299, %v1291
        %v1588 = vpack.c.b16 %v1300, %v1292
        %v1589 = vpack.c.b16 %v1301, %v1293
        %v1590 = vpack.c.b16 %v1302, %v1294
        %v1591 = vpack.c.b16 %v1311, %v1303
        %v1592 = vpack.c.b16 %v1312, %v1304
        %v1593 = vpack.c.b16 %v1313, %v1305
        %v1594 = vpack.c.b16 %v1314, %v1306
        %v1595 = vpack.c.b16 %v1315, %v1307
        %v1596 = vpack.c.b16 %v1316, %v1308
        %v1597 = vpack.c.b16 %v1317, %v1309
        %v1598 = vpack.c.b16 %v1318, %v1310
        %v1599 = vpack.c.b16 %v1327, %v1319
        %v1600 = vpack.c.b16 %v1328, %v1320
        %v1601 = vpack.c.b16 %v1329, %v1321
        %v1602 = vpack.c.b16 %v1330, %v1322
        %v1603 = vpack.c.b16 %v1331, %v1323
        %v1604 = vpack.c.b16 %v1332, %v1324
        %v1605 = vpack.c.b16 %v1333, %v1325
        %v1606 = vpack.c.b16 %v1334, %v1326
        %v1607 = vpack.c.b16 %v1343, %v1335
        %v1608 = vpack.c.b16 %v1344, %v1336
        %v1609 = vpack.c.b16 %v1345, %v1337
        %v1610 = vpack.c.b16 %v1346, %v1338
        %v1611 = vpack.c.b16 %v1347, %v1339
        %v1612 = vpack.c.b16 %v1348, %v1340
        %v1613 = vpack.c.b16 %v1349, %v1341
        %v1614 = vpack.c.b16 %v1350, %v1342
        %v1615 = vpack.c.b16 %v1359, %v1351
        %v1616 = vpack.c.b16 %v1360, %v1352
        %v1617 = vpack.c.b16 %v1361, %v1353
        %v1618 = vpack.c.b16 %v1362, %v1354
        %v1619 = vpack.c.b16 %v1363, %v1355
        %v1620 = vpack.c.b16 %v1364, %v1356
        %v1621 = vpack.c.b16 %v1365, %v1357
        %v1622 = vpack.c.b16 %v1366, %v1358
        %v1623 = vpack.c.b16 %v1375, %v1367
        %v1624 = vpack.c.b16 %v1376, %v1368
        %v1625 = vpack.c.b16 %v1377, %v1369
        %v1626 = vpack.c.b16 %v1378, %v1370
        %v1627 = vpack.c.b16 %v1379, %v1371
        %v1628 = vpack.c.b16 %v1380, %v1372
        %v1629 = vpack.c.b16 %v1381, %v1373
        %v1630 = vpack.c.b16 %v1382, %v1374
        %v1631 = vpack.c.b16 %v1391, %v1383
        %v1632 = vpack.c.b16 %v1392, %v1384
        %v1633 = vpack.c.b16 %v1393, %v1385
        %v1634 = vpack.c.b16 %v1394, %v1386
        %v1635 = vpack.c.b16 %v1395, %v1387
        %v1636 = vpack.c.b16 %v1396, %v1388
        %v1637 = vpack.c.b16 %v1397, %v1389
        %v1638 = vpack.c.b16 %v1398, %v1390
        %v1639 = vpack.c.b16 %v1407, %v1399
        %v1640 = vpack.c.b16 %v1408, %v1400
        %v1641 = vpack.c.b16 %v1409, %v1401
        %v1642 = vpack.c.b16 %v1410, %v1402
        %v1643 = vpack.c.b16 %v1411, %v1403
        %v1644 = vpack.c.b16 %v1412, %v1404
        %v1645 = vpack.c.b16 %v1413, %v1405
        %v1646 = vpack.c.b16 %v1414, %v1406
        %v1647 = vpack.c.b16 %v1423, %v1415
        %v1648 = vpack.c.b16 %v1424, %v1416
        %v1649 = vpack.c.b16 %v1425, %v1417
        %v1650 = vpack.c.b16 %v1426, %v1418
        %v1651 = vpack.c.b16 %v1427, %v1419
        %v1652 = vpack.c.b16 %v1428, %v1420
        %v1653 = vpack.c.b16 %v1429, %v1421
        %v1654 = vpack.c.b16 %v1430, %v1422
        %v1655 = vpack.c.b16 %v1439, %v1431
        %v1656 = vpack.c.b16 %v1440, %v1432
        %v1657 = vpack.c.b16 %v1441, %v1433
        %v1658 = vpack.c.b16 %v1442, %v1434
        %v1659 = vpack.c.b16 %v1443, %v1435
        %v1660 = vpack.c.b16 %v1444, %v1436
        %v1661 = vpack.c.b16 %v1445, %v1437
        %v1662 = vpack.c.b16 %v1446, %v1438
        %v1663 = vpack.c.b16 %v1455, %v1447
        %v1664 = vpack.c.b16 %v1456, %v1448
        %v1665 = vpack.c.b16 %v1457, %v1449
        %v1666 = vpack.c.b16 %v1458, %v1450
        %v1667 = vpack.c.b16 %v1459, %v1451
        %v1668 = vpack.c.b16 %v1460, %v1452
        %v1669 = vpack.c.b16 %v1461, %v1453
        %v1670 = vpack.c.b16 %v1462, %v1454
        %v1671 = vpack.c.b16 %v1471, %v1463
        %v1672 = vpack.c.b16 %v1472, %v1464
        %v1673 = vpack.c.b16 %v1473, %v1465
        %v1674 = vpack.c.b16 %v1474, %v1466
        %v1675 = vpack.c.b16 %v1475, %v1467
        %v1676 = vpack.c.b16 %v1476, %v1468
        %v1677 = vpack.c.b16 %v1477, %v1469
        %v1678 = vpack.c.b16 %v1478, %v1470
        %vm1879 = vcmask 130048
        %v1881 = vsel %vm1879, %v875, 0
        %1883 = vmatprep.subr.bf16.mxu0 %v1536
        %1884 = vmatpush1.bf16.msra.mxu0 %v1535
        %1885 = vmatprep.subr.bf16.mxu0 %v1528
        %1886 = vmatpush1.bf16.msra.mxu0 %v1527
        %1887 = vmatprep.subr.bf16.mxu0 %v1520
        %1888 = vmatpush1.bf16.msra.mxu0 %v1519
        %1889 = vmatprep.subr.bf16.mxu0 %v1512
        %1890 = vmatpush1.bf16.msra.mxu0 %v1511
        %1891 = vmatprep.subr.bf16.mxu0 %v1504
        %1892 = vmatpush1.bf16.msra.mxu0 %v1503
        %1893 = vmatprep.subr.bf16.mxu0 %v1496
        %1894 = vmatpush1.bf16.msra.mxu0 %v1495
        %1895 = vmatprep.subr.bf16.mxu0 %v1488
        %1896 = vmatpush1.bf16.msra.mxu0 %v1487
        %1897 = vmatprep.subr.bf16.mxu0 %v1480
        %1898 = vmatpush1.bf16.msra.mxu0 %v1479
        %1899 = vmatprep.subr.bf16.mxu0 %v1600
        %1900 = vmatpush2.bf16.msra.mxu0 %v1599
        %1901 = vmatprep.subr.bf16.mxu0 %v1592
        %1902 = vmatpush2.bf16.msra.mxu0 %v1591
        %1903 = vmatprep.subr.bf16.mxu0 %v1584
        %1904 = vmatpush2.bf16.msra.mxu0 %v1583
        %1905 = vmatprep.subr.bf16.mxu0 %v1576
        %1906 = vmatpush2.bf16.msra.mxu0 %v1575
        %1907 = vmatprep.subr.bf16.mxu0 %v1568
        %1908 = vmatpush2.bf16.msra.mxu0 %v1567
        %1909 = vmatprep.subr.bf16.mxu0 %v1560
        %1910 = vmatpush2.bf16.msra.mxu0 %v1559
        %1911 = vmatprep.subr.bf16.mxu0 %v1552
        %1912 = vmatpush2.bf16.msra.mxu0 %v1551
        %1913 = vmatprep.subr.bf16.mxu0 %v1544
        %1914 = vmatpush2.bf16.msra.mxu0 %v1543
        %1915 = vmatprep.mubr.bf16.mxu0 %v873
        %1916 = vmatmul.mubr.bf16.gmra.mxu0 %v872
        %v1917 = vpop.f32.mrf.mxu0
        %v1918 = vadd.f32 %v853, %v1917
        %v1919 = vpop.f32.mrf.mxu0
        %v1920 = vadd.f32 %v853, %v1919
        %v1921 = vpop.f32.mrf.mxu0
        %v1922 = vadd.f32 %v858, %v1921
        %v1923 = vpop.f32.mrf.mxu0
        %v1924 = vadd.f32 %v858, %v1923
        %1925 = vdwg.mxu0
        %1926 = vmatprep.subr.bf16.mxu0 %v1664
        %1927 = vmatpush1.bf16.msra.mxu0 %v1663
        %1928 = vmatprep.subr.bf16.mxu0 %v1656
        %1929 = vmatpush1.bf16.msra.mxu0 %v1655
        %1930 = vmatprep.subr.bf16.mxu0 %v1648
        %1931 = vmatpush1.bf16.msra.mxu0 %v1647
        %1932 = vmatprep.subr.bf16.mxu0 %v1640
        %1933 = vmatpush1.bf16.msra.mxu0 %v1639
        %1934 = vmatprep.subr.bf16.mxu0 %v1632
        %1935 = vmatpush1.bf16.msra.mxu0 %v1631
        %1936 = vmatprep.subr.bf16.mxu0 %v1624
        %1937 = vmatpush1.bf16.msra.mxu0 %v1623
        %1938 = vmatprep.subr.bf16.mxu0 %v1616
        %1939 = vmatpush1.bf16.msra.mxu0 %v1615
        %1940 = vmatprep.subr.bf16.mxu0 %v1608
        %1941 = vmatpush1.bf16.msra.mxu0 %v1607
        %1942 = vmatprep.subr.bf16.mxu0 0
        %1943 = vmatpush2.bf16.msra.mxu0 0
        %1944 = vmatprep.subr.bf16.mxu0 0
        %1945 = vmatpush2.bf16.msra.mxu0 0
        %1946 = vmatprep.subr.bf16.mxu0 0
        %1947 = vmatpush2.bf16.msra.mxu0 0
        %1948 = vmatprep.subr.bf16.mxu0 0
        %1949 = vmatpush2.bf16.msra.mxu0 0
        %1950 = vmatprep.subr.bf16.mxu0 0
        %1951 = vmatpush2.bf16.msra.mxu0 0
        %1952 = vmatprep.subr.bf16.mxu0 0
        %1953 = vmatpush2.bf16.msra.mxu0 0
        %1954 = vmatprep.subr.bf16.mxu0 0
        %1955 = vmatpush2.bf16.msra.mxu0 0
        %1956 = vmatprep.subr.bf16.mxu0 %v1672
        %1957 = vmatpush2.bf16.msra.mxu0 %v1671
        %1958 = vmatprep.mubr.bf16.mxu0 %v1881
        %1959 = vmatmul.mubr.bf16.gmra.mxu0 %v874
        %v1960 = vpop.f32.mrf.mxu0
        %v1961 = vadd.f32 %v1918, %v1960
        %v1962 = vpop.f32.mrf.mxu0
        %v1963 = vadd.f32 %v1920, %v1962
        %v1964 = vpop.f32.mrf.mxu0
        %v1965 = vadd.f32 %v1922, %v1964
        %v1966 = vpop.f32.mrf.mxu0
        %v1967 = vadd.f32 %v1924, %v1966
        %1968 = vdwg.mxu0
        %1969 = vmatprep.subr.bf16.mxu0 %v1538
        %1970 = vmatpush1.bf16.msra.mxu0 %v1537
        %1971 = vmatprep.subr.bf16.mxu0 %v1530
        %1972 = vmatpush1.bf16.msra.mxu0 %v1529
        %1973 = vmatprep.subr.bf16.mxu0 %v1522
        %1974 = vmatpush1.bf16.msra.mxu0 %v1521
        %1975 = vmatprep.subr.bf16.mxu0 %v1514
        %1976 = vmatpush1.bf16.msra.mxu0 %v1513
        %1977 = vmatprep.subr.bf16.mxu0 %v1506
        %1978 = vmatpush1.bf16.msra.mxu0 %v1505
        %1979 = vmatprep.subr.bf16.mxu0 %v1498
        %1980 = vmatpush1.bf16.msra.mxu0 %v1497
        %1981 = vmatprep.subr.bf16.mxu0 %v1490
        %1982 = vmatpush1.bf16.msra.mxu0 %v1489
        %1983 = vmatprep.subr.bf16.mxu0 %v1482
        %1984 = vmatpush1.bf16.msra.mxu0 %v1481
        %1985 = vmatprep.subr.bf16.mxu0 %v1602
        %1986 = vmatpush2.bf16.msra.mxu0 %v1601
        %1987 = vmatprep.subr.bf16.mxu0 %v1594
        %1988 = vmatpush2.bf16.msra.mxu0 %v1593
        %1989 = vmatprep.subr.bf16.mxu0 %v1586
        %1990 = vmatpush2.bf16.msra.mxu0 %v1585
        %1991 = vmatprep.subr.bf16.mxu0 %v1578
        %1992 = vmatpush2.bf16.msra.mxu0 %v1577
        %1993 = vmatprep.subr.bf16.mxu0 %v1570
        %1994 = vmatpush2.bf16.msra.mxu0 %v1569
        %1995 = vmatprep.subr.bf16.mxu0 %v1562
        %1996 = vmatpush2.bf16.msra.mxu0 %v1561
        %1997 = vmatprep.subr.bf16.mxu0 %v1554
        %1998 = vmatpush2.bf16.msra.mxu0 %v1553
        %1999 = vmatprep.subr.bf16.mxu0 %v1546
        %2000 = vmatpush2.bf16.msra.mxu0 %v1545
        %2001 = vmatprep.mubr.bf16.mxu0 %v873
        %2002 = vmatmul.mubr.bf16.gmra.mxu0 %v872
        %v2003 = vpop.f32.mrf.mxu0
        %v2004 = vadd.f32 %v853, %v2003
        %v2005 = vpop.f32.mrf.mxu0
        %v2006 = vadd.f32 %v853, %v2005
        %v2007 = vpop.f32.mrf.mxu0
        %v2008 = vadd.f32 %v858, %v2007
        %v2009 = vpop.f32.mrf.mxu0
        %v2010 = vadd.f32 %v858, %v2009
        %2011 = vdwg.mxu0
        %2012 = vmatprep.subr.bf16.mxu0 %v1666
        %2013 = vmatpush1.bf16.msra.mxu0 %v1665
        %2014 = vmatprep.subr.bf16.mxu0 %v1658
        %2015 = vmatpush1.bf16.msra.mxu0 %v1657
        %2016 = vmatprep.subr.bf16.mxu0 %v1650
        %2017 = vmatpush1.bf16.msra.mxu0 %v1649
        %2018 = vmatprep.subr.bf16.mxu0 %v1642
        %2019 = vmatpush1.bf16.msra.mxu0 %v1641
        %2020 = vmatprep.subr.bf16.mxu0 %v1634
        %2021 = vmatpush1.bf16.msra.mxu0 %v1633
        %2022 = vmatprep.subr.bf16.mxu0 %v1626
        %2023 = vmatpush1.bf16.msra.mxu0 %v1625
        %2024 = vmatprep.subr.bf16.mxu0 %v1618
        %2025 = vmatpush1.bf16.msra.mxu0 %v1617
        %2026 = vmatprep.subr.bf16.mxu0 %v1610
        %2027 = vmatpush1.bf16.msra.mxu0 %v1609
        %2028 = vmatprep.subr.bf16.mxu0 0
        %2029 = vmatpush2.bf16.msra.mxu0 0
        %2030 = vmatprep.subr.bf16.mxu0 0
        %2031 = vmatpush2.bf16.msra.mxu0 0
        %2032 = vmatprep.subr.bf16.mxu0 0
        %2033 = vmatpush2.bf16.msra.mxu0 0
        %2034 = vmatprep.subr.bf16.mxu0 0
        %2035 = vmatpush2.bf16.msra.mxu0 0
        %2036 = vmatprep.subr.bf16.mxu0 0
        %2037 = vmatpush2.bf16.msra.mxu0 0
        %2038 = vmatprep.subr.bf16.mxu0 0
        %2039 = vmatpush2.bf16.msra.mxu0 0
        %2040 = vmatprep.subr.bf16.mxu0 0
        %2041 = vmatpush2.bf16.msra.mxu0 0
        %2042 = vmatprep.subr.bf16.mxu0 %v1674
        %2043 = vmatpush2.bf16.msra.mxu0 %v1673
        %2044 = vmatprep.mubr.bf16.mxu0 %v1881
        %2045 = vmatmul.mubr.bf16.gmra.mxu0 %v874
        %v2046 = vpop.f32.mrf.mxu0
        %v2047 = vadd.f32 %v2004, %v2046
        %v2048 = vpop.f32.mrf.mxu0
        %v2049 = vadd.f32 %v2006, %v2048
        %v2050 = vpop.f32.mrf.mxu0
        %v2051 = vadd.f32 %v2008, %v2050
        %v2052 = vpop.f32.mrf.mxu0
        %v2053 = vadd.f32 %v2010, %v2052
        %2054 = vdwg.mxu0
        %2055 = vmatprep.subr.bf16.mxu0 %v1540
        %2056 = vmatpush1.bf16.msra.mxu0 %v1539
        %2057 = vmatprep.subr.bf16.mxu0 %v1532
        %2058 = vmatpush1.bf16.msra.mxu0 %v1531
        %2059 = vmatprep.subr.bf16.mxu0 %v1524
        %2060 = vmatpush1.bf16.msra.mxu0 %v1523
        %2061 = vmatprep.subr.bf16.mxu0 %v1516
        %2062 = vmatpush1.bf16.msra.mxu0 %v1515
        %2063 = vmatprep.subr.bf16.mxu0 %v1508
        %2064 = vmatpush1.bf16.msra.mxu0 %v1507
        %2065 = vmatprep.subr.bf16.mxu0 %v1500
        %2066 = vmatpush1.bf16.msra.mxu0 %v1499
        %2067 = vmatprep.subr.bf16.mxu0 %v1492
        %2068 = vmatpush1.bf16.msra.mxu0 %v1491
        %2069 = vmatprep.subr.bf16.mxu0 %v1484
        %2070 = vmatpush1.bf16.msra.mxu0 %v1483
        %2071 = vmatprep.subr.bf16.mxu0 %v1604
        %2072 = vmatpush2.bf16.msra.mxu0 %v1603
        %2073 = vmatprep.subr.bf16.mxu0 %v1596
        %2074 = vmatpush2.bf16.msra.mxu0 %v1595
        %2075 = vmatprep.subr.bf16.mxu0 %v1588
        %2076 = vmatpush2.bf16.msra.mxu0 %v1587
        %2077 = vmatprep.subr.bf16.mxu0 %v1580
        %2078 = vmatpush2.bf16.msra.mxu0 %v1579
        %2079 = vmatprep.subr.bf16.mxu0 %v1572
        %2080 = vmatpush2.bf16.msra.mxu0 %v1571
        %2081 = vmatprep.subr.bf16.mxu0 %v1564
        %2082 = vmatpush2.bf16.msra.mxu0 %v1563
        %2083 = vmatprep.subr.bf16.mxu0 %v1556
        %2084 = vmatpush2.bf16.msra.mxu0 %v1555
        %2085 = vmatprep.subr.bf16.mxu0 %v1548
        %2086 = vmatpush2.bf16.msra.mxu0 %v1547
        %2087 = vmatprep.mubr.bf16.mxu0 %v873
        %2088 = vmatmul.mubr.bf16.gmra.mxu0 %v872
        %v2089 = vpop.f32.mrf.mxu0
        %v2090 = vadd.f32 %v853, %v2089
        %v2091 = vpop.f32.mrf.mxu0
        %v2092 = vadd.f32 %v853, %v2091
        %v2093 = vpop.f32.mrf.mxu0
        %v2094 = vadd.f32 %v858, %v2093
        %v2095 = vpop.f32.mrf.mxu0
        %v2096 = vadd.f32 %v858, %v2095
        %2097 = vdwg.mxu0
        %2098 = vmatprep.subr.bf16.mxu0 %v1668
        %2099 = vmatpush1.bf16.msra.mxu0 %v1667
        %2100 = vmatprep.subr.bf16.mxu0 %v1660
        %2101 = vmatpush1.bf16.msra.mxu0 %v1659
        %2102 = vmatprep.subr.bf16.mxu0 %v1652
        %2103 = vmatpush1.bf16.msra.mxu0 %v1651
        %2104 = vmatprep.subr.bf16.mxu0 %v1644
        %2105 = vmatpush1.bf16.msra.mxu0 %v1643
        %2106 = vmatprep.subr.bf16.mxu0 %v1636
        %2107 = vmatpush1.bf16.msra.mxu0 %v1635
        %2108 = vmatprep.subr.bf16.mxu0 %v1628
        %2109 = vmatpush1.bf16.msra.mxu0 %v1627
        %2110 = vmatprep.subr.bf16.mxu0 %v1620
        %2111 = vmatpush1.bf16.msra.mxu0 %v1619
        %2112 = vmatprep.subr.bf16.mxu0 %v1612
        %2113 = vmatpush1.bf16.msra.mxu0 %v1611
        %2114 = vmatprep.subr.bf16.mxu0 0
        %2115 = vmatpush2.bf16.msra.mxu0 0
        %2116 = vmatprep.subr.bf16.mxu0 0
        %2117 = vmatpush2.bf16.msra.mxu0 0
        %2118 = vmatprep.subr.bf16.mxu0 0
        %2119 = vmatpush2.bf16.msra.mxu0 0
        %2120 = vmatprep.subr.bf16.mxu0 0
        %2121 = vmatpush2.bf16.msra.mxu0 0
        %2122 = vmatprep.subr.bf16.mxu0 0
        %2123 = vmatpush2.bf16.msra.mxu0 0
        %2124 = vmatprep.subr.bf16.mxu0 0
        %2125 = vmatpush2.bf16.msra.mxu0 0
        %2126 = vmatprep.subr.bf16.mxu0 0
        %2127 = vmatpush2.bf16.msra.mxu0 0
        %2128 = vmatprep.subr.bf16.mxu0 %v1676
        %2129 = vmatpush2.bf16.msra.mxu0 %v1675
        %2130 = vmatprep.mubr.bf16.mxu0 %v1881
        %2131 = vmatmul.mubr.bf16.gmra.mxu0 %v874
        %v2132 = vpop.f32.mrf.mxu0
        %v2133 = vadd.f32 %v2090, %v2132
        %v2134 = vpop.f32.mrf.mxu0
        %v2135 = vadd.f32 %v2092, %v2134
        %v2136 = vpop.f32.mrf.mxu0
        %v2137 = vadd.f32 %v2094, %v2136
        %v2138 = vpop.f32.mrf.mxu0
        %v2139 = vadd.f32 %v2096, %v2138
        %2140 = vdwg.mxu0
        %2141 = vmatprep.subr.bf16.mxu0 %v1542
        %2142 = vmatpush1.bf16.msra.mxu0 %v1541
        %2143 = vmatprep.subr.bf16.mxu0 %v1534
        %2144 = vmatpush1.bf16.msra.mxu0 %v1533
        %2145 = vmatprep.subr.bf16.mxu0 %v1526
        %2146 = vmatpush1.bf16.msra.mxu0 %v1525
        %2147 = vmatprep.subr.bf16.mxu0 %v1518
        %2148 = vmatpush1.bf16.msra.mxu0 %v1517
        %2149 = vmatprep.subr.bf16.mxu0 %v1510
        %2150 = vmatpush1.bf16.msra.mxu0 %v1509
        %2151 = vmatprep.subr.bf16.mxu0 %v1502
        %2152 = vmatpush1.bf16.msra.mxu0 %v1501
        %2153 = vmatprep.subr.bf16.mxu0 %v1494
        %2154 = vmatpush1.bf16.msra.mxu0 %v1493
        %2155 = vmatprep.subr.bf16.mxu0 %v1486
        %2156 = vmatpush1.bf16.msra.mxu0 %v1485
        %2157 = vmatprep.subr.bf16.mxu0 %v1606
        %2158 = vmatpush2.bf16.msra.mxu0 %v1605
        %2159 = vmatprep.subr.bf16.mxu0 %v1598
        %2160 = vmatpush2.bf16.msra.mxu0 %v1597
        %2161 = vmatprep.subr.bf16.mxu0 %v1590
        %2162 = vmatpush2.bf16.msra.mxu0 %v1589
        %2163 = vmatprep.subr.bf16.mxu0 %v1582
        %2164 = vmatpush2.bf16.msra.mxu0 %v1581
        %2165 = vmatprep.subr.bf16.mxu0 %v1574
        %2166 = vmatpush2.bf16.msra.mxu0 %v1573
        %2167 = vmatprep.subr.bf16.mxu0 %v1566
        %2168 = vmatpush2.bf16.msra.mxu0 %v1565
        %2169 = vmatprep.subr.bf16.mxu0 %v1558
        %2170 = vmatpush2.bf16.msra.mxu0 %v1557
        %2171 = vmatprep.subr.bf16.mxu0 %v1550
        %2172 = vmatpush2.bf16.msra.mxu0 %v1549
        %2173 = vmatprep.mubr.bf16.mxu0 %v873
        %2174 = vmatmul.mubr.bf16.gmra.mxu0 %v872
        %v2175 = vpop.f32.mrf.mxu0
        %v2176 = vadd.f32 %v853, %v2175
        %v2177 = vpop.f32.mrf.mxu0
        %v2178 = vadd.f32 %v853, %v2177
        %v2179 = vpop.f32.mrf.mxu0
        %v2180 = vadd.f32 %v858, %v2179
        %v2181 = vpop.f32.mrf.mxu0
        %v2182 = vadd.f32 %v858, %v2181
        %2183 = vdwg.mxu0
        %2184 = vmatprep.subr.bf16.mxu0 %v1670
        %2185 = vmatpush1.bf16.msra.mxu0 %v1669
        %2186 = vmatprep.subr.bf16.mxu0 %v1662
        %2187 = vmatpush1.bf16.msra.mxu0 %v1661
        %2188 = vmatprep.subr.bf16.mxu0 %v1654
        %2189 = vmatpush1.bf16.msra.mxu0 %v1653
        %2190 = vmatprep.subr.bf16.mxu0 %v1646
        %2191 = vmatpush1.bf16.msra.mxu0 %v1645
        %2192 = vmatprep.subr.bf16.mxu0 %v1638
        %2193 = vmatpush1.bf16.msra.mxu0 %v1637
        %2194 = vmatprep.subr.bf16.mxu0 %v1630
        %2195 = vmatpush1.bf16.msra.mxu0 %v1629
        %2196 = vmatprep.subr.bf16.mxu0 %v1622
        %2197 = vmatpush1.bf16.msra.mxu0 %v1621
        %2198 = vmatprep.subr.bf16.mxu0 %v1614
        %2199 = vmatpush1.bf16.msra.mxu0 %v1613
        %2200 = vmatprep.subr.bf16.mxu0 0
        %2201 = vmatpush2.bf16.msra.mxu0 0
        %2202 = vmatprep.subr.bf16.mxu0 0
        %2203 = vmatpush2.bf16.msra.mxu0 0
        %2204 = vmatprep.subr.bf16.mxu0 0
        %2205 = vmatpush2.bf16.msra.mxu0 0
        %2206 = vmatprep.subr.bf16.mxu0 0
        %2207 = vmatpush2.bf16.msra.mxu0 0
        %2208 = vmatprep.subr.bf16.mxu0 0
        %2209 = vmatpush2.bf16.msra.mxu0 0
        %2210 = vmatprep.subr.bf16.mxu0 0
        %2211 = vmatpush2.bf16.msra.mxu0 0
        %2212 = vmatprep.subr.bf16.mxu0 0
        %2213 = vmatpush2.bf16.msra.mxu0 0
        %2214 = vmatprep.subr.bf16.mxu0 %v1678
        %2215 = vmatpush2.bf16.msra.mxu0 %v1677
        %2216 = vmatprep.mubr.bf16.mxu0 %v1881
        %2217 = vmatmul.mubr.bf16.gmra.mxu0 %v874
        %v2218 = vpop.f32.mrf.mxu0
        %v2219 = vadd.f32 %v2176, %v2218
        %v2220 = vpop.f32.mrf.mxu0
        %v2221 = vadd.f32 %v2178, %v2220
        %v2222 = vpop.f32.mrf.mxu0
        %v2223 = vadd.f32 %v2180, %v2222
        %v2224 = vpop.f32.mrf.mxu0
        %v2225 = vadd.f32 %v2182, %v2224
        %2226 = vdwg.mxu0
        %vm2227 = vcmp.gt.f32.partialorder %v1961, 0.0
        %vm2228 = vcmp.gt.f32.partialorder %v1963, 0.0
        %vm2229 = vcmp.gt.f32.partialorder %v2047, 0.0
        %vm2230 = vcmp.gt.f32.partialorder %v2049, 0.0
        %vm2231 = vcmp.gt.f32.partialorder %v2133, 0.0
        %vm2232 = vcmp.gt.f32.partialorder %v2135, 0.0
        %vm2233 = vcmp.gt.f32.partialorder %v2219, 0.0
        %vm2234 = vcmp.gt.f32.partialorder %v2221, 0.0
        %vm2235 = vcmp.gt.f32.partialorder %v1965, 0.0
        %vm2236 = vcmp.gt.f32.partialorder %v1967, 0.0
        %vm2237 = vcmp.gt.f32.partialorder %v2051, 0.0
        %vm2238 = vcmp.gt.f32.partialorder %v2053, 0.0
        %vm2239 = vcmp.gt.f32.partialorder %v2137, 0.0
        %vm2240 = vcmp.gt.f32.partialorder %v2139, 0.0
        %vm2241 = vcmp.gt.f32.partialorder %v2223, 0.0
        %vm2242 = vcmp.gt.f32.partialorder %v2225, 0.0
        %v2243 = vmul.f32 %v1961, 0.01
        %v2244 = vmul.f32 %v1963, 0.01
        %v2245 = vmul.f32 %v2047, 0.01
        %v2246 = vmul.f32 %v2049, 0.01
        %v2247 = vmul.f32 %v2133, 0.01
        %v2248 = vmul.f32 %v2135, 0.01
        %v2249 = vmul.f32 %v2219, 0.01
        %v2250 = vmul.f32 %v2221, 0.01
        %v2251 = vmul.f32 %v1965, 0.01
        %v2252 = vmul.f32 %v1967, 0.01
        %v2253 = vmul.f32 %v2051, 0.01
        %v2254 = vmul.f32 %v2053, 0.01
        %v2255 = vmul.f32 %v2137, 0.01
        %v2256 = vmul.f32 %v2139, 0.01
        %v2257 = vmul.f32 %v2223, 0.01
        %v2258 = vmul.f32 %v2225, 0.01
        %v2259 = vsel %vm2227, %v1961, %v2243
        %v2260 = vsel %vm2228, %v1963, %v2244
        %v2261 = vsel %vm2229, %v2047, %v2245
        %v2262 = vsel %vm2230, %v2049, %v2246
        %v2263 = vsel %vm2231, %v2133, %v2247
        %v2264 = vsel %vm2232, %v2135, %v2248
        %v2265 = vsel %vm2233, %v2219, %v2249
        %v2266 = vsel %vm2234, %v2221, %v2250
        %v2267 = vsel %vm2235, %v1965, %v2251
        %v2268 = vsel %vm2236, %v1967, %v2252
        %v2269 = vsel %vm2237, %v2051, %v2253
        %v2270 = vsel %vm2238, %v2053, %v2254
        %v2271 = vsel %vm2239, %v2137, %v2255
        %v2272 = vsel %vm2240, %v2139, %v2256
        %v2273 = vsel %vm2241, %v2223, %v2257
        %v2274 = vsel %vm2242, %v2225, %v2258
        %v2275 = vpack.c.bf16 %v2267, %v2259
        %v2276 = vpack.c.bf16 %v2268, %v2260
        %v2277 = vpack.c.bf16 %v2269, %v2261
        %v2278 = vpack.c.bf16 %v2270, %v2262
        %v2279 = vpack.c.bf16 %v2271, %v2263
        %v2280 = vpack.c.bf16 %v2272, %v2264
        %v2281 = vpack.c.bf16 %v2273, %v2265
        %v2282 = vpack.c.bf16 %v2274, %v2266
        %v2291 = vunpack.c.l.b16 %v2275
        %v2292 = vunpack.c.l.b16 %v2276
        %v2293 = vunpack.c.l.b16 %v2277
        %v2294 = vunpack.c.l.b16 %v2278
        %v2295 = vunpack.c.l.b16 %v2279
        %v2296 = vunpack.c.l.b16 %v2280
        %v2297 = vunpack.c.l.b16 %v2281
        %v2298 = vunpack.c.l.b16 %v2282
        %v2299 = vunpack.c.h.b16 %v2275
        %v2300 = vunpack.c.h.b16 %v2276
        %v2301 = vunpack.c.h.b16 %v2277
        %v2302 = vunpack.c.h.b16 %v2278
        %v2303 = vunpack.c.h.b16 %v2279
        %v2304 = vunpack.c.h.b16 %v2280
        %v2305 = vunpack.c.h.b16 %v2281
        %v2306 = vunpack.c.h.b16 %v2282
        %v2307 = vpack.c.b16 %v2292, %v2291
        %v2308 = vpack.c.b16 %v2294, %v2293
        %v2309 = vpack.c.b16 %v2296, %v2295
        %v2310 = vpack.c.b16 %v2298, %v2297
        %v2311 = vpack.c.b16 %v2300, %v2299
        %v2312 = vpack.c.b16 %v2302, %v2301
        %v2313 = vpack.c.b16 %v2304, %v2303
        %v2314 = vpack.c.b16 %v2306, %v2305
        %2323 = vst [vmem:[%s630] sm:$0xff] %v2307
        %2324 = vst [vmem:[%s630 + $0x8] sm:$0xff] %v2308
        %2325 = vst [vmem:[%s630 + $0x10] sm:$0xff] %v2309
        %2326 = vst [vmem:[%s630 + $0x18] sm:$0xff] %v2310
        %2327 = vst [vmem:[%s630 + $0x20] sm:$0xff] %v2311
        %2328 = vst [vmem:[%s630 + $0x28] sm:$0xff] %v2312
        %2329 = vst [vmem:[%s630 + $0x30] sm:$0xff] %v2313
        %2330 = vst [vmem:[%s630 + $0x38] sm:$0xff] %v2314
        %s2331 = sand.u32 %s116, 1
        %s2332 = sand.u32 %s116, 1
        %s2333 = smul.addr %s2332, 64
        %s2334 = scalar_lea.vmem [#allocation3], %s2333
        // Predicated region
        $region56: #{dec_forward.5} parent=50 // pred_check
          %p2335 = pneg %p126
        $region57: #{dec_forward.5} parent=50 // pred_check_branch
          %2337 = sbr.rel (%p2335) target = $region59
        $region58: #{dec_forward.5} parent=50 // pred_region
          %s2338 = smul.u32 8, %s19
          %s2339 = smul.addr %s18, 32
          %s2340 = sadd.s32 %s2338, %s2339
          %s2341 = smul.addr %s2340, 4
          %s2342 = scalar_lea.vmem %s3, %s2341
          // Predicated region
          $region60: #{dec_forward.5} parent=58 // pred_check
            _
          $region61: #{dec_forward.5} parent=58 // pred_check_branch
            %2344 = sbr.rel (0) target = $region63
          $region62: #{dec_forward.5} parent=58 // pred_region
            // Predicated region
            $region64: #{dec_forward.5} parent=62 // pred_check
              _
            $region65: #{dec_forward.5} parent=62 // pred_check_branch
              %2346 = sbr.rel (0) target = $region67
            $region66: #{dec_forward.5} parent=62 // pred_region
              loop: start=0, step=1, limit=1
              $region68: #{dec_forward.5} parent=66 // loop_pre_header
                _
              $region69: #{dec_forward.5} parent=66 // loop_header
                %s2348 = sphi 0, %s2352
                %p2349 = scmp.ge.s32.totalorder %s2348, 1
                %s2353 = sphi %s2334, %s2334
                %s2354 = sphi %s2342, %s2342
              $region70: #{dec_forward.5} parent=66 // loop_header_branch
                %2351 = sbr.rel (%p2349) target = $region74
              $region71: #{dec_forward.5} parent=66 // loop_body
                %v2355 = vld [vmem:[%s2353] sm:$0xff]
                %2356 = vst [vmem:[%s2354] sm:$0xff] %v2355
                %v2357 = vld [vmem:[%s2353 + $0x8] sm:$0xff]
                %2358 = vst [vmem:[%s2354 + $0x8] sm:$0xff] %v2357
                %v2359 = vld [vmem:[%s2353 + $0x10] sm:$0xff]
                %2360 = vst [vmem:[%s2354 + $0x10] sm:$0xff] %v2359
                %v2361 = vld [vmem:[%s2353 + $0x18] sm:$0xff]
                %2362 = vst [vmem:[%s2354 + $0x18] sm:$0xff] %v2361
                %v2363 = vld [vmem:[%s2353 + $0x20] sm:$0xff]
                %2364 = vst [vmem:[%s2354 + $0x40] sm:$0xff] %v2363
                %v2365 = vld [vmem:[%s2353 + $0x28] sm:$0xff]
                %2366 = vst [vmem:[%s2354 + $0x48] sm:$0xff] %v2365
                %v2367 = vld [vmem:[%s2353 + $0x30] sm:$0xff]
                %2368 = vst [vmem:[%s2354 + $0x50] sm:$0xff] %v2367
                %v2369 = vld [vmem:[%s2353 + $0x38] sm:$0xff]
                %2370 = vst [vmem:[%s2354 + $0x58] sm:$0xff] %v2369
              $region72: #{dec_forward.5} parent=66 // loop_footer
                %s2352 = sadd.s32 1, %s2348
              $region73: #{dec_forward.5} parent=66 // loop_footer_branch
                %2347 = sbr.rel target = $region69
              $region74: #{dec_forward.5} parent=66 // loop_exit
                _
            $region67: #{dec_forward.5} parent=62 // pred_fallthru
              _
            // Predicated region
            $region75: #{dec_forward.5} parent=62 // pred_check
              _
            $region76: #{dec_forward.5} parent=62 // pred_check_branch
              %2372 = sbr.rel target = $region78
            $region77: #{dec_forward.5} parent=62 // pred_region
              _
            $region78: #{dec_forward.5} parent=62 // pred_fallthru
              _
          $region63: #{dec_forward.5} parent=58 // pred_fallthru
            _
          %2373 = vnop
        $region59: #{dec_forward.5} parent=50 // pred_fallthru
          _
      $region51: #{dec_forward.5} parent=5 // pred_fallthru
        _
      %p2374 = scmp.le.s32.totalorder 2, %s9
      // Predicated region
      $region79: #{dec_forward.5} parent=5 // pred_check
        %p2375 = pneg %p2374
      $region80: #{dec_forward.5} parent=5 // pred_check_branch
        %2377 = sbr.rel (%p2375) target = $region82
      $region81: #{dec_forward.5} parent=5 // pred_region
        %s2378 = ssub.s32 %s9, 2
        // Predicated region
        $region83: #{dec_forward.5} parent=81 // pred_check
          %p2379 = pneg %p132
        $region84: #{dec_forward.5} parent=81 // pred_check_branch
          %2381 = sbr.rel (%p2379) target = $region86
        $region85: #{dec_forward.5} parent=81 // pred_region
          %s2382 = sand.u32 %s117, 1
          %s2383 = sand.u32 %s117, 1
          %s2384 = smul.addr %s2383, 64
          %s2385 = scalar_lea.vmem [#allocation3], %s2384
        $region86: #{dec_forward.5} parent=81 // pred_fallthru
          _
      $region82: #{dec_forward.5} parent=5 // pred_fallthru
        _
    $region6: #{dec_forward.5} parent=1 // loop_footer
      %s13 = sadd.s32 1, %s9
    $region7: #{dec_forward.5} parent=1 // loop_footer_branch
      %8 = sbr.rel target = $region3
    $region8: #{dec_forward.5} parent=1 // loop_exit
      _

// kernel: dec_forward.6
$region0: #{dec_forward.6}
  #allocation0 [shape = 'u32[]', space=smem, size = 0x4, offset = 0x4, fixed_abs, tag = 'smem constant byte address 0x4 - core index']
  #allocation1 [shape = 'u32[144,128]{1,0:T(1,128)}', space=vmem, size = 0x12000, scoped, tag = 'internal scratch']
  %s0 = inlined_call_operand.vmem [shape: bf16[2,16,400], index: 0, kind: input, shape index: {}]
  %s1 = inlined_call_operand.vmem [shape: bf16[2,400,8192], index: 1, kind: input, shape index: {}]
  %s2 = inlined_call_operand.vmem [shape: f32[2,16,1], index: 2, kind: input, shape index: {}]
  %s3 = inlined_call_operand.vmem [shape: bf16[2,16,8192], index: 3, kind: output, shape index: {}]
  %s4 = sld [smem:[#allocation0]]
  $region87: #{dec_forward.6} parent=0
    _
  %s6 = ssub.s32 1, %s4
  %s7 = scalar_select 0, %s6, %s4
  $region1: #{dec_forward.6} parent=0
    #allocation2 [shape = 'u8[1638400]{0}', space=vmem, size = 0x190000, scoped, tag = 'input window, operand 1']
    #allocation3 [shape = 'u8[65536]{0}', space=vmem, size = 0x10000, scoped, tag = 'output window, operand 0']
    loop: start=0, step=1, limit=18
    $region2: #{dec_forward.6} parent=1 // loop_pre_header
      _
    $region3: #{dec_forward.6} parent=1 // loop_header
      %s9 = sphi 0, %s13
      %p10 = scmp.ge.s32.totalorder %s9, 18
      %s16 = sphi 0, %s28
      %s17 = sphi 0, %s24
      %s18 = sphi 0, %s16
      %s19 = sphi 0, %s17
      %s20 = sphi 0, %s18
      %s21 = sphi 0, %s19
      %s31 = sphi 0, %s33
      %s34 = sphi 0, %s31
      %s35 = sphi 0, %s34
      %s51 = sphi 0, %s35
      %s59 = sphi 0, %s61
      %s62 = sphi 0, %s59
      %s63 = sphi 0, %s62
      %s79 = sphi 0, %s63
      %s85 = sphi 0, %s87
      %s88 = sphi 0, %s85
      %s89 = sphi 0, %s88
      %s105 = sphi 0, %s89
      %s113 = sphi 0, %s115
      %s116 = sphi 0, %s113
      %s117 = sphi 0, %s116
      %s133 = sphi 0, %s117
    $region4: #{dec_forward.6} parent=1 // loop_header_branch
      %12 = sbr.rel (%p10) target = $region8
    $region5: #{dec_forward.6} parent=1 // loop_body
      %s14 = ssub.s32 %s9, 1
      %s15 = ssub.s32 %s9, 2
      %s22 = sadd.s32 1, %s17
      %p23 = scmp.ge.s32.totalorder %s22, 8
      %s24 = scalar_select %p23, 0, %s22
      %s25 = sadd.s32 1, %s16
      %s26 = scalar_select %p23, %s25, %s16
      %p27 = scmp.ge.s32.totalorder %s26, 2
      %s28 = scalar_select %p27, 0, %s26
      %s29 = ssub.s32 %s16, %s28
      %p30 = scmp.eq.s32.totalorder %s29, 0
      %s32 = sadd.s32 %s31, 1
      %s33 = scalar_select %p30, %s31, %s32
      %p36 = pneg %p30
      %p37 = scmp.eq.s32.totalorder %s9, 15
      %p38 = por %p36, %p37
      %p39 = scmp.ne.s32.totalorder %s31, %s34
      %p40 = scmp.eq.s32.totalorder %s9, 0
      %p41 = por %p39, %p40
      %p42 = scmp.ne.s32.totalorder %s31, %s34
      %p43 = scmp.eq.s32.totalorder %s14, 15
      %p44 = por %p42, %p43
      %p45 = scmp.ne.s32.totalorder %s34, %s35
      %p46 = scmp.eq.s32.totalorder %s14, 0
      %p47 = por %p45, %p46
      %p48 = scmp.ne.s32.totalorder %s34, %s35
      %p49 = scmp.eq.s32.totalorder %s15, 15
      %p50 = por %p48, %p49
      %p52 = scmp.ne.s32.totalorder %s35, %s51
      %p53 = scmp.eq.s32.totalorder %s15, 0
      %p54 = por %p52, %p53
      %s55 = ssub.s32 %s16, %s28
      %s56 = ssub.s32 %s17, %s24
      %s57 = sor.u32 %s55, %s56
      %p58 = scmp.eq.s32.totalorder %s57, 0
      %s60 = sadd.s32 %s59, 1
      %s61 = scalar_select %p58, %s59, %s60
      %p64 = pneg %p58
      %p65 = scmp.eq.s32.totalorder %s9, 15
      %p66 = por %p64, %p65
      %p67 = scmp.ne.s32.totalorder %s59, %s62
      %p68 = scmp.eq.s32.totalorder %s9, 0
      %p69 = por %p67, %p68
      %p70 = scmp.ne.s32.totalorder %s59, %s62
      %p71 = scmp.eq.s32.totalorder %s14, 15
      %p72 = por %p70, %p71
      %p73 = scmp.ne.s32.totalorder %s62, %s63
      %p74 = scmp.eq.s32.totalorder %s14, 0
      %p75 = por %p73, %p74
      %p76 = scmp.ne.s32.totalorder %s62, %s63
      %p77 = scmp.eq.s32.totalorder %s15, 15
      %p78 = por %p76, %p77
      %p80 = scmp.ne.s32.totalorder %s63, %s79
      %p81 = scmp.eq.s32.totalorder %s15, 0
      %p82 = por %p80, %p81
      %s83 = ssub.s32 %s16, %s28
      %p84 = scmp.eq.s32.totalorder %s83, 0
      %s86 = sadd.s32 %s85, 1
      %s87 = scalar_select %p84, %s85, %s86
      %p90 = pneg %p84
      %p91 = scmp.eq.s32.totalorder %s9, 15
      %p92 = por %p90, %p91
      %p93 = scmp.ne.s32.totalorder %s85, %s88
      %p94 = scmp.eq.s32.totalorder %s9, 0
      %p95 = por %p93, %p94
      %p96 = scmp.ne.s32.totalorder %s85, %s88
      %p97 = scmp.eq.s32.totalorder %s14, 15
      %p98 = por %p96, %p97
      %p99 = scmp.ne.s32.totalorder %s88, %s89
      %p100 = scmp.eq.s32.totalorder %s14, 0
      %p101 = por %p99, %p100
      %p102 = scmp.ne.s32.totalorder %s88, %s89
      %p103 = scmp.eq.s32.totalorder %s15, 15
      %p104 = por %p102, %p103
      %p106 = scmp.ne.s32.totalorder %s89, %s105
      %p107 = scmp.eq.s32.totalorder %s15, 0
      %p108 = por %p106, %p107
      %s109 = ssub.s32 %s16, %s28
      %s110 = ssub.s32 %s17, %s24
      %s111 = sor.u32 %s109, %s110
      %p112 = scmp.eq.s32.totalorder %s111, 0
      %s114 = sadd.s32 %s113, 1
      %s115 = scalar_select %p112, %s113, %s114
      %p118 = pneg %p112
      %p119 = scmp.eq.s32.totalorder %s9, 15
      %p120 = por %p118, %p119
      %p121 = scmp.ne.s32.totalorder %s113, %s116
      %p122 = scmp.eq.s32.totalorder %s9, 0
      %p123 = por %p121, %p122
      %p124 = scmp.ne.s32.totalorder %s113, %s116
      %p125 = scmp.eq.s32.totalorder %s14, 15
      %p126 = por %p124, %p125
      %p127 = scmp.ne.s32.totalorder %s116, %s117
      %p128 = scmp.eq.s32.totalorder %s14, 0
      %p129 = por %p127, %p128
      %p130 = scmp.ne.s32.totalorder %s116, %s117
      %p131 = scmp.eq.s32.totalorder %s15, 15
      %p132 = por %p130, %p131
      %p134 = scmp.ne.s32.totalorder %s117, %s133
      %p135 = scmp.eq.s32.totalorder %s15, 0
      %p136 = por %p134, %p135
      %p137 = scmp.le.s32.totalorder 1, %s9
      %p138 = scmp.lt.s32.totalorder %s9, 17
      %p139 = pnand %p137, %p138
      %p140 = pneg %p139
      // Predicated region
      $region9: #{dec_forward.6} parent=5 // pred_check
        _
      $region10: #{dec_forward.6} parent=5 // pred_check_branch
        %142 = sbr.rel (%p139) target = $region12
      $region11: #{dec_forward.6} parent=5 // pred_region
        %s143 = ssub.s32 %s9, 1
      $region12: #{dec_forward.6} parent=5 // pred_fallthru
        _
      %p144 = scmp.lt.s32.totalorder %s9, 16
      // Predicated region
      $region13: #{dec_forward.6} parent=5 // pred_check
        %p145 = pneg %p144
      $region14: #{dec_forward.6} parent=5 // pred_check_branch
        %147 = sbr.rel (%p145) target = $region16
      $region15: #{dec_forward.6} parent=5 // pred_region
        // Predicated region
        $region17: #{dec_forward.6} parent=15 // pred_check
          %p148 = pneg %p41
        $region18: #{dec_forward.6} parent=15 // pred_check_branch
          %150 = sbr.rel (%p148) target = $region20
        $region19: #{dec_forward.6} parent=15 // pred_region
          %p151 = scmp.lt.s32.totalorder %s16, 1
          %s152 = scalar_select %p151, %s16, 1
          %s153 = smul.addr %s152, 8
          %s154 = smul.addr %s153, 4
          %s155 = scalar_lea.vmem %s0, %s154
        $region20: #{dec_forward.6} parent=15 // pred_fallthru
          _
        // Predicated region
        $region21: #{dec_forward.6} parent=15 // pred_check
          %p156 = pneg %p69
        $region22: #{dec_forward.6} parent=15 // pred_check_branch
          %158 = sbr.rel (%p156) target = $region24
        $region23: #{dec_forward.6} parent=15 // pred_region
          %s159 = sand.u32 %s59, 1
          %s160 = sand.u32 %s59, 1
          %s161 = smul.addr %s160, 1600
          %s162 = scalar_lea.vmem [#allocation2], %s161
          %s163 = smul.u32 8, %s17
          %s164 = smul.addr %s16, 3200
          %s165 = sadd.s32 %s163, %s164
          %s166 = smul.addr %s165, 4
          %s167 = scalar_lea.vmem %s1, %s166
          // Predicated region
          $region25: #{dec_forward.6} parent=23 // pred_check
            _
          $region26: #{dec_forward.6} parent=23 // pred_check_branch
            %169 = sbr.rel (0) target = $region28
          $region27: #{dec_forward.6} parent=23 // pred_region
            // Predicated region
            $region29: #{dec_forward.6} parent=27 // pred_check
              _
            $region30: #{dec_forward.6} parent=27 // pred_check_branch
              %171 = sbr.rel (0) target = $region32
            $region31: #{dec_forward.6} parent=27 // pred_region
              loop: start=0, step=1, limit=1
              $region33: #{dec_forward.6} parent=31 // loop_pre_header
                _
              $region34: #{dec_forward.6} parent=31 // loop_header
                %s173 = sphi 0, %s177
                %p174 = scmp.ge.s32.totalorder %s173, 1
                %s178 = sphi %s167, %s167
                %s179 = sphi %s162, %s162
              $region35: #{dec_forward.6} parent=31 // loop_header_branch
                %176 = sbr.rel (%p174) target = $region39
              $region36: #{dec_forward.6} parent=31 // loop_body
                %v180 = vld [vmem:[%s178] sm:$0xff]
                %181 = vst [vmem:[%s179] sm:$0xff] %v180
                %v182 = vld [vmem:[%s178 + $0x8] sm:$0xff]
                %183 = vst [vmem:[%s179 + $0x8] sm:$0xff] %v182
                %v184 = vld [vmem:[%s178 + $0x10] sm:$0xff]
                %185 = vst [vmem:[%s179 + $0x10] sm:$0xff] %v184
                %v186 = vld [vmem:[%s178 + $0x18] sm:$0xff]
                %187 = vst [vmem:[%s179 + $0x18] sm:$0xff] %v186
                %v188 = vld [vmem:[%s178 + $0x100] sm:$0xff]
                %189 = vst [vmem:[%s179 + $0x20] sm:$0xff] %v188
                %v190 = vld [vmem:[%s178 + $0x108] sm:$0xff]
                %191 = vst [vmem:[%s179 + $0x28] sm:$0xff] %v190
                %v192 = vld [vmem:[%s178 + $0x110] sm:$0xff]
                %193 = vst [vmem:[%s179 + $0x30] sm:$0xff] %v192
                %v194 = vld [vmem:[%s178 + $0x118] sm:$0xff]
                %195 = vst [vmem:[%s179 + $0x38] sm:$0xff] %v194
                %v196 = vld [vmem:[%s178 + $0x200] sm:$0xff]
                %197 = vst [vmem:[%s179 + $0x40] sm:$0xff] %v196
                %v198 = vld [vmem:[%s178 + $0x208] sm:$0xff]
                %199 = vst [vmem:[%s179 + $0x48] sm:$0xff] %v198
                %v200 = vld [vmem:[%s178 + $0x210] sm:$0xff]
                %201 = vst [vmem:[%s179 + $0x50] sm:$0xff] %v200
                %v202 = vld [vmem:[%s178 + $0x218] sm:$0xff]
                %203 = vst [vmem:[%s179 + $0x58] sm:$0xff] %v202
                %v204 = vld [vmem:[%s178 + $0x300] sm:$0xff]
                %205 = vst [vmem:[%s179 + $0x60] sm:$0xff] %v204
                %v206 = vld [vmem:[%s178 + $0x308] sm:$0xff]
                %207 = vst [vmem:[%s179 + $0x68] sm:$0xff] %v206
                %v208 = vld [vmem:[%s178 + $0x310] sm:$0xff]
                %209 = vst [vmem:[%s179 + $0x70] sm:$0xff] %v208
                %v210 = vld [vmem:[%s178 + $0x318] sm:$0xff]
                %211 = vst [vmem:[%s179 + $0x78] sm:$0xff] %v210
                %v212 = vld [vmem:[%s178 + $0x400] sm:$0xff]
                %213 = vst [vmem:[%s179 + $0x80] sm:$0xff] %v212
                %v214 = vld [vmem:[%s178 + $0x408] sm:$0xff]
                %215 = vst [vmem:[%s179 + $0x88] sm:$0xff] %v214
                %v216 = vld [vmem:[%s178 + $0x410] sm:$0xff]
                %217 = vst [vmem:[%s179 + $0x90] sm:$0xff] %v216
                %v218 = vld [vmem:[%s178 + $0x418] sm:$0xff]
                %219 = vst [vmem:[%s179 + $0x98] sm:$0xff] %v218
                %v220 = vld [vmem:[%s178 + $0x500] sm:$0xff]
                %221 = vst [vmem:[%s179 + $0xa0] sm:$0xff] %v220
                %v222 = vld [vmem:[%s178 + $0x508] sm:$0xff]
                %223 = vst [vmem:[%s179 + $0xa8] sm:$0xff] %v222
                %v224 = vld [vmem:[%s178 + $0x510] sm:$0xff]
                %225 = vst [vmem:[%s179 + $0xb0] sm:$0xff] %v224
                %v226 = vld [vmem:[%s178 + $0x518] sm:$0xff]
                %227 = vst [vmem:[%s179 + $0xb8] sm:$0xff] %v226
                %v228 = vld [vmem:[%s178 + $0x600] sm:$0xff]
                %229 = vst [vmem:[%s179 + $0xc0] sm:$0xff] %v228
                %v230 = vld [vmem:[%s178 + $0x608] sm:$0xff]
                %231 = vst [vmem:[%s179 + $0xc8] sm:$0xff] %v230
                %v232 = vld [vmem:[%s178 + $0x610] sm:$0xff]
                %233 = vst [vmem:[%s179 + $0xd0] sm:$0xff] %v232
                %v234 = vld [vmem:[%s178 + $0x618] sm:$0xff]
                %235 = vst [vmem:[%s179 + $0xd8] sm:$0xff] %v234
                %v236 = vld [vmem:[%s178 + $0x700] sm:$0xff]
                %237 = vst [vmem:[%s179 + $0xe0] sm:$0xff] %v236
                %v238 = vld [vmem:[%s178 + $0x708] sm:$0xff]
                %239 = vst [vmem:[%s179 + $0xe8] sm:$0xff] %v238
                %v240 = vld [vmem:[%s178 + $0x710] sm:$0xff]
                %241 = vst [vmem:[%s179 + $0xf0] sm:$0xff] %v240
                %v242 = vld [vmem:[%s178 + $0x718] sm:$0xff]
                %243 = vst [vmem:[%s179 + $0xf8] sm:$0xff] %v242
                %v244 = vld [vmem:[%s178 + $0x800] sm:$0xff]
                %245 = vst [vmem:[%s179 + $0x100] sm:$0xff] %v244
                %v246 = vld [vmem:[%s178 + $0x808] sm:$0xff]
                %247 = vst [vmem:[%s179 + $0x108] sm:$0xff] %v246
                %v248 = vld [vmem:[%s178 + $0x810] sm:$0xff]
                %249 = vst [vmem:[%s179 + $0x110] sm:$0xff] %v248
                %v250 = vld [vmem:[%s178 + $0x818] sm:$0xff]
                %251 = vst [vmem:[%s179 + $0x118] sm:$0xff] %v250
                %v252 = vld [vmem:[%s178 + $0x900] sm:$0xff]
                %253 = vst [vmem:[%s179 + $0x120] sm:$0xff] %v252
                %v254 = vld [vmem:[%s178 + $0x908] sm:$0xff]
                %255 = vst [vmem:[%s179 + $0x128] sm:$0xff] %v254
                %v256 = vld [vmem:[%s178 + $0x910] sm:$0xff]
                %257 = vst [vmem:[%s179 + $0x130] sm:$0xff] %v256
                %v258 = vld [vmem:[%s178 + $0x918] sm:$0xff]
                %259 = vst [vmem:[%s179 + $0x138] sm:$0xff] %v258
                %v260 = vld [vmem:[%s178 + $0xa00] sm:$0xff]
                %261 = vst [vmem:[%s179 + $0x140] sm:$0xff] %v260
                %v262 = vld [vmem:[%s178 + $0xa08] sm:$0xff]
                %263 = vst [vmem:[%s179 + $0x148] sm:$0xff] %v262
                %v264 = vld [vmem:[%s178 + $0xa10] sm:$0xff]
                %265 = vst [vmem:[%s179 + $0x150] sm:$0xff] %v264
                %v266 = vld [vmem:[%s178 + $0xa18] sm:$0xff]
                %267 = vst [vmem:[%s179 + $0x158] sm:$0xff] %v266
                %v268 = vld [vmem:[%s178 + $0xb00] sm:$0xff]
                %269 = vst [vmem:[%s179 + $0x160] sm:$0xff] %v268
                %v270 = vld [vmem:[%s178 + $0xb08] sm:$0xff]
                %271 = vst [vmem:[%s179 + $0x168] sm:$0xff] %v270
                %v272 = vld [vmem:[%s178 + $0xb10] sm:$0xff]
                %273 = vst [vmem:[%s179 + $0x170] sm:$0xff] %v272
                %v274 = vld [vmem:[%s178 + $0xb18] sm:$0xff]
                %275 = vst [vmem:[%s179 + $0x178] sm:$0xff] %v274
                %v276 = vld [vmem:[%s178 + $0xc00] sm:$0xff]
                %277 = vst [vmem:[%s179 + $0x180] sm:$0xff] %v276
                %v278 = vld [vmem:[%s178 + $0xc08] sm:$0xff]
                %279 = vst [vmem:[%s179 + $0x188] sm:$0xff] %v278
                %v280 = vld [vmem:[%s178 + $0xc10] sm:$0xff]
                %281 = vst [vmem:[%s179 + $0x190] sm:$0xff] %v280
                %v282 = vld [vmem:[%s178 + $0xc18] sm:$0xff]
                %283 = vst [vmem:[%s179 + $0x198] sm:$0xff] %v282
                %v284 = vld [vmem:[%s178 + $0xd00] sm:$0xff]
                %285 = vst [vmem:[%s179 + $0x1a0] sm:$0xff] %v284
                %v286 = vld [vmem:[%s178 + $0xd08] sm:$0xff]
                %287 = vst [vmem:[%s179 + $0x1a8] sm:$0xff] %v286
                %v288 = vld [vmem:[%s178 + $0xd10] sm:$0xff]
                %289 = vst [vmem:[%s179 + $0x1b0] sm:$0xff] %v288
                %v290 = vld [vmem:[%s178 + $0xd18] sm:$0xff]
                %291 = vst [vmem:[%s179 + $0x1b8] sm:$0xff] %v290
                %v292 = vld [vmem:[%s178 + $0xe00] sm:$0xff]
                %293 = vst [vmem:[%s179 + $0x1c0] sm:$0xff] %v292
                %v294 = vld [vmem:[%s178 + $0xe08] sm:$0xff]
                %295 = vst [vmem:[%s179 + $0x1c8] sm:$0xff] %v294
                %v296 = vld [vmem:[%s178 + $0xe10] sm:$0xff]
                %297 = vst [vmem:[%s179 + $0x1d0] sm:$0xff] %v296
                %v298 = vld [vmem:[%s178 + $0xe18] sm:$0xff]
                %299 = vst [vmem:[%s179 + $0x1d8] sm:$0xff] %v298
                %v300 = vld [vmem:[%s178 + $0xf00] sm:$0xff]
                %301 = vst [vmem:[%s179 + $0x1e0] sm:$0xff] %v300
                %v302 = vld [vmem:[%s178 + $0xf08] sm:$0xff]
                %303 = vst [vmem:[%s179 + $0x1e8] sm:$0xff] %v302
                %v304 = vld [vmem:[%s178 + $0xf10] sm:$0xff]
                %305 = vst [vmem:[%s179 + $0x1f0] sm:$0xff] %v304
                %v306 = vld [vmem:[%s178 + $0xf18] sm:$0xff]
                %307 = vst [vmem:[%s179 + $0x1f8] sm:$0xff] %v306
                %v308 = vld [vmem:[%s178 + $0x1000] sm:$0xff]
                %309 = vst [vmem:[%s179 + $0x200] sm:$0xff] %v308
                %v310 = vld [vmem:[%s178 + $0x1008] sm:$0xff]
                %311 = vst [vmem:[%s179 + $0x208] sm:$0xff] %v310
                %v312 = vld [vmem:[%s178 + $0x1010] sm:$0xff]
                %313 = vst [vmem:[%s179 + $0x210] sm:$0xff] %v312
                %v314 = vld [vmem:[%s178 + $0x1018] sm:$0xff]
                %315 = vst [vmem:[%s179 + $0x218] sm:$0xff] %v314
                %v316 = vld [vmem:[%s178 + $0x1100] sm:$0xff]
                %317 = vst [vmem:[%s179 + $0x220] sm:$0xff] %v316
                %v318 = vld [vmem:[%s178 + $0x1108] sm:$0xff]
                %319 = vst [vmem:[%s179 + $0x228] sm:$0xff] %v318
                %v320 = vld [vmem:[%s178 + $0x1110] sm:$0xff]
                %321 = vst [vmem:[%s179 + $0x230] sm:$0xff] %v320
                %v322 = vld [vmem:[%s178 + $0x1118] sm:$0xff]
                %323 = vst [vmem:[%s179 + $0x238] sm:$0xff] %v322
                %v324 = vld [vmem:[%s178 + $0x1200] sm:$0xff]
                %325 = vst [vmem:[%s179 + $0x240] sm:$0xff] %v324
                %v326 = vld [vmem:[%s178 + $0x1208] sm:$0xff]
                %327 = vst [vmem:[%s179 + $0x248] sm:$0xff] %v326
                %v328 = vld [vmem:[%s178 + $0x1210] sm:$0xff]
                %329 = vst [vmem:[%s179 + $0x250] sm:$0xff] %v328
                %v330 = vld [vmem:[%s178 + $0x1218] sm:$0xff]
                %331 = vst [vmem:[%s179 + $0x258] sm:$0xff] %v330
                %v332 = vld [vmem:[%s178 + $0x1300] sm:$0xff]
                %333 = vst [vmem:[%s179 + $0x260] sm:$0xff] %v332
                %v334 = vld [vmem:[%s178 + $0x1308] sm:$0xff]
                %335 = vst [vmem:[%s179 + $0x268] sm:$0xff] %v334
                %v336 = vld [vmem:[%s178 + $0x1310] sm:$0xff]
                %337 = vst [vmem:[%s179 + $0x270] sm:$0xff] %v336
                %v338 = vld [vmem:[%s178 + $0x1318] sm:$0xff]
                %339 = vst [vmem:[%s179 + $0x278] sm:$0xff] %v338
                %v340 = vld [vmem:[%s178 + $0x1400] sm:$0xff]
                %341 = vst [vmem:[%s179 + $0x280] sm:$0xff] %v340
                %v342 = vld [vmem:[%s178 + $0x1408] sm:$0xff]
                %343 = vst [vmem:[%s179 + $0x288] sm:$0xff] %v342
                %v344 = vld [vmem:[%s178 + $0x1410] sm:$0xff]
                %345 = vst [vmem:[%s179 + $0x290] sm:$0xff] %v344
                %v346 = vld [vmem:[%s178 + $0x1418] sm:$0xff]
                %347 = vst [vmem:[%s179 + $0x298] sm:$0xff] %v346
                %v348 = vld [vmem:[%s178 + $0x1500] sm:$0xff]
                %349 = vst [vmem:[%s179 + $0x2a0] sm:$0xff] %v348
                %v350 = vld [vmem:[%s178 + $0x1508] sm:$0xff]
                %351 = vst [vmem:[%s179 + $0x2a8] sm:$0xff] %v350
                %v352 = vld [vmem:[%s178 + $0x1510] sm:$0xff]
                %353 = vst [vmem:[%s179 + $0x2b0] sm:$0xff] %v352
                %v354 = vld [vmem:[%s178 + $0x1518] sm:$0xff]
                %355 = vst [vmem:[%s179 + $0x2b8] sm:$0xff] %v354
                %v356 = vld [vmem:[%s178 + $0x1600] sm:$0xff]
                %357 = vst [vmem:[%s179 + $0x2c0] sm:$0xff] %v356
                %v358 = vld [vmem:[%s178 + $0x1608] sm:$0xff]
                %359 = vst [vmem:[%s179 + $0x2c8] sm:$0xff] %v358
                %v360 = vld [vmem:[%s178 + $0x1610] sm:$0xff]
                %361 = vst [vmem:[%s179 + $0x2d0] sm:$0xff] %v360
                %v362 = vld [vmem:[%s178 + $0x1618] sm:$0xff]
                %363 = vst [vmem:[%s179 + $0x2d8] sm:$0xff] %v362
                %v364 = vld [vmem:[%s178 + $0x1700] sm:$0xff]
                %365 = vst [vmem:[%s179 + $0x2e0] sm:$0xff] %v364
                %v366 = vld [vmem:[%s178 + $0x1708] sm:$0xff]
                %367 = vst [vmem:[%s179 + $0x2e8] sm:$0xff] %v366
                %v368 = vld [vmem:[%s178 + $0x1710] sm:$0xff]
                %369 = vst [vmem:[%s179 + $0x2f0] sm:$0xff] %v368
                %v370 = vld [vmem:[%s178 + $0x1718] sm:$0xff]
                %371 = vst [vmem:[%s179 + $0x2f8] sm:$0xff] %v370
                %v372 = vld [vmem:[%s178 + $0x1800] sm:$0xff]
                %373 = vst [vmem:[%s179 + $0x300] sm:$0xff] %v372
                %v374 = vld [vmem:[%s178 + $0x1808] sm:$0xff]
                %375 = vst [vmem:[%s179 + $0x308] sm:$0xff] %v374
                %v376 = vld [vmem:[%s178 + $0x1810] sm:$0xff]
                %377 = vst [vmem:[%s179 + $0x310] sm:$0xff] %v376
                %v378 = vld [vmem:[%s178 + $0x1818] sm:$0xff]
                %379 = vst [vmem:[%s179 + $0x318] sm:$0xff] %v378
                %v380 = vld [vmem:[%s178 + $0x1900] sm:$0xff]
                %381 = vst [vmem:[%s179 + $0x320] sm:$0xff] %v380
                %v382 = vld [vmem:[%s178 + $0x1908] sm:$0xff]
                %383 = vst [vmem:[%s179 + $0x328] sm:$0xff] %v382
                %v384 = vld [vmem:[%s178 + $0x1910] sm:$0xff]
                %385 = vst [vmem:[%s179 + $0x330] sm:$0xff] %v384
                %v386 = vld [vmem:[%s178 + $0x1918] sm:$0xff]
                %387 = vst [vmem:[%s179 + $0x338] sm:$0xff] %v386
                %v388 = vld [vmem:[%s178 + $0x1a00] sm:$0xff]
                %389 = vst [vmem:[%s179 + $0x340] sm:$0xff] %v388
                %v390 = vld [vmem:[%s178 + $0x1a08] sm:$0xff]
                %391 = vst [vmem:[%s179 + $0x348] sm:$0xff] %v390
                %v392 = vld [vmem:[%s178 + $0x1a10] sm:$0xff]
                %393 = vst [vmem:[%s179 + $0x350] sm:$0xff] %v392
                %v394 = vld [vmem:[%s178 + $0x1a18] sm:$0xff]
                %395 = vst [vmem:[%s179 + $0x358] sm:$0xff] %v394
                %v396 = vld [vmem:[%s178 + $0x1b00] sm:$0xff]
                %397 = vst [vmem:[%s179 + $0x360] sm:$0xff] %v396
                %v398 = vld [vmem:[%s178 + $0x1b08] sm:$0xff]
                %399 = vst [vmem:[%s179 + $0x368] sm:$0xff] %v398
                %v400 = vld [vmem:[%s178 + $0x1b10] sm:$0xff]
                %401 = vst [vmem:[%s179 + $0x370] sm:$0xff] %v400
                %v402 = vld [vmem:[%s178 + $0x1b18] sm:$0xff]
                %403 = vst [vmem:[%s179 + $0x378] sm:$0xff] %v402
                %v404 = vld [vmem:[%s178 + $0x1c00] sm:$0xff]
                %405 = vst [vmem:[%s179 + $0x380] sm:$0xff] %v404
                %v406 = vld [vmem:[%s178 + $0x1c08] sm:$0xff]
                %407 = vst [vmem:[%s179 + $0x388] sm:$0xff] %v406
                %v408 = vld [vmem:[%s178 + $0x1c10] sm:$0xff]
                %409 = vst [vmem:[%s179 + $0x390] sm:$0xff] %v408
                %v410 = vld [vmem:[%s178 + $0x1c18] sm:$0xff]
                %411 = vst [vmem:[%s179 + $0x398] sm:$0xff] %v410
                %v412 = vld [vmem:[%s178 + $0x1d00] sm:$0xff]
                %413 = vst [vmem:[%s179 + $0x3a0] sm:$0xff] %v412
                %v414 = vld [vmem:[%s178 + $0x1d08] sm:$0xff]
                %415 = vst [vmem:[%s179 + $0x3a8] sm:$0xff] %v414
                %v416 = vld [vmem:[%s178 + $0x1d10] sm:$0xff]
                %417 = vst [vmem:[%s179 + $0x3b0] sm:$0xff] %v416
                %v418 = vld [vmem:[%s178 + $0x1d18] sm:$0xff]
                %419 = vst [vmem:[%s179 + $0x3b8] sm:$0xff] %v418
                %v420 = vld [vmem:[%s178 + $0x1e00] sm:$0xff]
                %421 = vst [vmem:[%s179 + $0x3c0] sm:$0xff] %v420
                %v422 = vld [vmem:[%s178 + $0x1e08] sm:$0xff]
                %423 = vst [vmem:[%s179 + $0x3c8] sm:$0xff] %v422
                %v424 = vld [vmem:[%s178 + $0x1e10] sm:$0xff]
                %425 = vst [vmem:[%s179 + $0x3d0] sm:$0xff] %v424
                %v426 = vld [vmem:[%s178 + $0x1e18] sm:$0xff]
                %427 = vst [vmem:[%s179 + $0x3d8] sm:$0xff] %v426
                %v428 = vld [vmem:[%s178 + $0x1f00] sm:$0xff]
                %429 = vst [vmem:[%s179 + $0x3e0] sm:$0xff] %v428
                %v430 = vld [vmem:[%s178 + $0x1f08] sm:$0xff]
                %431 = vst [vmem:[%s179 + $0x3e8] sm:$0xff] %v430
                %v432 = vld [vmem:[%s178 + $0x1f10] sm:$0xff]
                %433 = vst [vmem:[%s179 + $0x3f0] sm:$0xff] %v432
                %v434 = vld [vmem:[%s178 + $0x1f18] sm:$0xff]
                %435 = vst [vmem:[%s179 + $0x3f8] sm:$0xff] %v434
                %v436 = vld [vmem:[%s178 + $0x2000] sm:$0xff]
                %437 = vst [vmem:[%s179 + $0x400] sm:$0xff] %v436
                %v438 = vld [vmem:[%s178 + $0x2008] sm:$0xff]
                %439 = vst [vmem:[%s179 + $0x408] sm:$0xff] %v438
                %v440 = vld [vmem:[%s178 + $0x2010] sm:$0xff]
                %441 = vst [vmem:[%s179 + $0x410] sm:$0xff] %v440
                %v442 = vld [vmem:[%s178 + $0x2018] sm:$0xff]
                %443 = vst [vmem:[%s179 + $0x418] sm:$0xff] %v442
                %v444 = vld [vmem:[%s178 + $0x2100] sm:$0xff]
                %445 = vst [vmem:[%s179 + $0x420] sm:$0xff] %v444
                %v446 = vld [vmem:[%s178 + $0x2108] sm:$0xff]
                %447 = vst [vmem:[%s179 + $0x428] sm:$0xff] %v446
                %v448 = vld [vmem:[%s178 + $0x2110] sm:$0xff]
                %449 = vst [vmem:[%s179 + $0x430] sm:$0xff] %v448
                %v450 = vld [vmem:[%s178 + $0x2118] sm:$0xff]
                %451 = vst [vmem:[%s179 + $0x438] sm:$0xff] %v450
                %v452 = vld [vmem:[%s178 + $0x2200] sm:$0xff]
                %453 = vst [vmem:[%s179 + $0x440] sm:$0xff] %v452
                %v454 = vld [vmem:[%s178 + $0x2208] sm:$0xff]
                %455 = vst [vmem:[%s179 + $0x448] sm:$0xff] %v454
                %v456 = vld [vmem:[%s178 + $0x2210] sm:$0xff]
                %457 = vst [vmem:[%s179 + $0x450] sm:$0xff] %v456
                %v458 = vld [vmem:[%s178 + $0x2218] sm:$0xff]
                %459 = vst [vmem:[%s179 + $0x458] sm:$0xff] %v458
                %v460 = vld [vmem:[%s178 + $0x2300] sm:$0xff]
                %461 = vst [vmem:[%s179 + $0x460] sm:$0xff] %v460
                %v462 = vld [vmem:[%s178 + $0x2308] sm:$0xff]
                %463 = vst [vmem:[%s179 + $0x468] sm:$0xff] %v462
                %v464 = vld [vmem:[%s178 + $0x2310] sm:$0xff]
                %465 = vst [vmem:[%s179 + $0x470] sm:$0xff] %v464
                %v466 = vld [vmem:[%s178 + $0x2318] sm:$0xff]
                %467 = vst [vmem:[%s179 + $0x478] sm:$0xff] %v466
                %v468 = vld [vmem:[%s178 + $0x2400] sm:$0xff]
                %469 = vst [vmem:[%s179 + $0x480] sm:$0xff] %v468
                %v470 = vld [vmem:[%s178 + $0x2408] sm:$0xff]
                %471 = vst [vmem:[%s179 + $0x488] sm:$0xff] %v470
                %v472 = vld [vmem:[%s178 + $0x2410] sm:$0xff]
                %473 = vst [vmem:[%s179 + $0x490] sm:$0xff] %v472
                %v474 = vld [vmem:[%s178 + $0x2418] sm:$0xff]
                %475 = vst [vmem:[%s179 + $0x498] sm:$0xff] %v474
                %v476 = vld [vmem:[%s178 + $0x2500] sm:$0xff]
                %477 = vst [vmem:[%s179 + $0x4a0] sm:$0xff] %v476
                %v478 = vld [vmem:[%s178 + $0x2508] sm:$0xff]
                %479 = vst [vmem:[%s179 + $0x4a8] sm:$0xff] %v478
                %v480 = vld [vmem:[%s178 + $0x2510] sm:$0xff]
                %481 = vst [vmem:[%s179 + $0x4b0] sm:$0xff] %v480
                %v482 = vld [vmem:[%s178 + $0x2518] sm:$0xff]
                %483 = vst [vmem:[%s179 + $0x4b8] sm:$0xff] %v482
                %v484 = vld [vmem:[%s178 + $0x2600] sm:$0xff]
                %485 = vst [vmem:[%s179 + $0x4c0] sm:$0xff] %v484
                %v486 = vld [vmem:[%s178 + $0x2608] sm:$0xff]
                %487 = vst [vmem:[%s179 + $0x4c8] sm:$0xff] %v486
                %v488 = vld [vmem:[%s178 + $0x2610] sm:$0xff]
                %489 = vst [vmem:[%s179 + $0x4d0] sm:$0xff] %v488
                %v490 = vld [vmem:[%s178 + $0x2618] sm:$0xff]
                %491 = vst [vmem:[%s179 + $0x4d8] sm:$0xff] %v490
                %v492 = vld [vmem:[%s178 + $0x2700] sm:$0xff]
                %493 = vst [vmem:[%s179 + $0x4e0] sm:$0xff] %v492
                %v494 = vld [vmem:[%s178 + $0x2708] sm:$0xff]
                %495 = vst [vmem:[%s179 + $0x4e8] sm:$0xff] %v494
                %v496 = vld [vmem:[%s178 + $0x2710] sm:$0xff]
                %497 = vst [vmem:[%s179 + $0x4f0] sm:$0xff] %v496
                %v498 = vld [vmem:[%s178 + $0x2718] sm:$0xff]
                %499 = vst [vmem:[%s179 + $0x4f8] sm:$0xff] %v498
                %v500 = vld [vmem:[%s178 + $0x2800] sm:$0xff]
                %501 = vst [vmem:[%s179 + $0x500] sm:$0xff] %v500
                %v502 = vld [vmem:[%s178 + $0x2808] sm:$0xff]
                %503 = vst [vmem:[%s179 + $0x508] sm:$0xff] %v502
                %v504 = vld [vmem:[%s178 + $0x2810] sm:$0xff]
                %505 = vst [vmem:[%s179 + $0x510] sm:$0xff] %v504
                %v506 = vld [vmem:[%s178 + $0x2818] sm:$0xff]
                %507 = vst [vmem:[%s179 + $0x518] sm:$0xff] %v506
                %v508 = vld [vmem:[%s178 + $0x2900] sm:$0xff]
                %509 = vst [vmem:[%s179 + $0x520] sm:$0xff] %v508
                %v510 = vld [vmem:[%s178 + $0x2908] sm:$0xff]
                %511 = vst [vmem:[%s179 + $0x528] sm:$0xff] %v510
                %v512 = vld [vmem:[%s178 + $0x2910] sm:$0xff]
                %513 = vst [vmem:[%s179 + $0x530] sm:$0xff] %v512
                %v514 = vld [vmem:[%s178 + $0x2918] sm:$0xff]
                %515 = vst [vmem:[%s179 + $0x538] sm:$0xff] %v514
                %v516 = vld [vmem:[%s178 + $0x2a00] sm:$0xff]
                %517 = vst [vmem:[%s179 + $0x540] sm:$0xff] %v516
                %v518 = vld [vmem:[%s178 + $0x2a08] sm:$0xff]
                %519 = vst [vmem:[%s179 + $0x548] sm:$0xff] %v518
                %v520 = vld [vmem:[%s178 + $0x2a10] sm:$0xff]
                %521 = vst [vmem:[%s179 + $0x550] sm:$0xff] %v520
                %v522 = vld [vmem:[%s178 + $0x2a18] sm:$0xff]
                %523 = vst [vmem:[%s179 + $0x558] sm:$0xff] %v522
                %v524 = vld [vmem:[%s178 + $0x2b00] sm:$0xff]
                %525 = vst [vmem:[%s179 + $0x560] sm:$0xff] %v524
                %v526 = vld [vmem:[%s178 + $0x2b08] sm:$0xff]
                %527 = vst [vmem:[%s179 + $0x568] sm:$0xff] %v526
                %v528 = vld [vmem:[%s178 + $0x2b10] sm:$0xff]
                %529 = vst [vmem:[%s179 + $0x570] sm:$0xff] %v528
                %v530 = vld [vmem:[%s178 + $0x2b18] sm:$0xff]
                %531 = vst [vmem:[%s179 + $0x578] sm:$0xff] %v530
                %v532 = vld [vmem:[%s178 + $0x2c00] sm:$0xff]
                %533 = vst [vmem:[%s179 + $0x580] sm:$0xff] %v532
                %v534 = vld [vmem:[%s178 + $0x2c08] sm:$0xff]
                %535 = vst [vmem:[%s179 + $0x588] sm:$0xff] %v534
                %v536 = vld [vmem:[%s178 + $0x2c10] sm:$0xff]
                %537 = vst [vmem:[%s179 + $0x590] sm:$0xff] %v536
                %v538 = vld [vmem:[%s178 + $0x2c18] sm:$0xff]
                %539 = vst [vmem:[%s179 + $0x598] sm:$0xff] %v538
                %v540 = vld [vmem:[%s178 + $0x2d00] sm:$0xff]
                %541 = vst [vmem:[%s179 + $0x5a0] sm:$0xff] %v540
                %v542 = vld [vmem:[%s178 + $0x2d08] sm:$0xff]
                %543 = vst [vmem:[%s179 + $0x5a8] sm:$0xff] %v542
                %v544 = vld [vmem:[%s178 + $0x2d10] sm:$0xff]
                %545 = vst [vmem:[%s179 + $0x5b0] sm:$0xff] %v544
                %v546 = vld [vmem:[%s178 + $0x2d18] sm:$0xff]
                %547 = vst [vmem:[%s179 + $0x5b8] sm:$0xff] %v546
                %v548 = vld [vmem:[%s178 + $0x2e00] sm:$0xff]
                %549 = vst [vmem:[%s179 + $0x5c0] sm:$0xff] %v548
                %v550 = vld [vmem:[%s178 + $0x2e08] sm:$0xff]
                %551 = vst [vmem:[%s179 + $0x5c8] sm:$0xff] %v550
                %v552 = vld [vmem:[%s178 + $0x2e10] sm:$0xff]
                %553 = vst [vmem:[%s179 + $0x5d0] sm:$0xff] %v552
                %v554 = vld [vmem:[%s178 + $0x2e18] sm:$0xff]
                %555 = vst [vmem:[%s179 + $0x5d8] sm:$0xff] %v554
                %v556 = vld [vmem:[%s178 + $0x2f00] sm:$0xff]
                %557 = vst [vmem:[%s179 + $0x5e0] sm:$0xff] %v556
                %v558 = vld [vmem:[%s178 + $0x2f08] sm:$0xff]
                %559 = vst [vmem:[%s179 + $0x5e8] sm:$0xff] %v558
                %v560 = vld [vmem:[%s178 + $0x2f10] sm:$0xff]
                %561 = vst [vmem:[%s179 + $0x5f0] sm:$0xff] %v560
                %v562 = vld [vmem:[%s178 + $0x2f18] sm:$0xff]
                %563 = vst [vmem:[%s179 + $0x5f8] sm:$0xff] %v562
                %v564 = vld [vmem:[%s178 + $0x3000] sm:$0xff]
                %565 = vst [vmem:[%s179 + $0x600] sm:$0xff] %v564
                %v566 = vld [vmem:[%s178 + $0x3008] sm:$0xff]
                %567 = vst [vmem:[%s179 + $0x608] sm:$0xff] %v566
                %v568 = vld [vmem:[%s178 + $0x3010] sm:$0xff]
                %569 = vst [vmem:[%s179 + $0x610] sm:$0xff] %v568
                %v570 = vld [vmem:[%s178 + $0x3018] sm:$0xff]
                %571 = vst [vmem:[%s179 + $0x618] sm:$0xff] %v570
                %v572 = vld [vmem:[%s178 + $0x3100] sm:$0xff]
                %573 = vst [vmem:[%s179 + $0x620] sm:$0xff] %v572
                %v574 = vld [vmem:[%s178 + $0x3108] sm:$0xff]
                %575 = vst [vmem:[%s179 + $0x628] sm:$0xff] %v574
                %v576 = vld [vmem:[%s178 + $0x3110] sm:$0xff]
                %577 = vst [vmem:[%s179 + $0x630] sm:$0xff] %v576
                %v578 = vld [vmem:[%s178 + $0x3118] sm:$0xff]
                %579 = vst [vmem:[%s179 + $0x638] sm:$0xff] %v578
              $region37: #{dec_forward.6} parent=31 // loop_footer
                %s177 = sadd.s32 1, %s173
              $region38: #{dec_forward.6} parent=31 // loop_footer_branch
                %172 = sbr.rel target = $region34
              $region39: #{dec_forward.6} parent=31 // loop_exit
                _
            $region32: #{dec_forward.6} parent=27 // pred_fallthru
              _
            // Predicated region
            $region40: #{dec_forward.6} parent=27 // pred_check
              _
            $region41: #{dec_forward.6} parent=27 // pred_check_branch
              %581 = sbr.rel target = $region43
            $region42: #{dec_forward.6} parent=27 // pred_region
              _
            $region43: #{dec_forward.6} parent=27 // pred_fallthru
              _
          $region28: #{dec_forward.6} parent=23 // pred_fallthru
            _
          %582 = vnop
        $region24: #{dec_forward.6} parent=15 // pred_fallthru
          _
        // Predicated region
        $region44: #{dec_forward.6} parent=15 // pred_check
          %p583 = pneg %p95
        $region45: #{dec_forward.6} parent=15 // pred_check_branch
          %585 = sbr.rel (%p583) target = $region47
        $region46: #{dec_forward.6} parent=15 // pred_region
          %p586 = scmp.lt.s32.totalorder %s16, 1
          %s587 = scalar_select %p586, %s16, 1
          %s588 = smul.addr %s587, 2
          %s589 = smul.addr %s588, 8
          %s590 = scalar_lea.vmem %s2, %s589
        $region47: #{dec_forward.6} parent=15 // pred_fallthru
          _
      $region16: #{dec_forward.6} parent=5 // pred_fallthru
        _
      %p591 = scmp.le.s32.totalorder 1, %s9
      %p592 = scmp.lt.s32.totalorder %s9, 17
      %p593 = pnand %p591, %p592
      %p594 = pneg %p593
      // Predicated region
      $region48: #{dec_forward.6} parent=5 // pred_check
        _
      $region49: #{dec_forward.6} parent=5 // pred_check_branch
        %596 = sbr.rel (%p593) target = $region51
      $region50: #{dec_forward.6} parent=5 // pred_region
        %s597 = ssub.s32 %s9, 1
        %s598 = sand.u32 %s62, 1
        %s599 = sand.u32 %s62, 1
        %s600 = smul.addr %s599, 1600
        %s601 = scalar_lea.vmem [#allocation2], %s600
        // Predicated region
        $region52: #{dec_forward.6} parent=50 // pred_check
          %p602 = pneg %p75
        $region53: #{dec_forward.6} parent=50 // pred_check_branch
          %604 = sbr.rel (%p602) target = $region55
        $region54: #{dec_forward.6} parent=50 // pred_region
          _
        $region55: #{dec_forward.6} parent=50 // pred_fallthru
          _
        %p605 = scmp.lt.s32.totalorder %s18, 1
        %s606 = scalar_select %p605, %s18, 1
        %s607 = smul.addr %s606, 8
        %s608 = smul.addr %s607, 4
        %s609 = scalar_lea.vmem %s0, %s608
        %p610 = pneg %p47
        %p611 = pneg %p44
        %s612 = sand.u32 %s62, 1
        %s613 = sand.u32 %s62, 1
        %s614 = smul.addr %s613, 1600
        %s615 = scalar_lea.vmem [#allocation2], %s614
        %p616 = pneg %p75
        %p617 = pneg %p72
        %p618 = scmp.lt.s32.totalorder %s18, 1
        %s619 = scalar_select %p618, %s18, 1
        %s620 = smul.addr %s619, 2
        %s621 = smul.addr %s620, 8
        %s622 = scalar_lea.vmem %s2, %s621
        %p623 = pneg %p101
        %p624 = pneg %p98
        %p625 = pneg %p129
        %p626 = pneg %p126
        %s627 = sand.u32 %s116, 1
        %s628 = sand.u32 %s116, 1
        %s629 = smul.addr %s628, 64
        %s630 = scalar_lea.vmem [#allocation3], %s629
        %p631 = scmp.lt.s32.totalorder %s18, 1
        %s632 = scalar_select %p631, %s18, 1
        %s633 = smul.addr %s632, 8
        %s634 = smul.addr %s633, 4
        %s635 = scalar_lea.vmem %s0, %s634
        %s636 = smul.u32 8, %s19
        %p637 = scmp.lt.s32.totalorder %s18, 1
        %s638 = scalar_select %p637, %s18, 1
        %s639 = smul.addr %s638, 2
        %s640 = smul.addr %s639, 8
        %s641 = scalar_lea.vmem %s2, %s640
        %s642 = smul.u32 8, %s19
        %v644 = vld [vmem:[%s635] sm:$0xff]
        %v645 = vld [vmem:[%s635 + $0x8] sm:$0xff]
        %v646 = vld [vmem:[%s635 + $0x10] sm:$0xff]
        %v647 = vld [vmem:[%s635 + $0x18] sm:$0xff]
        %v648 = vld [vmem:[%s601] sm:$0xff]
        %v649 = vld [vmem:[%s601 + $0x8] sm:$0xff]
        %v650 = vld [vmem:[%s601 + $0x10] sm:$0xff]
        %v651 = vld [vmem:[%s601 + $0x18] sm:$0xff]
        %v652 = vld [vmem:[%s601 + $0x20] sm:$0xff]
        %v653 = vld [vmem:[%s601 + $0x28] sm:$0xff]
        %v654 = vld [vmem:[%s601 + $0x30] sm:$0xff]
        %v655 = vld [vmem:[%s601 + $0x38] sm:$0xff]
        %v656 = vld [vmem:[%s601 + $0x40] sm:$0xff]
        %v657 = vld [vmem:[%s601 + $0x48] sm:$0xff]
        %v658 = vld [vmem:[%s601 + $0x50] sm:$0xff]
        %v659 = vld [vmem:[%s601 + $0x58] sm:$0xff]
        %v660 = vld [vmem:[%s601 + $0x60] sm:$0xff]
        %v661 = vld [vmem:[%s601 + $0x68] sm:$0xff]
        %v662 = vld [vmem:[%s601 + $0x70] sm:$0xff]
        %v663 = vld [vmem:[%s601 + $0x78] sm:$0xff]
        %v664 = vld [vmem:[%s601 + $0x80] sm:$0xff]
        %v665 = vld [vmem:[%s601 + $0x88] sm:$0xff]
        %v666 = vld [vmem:[%s601 + $0x90] sm:$0xff]
        %v667 = vld [vmem:[%s601 + $0x98] sm:$0xff]
        %v668 = vld [vmem:[%s601 + $0xa0] sm:$0xff]
        %v669 = vld [vmem:[%s601 + $0xa8] sm:$0xff]
        %v670 = vld [vmem:[%s601 + $0xb0] sm:$0xff]
        %v671 = vld [vmem:[%s601 + $0xb8] sm:$0xff]
        %v672 = vld [vmem:[%s601 + $0xc0] sm:$0xff]
        %v673 = vld [vmem:[%s601 + $0xc8] sm:$0xff]
        %v674 = vld [vmem:[%s601 + $0xd0] sm:$0xff]
        %v675 = vld [vmem:[%s601 + $0xd8] sm:$0xff]
        %v676 = vld [vmem:[%s601 + $0xe0] sm:$0xff]
        %v677 = vld [vmem:[%s601 + $0xe8] sm:$0xff]
        %v678 = vld [vmem:[%s601 + $0xf0] sm:$0xff]
        %v679 = vld [vmem:[%s601 + $0xf8] sm:$0xff]
        %v680 = vld [vmem:[%s601 + $0x100] sm:$0xff]
        %v681 = vld [vmem:[%s601 + $0x108] sm:$0xff]
        %v682 = vld [vmem:[%s601 + $0x110] sm:$0xff]
        %v683 = vld [vmem:[%s601 + $0x118] sm:$0xff]
        %v684 = vld [vmem:[%s601 + $0x120] sm:$0xff]
        %v685 = vld [vmem:[%s601 + $0x128] sm:$0xff]
        %v686 = vld [vmem:[%s601 + $0x130] sm:$0xff]
        %v687 = vld [vmem:[%s601 + $0x138] sm:$0xff]
        %v688 = vld [vmem:[%s601 + $0x140] sm:$0xff]
        %v689 = vld [vmem:[%s601 + $0x148] sm:$0xff]
        %v690 = vld [vmem:[%s601 + $0x150] sm:$0xff]
        %v691 = vld [vmem:[%s601 + $0x158] sm:$0xff]
        %v692 = vld [vmem:[%s601 + $0x160] sm:$0xff]
        %v693 = vld [vmem:[%s601 + $0x168] sm:$0xff]
        %v694 = vld [vmem:[%s601 + $0x170] sm:$0xff]
        %v695 = vld [vmem:[%s601 + $0x178] sm:$0xff]
        %v696 = vld [vmem:[%s601 + $0x180] sm:$0xff]
        %v697 = vld [vmem:[%s601 + $0x188] sm:$0xff]
        %v698 = vld [vmem:[%s601 + $0x190] sm:$0xff]
        %v699 = vld [vmem:[%s601 + $0x198] sm:$0xff]
        %v700 = vld [vmem:[%s601 + $0x1a0] sm:$0xff]
        %v701 = vld [vmem:[%s601 + $0x1a8] sm:$0xff]
        %v702 = vld [vmem:[%s601 + $0x1b0] sm:$0xff]
        %v703 = vld [vmem:[%s601 + $0x1b8] sm:$0xff]
        %v704 = vld [vmem:[%s601 + $0x1c0] sm:$0xff]
        %v705 = vld [vmem:[%s601 + $0x1c8] sm:$0xff]
        %v706 = vld [vmem:[%s601 + $0x1d0] sm:$0xff]
        %v707 = vld [vmem:[%s601 + $0x1d8] sm:$0xff]
        %v708 = vld [vmem:[%s601 + $0x1e0] sm:$0xff]
        %v709 = vld [vmem:[%s601 + $0x1e8] sm:$0xff]
        %v710 = vld [vmem:[%s601 + $0x1f0] sm:$0xff]
        %v711 = vld [vmem:[%s601 + $0x1f8] sm:$0xff]
        %v712 = vld [vmem:[%s601 + $0x200] sm:$0xff]
        %v713 = vld [vmem:[%s601 + $0x208] sm:$0xff]
        %v714 = vld [vmem:[%s601 + $0x210] sm:$0xff]
        %v715 = vld [vmem:[%s601 + $0x218] sm:$0xff]
        %v716 = vld [vmem:[%s601 + $0x220] sm:$0xff]
        %v717 = vld [vmem:[%s601 + $0x228] sm:$0xff]
        %v718 = vld [vmem:[%s601 + $0x230] sm:$0xff]
        %v719 = vld [vmem:[%s601 + $0x238] sm:$0xff]
        %v720 = vld [vmem:[%s601 + $0x240] sm:$0xff]
        %v721 = vld [vmem:[%s601 + $0x248] sm:$0xff]
        %v722 = vld [vmem:[%s601 + $0x250] sm:$0xff]
        %v723 = vld [vmem:[%s601 + $0x258] sm:$0xff]
        %v724 = vld [vmem:[%s601 + $0x260] sm:$0xff]
        %v725 = vld [vmem:[%s601 + $0x268] sm:$0xff]
        %v726 = vld [vmem:[%s601 + $0x270] sm:$0xff]
        %v727 = vld [vmem:[%s601 + $0x278] sm:$0xff]
        %v728 = vld [vmem:[%s601 + $0x280] sm:$0xff]
        %v729 = vld [vmem:[%s601 + $0x288] sm:$0xff]
        %v730 = vld [vmem:[%s601 + $0x290] sm:$0xff]
        %v731 = vld [vmem:[%s601 + $0x298] sm:$0xff]
        %v732 = vld [vmem:[%s601 + $0x2a0] sm:$0xff]
        %v733 = vld [vmem:[%s601 + $0x2a8] sm:$0xff]
        %v734 = vld [vmem:[%s601 + $0x2b0] sm:$0xff]
        %v735 = vld [vmem:[%s601 + $0x2b8] sm:$0xff]
        %v736 = vld [vmem:[%s601 + $0x2c0] sm:$0xff]
        %v737 = vld [vmem:[%s601 + $0x2c8] sm:$0xff]
        %v738 = vld [vmem:[%s601 + $0x2d0] sm:$0xff]
        %v739 = vld [vmem:[%s601 + $0x2d8] sm:$0xff]
        %v740 = vld [vmem:[%s601 + $0x2e0] sm:$0xff]
        %v741 = vld [vmem:[%s601 + $0x2e8] sm:$0xff]
        %v742 = vld [vmem:[%s601 + $0x2f0] sm:$0xff]
        %v743 = vld [vmem:[%s601 + $0x2f8] sm:$0xff]
        %v744 = vld [vmem:[%s601 + $0x300] sm:$0xff]
        %v745 = vld [vmem:[%s601 + $0x308] sm:$0xff]
        %v746 = vld [vmem:[%s601 + $0x310] sm:$0xff]
        %v747 = vld [vmem:[%s601 + $0x318] sm:$0xff]
        %v748 = vld [vmem:[%s601 + $0x320] sm:$0xff]
        %v749 = vld [vmem:[%s601 + $0x328] sm:$0xff]
        %v750 = vld [vmem:[%s601 + $0x330] sm:$0xff]
        %v751 = vld [vmem:[%s601 + $0x338] sm:$0xff]
        %v752 = vld [vmem:[%s601 + $0x340] sm:$0xff]
        %v753 = vld [vmem:[%s601 + $0x348] sm:$0xff]
        %v754 = vld [vmem:[%s601 + $0x350] sm:$0xff]
        %v755 = vld [vmem:[%s601 + $0x358] sm:$0xff]
        %v756 = vld [vmem:[%s601 + $0x360] sm:$0xff]
        %v757 = vld [vmem:[%s601 + $0x368] sm:$0xff]
        %v758 = vld [vmem:[%s601 + $0x370] sm:$0xff]
        %v759 = vld [vmem:[%s601 + $0x378] sm:$0xff]
        %v760 = vld [vmem:[%s601 + $0x380] sm:$0xff]
        %v761 = vld [vmem:[%s601 + $0x388] sm:$0xff]
        %v762 = vld [vmem:[%s601 + $0x390] sm:$0xff]
        %v763 = vld [vmem:[%s601 + $0x398] sm:$0xff]
        %v764 = vld [vmem:[%s601 + $0x3a0] sm:$0xff]
        %v765 = vld [vmem:[%s601 + $0x3a8] sm:$0xff]
        %v766 = vld [vmem:[%s601 + $0x3b0] sm:$0xff]
        %v767 = vld [vmem:[%s601 + $0x3b8] sm:$0xff]
        %v768 = vld [vmem:[%s601 + $0x3c0] sm:$0xff]
        %v769 = vld [vmem:[%s601 + $0x3c8] sm:$0xff]
        %v770 = vld [vmem:[%s601 + $0x3d0] sm:$0xff]
        %v771 = vld [vmem:[%s601 + $0x3d8] sm:$0xff]
        %v772 = vld [vmem:[%s601 + $0x3e0] sm:$0xff]
        %v773 = vld [vmem:[%s601 + $0x3e8] sm:$0xff]
        %v774 = vld [vmem:[%s601 + $0x3f0] sm:$0xff]
        %v775 = vld [vmem:[%s601 + $0x3f8] sm:$0xff]
        %v776 = vld [vmem:[%s601 + $0x400] sm:$0xff]
        %v777 = vld [vmem:[%s601 + $0x408] sm:$0xff]
        %v778 = vld [vmem:[%s601 + $0x410] sm:$0xff]
        %v779 = vld [vmem:[%s601 + $0x418] sm:$0xff]
        %v780 = vld [vmem:[%s601 + $0x420] sm:$0xff]
        %v781 = vld [vmem:[%s601 + $0x428] sm:$0xff]
        %v782 = vld [vmem:[%s601 + $0x430] sm:$0xff]
        %v783 = vld [vmem:[%s601 + $0x438] sm:$0xff]
        %v784 = vld [vmem:[%s601 + $0x440] sm:$0xff]
        %v785 = vld [vmem:[%s601 + $0x448] sm:$0xff]
        %v786 = vld [vmem:[%s601 + $0x450] sm:$0xff]
        %v787 = vld [vmem:[%s601 + $0x458] sm:$0xff]
        %v788 = vld [vmem:[%s601 + $0x460] sm:$0xff]
        %v789 = vld [vmem:[%s601 + $0x468] sm:$0xff]
        %v790 = vld [vmem:[%s601 + $0x470] sm:$0xff]
        %v791 = vld [vmem:[%s601 + $0x478] sm:$0xff]
        %v792 = vld [vmem:[%s601 + $0x480] sm:$0xff]
        %v793 = vld [vmem:[%s601 + $0x488] sm:$0xff]
        %v794 = vld [vmem:[%s601 + $0x490] sm:$0xff]
        %v795 = vld [vmem:[%s601 + $0x498] sm:$0xff]
        %v796 = vld [vmem:[%s601 + $0x4a0] sm:$0xff]
        %v797 = vld [vmem:[%s601 + $0x4a8] sm:$0xff]
        %v798 = vld [vmem:[%s601 + $0x4b0] sm:$0xff]
        %v799 = vld [vmem:[%s601 + $0x4b8] sm:$0xff]
        %v800 = vld [vmem:[%s601 + $0x4c0] sm:$0xff]
        %v801 = vld [vmem:[%s601 + $0x4c8] sm:$0xff]
        %v802 = vld [vmem:[%s601 + $0x4d0] sm:$0xff]
        %v803 = vld [vmem:[%s601 + $0x4d8] sm:$0xff]
        %v804 = vld [vmem:[%s601 + $0x4e0] sm:$0xff]
        %v805 = vld [vmem:[%s601 + $0x4e8] sm:$0xff]
        %v806 = vld [vmem:[%s601 + $0x4f0] sm:$0xff]
        %v807 = vld [vmem:[%s601 + $0x4f8] sm:$0xff]
        %v808 = vld [vmem:[%s601 + $0x500] sm:$0xff]
        %v809 = vld [vmem:[%s601 + $0x508] sm:$0xff]
        %v810 = vld [vmem:[%s601 + $0x510] sm:$0xff]
        %v811 = vld [vmem:[%s601 + $0x518] sm:$0xff]
        %v812 = vld [vmem:[%s601 + $0x520] sm:$0xff]
        %v813 = vld [vmem:[%s601 + $0x528] sm:$0xff]
        %v814 = vld [vmem:[%s601 + $0x530] sm:$0xff]
        %v815 = vld [vmem:[%s601 + $0x538] sm:$0xff]
        %v816 = vld [vmem:[%s601 + $0x540] sm:$0xff]
        %v817 = vld [vmem:[%s601 + $0x548] sm:$0xff]
        %v818 = vld [vmem:[%s601 + $0x550] sm:$0xff]
        %v819 = vld [vmem:[%s601 + $0x558] sm:$0xff]
        %v820 = vld [vmem:[%s601 + $0x560] sm:$0xff]
        %v821 = vld [vmem:[%s601 + $0x568] sm:$0xff]
        %v822 = vld [vmem:[%s601 + $0x570] sm:$0xff]
        %v823 = vld [vmem:[%s601 + $0x578] sm:$0xff]
        %v824 = vld [vmem:[%s601 + $0x580] sm:$0xff]
        %v825 = vld [vmem:[%s601 + $0x588] sm:$0xff]
        %v826 = vld [vmem:[%s601 + $0x590] sm:$0xff]
        %v827 = vld [vmem:[%s601 + $0x598] sm:$0xff]
        %v828 = vld [vmem:[%s601 + $0x5a0] sm:$0xff]
        %v829 = vld [vmem:[%s601 + $0x5a8] sm:$0xff]
        %v830 = vld [vmem:[%s601 + $0x5b0] sm:$0xff]
        %v831 = vld [vmem:[%s601 + $0x5b8] sm:$0xff]
        %v832 = vld [vmem:[%s601 + $0x5c0] sm:$0xff]
        %v833 = vld [vmem:[%s601 + $0x5c8] sm:$0xff]
        %v834 = vld [vmem:[%s601 + $0x5d0] sm:$0xff]
        %v835 = vld [vmem:[%s601 + $0x5d8] sm:$0xff]
        %v836 = vld [vmem:[%s601 + $0x5e0] sm:$0xff]
        %v837 = vld [vmem:[%s601 + $0x5e8] sm:$0xff]
        %v838 = vld [vmem:[%s601 + $0x5f0] sm:$0xff]
        %v839 = vld [vmem:[%s601 + $0x5f8] sm:$0xff]
        %v840 = vld [vmem:[%s601 + $0x600] sm:$0xff]
        %v841 = vld [vmem:[%s601 + $0x608] sm:$0xff]
        %v842 = vld [vmem:[%s601 + $0x610] sm:$0xff]
        %v843 = vld [vmem:[%s601 + $0x618] sm:$0xff]
        %v844 = vld [vmem:[%s601 + $0x620] sm:$0xff]
        %v845 = vld [vmem:[%s601 + $0x628] sm:$0xff]
        %v846 = vld [vmem:[%s601 + $0x630] sm:$0xff]
        %v847 = vld [vmem:[%s601 + $0x638] sm:$0xff]
        %v848 = vld [vmem:[%s641] sm:$0xff]
        %v849 = vld [vmem:[%s641 + $0x8] sm:$0xff]
        %851 = vset.pattern.permute.xlu0 0
        %852 = vperm.xlu0 %851, %v848
        %v853 = vpop.permute.xlu0 %852
        %856 = vset.pattern.permute.xlu0 0
        %857 = vperm.xlu0 %856, %v849
        %v858 = vpop.permute.xlu0 %857
        %v864 = vunpack.c.l.b16 %v644
        %v865 = vunpack.c.h.b16 %v644
        %v866 = vunpack.c.l.b16 %v645
        %v867 = vunpack.c.h.b16 %v645
        %v868 = vunpack.c.l.b16 %v646
        %v869 = vunpack.c.h.b16 %v646
        %v870 = vunpack.c.l.b16 %v647
        %v871 = vunpack.c.h.b16 %v647
        %v872 = vpack.c.b16 %v868, %v864
        %v873 = vpack.c.b16 %v869, %v865
        %v874 = vpack.c.b16 %v870, %v866
        %v875 = vpack.c.b16 %v871, %v867
        %v1079 = vunpack.c.l.b16 %v648
        %v1080 = vunpack.c.h.b16 %v648
        %v1081 = vunpack.c.l.b16 %v649
        %v1082 = vunpack.c.h.b16 %v649
        %v1083 = vunpack.c.l.b16 %v650
        %v1084 = vunpack.c.h.b16 %v650
        %v1085 = vunpack.c.l.b16 %v651
        %v1086 = vunpack.c.h.b16 %v651
        %v1087 = vunpack.c.l.b16 %v652
        %v1088 = vunpack.c.h.b16 %v652
        %v1089 = vunpack.c.l.b16 %v653
        %v1090 = vunpack.c.h.b16 %v653
        %v1091 = vunpack.c.l.b16 %v654
        %v1092 = vunpack.c.h.b16 %v654
        %v1093 = vunpack.c.l.b16 %v655
        %v1094 = vunpack.c.h.b16 %v655
        %v1095 = vunpack.c.l.b16 %v656
        %v1096 = vunpack.c.h.b16 %v656
        %v1097 = vunpack.c.l.b16 %v657
        %v1098 = vunpack.c.h.b16 %v657
        %v1099 = vunpack.c.l.b16 %v658
        %v1100 = vunpack.c.h.b16 %v658
        %v1101 = vunpack.c.l.b16 %v659
        %v1102 = vunpack.c.h.b16 %v659
        %v1103 = vunpack.c.l.b16 %v660
        %v1104 = vunpack.c.h.b16 %v660
        %v1105 = vunpack.c.l.b16 %v661
        %v1106 = vunpack.c.h.b16 %v661
        %v1107 = vunpack.c.l.b16 %v662
        %v1108 = vunpack.c.h.b16 %v662
        %v1109 = vunpack.c.l.b16 %v663
        %v1110 = vunpack.c.h.b16 %v663
        %v1111 = vunpack.c.l.b16 %v664
        %v1112 = vunpack.c.h.b16 %v664
        %v1113 = vunpack.c.l.b16 %v665
        %v1114 = vunpack.c.h.b16 %v665
        %v1115 = vunpack.c.l.b16 %v666
        %v1116 = vunpack.c.h.b16 %v666
        %v1117 = vunpack.c.l.b16 %v667
        %v1118 = vunpack.c.h.b16 %v667
        %v1119 = vunpack.c.l.b16 %v668
        %v1120 = vunpack.c.h.b16 %v668
        %v1121 = vunpack.c.l.b16 %v669
        %v1122 = vunpack.c.h.b16 %v669
        %v1123 = vunpack.c.l.b16 %v670
        %v1124 = vunpack.c.h.b16 %v670
        %v1125 = vunpack.c.l.b16 %v671
        %v1126 = vunpack.c.h.b16 %v671
        %v1127 = vunpack.c.l.b16 %v672
        %v1128 = vunpack.c.h.b16 %v672
        %v1129 = vunpack.c.l.b16 %v673
        %v1130 = vunpack.c.h.b16 %v673
        %v1131 = vunpack.c.l.b16 %v674
        %v1132 = vunpack.c.h.b16 %v674
        %v1133 = vunpack.c.l.b16 %v675
        %v1134 = vunpack.c.h.b16 %v675
        %v1135 = vunpack.c.l.b16 %v676
        %v1136 = vunpack.c.h.b16 %v676
        %v1137 = vunpack.c.l.b16 %v677
        %v1138 = vunpack.c.h.b16 %v677
        %v1139 = vunpack.c.l.b16 %v678
        %v1140 = vunpack.c.h.b16 %v678
        %v1141 = vunpack.c.l.b16 %v679
        %v1142 = vunpack.c.h.b16 %v679
        %v1143 = vunpack.c.l.b16 %v680
        %v1144 = vunpack.c.h.b16 %v680
        %v1145 = vunpack.c.l.b16 %v681
        %v1146 = vunpack.c.h.b16 %v681
        %v1147 = vunpack.c.l.b16 %v682
        %v1148 = vunpack.c.h.b16 %v682
        %v1149 = vunpack.c.l.b16 %v683
        %v1150 = vunpack.c.h.b16 %v683
        %v1151 = vunpack.c.l.b16 %v684
        %v1152 = vunpack.c.h.b16 %v684
        %v1153 = vunpack.c.l.b16 %v685
        %v1154 = vunpack.c.h.b16 %v685
        %v1155 = vunpack.c.l.b16 %v686
        %v1156 = vunpack.c.h.b16 %v686
        %v1157 = vunpack.c.l.b16 %v687
        %v1158 = vunpack.c.h.b16 %v687
        %v1159 = vunpack.c.l.b16 %v688
        %v1160 = vunpack.c.h.b16 %v688
        %v1161 = vunpack.c.l.b16 %v689
        %v1162 = vunpack.c.h.b16 %v689
        %v1163 = vunpack.c.l.b16 %v690
        %v1164 = vunpack.c.h.b16 %v690
        %v1165 = vunpack.c.l.b16 %v691
        %v1166 = vunpack.c.h.b16 %v691
        %v1167 = vunpack.c.l.b16 %v692
        %v1168 = vunpack.c.h.b16 %v692
        %v1169 = vunpack.c.l.b16 %v693
        %v1170 = vunpack.c.h.b16 %v693
        %v1171 = vunpack.c.l.b16 %v694
        %v1172 = vunpack.c.h.b16 %v694
        %v1173 = vunpack.c.l.b16 %v695
        %v1174 = vunpack.c.h.b16 %v695
        %v1175 = vunpack.c.l.b16 %v696
        %v1176 = vunpack.c.h.b16 %v696
        %v1177 = vunpack.c.l.b16 %v697
        %v1178 = vunpack.c.h.b16 %v697
        %v1179 = vunpack.c.l.b16 %v698
        %v1180 = vunpack.c.h.b16 %v698
        %v1181 = vunpack.c.l.b16 %v699
        %v1182 = vunpack.c.h.b16 %v699
        %v1183 = vunpack.c.l.b16 %v700
        %v1184 = vunpack.c.h.b16 %v700
        %v1185 = vunpack.c.l.b16 %v701
        %v1186 = vunpack.c.h.b16 %v701
        %v1187 = vunpack.c.l.b16 %v702
        %v1188 = vunpack.c.h.b16 %v702
        %v1189 = vunpack.c.l.b16 %v703
        %v1190 = vunpack.c.h.b16 %v703
        %v1191 = vunpack.c.l.b16 %v704
        %v1192 = vunpack.c.h.b16 %v704
        %v1193 = vunpack.c.l.b16 %v705
        %v1194 = vunpack.c.h.b16 %v705
        %v1195 = vunpack.c.l.b16 %v706
        %v1196 = vunpack.c.h.b16 %v706
        %v1197 = vunpack.c.l.b16 %v707
        %v1198 = vunpack.c.h.b16 %v707
        %v1199 = vunpack.c.l.b16 %v708
        %v1200 = vunpack.c.h.b16 %v708
        %v1201 = vunpack.c.l.b16 %v709
        %v1202 = vunpack.c.h.b16 %v709
        %v1203 = vunpack.c.l.b16 %v710
        %v1204 = vunpack.c.h.b16 %v710
        %v1205 = vunpack.c.l.b16 %v711
        %v1206 = vunpack.c.h.b16 %v711
        %v1207 = vunpack.c.l.b16 %v712
        %v1208 = vunpack.c.h.b16 %v712
        %v1209 = vunpack.c.l.b16 %v713
        %v1210 = vunpack.c.h.b16 %v713
        %v1211 = vunpack.c.l.b16 %v714
        %v1212 = vunpack.c.h.b16 %v714
        %v1213 = vunpack.c.l.b16 %v715
        %v1214 = vunpack.c.h.b16 %v715
        %v1215 = vunpack.c.l.b16 %v716
        %v1216 = vunpack.c.h.b16 %v716
        %v1217 = vunpack.c.l.b16 %v717
        %v1218 = vunpack.c.h.b16 %v717
        %v1219 = vunpack.c.l.b16 %v718
        %v1220 = vunpack.c.h.b16 %v718
        %v1221 = vunpack.c.l.b16 %v719
        %v1222 = vunpack.c.h.b16 %v719
        %v1223 = vunpack.c.l.b16 %v720
        %v1224 = vunpack.c.h.b16 %v720
        %v1225 = vunpack.c.l.b16 %v721
        %v1226 = vunpack.c.h.b16 %v721
        %v1227 = vunpack.c.l.b16 %v722
        %v1228 = vunpack.c.h.b16 %v722
        %v1229 = vunpack.c.l.b16 %v723
        %v1230 = vunpack.c.h.b16 %v723
        %v1231 = vunpack.c.l.b16 %v724
        %v1232 = vunpack.c.h.b16 %v724
        %v1233 = vunpack.c.l.b16 %v725
        %v1234 = vunpack.c.h.b16 %v725
        %v1235 = vunpack.c.l.b16 %v726
        %v1236 = vunpack.c.h.b16 %v726
        %v1237 = vunpack.c.l.b16 %v727
        %v1238 = vunpack.c.h.b16 %v727
        %v1239 = vunpack.c.l.b16 %v728
        %v1240 = vunpack.c.h.b16 %v728
        %v1241 = vunpack.c.l.b16 %v729
        %v1242 = vunpack.c.h.b16 %v729
        %v1243 = vunpack.c.l.b16 %v730
        %v1244 = vunpack.c.h.b16 %v730
        %v1245 = vunpack.c.l.b16 %v731
        %v1246 = vunpack.c.h.b16 %v731
        %v1247 = vunpack.c.l.b16 %v732
        %v1248 = vunpack.c.h.b16 %v732
        %v1249 = vunpack.c.l.b16 %v733
        %v1250 = vunpack.c.h.b16 %v733
        %v1251 = vunpack.c.l.b16 %v734
        %v1252 = vunpack.c.h.b16 %v734
        %v1253 = vunpack.c.l.b16 %v735
        %v1254 = vunpack.c.h.b16 %v735
        %v1255 = vunpack.c.l.b16 %v736
        %v1256 = vunpack.c.h.b16 %v736
        %v1257 = vunpack.c.l.b16 %v737
        %v1258 = vunpack.c.h.b16 %v737
        %v1259 = vunpack.c.l.b16 %v738
        %v1260 = vunpack.c.h.b16 %v738
        %v1261 = vunpack.c.l.b16 %v739
        %v1262 = vunpack.c.h.b16 %v739
        %v1263 = vunpack.c.l.b16 %v740
        %v1264 = vunpack.c.h.b16 %v740
        %v1265 = vunpack.c.l.b16 %v741
        %v1266 = vunpack.c.h.b16 %v741
        %v1267 = vunpack.c.l.b16 %v742
        %v1268 = vunpack.c.h.b16 %v742
        %v1269 = vunpack.c.l.b16 %v743
        %v1270 = vunpack.c.h.b16 %v743
        %v1271 = vunpack.c.l.b16 %v744
        %v1272 = vunpack.c.h.b16 %v744
        %v1273 = vunpack.c.l.b16 %v745
        %v1274 = vunpack.c.h.b16 %v745
        %v1275 = vunpack.c.l.b16 %v746
        %v1276 = vunpack.c.h.b16 %v746
        %v1277 = vunpack.c.l.b16 %v747
        %v1278 = vunpack.c.h.b16 %v747
        %v1279 = vunpack.c.l.b16 %v748
        %v1280 = vunpack.c.h.b16 %v748
        %v1281 = vunpack.c.l.b16 %v749
        %v1282 = vunpack.c.h.b16 %v749
        %v1283 = vunpack.c.l.b16 %v750
        %v1284 = vunpack.c.h.b16 %v750
        %v1285 = vunpack.c.l.b16 %v751
        %v1286 = vunpack.c.h.b16 %v751
        %v1287 = vunpack.c.l.b16 %v752
        %v1288 = vunpack.c.h.b16 %v752
        %v1289 = vunpack.c.l.b16 %v753
        %v1290 = vunpack.c.h.b16 %v753
        %v1291 = vunpack.c.l.b16 %v754
        %v1292 = vunpack.c.h.b16 %v754
        %v1293 = vunpack.c.l.b16 %v755
        %v1294 = vunpack.c.h.b16 %v755
        %v1295 = vunpack.c.l.b16 %v756
        %v1296 = vunpack.c.h.b16 %v756
        %v1297 = vunpack.c.l.b16 %v757
        %v1298 = vunpack.c.h.b16 %v757
        %v1299 = vunpack.c.l.b16 %v758
        %v1300 = vunpack.c.h.b16 %v758
        %v1301 = vunpack.c.l.b16 %v759
        %v1302 = vunpack.c.h.b16 %v759
        %v1303 = vunpack.c.l.b16 %v760
        %v1304 = vunpack.c.h.b16 %v760
        %v1305 = vunpack.c.l.b16 %v761
        %v1306 = vunpack.c.h.b16 %v761
        %v1307 = vunpack.c.l.b16 %v762
        %v1308 = vunpack.c.h.b16 %v762
        %v1309 = vunpack.c.l.b16 %v763
        %v1310 = vunpack.c.h.b16 %v763
        %v1311 = vunpack.c.l.b16 %v764
        %v1312 = vunpack.c.h.b16 %v764
        %v1313 = vunpack.c.l.b16 %v765
        %v1314 = vunpack.c.h.b16 %v765
        %v1315 = vunpack.c.l.b16 %v766
        %v1316 = vunpack.c.h.b16 %v766
        %v1317 = vunpack.c.l.b16 %v767
        %v1318 = vunpack.c.h.b16 %v767
        %v1319 = vunpack.c.l.b16 %v768
        %v1320 = vunpack.c.h.b16 %v768
        %v1321 = vunpack.c.l.b16 %v769
        %v1322 = vunpack.c.h.b16 %v769
        %v1323 = vunpack.c.l.b16 %v770
        %v1324 = vunpack.c.h.b16 %v770
        %v1325 = vunpack.c.l.b16 %v771
        %v1326 = vunpack.c.h.b16 %v771
        %v1327 = vunpack.c.l.b16 %v772
        %v1328 = vunpack.c.h.b16 %v772
        %v1329 = vunpack.c.l.b16 %v773
        %v1330 = vunpack.c.h.b16 %v773
        %v1331 = vunpack.c.l.b16 %v774
        %v1332 = vunpack.c.h.b16 %v774
        %v1333 = vunpack.c.l.b16 %v775
        %v1334 = vunpack.c.h.b16 %v775
        %v1335 = vunpack.c.l.b16 %v776
        %v1336 = vunpack.c.h.b16 %v776
        %v1337 = vunpack.c.l.b16 %v777
        %v1338 = vunpack.c.h.b16 %v777
        %v1339 = vunpack.c.l.b16 %v778
        %v1340 = vunpack.c.h.b16 %v778
        %v1341 = vunpack.c.l.b16 %v779
        %v1342 = vunpack.c.h.b16 %v779
        %v1343 = vunpack.c.l.b16 %v780
        %v1344 = vunpack.c.h.b16 %v780
        %v1345 = vunpack.c.l.b16 %v781
        %v1346 = vunpack.c.h.b16 %v781
        %v1347 = vunpack.c.l.b16 %v782
        %v1348 = vunpack.c.h.b16 %v782
        %v1349 = vunpack.c.l.b16 %v783
        %v1350 = vunpack.c.h.b16 %v783
        %v1351 = vunpack.c.l.b16 %v784
        %v1352 = vunpack.c.h.b16 %v784
        %v1353 = vunpack.c.l.b16 %v785
        %v1354 = vunpack.c.h.b16 %v785
        %v1355 = vunpack.c.l.b16 %v786
        %v1356 = vunpack.c.h.b16 %v786
        %v1357 = vunpack.c.l.b16 %v787
        %v1358 = vunpack.c.h.b16 %v787
        %v1359 = vunpack.c.l.b16 %v788
        %v1360 = vunpack.c.h.b16 %v788
        %v1361 = vunpack.c.l.b16 %v789
        %v1362 = vunpack.c.h.b16 %v789
        %v1363 = vunpack.c.l.b16 %v790
        %v1364 = vunpack.c.h.b16 %v790
        %v1365 = vunpack.c.l.b16 %v791
        %v1366 = vunpack.c.h.b16 %v791
        %v1367 = vunpack.c.l.b16 %v792
        %v1368 = vunpack.c.h.b16 %v792
        %v1369 = vunpack.c.l.b16 %v793
        %v1370 = vunpack.c.h.b16 %v793
        %v1371 = vunpack.c.l.b16 %v794
        %v1372 = vunpack.c.h.b16 %v794
        %v1373 = vunpack.c.l.b16 %v795
        %v1374 = vunpack.c.h.b16 %v795
        %v1375 = vunpack.c.l.b16 %v796
        %v1376 = vunpack.c.h.b16 %v796
        %v1377 = vunpack.c.l.b16 %v797
        %v1378 = vunpack.c.h.b16 %v797
        %v1379 = vunpack.c.l.b16 %v798
        %v1380 = vunpack.c.h.b16 %v798
        %v1381 = vunpack.c.l.b16 %v799
        %v1382 = vunpack.c.h.b16 %v799
        %v1383 = vunpack.c.l.b16 %v800
        %v1384 = vunpack.c.h.b16 %v800
        %v1385 = vunpack.c.l.b16 %v801
        %v1386 = vunpack.c.h.b16 %v801
        %v1387 = vunpack.c.l.b16 %v802
        %v1388 = vunpack.c.h.b16 %v802
        %v1389 = vunpack.c.l.b16 %v803
        %v1390 = vunpack.c.h.b16 %v803
        %v1391 = vunpack.c.l.b16 %v804
        %v1392 = vunpack.c.h.b16 %v804
        %v1393 = vunpack.c.l.b16 %v805
        %v1394 = vunpack.c.h.b16 %v805
        %v1395 = vunpack.c.l.b16 %v806
        %v1396 = vunpack.c.h.b16 %v806
        %v1397 = vunpack.c.l.b16 %v807
        %v1398 = vunpack.c.h.b16 %v807
        %v1399 = vunpack.c.l.b16 %v808
        %v1400 = vunpack.c.h.b16 %v808
        %v1401 = vunpack.c.l.b16 %v809
        %v1402 = vunpack.c.h.b16 %v809
        %v1403 = vunpack.c.l.b16 %v810
        %v1404 = vunpack.c.h.b16 %v810
        %v1405 = vunpack.c.l.b16 %v811
        %v1406 = vunpack.c.h.b16 %v811
        %v1407 = vunpack.c.l.b16 %v812
        %v1408 = vunpack.c.h.b16 %v812
        %v1409 = vunpack.c.l.b16 %v813
        %v1410 = vunpack.c.h.b16 %v813
        %v1411 = vunpack.c.l.b16 %v814
        %v1412 = vunpack.c.h.b16 %v814
        %v1413 = vunpack.c.l.b16 %v815
        %v1414 = vunpack.c.h.b16 %v815
        %v1415 = vunpack.c.l.b16 %v816
        %v1416 = vunpack.c.h.b16 %v816
        %v1417 = vunpack.c.l.b16 %v817
        %v1418 = vunpack.c.h.b16 %v817
        %v1419 = vunpack.c.l.b16 %v818
        %v1420 = vunpack.c.h.b16 %v818
        %v1421 = vunpack.c.l.b16 %v819
        %v1422 = vunpack.c.h.b16 %v819
        %v1423 = vunpack.c.l.b16 %v820
        %v1424 = vunpack.c.h.b16 %v820
        %v1425 = vunpack.c.l.b16 %v821
        %v1426 = vunpack.c.h.b16 %v821
        %v1427 = vunpack.c.l.b16 %v822
        %v1428 = vunpack.c.h.b16 %v822
        %v1429 = vunpack.c.l.b16 %v823
        %v1430 = vunpack.c.h.b16 %v823
        %v1431 = vunpack.c.l.b16 %v824
        %v1432 = vunpack.c.h.b16 %v824
        %v1433 = vunpack.c.l.b16 %v825
        %v1434 = vunpack.c.h.b16 %v825
        %v1435 = vunpack.c.l.b16 %v826
        %v1436 = vunpack.c.h.b16 %v826
        %v1437 = vunpack.c.l.b16 %v827
        %v1438 = vunpack.c.h.b16 %v827
        %v1439 = vunpack.c.l.b16 %v828
        %v1440 = vunpack.c.h.b16 %v828
        %v1441 = vunpack.c.l.b16 %v829
        %v1442 = vunpack.c.h.b16 %v829
        %v1443 = vunpack.c.l.b16 %v830
        %v1444 = vunpack.c.h.b16 %v830
        %v1445 = vunpack.c.l.b16 %v831
        %v1446 = vunpack.c.h.b16 %v831
        %v1447 = vunpack.c.l.b16 %v832
        %v1448 = vunpack.c.h.b16 %v832
        %v1449 = vunpack.c.l.b16 %v833
        %v1450 = vunpack.c.h.b16 %v833
        %v1451 = vunpack.c.l.b16 %v834
        %v1452 = vunpack.c.h.b16 %v834
        %v1453 = vunpack.c.l.b16 %v835
        %v1454 = vunpack.c.h.b16 %v835
        %v1455 = vunpack.c.l.b16 %v836
        %v1456 = vunpack.c.h.b16 %v836
        %v1457 = vunpack.c.l.b16 %v837
        %v1458 = vunpack.c.h.b16 %v837
        %v1459 = vunpack.c.l.b16 %v838
        %v1460 = vunpack.c.h.b16 %v838
        %v1461 = vunpack.c.l.b16 %v839
        %v1462 = vunpack.c.h.b16 %v839
        %v1463 = vunpack.c.l.b16 %v840
        %v1464 = vunpack.c.h.b16 %v840
        %v1465 = vunpack.c.l.b16 %v841
        %v1466 = vunpack.c.h.b16 %v841
        %v1467 = vunpack.c.l.b16 %v842
        %v1468 = vunpack.c.h.b16 %v842
        %v1469 = vunpack.c.l.b16 %v843
        %v1470 = vunpack.c.h.b16 %v843
        %v1471 = vunpack.c.l.b16 %v844
        %v1472 = vunpack.c.h.b16 %v844
        %v1473 = vunpack.c.l.b16 %v845
        %v1474 = vunpack.c.h.b16 %v845
        %v1475 = vunpack.c.l.b16 %v846
        %v1476 = vunpack.c.h.b16 %v846
        %v1477 = vunpack.c.l.b16 %v847
        %v1478 = vunpack.c.h.b16 %v847
        %v1479 = vpack.c.b16 %v1087, %v1079
        %v1480 = vpack.c.b16 %v1088, %v1080
        %v1481 = vpack.c.b16 %v1089, %v1081
        %v1482 = vpack.c.b16 %v1090, %v1082
        %v1483 = vpack.c.b16 %v1091, %v1083
        %v1484 = vpack.c.b16 %v1092, %v1084
        %v1485 = vpack.c.b16 %v1093, %v1085
        %v1486 = vpack.c.b16 %v1094, %v1086
        %v1487 = vpack.c.b16 %v1103, %v1095
        %v1488 = vpack.c.b16 %v1104, %v1096
        %v1489 = vpack.c.b16 %v1105, %v1097
        %v1490 = vpack.c.b16 %v1106, %v1098
        %v1491 = vpack.c.b16 %v1107, %v1099
        %v1492 = vpack.c.b16 %v1108, %v1100
        %v1493 = vpack.c.b16 %v1109, %v1101
        %v1494 = vpack.c.b16 %v1110, %v1102
        %v1495 = vpack.c.b16 %v1119, %v1111
        %v1496 = vpack.c.b16 %v1120, %v1112
        %v1497 = vpack.c.b16 %v1121, %v1113
        %v1498 = vpack.c.b16 %v1122, %v1114
        %v1499 = vpack.c.b16 %v1123, %v1115
        %v1500 = vpack.c.b16 %v1124, %v1116
        %v1501 = vpack.c.b16 %v1125, %v1117
        %v1502 = vpack.c.b16 %v1126, %v1118
        %v1503 = vpack.c.b16 %v1135, %v1127
        %v1504 = vpack.c.b16 %v1136, %v1128
        %v1505 = vpack.c.b16 %v1137, %v1129
        %v1506 = vpack.c.b16 %v1138, %v1130
        %v1507 = vpack.c.b16 %v1139, %v1131
        %v1508 = vpack.c.b16 %v1140, %v1132
        %v1509 = vpack.c.b16 %v1141, %v1133
        %v1510 = vpack.c.b16 %v1142, %v1134
        %v1511 = vpack.c.b16 %v1151, %v1143
        %v1512 = vpack.c.b16 %v1152, %v1144
        %v1513 = vpack.c.b16 %v1153, %v1145
        %v1514 = vpack.c.b16 %v1154, %v1146
        %v1515 = vpack.c.b16 %v1155, %v1147
        %v1516 = vpack.c.b16 %v1156, %v1148
        %v1517 = vpack.c.b16 %v1157, %v1149
        %v1518 = vpack.c.b16 %v1158, %v1150
        %v1519 = vpack.c.b16 %v1167, %v1159
        %v1520 = vpack.c.b16 %v1168, %v1160
        %v1521 = vpack.c.b16 %v1169, %v1161
        %v1522 = vpack.c.b16 %v1170, %v1162
        %v1523 = vpack.c.b16 %v1171, %v1163
        %v1524 = vpack.c.b16 %v1172, %v1164
        %v1525 = vpack.c.b16 %v1173, %v1165
        %v1526 = vpack.c.b16 %v1174, %v1166
        %v1527 = vpack.c.b16 %v1183, %v1175
        %v1528 = vpack.c.b16 %v1184, %v1176
        %v1529 = vpack.c.b16 %v1185, %v1177
        %v1530 = vpack.c.b16 %v1186, %v1178
        %v1531 = vpack.c.b16 %v1187, %v1179
        %v1532 = vpack.c.b16 %v1188, %v1180
        %v1533 = vpack.c.b16 %v1189, %v1181
        %v1534 = vpack.c.b16 %v1190, %v1182
        %v1535 = vpack.c.b16 %v1199, %v1191
        %v1536 = vpack.c.b16 %v1200, %v1192
        %v1537 = vpack.c.b16 %v1201, %v1193
        %v1538 = vpack.c.b16 %v1202, %v1194
        %v1539 = vpack.c.b16 %v1203, %v1195
        %v1540 = vpack.c.b16 %v1204, %v1196
        %v1541 = vpack.c.b16 %v1205, %v1197
        %v1542 = vpack.c.b16 %v1206, %v1198
        %v1543 = vpack.c.b16 %v1215, %v1207
        %v1544 = vpack.c.b16 %v1216, %v1208
        %v1545 = vpack.c.b16 %v1217, %v1209
        %v1546 = vpack.c.b16 %v1218, %v1210
        %v1547 = vpack.c.b16 %v1219, %v1211
        %v1548 = vpack.c.b16 %v1220, %v1212
        %v1549 = vpack.c.b16 %v1221, %v1213
        %v1550 = vpack.c.b16 %v1222, %v1214
        %v1551 = vpack.c.b16 %v1231, %v1223
        %v1552 = vpack.c.b16 %v1232, %v1224
        %v1553 = vpack.c.b16 %v1233, %v1225
        %v1554 = vpack.c.b16 %v1234, %v1226
        %v1555 = vpack.c.b16 %v1235, %v1227
        %v1556 = vpack.c.b16 %v1236, %v1228
        %v1557 = vpack.c.b16 %v1237, %v1229
        %v1558 = vpack.c.b16 %v1238, %v1230
        %v1559 = vpack.c.b16 %v1247, %v1239
        %v1560 = vpack.c.b16 %v1248, %v1240
        %v1561 = vpack.c.b16 %v1249, %v1241
        %v1562 = vpack.c.b16 %v1250, %v1242
        %v1563 = vpack.c.b16 %v1251, %v1243
        %v1564 = vpack.c.b16 %v1252, %v1244
        %v1565 = vpack.c.b16 %v1253, %v1245
        %v1566 = vpack.c.b16 %v1254, %v1246
        %v1567 = vpack.c.b16 %v1263, %v1255
        %v1568 = vpack.c.b16 %v1264, %v1256
        %v1569 = vpack.c.b16 %v1265, %v1257
        %v1570 = vpack.c.b16 %v1266, %v1258
        %v1571 = vpack.c.b16 %v1267, %v1259
        %v1572 = vpack.c.b16 %v1268, %v1260
        %v1573 = vpack.c.b16 %v1269, %v1261
        %v1574 = vpack.c.b16 %v1270, %v1262
        %v1575 = vpack.c.b16 %v1279, %v1271
        %v1576 = vpack.c.b16 %v1280, %v1272
        %v1577 = vpack.c.b16 %v1281, %v1273
        %v1578 = vpack.c.b16 %v1282, %v1274
        %v1579 = vpack.c.b16 %v1283, %v1275
        %v1580 = vpack.c.b16 %v1284, %v1276
        %v1581 = vpack.c.b16 %v1285, %v1277
        %v1582 = vpack.c.b16 %v1286, %v1278
        %v1583 = vpack.c.b16 %v1295, %v1287
        %v1584 = vpack.c.b16 %v1296, %v1288
        %v1585 = vpack.c.b16 %v1297, %v1289
        %v1586 = vpack.c.b16 %v1298, %v1290
        %v1587 = vpack.c.b16 %v1299, %v1291
        %v1588 = vpack.c.b16 %v1300, %v1292
        %v1589 = vpack.c.b16 %v1301, %v1293
        %v1590 = vpack.c.b16 %v1302, %v1294
        %v1591 = vpack.c.b16 %v1311, %v1303
        %v1592 = vpack.c.b16 %v1312, %v1304
        %v1593 = vpack.c.b16 %v1313, %v1305
        %v1594 = vpack.c.b16 %v1314, %v1306
        %v1595 = vpack.c.b16 %v1315, %v1307
        %v1596 = vpack.c.b16 %v1316, %v1308
        %v1597 = vpack.c.b16 %v1317, %v1309
        %v1598 = vpack.c.b16 %v1318, %v1310
        %v1599 = vpack.c.b16 %v1327, %v1319
        %v1600 = vpack.c.b16 %v1328, %v1320
        %v1601 = vpack.c.b16 %v1329, %v1321
        %v1602 = vpack.c.b16 %v1330, %v1322
        %v1603 = vpack.c.b16 %v1331, %v1323
        %v1604 = vpack.c.b16 %v1332, %v1324
        %v1605 = vpack.c.b16 %v1333, %v1325
        %v1606 = vpack.c.b16 %v1334, %v1326
        %v1607 = vpack.c.b16 %v1343, %v1335
        %v1608 = vpack.c.b16 %v1344, %v1336
        %v1609 = vpack.c.b16 %v1345, %v1337
        %v1610 = vpack.c.b16 %v1346, %v1338
        %v1611 = vpack.c.b16 %v1347, %v1339
        %v1612 = vpack.c.b16 %v1348, %v1340
        %v1613 = vpack.c.b16 %v1349, %v1341
        %v1614 = vpack.c.b16 %v1350, %v1342
        %v1615 = vpack.c.b16 %v1359, %v1351
        %v1616 = vpack.c.b16 %v1360, %v1352
        %v1617 = vpack.c.b16 %v1361, %v1353
        %v1618 = vpack.c.b16 %v1362, %v1354
        %v1619 = vpack.c.b16 %v1363, %v1355
        %v1620 = vpack.c.b16 %v1364, %v1356
        %v1621 = vpack.c.b16 %v1365, %v1357
        %v1622 = vpack.c.b16 %v1366, %v1358
        %v1623 = vpack.c.b16 %v1375, %v1367
        %v1624 = vpack.c.b16 %v1376, %v1368
        %v1625 = vpack.c.b16 %v1377, %v1369
        %v1626 = vpack.c.b16 %v1378, %v1370
        %v1627 = vpack.c.b16 %v1379, %v1371
        %v1628 = vpack.c.b16 %v1380, %v1372
        %v1629 = vpack.c.b16 %v1381, %v1373
        %v1630 = vpack.c.b16 %v1382, %v1374
        %v1631 = vpack.c.b16 %v1391, %v1383
        %v1632 = vpack.c.b16 %v1392, %v1384
        %v1633 = vpack.c.b16 %v1393, %v1385
        %v1634 = vpack.c.b16 %v1394, %v1386
        %v1635 = vpack.c.b16 %v1395, %v1387
        %v1636 = vpack.c.b16 %v1396, %v1388
        %v1637 = vpack.c.b16 %v1397, %v1389
        %v1638 = vpack.c.b16 %v1398, %v1390
        %v1639 = vpack.c.b16 %v1407, %v1399
        %v1640 = vpack.c.b16 %v1408, %v1400
        %v1641 = vpack.c.b16 %v1409, %v1401
        %v1642 = vpack.c.b16 %v1410, %v1402
        %v1643 = vpack.c.b16 %v1411, %v1403
        %v1644 = vpack.c.b16 %v1412, %v1404
        %v1645 = vpack.c.b16 %v1413, %v1405
        %v1646 = vpack.c.b16 %v1414, %v1406
        %v1647 = vpack.c.b16 %v1423, %v1415
        %v1648 = vpack.c.b16 %v1424, %v1416
        %v1649 = vpack.c.b16 %v1425, %v1417
        %v1650 = vpack.c.b16 %v1426, %v1418
        %v1651 = vpack.c.b16 %v1427, %v1419
        %v1652 = vpack.c.b16 %v1428, %v1420
        %v1653 = vpack.c.b16 %v1429, %v1421
        %v1654 = vpack.c.b16 %v1430, %v1422
        %v1655 = vpack.c.b16 %v1439, %v1431
        %v1656 = vpack.c.b16 %v1440, %v1432
        %v1657 = vpack.c.b16 %v1441, %v1433
        %v1658 = vpack.c.b16 %v1442, %v1434
        %v1659 = vpack.c.b16 %v1443, %v1435
        %v1660 = vpack.c.b16 %v1444, %v1436
        %v1661 = vpack.c.b16 %v1445, %v1437
        %v1662 = vpack.c.b16 %v1446, %v1438
        %v1663 = vpack.c.b16 %v1455, %v1447
        %v1664 = vpack.c.b16 %v1456, %v1448
        %v1665 = vpack.c.b16 %v1457, %v1449
        %v1666 = vpack.c.b16 %v1458, %v1450
        %v1667 = vpack.c.b16 %v1459, %v1451
        %v1668 = vpack.c.b16 %v1460, %v1452
        %v1669 = vpack.c.b16 %v1461, %v1453
        %v1670 = vpack.c.b16 %v1462, %v1454
        %v1671 = vpack.c.b16 %v1471, %v1463
        %v1672 = vpack.c.b16 %v1472, %v1464
        %v1673 = vpack.c.b16 %v1473, %v1465
        %v1674 = vpack.c.b16 %v1474, %v1466
        %v1675 = vpack.c.b16 %v1475, %v1467
        %v1676 = vpack.c.b16 %v1476, %v1468
        %v1677 = vpack.c.b16 %v1477, %v1469
        %v1678 = vpack.c.b16 %v1478, %v1470
        %vm1879 = vcmask 130048
        %v1881 = vsel %vm1879, %v875, 0
        %1883 = vmatprep.subr.bf16.mxu0 %v1536
        %1884 = vmatpush1.bf16.msra.mxu0 %v1535
        %1885 = vmatprep.subr.bf16.mxu0 %v1528
        %1886 = vmatpush1.bf16.msra.mxu0 %v1527
        %1887 = vmatprep.subr.bf16.mxu0 %v1520
        %1888 = vmatpush1.bf16.msra.mxu0 %v1519
        %1889 = vmatprep.subr.bf16.mxu0 %v1512
        %1890 = vmatpush1.bf16.msra.mxu0 %v1511
        %1891 = vmatprep.subr.bf16.mxu0 %v1504
        %1892 = vmatpush1.bf16.msra.mxu0 %v1503
        %1893 = vmatprep.subr.bf16.mxu0 %v1496
        %1894 = vmatpush1.bf16.msra.mxu0 %v1495
        %1895 = vmatprep.subr.bf16.mxu0 %v1488
        %1896 = vmatpush1.bf16.msra.mxu0 %v1487
        %1897 = vmatprep.subr.bf16.mxu0 %v1480
        %1898 = vmatpush1.bf16.msra.mxu0 %v1479
        %1899 = vmatprep.subr.bf16.mxu0 %v1600
        %1900 = vmatpush2.bf16.msra.mxu0 %v1599
        %1901 = vmatprep.subr.bf16.mxu0 %v1592
        %1902 = vmatpush2.bf16.msra.mxu0 %v1591
        %1903 = vmatprep.subr.bf16.mxu0 %v1584
        %1904 = vmatpush2.bf16.msra.mxu0 %v1583
        %1905 = vmatprep.subr.bf16.mxu0 %v1576
        %1906 = vmatpush2.bf16.msra.mxu0 %v1575
        %1907 = vmatprep.subr.bf16.mxu0 %v1568
        %1908 = vmatpush2.bf16.msra.mxu0 %v1567
        %1909 = vmatprep.subr.bf16.mxu0 %v1560
        %1910 = vmatpush2.bf16.msra.mxu0 %v1559
        %1911 = vmatprep.subr.bf16.mxu0 %v1552
        %1912 = vmatpush2.bf16.msra.mxu0 %v1551
        %1913 = vmatprep.subr.bf16.mxu0 %v1544
        %1914 = vmatpush2.bf16.msra.mxu0 %v1543
        %1915 = vmatprep.mubr.bf16.mxu0 %v873
        %1916 = vmatmul.mubr.bf16.gmra.mxu0 %v872
        %v1917 = vpop.f32.mrf.mxu0
        %v1918 = vadd.f32 %v853, %v1917
        %v1919 = vpop.f32.mrf.mxu0
        %v1920 = vadd.f32 %v853, %v1919
        %v1921 = vpop.f32.mrf.mxu0
        %v1922 = vadd.f32 %v858, %v1921
        %v1923 = vpop.f32.mrf.mxu0
        %v1924 = vadd.f32 %v858, %v1923
        %1925 = vdwg.mxu0
        %1926 = vmatprep.subr.bf16.mxu0 %v1664
        %1927 = vmatpush1.bf16.msra.mxu0 %v1663
        %1928 = vmatprep.subr.bf16.mxu0 %v1656
        %1929 = vmatpush1.bf16.msra.mxu0 %v1655
        %1930 = vmatprep.subr.bf16.mxu0 %v1648
        %1931 = vmatpush1.bf16.msra.mxu0 %v1647
        %1932 = vmatprep.subr.bf16.mxu0 %v1640
        %1933 = vmatpush1.bf16.msra.mxu0 %v1639
        %1934 = vmatprep.subr.bf16.mxu0 %v1632
        %1935 = vmatpush1.bf16.msra.mxu0 %v1631
        %1936 = vmatprep.subr.bf16.mxu0 %v1624
        %1937 = vmatpush1.bf16.msra.mxu0 %v1623
        %1938 = vmatprep.subr.bf16.mxu0 %v1616
        %1939 = vmatpush1.bf16.msra.mxu0 %v1615
        %1940 = vmatprep.subr.bf16.mxu0 %v1608
        %1941 = vmatpush1.bf16.msra.mxu0 %v1607
        %1942 = vmatprep.subr.bf16.mxu0 0
        %1943 = vmatpush2.bf16.msra.mxu0 0
        %1944 = vmatprep.subr.bf16.mxu0 0
        %1945 = vmatpush2.bf16.msra.mxu0 0
        %1946 = vmatprep.subr.bf16.mxu0 0
        %1947 = vmatpush2.bf16.msra.mxu0 0
        %1948 = vmatprep.subr.bf16.mxu0 0
        %1949 = vmatpush2.bf16.msra.mxu0 0
        %1950 = vmatprep.subr.bf16.mxu0 0
        %1951 = vmatpush2.bf16.msra.mxu0 0
        %1952 = vmatprep.subr.bf16.mxu0 0
        %1953 = vmatpush2.bf16.msra.mxu0 0
        %1954 = vmatprep.subr.bf16.mxu0 0
        %1955 = vmatpush2.bf16.msra.mxu0 0
        %1956 = vmatprep.subr.bf16.mxu0 %v1672
        %1957 = vmatpush2.bf16.msra.mxu0 %v1671
        %1958 = vmatprep.mubr.bf16.mxu0 %v1881
        %1959 = vmatmul.mubr.bf16.gmra.mxu0 %v874
        %v1960 = vpop.f32.mrf.mxu0
        %v1961 = vadd.f32 %v1918, %v1960
        %v1962 = vpop.f32.mrf.mxu0
        %v1963 = vadd.f32 %v1920, %v1962
        %v1964 = vpop.f32.mrf.mxu0
        %v1965 = vadd.f32 %v1922, %v1964
        %v1966 = vpop.f32.mrf.mxu0
        %v1967 = vadd.f32 %v1924, %v1966
        %1968 = vdwg.mxu0
        %1969 = vmatprep.subr.bf16.mxu0 %v1538
        %1970 = vmatpush1.bf16.msra.mxu0 %v1537
        %1971 = vmatprep.subr.bf16.mxu0 %v1530
        %1972 = vmatpush1.bf16.msra.mxu0 %v1529
        %1973 = vmatprep.subr.bf16.mxu0 %v1522
        %1974 = vmatpush1.bf16.msra.mxu0 %v1521
        %1975 = vmatprep.subr.bf16.mxu0 %v1514
        %1976 = vmatpush1.bf16.msra.mxu0 %v1513
        %1977 = vmatprep.subr.bf16.mxu0 %v1506
        %1978 = vmatpush1.bf16.msra.mxu0 %v1505
        %1979 = vmatprep.subr.bf16.mxu0 %v1498
        %1980 = vmatpush1.bf16.msra.mxu0 %v1497
        %1981 = vmatprep.subr.bf16.mxu0 %v1490
        %1982 = vmatpush1.bf16.msra.mxu0 %v1489
        %1983 = vmatprep.subr.bf16.mxu0 %v1482
        %1984 = vmatpush1.bf16.msra.mxu0 %v1481
        %1985 = vmatprep.subr.bf16.mxu0 %v1602
        %1986 = vmatpush2.bf16.msra.mxu0 %v1601
        %1987 = vmatprep.subr.bf16.mxu0 %v1594
        %1988 = vmatpush2.bf16.msra.mxu0 %v1593
        %1989 = vmatprep.subr.bf16.mxu0 %v1586
        %1990 = vmatpush2.bf16.msra.mxu0 %v1585
        %1991 = vmatprep.subr.bf16.mxu0 %v1578
        %1992 = vmatpush2.bf16.msra.mxu0 %v1577
        %1993 = vmatprep.subr.bf16.mxu0 %v1570
        %1994 = vmatpush2.bf16.msra.mxu0 %v1569
        %1995 = vmatprep.subr.bf16.mxu0 %v1562
        %1996 = vmatpush2.bf16.msra.mxu0 %v1561
        %1997 = vmatprep.subr.bf16.mxu0 %v1554
        %1998 = vmatpush2.bf16.msra.mxu0 %v1553
        %1999 = vmatprep.subr.bf16.mxu0 %v1546
        %2000 = vmatpush2.bf16.msra.mxu0 %v1545
        %2001 = vmatprep.mubr.bf16.mxu0 %v873
        %2002 = vmatmul.mubr.bf16.gmra.mxu0 %v872
        %v2003 = vpop.f32.mrf.mxu0
        %v2004 = vadd.f32 %v853, %v2003
        %v2005 = vpop.f32.mrf.mxu0
        %v2006 = vadd.f32 %v853, %v2005
        %v2007 = vpop.f32.mrf.mxu0
        %v2008 = vadd.f32 %v858, %v2007
        %v2009 = vpop.f32.mrf.mxu0
        %v2010 = vadd.f32 %v858, %v2009
        %2011 = vdwg.mxu0
        %2012 = vmatprep.subr.bf16.mxu0 %v1666
        %2013 = vmatpush1.bf16.msra.mxu0 %v1665
        %2014 = vmatprep.subr.bf16.mxu0 %v1658
        %2015 = vmatpush1.bf16.msra.mxu0 %v1657
        %2016 = vmatprep.subr.bf16.mxu0 %v1650
        %2017 = vmatpush1.bf16.msra.mxu0 %v1649
        %2018 = vmatprep.subr.bf16.mxu0 %v1642
        %2019 = vmatpush1.bf16.msra.mxu0 %v1641
        %2020 = vmatprep.subr.bf16.mxu0 %v1634
        %2021 = vmatpush1.bf16.msra.mxu0 %v1633
        %2022 = vmatprep.subr.bf16.mxu0 %v1626
        %2023 = vmatpush1.bf16.msra.mxu0 %v1625
        %2024 = vmatprep.subr.bf16.mxu0 %v1618
        %2025 = vmatpush1.bf16.msra.mxu0 %v1617
        %2026 = vmatprep.subr.bf16.mxu0 %v1610
        %2027 = vmatpush1.bf16.msra.mxu0 %v1609
        %2028 = vmatprep.subr.bf16.mxu0 0
        %2029 = vmatpush2.bf16.msra.mxu0 0
        %2030 = vmatprep.subr.bf16.mxu0 0
        %2031 = vmatpush2.bf16.msra.mxu0 0
        %2032 = vmatprep.subr.bf16.mxu0 0
        %2033 = vmatpush2.bf16.msra.mxu0 0
        %2034 = vmatprep.subr.bf16.mxu0 0
        %2035 = vmatpush2.bf16.msra.mxu0 0
        %2036 = vmatprep.subr.bf16.mxu0 0
        %2037 = vmatpush2.bf16.msra.mxu0 0
        %2038 = vmatprep.subr.bf16.mxu0 0
        %2039 = vmatpush2.bf16.msra.mxu0 0
        %2040 = vmatprep.subr.bf16.mxu0 0
        %2041 = vmatpush2.bf16.msra.mxu0 0
        %2042 = vmatprep.subr.bf16.mxu0 %v1674
        %2043 = vmatpush2.bf16.msra.mxu0 %v1673
        %2044 = vmatprep.mubr.bf16.mxu0 %v1881
        %2045 = vmatmul.mubr.bf16.gmra.mxu0 %v874
        %v2046 = vpop.f32.mrf.mxu0
        %v2047 = vadd.f32 %v2004, %v2046
        %v2048 = vpop.f32.mrf.mxu0
        %v2049 = vadd.f32 %v2006, %v2048
        %v2050 = vpop.f32.mrf.mxu0
        %v2051 = vadd.f32 %v2008, %v2050
        %v2052 = vpop.f32.mrf.mxu0
        %v2053 = vadd.f32 %v2010, %v2052
        %2054 = vdwg.mxu0
        %2055 = vmatprep.subr.bf16.mxu0 %v1540
        %2056 = vmatpush1.bf16.msra.mxu0 %v1539
        %2057 = vmatprep.subr.bf16.mxu0 %v1532
        %2058 = vmatpush1.bf16.msra.mxu0 %v1531
        %2059 = vmatprep.subr.bf16.mxu0 %v1524
        %2060 = vmatpush1.bf16.msra.mxu0 %v1523
        %2061 = vmatprep.subr.bf16.mxu0 %v1516
        %2062 = vmatpush1.bf16.msra.mxu0 %v1515
        %2063 = vmatprep.subr.bf16.mxu0 %v1508
        %2064 = vmatpush1.bf16.msra.mxu0 %v1507
        %2065 = vmatprep.subr.bf16.mxu0 %v1500
        %2066 = vmatpush1.bf16.msra.mxu0 %v1499
        %2067 = vmatprep.subr.bf16.mxu0 %v1492
        %2068 = vmatpush1.bf16.msra.mxu0 %v1491
        %2069 = vmatprep.subr.bf16.mxu0 %v1484
        %2070 = vmatpush1.bf16.msra.mxu0 %v1483
        %2071 = vmatprep.subr.bf16.mxu0 %v1604
        %2072 = vmatpush2.bf16.msra.mxu0 %v1603
        %2073 = vmatprep.subr.bf16.mxu0 %v1596
        %2074 = vmatpush2.bf16.msra.mxu0 %v1595
        %2075 = vmatprep.subr.bf16.mxu0 %v1588
        %2076 = vmatpush2.bf16.msra.mxu0 %v1587
        %2077 = vmatprep.subr.bf16.mxu0 %v1580
        %2078 = vmatpush2.bf16.msra.mxu0 %v1579
        %2079 = vmatprep.subr.bf16.mxu0 %v1572
        %2080 = vmatpush2.bf16.msra.mxu0 %v1571
        %2081 = vmatprep.subr.bf16.mxu0 %v1564
        %2082 = vmatpush2.bf16.msra.mxu0 %v1563
        %2083 = vmatprep.subr.bf16.mxu0 %v1556
        %2084 = vmatpush2.bf16.msra.mxu0 %v1555
        %2085 = vmatprep.subr.bf16.mxu0 %v1548
        %2086 = vmatpush2.bf16.msra.mxu0 %v1547
        %2087 = vmatprep.mubr.bf16.mxu0 %v873
        %2088 = vmatmul.mubr.bf16.gmra.mxu0 %v872
        %v2089 = vpop.f32.mrf.mxu0
        %v2090 = vadd.f32 %v853, %v2089
        %v2091 = vpop.f32.mrf.mxu0
        %v2092 = vadd.f32 %v853, %v2091
        %v2093 = vpop.f32.mrf.mxu0
        %v2094 = vadd.f32 %v858, %v2093
        %v2095 = vpop.f32.mrf.mxu0
        %v2096 = vadd.f32 %v858, %v2095
        %2097 = vdwg.mxu0
        %2098 = vmatprep.subr.bf16.mxu0 %v1668
        %2099 = vmatpush1.bf16.msra.mxu0 %v1667
        %2100 = vmatprep.subr.bf16.mxu0 %v1660
        %2101 = vmatpush1.bf16.msra.mxu0 %v1659
        %2102 = vmatprep.subr.bf16.mxu0 %v1652
        %2103 = vmatpush1.bf16.msra.mxu0 %v1651
        %2104 = vmatprep.subr.bf16.mxu0 %v1644
        %2105 = vmatpush1.bf16.msra.mxu0 %v1643
        %2106 = vmatprep.subr.bf16.mxu0 %v1636
        %2107 = vmatpush1.bf16.msra.mxu0 %v1635
        %2108 = vmatprep.subr.bf16.mxu0 %v1628
        %2109 = vmatpush1.bf16.msra.mxu0 %v1627
        %2110 = vmatprep.subr.bf16.mxu0 %v1620
        %2111 = vmatpush1.bf16.msra.mxu0 %v1619
        %2112 = vmatprep.subr.bf16.mxu0 %v1612
        %2113 = vmatpush1.bf16.msra.mxu0 %v1611
        %2114 = vmatprep.subr.bf16.mxu0 0
        %2115 = vmatpush2.bf16.msra.mxu0 0
        %2116 = vmatprep.subr.bf16.mxu0 0
        %2117 = vmatpush2.bf16.msra.mxu0 0
        %2118 = vmatprep.subr.bf16.mxu0 0
        %2119 = vmatpush2.bf16.msra.mxu0 0
        %2120 = vmatprep.subr.bf16.mxu0 0
        %2121 = vmatpush2.bf16.msra.mxu0 0
        %2122 = vmatprep.subr.bf16.mxu0 0
        %2123 = vmatpush2.bf16.msra.mxu0 0
        %2124 = vmatprep.subr.bf16.mxu0 0
        %2125 = vmatpush2.bf16.msra.mxu0 0
        %2126 = vmatprep.subr.bf16.mxu0 0
        %2127 = vmatpush2.bf16.msra.mxu0 0
        %2128 = vmatprep.subr.bf16.mxu0 %v1676
        %2129 = vmatpush2.bf16.msra.mxu0 %v1675
        %2130 = vmatprep.mubr.bf16.mxu0 %v1881
        %2131 = vmatmul.mubr.bf16.gmra.mxu0 %v874
        %v2132 = vpop.f32.mrf.mxu0
        %v2133 = vadd.f32 %v2090, %v2132
        %v2134 = vpop.f32.mrf.mxu0
        %v2135 = vadd.f32 %v2092, %v2134
        %v2136 = vpop.f32.mrf.mxu0
        %v2137 = vadd.f32 %v2094, %v2136
        %v2138 = vpop.f32.mrf.mxu0
        %v2139 = vadd.f32 %v2096, %v2138
        %2140 = vdwg.mxu0
        %2141 = vmatprep.subr.bf16.mxu0 %v1542
        %2142 = vmatpush1.bf16.msra.mxu0 %v1541
        %2143 = vmatprep.subr.bf16.mxu0 %v1534
        %2144 = vmatpush1.bf16.msra.mxu0 %v1533
        %2145 = vmatprep.subr.bf16.mxu0 %v1526
        %2146 = vmatpush1.bf16.msra.mxu0 %v1525
        %2147 = vmatprep.subr.bf16.mxu0 %v1518
        %2148 = vmatpush1.bf16.msra.mxu0 %v1517
        %2149 = vmatprep.subr.bf16.mxu0 %v1510
        %2150 = vmatpush1.bf16.msra.mxu0 %v1509
        %2151 = vmatprep.subr.bf16.mxu0 %v1502
        %2152 = vmatpush1.bf16.msra.mxu0 %v1501
        %2153 = vmatprep.subr.bf16.mxu0 %v1494
        %2154 = vmatpush1.bf16.msra.mxu0 %v1493
        %2155 = vmatprep.subr.bf16.mxu0 %v1486
        %2156 = vmatpush1.bf16.msra.mxu0 %v1485
        %2157 = vmatprep.subr.bf16.mxu0 %v1606
        %2158 = vmatpush2.bf16.msra.mxu0 %v1605
        %2159 = vmatprep.subr.bf16.mxu0 %v1598
        %2160 = vmatpush2.bf16.msra.mxu0 %v1597
        %2161 = vmatprep.subr.bf16.mxu0 %v1590
        %2162 = vmatpush2.bf16.msra.mxu0 %v1589
        %2163 = vmatprep.subr.bf16.mxu0 %v1582
        %2164 = vmatpush2.bf16.msra.mxu0 %v1581
        %2165 = vmatprep.subr.bf16.mxu0 %v1574
        %2166 = vmatpush2.bf16.msra.mxu0 %v1573
        %2167 = vmatprep.subr.bf16.mxu0 %v1566
        %2168 = vmatpush2.bf16.msra.mxu0 %v1565
        %2169 = vmatprep.subr.bf16.mxu0 %v1558
        %2170 = vmatpush2.bf16.msra.mxu0 %v1557
        %2171 = vmatprep.subr.bf16.mxu0 %v1550
        %2172 = vmatpush2.bf16.msra.mxu0 %v1549
        %2173 = vmatprep.mubr.bf16.mxu0 %v873
        %2174 = vmatmul.mubr.bf16.gmra.mxu0 %v872
        %v2175 = vpop.f32.mrf.mxu0
        %v2176 = vadd.f32 %v853, %v2175
        %v2177 = vpop.f32.mrf.mxu0
        %v2178 = vadd.f32 %v853, %v2177
        %v2179 = vpop.f32.mrf.mxu0
        %v2180 = vadd.f32 %v858, %v2179
        %v2181 = vpop.f32.mrf.mxu0
        %v2182 = vadd.f32 %v858, %v2181
        %2183 = vdwg.mxu0
        %2184 = vmatprep.subr.bf16.mxu0 %v1670
        %2185 = vmatpush1.bf16.msra.mxu0 %v1669
        %2186 = vmatprep.subr.bf16.mxu0 %v1662
        %2187 = vmatpush1.bf16.msra.mxu0 %v1661
        %2188 = vmatprep.subr.bf16.mxu0 %v1654
        %2189 = vmatpush1.bf16.msra.mxu0 %v1653
        %2190 = vmatprep.subr.bf16.mxu0 %v1646
        %2191 = vmatpush1.bf16.msra.mxu0 %v1645
        %2192 = vmatprep.subr.bf16.mxu0 %v1638
        %2193 = vmatpush1.bf16.msra.mxu0 %v1637
        %2194 = vmatprep.subr.bf16.mxu0 %v1630
        %2195 = vmatpush1.bf16.msra.mxu0 %v1629
        %2196 = vmatprep.subr.bf16.mxu0 %v1622
        %2197 = vmatpush1.bf16.msra.mxu0 %v1621
        %2198 = vmatprep.subr.bf16.mxu0 %v1614
        %2199 = vmatpush1.bf16.msra.mxu0 %v1613
        %2200 = vmatprep.subr.bf16.mxu0 0
        %2201 = vmatpush2.bf16.msra.mxu0 0
        %2202 = vmatprep.subr.bf16.mxu0 0
        %2203 = vmatpush2.bf16.msra.mxu0 0
        %2204 = vmatprep.subr.bf16.mxu0 0
        %2205 = vmatpush2.bf16.msra.mxu0 0
        %2206 = vmatprep.subr.bf16.mxu0 0
        %2207 = vmatpush2.bf16.msra.mxu0 0
        %2208 = vmatprep.subr.bf16.mxu0 0
        %2209 = vmatpush2.bf16.msra.mxu0 0
        %2210 = vmatprep.subr.bf16.mxu0 0
        %2211 = vmatpush2.bf16.msra.mxu0 0
        %2212 = vmatprep.subr.bf16.mxu0 0
        %2213 = vmatpush2.bf16.msra.mxu0 0
        %2214 = vmatprep.subr.bf16.mxu0 %v1678
        %2215 = vmatpush2.bf16.msra.mxu0 %v1677
        %2216 = vmatprep.mubr.bf16.mxu0 %v1881
        %2217 = vmatmul.mubr.bf16.gmra.mxu0 %v874
        %v2218 = vpop.f32.mrf.mxu0
        %v2219 = vadd.f32 %v2176, %v2218
        %v2220 = vpop.f32.mrf.mxu0
        %v2221 = vadd.f32 %v2178, %v2220
        %v2222 = vpop.f32.mrf.mxu0
        %v2223 = vadd.f32 %v2180, %v2222
        %v2224 = vpop.f32.mrf.mxu0
        %v2225 = vadd.f32 %v2182, %v2224
        %2226 = vdwg.mxu0
        %vm2227 = vcmp.gt.f32.partialorder %v1961, 0.0
        %vm2228 = vcmp.gt.f32.partialorder %v1963, 0.0
        %vm2229 = vcmp.gt.f32.partialorder %v2047, 0.0
        %vm2230 = vcmp.gt.f32.partialorder %v2049, 0.0
        %vm2231 = vcmp.gt.f32.partialorder %v2133, 0.0
        %vm2232 = vcmp.gt.f32.partialorder %v2135, 0.0
        %vm2233 = vcmp.gt.f32.partialorder %v2219, 0.0
        %vm2234 = vcmp.gt.f32.partialorder %v2221, 0.0
        %vm2235 = vcmp.gt.f32.partialorder %v1965, 0.0
        %vm2236 = vcmp.gt.f32.partialorder %v1967, 0.0
        %vm2237 = vcmp.gt.f32.partialorder %v2051, 0.0
        %vm2238 = vcmp.gt.f32.partialorder %v2053, 0.0
        %vm2239 = vcmp.gt.f32.partialorder %v2137, 0.0
        %vm2240 = vcmp.gt.f32.partialorder %v2139, 0.0
        %vm2241 = vcmp.gt.f32.partialorder %v2223, 0.0
        %vm2242 = vcmp.gt.f32.partialorder %v2225, 0.0
        %v2243 = vmul.f32 %v1961, 0.01
        %v2244 = vmul.f32 %v1963, 0.01
        %v2245 = vmul.f32 %v2047, 0.01
        %v2246 = vmul.f32 %v2049, 0.01
        %v2247 = vmul.f32 %v2133, 0.01
        %v2248 = vmul.f32 %v2135, 0.01
        %v2249 = vmul.f32 %v2219, 0.01
        %v2250 = vmul.f32 %v2221, 0.01
        %v2251 = vmul.f32 %v1965, 0.01
        %v2252 = vmul.f32 %v1967, 0.01
        %v2253 = vmul.f32 %v2051, 0.01
        %v2254 = vmul.f32 %v2053, 0.01
        %v2255 = vmul.f32 %v2137, 0.01
        %v2256 = vmul.f32 %v2139, 0.01
        %v2257 = vmul.f32 %v2223, 0.01
        %v2258 = vmul.f32 %v2225, 0.01
        %v2259 = vsel %vm2227, %v1961, %v2243
        %v2260 = vsel %vm2228, %v1963, %v2244
        %v2261 = vsel %vm2229, %v2047, %v2245
        %v2262 = vsel %vm2230, %v2049, %v2246
        %v2263 = vsel %vm2231, %v2133, %v2247
        %v2264 = vsel %vm2232, %v2135, %v2248
        %v2265 = vsel %vm2233, %v2219, %v2249
        %v2266 = vsel %vm2234, %v2221, %v2250
        %v2267 = vsel %vm2235, %v1965, %v2251
        %v2268 = vsel %vm2236, %v1967, %v2252
        %v2269 = vsel %vm2237, %v2051, %v2253
        %v2270 = vsel %vm2238, %v2053, %v2254
        %v2271 = vsel %vm2239, %v2137, %v2255
        %v2272 = vsel %vm2240, %v2139, %v2256
        %v2273 = vsel %vm2241, %v2223, %v2257
        %v2274 = vsel %vm2242, %v2225, %v2258
        %v2275 = vpack.c.bf16 %v2267, %v2259
        %v2276 = vpack.c.bf16 %v2268, %v2260
        %v2277 = vpack.c.bf16 %v2269, %v2261
        %v2278 = vpack.c.bf16 %v2270, %v2262
        %v2279 = vpack.c.bf16 %v2271, %v2263
        %v2280 = vpack.c.bf16 %v2272, %v2264
        %v2281 = vpack.c.bf16 %v2273, %v2265
        %v2282 = vpack.c.bf16 %v2274, %v2266
        %v2291 = vunpack.c.l.b16 %v2275
        %v2292 = vunpack.c.l.b16 %v2276
        %v2293 = vunpack.c.l.b16 %v2277
        %v2294 = vunpack.c.l.b16 %v2278
        %v2295 = vunpack.c.l.b16 %v2279
        %v2296 = vunpack.c.l.b16 %v2280
        %v2297 = vunpack.c.l.b16 %v2281
        %v2298 = vunpack.c.l.b16 %v2282
        %v2299 = vunpack.c.h.b16 %v2275
        %v2300 = vunpack.c.h.b16 %v2276
        %v2301 = vunpack.c.h.b16 %v2277
        %v2302 = vunpack.c.h.b16 %v2278
        %v2303 = vunpack.c.h.b16 %v2279
        %v2304 = vunpack.c.h.b16 %v2280
        %v2305 = vunpack.c.h.b16 %v2281
        %v2306 = vunpack.c.h.b16 %v2282
        %v2307 = vpack.c.b16 %v2292, %v2291
        %v2308 = vpack.c.b16 %v2294, %v2293
        %v2309 = vpack.c.b16 %v2296, %v2295
        %v2310 = vpack.c.b16 %v2298, %v2297
        %v2311 = vpack.c.b16 %v2300, %v2299
        %v2312 = vpack.c.b16 %v2302, %v2301
        %v2313 = vpack.c.b16 %v2304, %v2303
        %v2314 = vpack.c.b16 %v2306, %v2305
        %2323 = vst [vmem:[%s630] sm:$0xff] %v2307
        %2324 = vst [vmem:[%s630 + $0x8] sm:$0xff] %v2308
        %2325 = vst [vmem:[%s630 + $0x10] sm:$0xff] %v2309
        %2326 = vst [vmem:[%s630 + $0x18] sm:$0xff] %v2310
        %2327 = vst [vmem:[%s630 + $0x20] sm:$0xff] %v2311
        %2328 = vst [vmem:[%s630 + $0x28] sm:$0xff] %v2312
        %2329 = vst [vmem:[%s630 + $0x30] sm:$0xff] %v2313
        %2330 = vst [vmem:[%s630 + $0x38] sm:$0xff] %v2314
        %s2331 = sand.u32 %s116, 1
        %s2332 = sand.u32 %s116, 1
        %s2333 = smul.addr %s2332, 64
        %s2334 = scalar_lea.vmem [#allocation3], %s2333
        // Predicated region
        $region56: #{dec_forward.6} parent=50 // pred_check
          %p2335 = pneg %p126
        $region57: #{dec_forward.6} parent=50 // pred_check_branch
          %2337 = sbr.rel (%p2335) target = $region59
        $region58: #{dec_forward.6} parent=50 // pred_region
          %s2338 = smul.u32 8, %s19
          %s2339 = smul.addr %s18, 128
          %s2340 = sadd.s32 %s2338, %s2339
          %s2341 = smul.addr %s2340, 4
          %s2342 = scalar_lea.vmem %s3, %s2341
          // Predicated region
          $region60: #{dec_forward.6} parent=58 // pred_check
            _
          $region61: #{dec_forward.6} parent=58 // pred_check_branch
            %2344 = sbr.rel (0) target = $region63
          $region62: #{dec_forward.6} parent=58 // pred_region
            // Predicated region
            $region64: #{dec_forward.6} parent=62 // pred_check
              _
            $region65: #{dec_forward.6} parent=62 // pred_check_branch
              %2346 = sbr.rel (0) target = $region67
            $region66: #{dec_forward.6} parent=62 // pred_region
              loop: start=0, step=1, limit=1
              $region68: #{dec_forward.6} parent=66 // loop_pre_header
                _
              $region69: #{dec_forward.6} parent=66 // loop_header
                %s2348 = sphi 0, %s2352
                %p2349 = scmp.ge.s32.totalorder %s2348, 1
                %s2353 = sphi %s2334, %s2334
                %s2354 = sphi %s2342, %s2342
              $region70: #{dec_forward.6} parent=66 // loop_header_branch
                %2351 = sbr.rel (%p2349) target = $region74
              $region71: #{dec_forward.6} parent=66 // loop_body
                %v2355 = vld [vmem:[%s2353] sm:$0xff]
                %2356 = vst [vmem:[%s2354] sm:$0xff] %v2355
                %v2357 = vld [vmem:[%s2353 + $0x8] sm:$0xff]
                %2358 = vst [vmem:[%s2354 + $0x8] sm:$0xff] %v2357
                %v2359 = vld [vmem:[%s2353 + $0x10] sm:$0xff]
                %2360 = vst [vmem:[%s2354 + $0x10] sm:$0xff] %v2359
                %v2361 = vld [vmem:[%s2353 + $0x18] sm:$0xff]
                %2362 = vst [vmem:[%s2354 + $0x18] sm:$0xff] %v2361
                %v2363 = vld [vmem:[%s2353 + $0x20] sm:$0xff]
                %2364 = vst [vmem:[%s2354 + $0x100] sm:$0xff] %v2363
                %v2365 = vld [vmem:[%s2353 + $0x28] sm:$0xff]
                %2366 = vst [vmem:[%s2354 + $0x108] sm:$0xff] %v2365
                %v2367 = vld [vmem:[%s2353 + $0x30] sm:$0xff]
                %2368 = vst [vmem:[%s2354 + $0x110] sm:$0xff] %v2367
                %v2369 = vld [vmem:[%s2353 + $0x38] sm:$0xff]
                %2370 = vst [vmem:[%s2354 + $0x118] sm:$0xff] %v2369
              $region72: #{dec_forward.6} parent=66 // loop_footer
                %s2352 = sadd.s32 1, %s2348
              $region73: #{dec_forward.6} parent=66 // loop_footer_branch
                %2347 = sbr.rel target = $region69
              $region74: #{dec_forward.6} parent=66 // loop_exit
                _
            $region67: #{dec_forward.6} parent=62 // pred_fallthru
              _
            // Predicated region
            $region75: #{dec_forward.6} parent=62 // pred_check
              _
            $region76: #{dec_forward.6} parent=62 // pred_check_branch
              %2372 = sbr.rel target = $region78
            $region77: #{dec_forward.6} parent=62 // pred_region
              _
            $region78: #{dec_forward.6} parent=62 // pred_fallthru
              _
          $region63: #{dec_forward.6} parent=58 // pred_fallthru
            _
          %2373 = vnop
        $region59: #{dec_forward.6} parent=50 // pred_fallthru
          _
      $region51: #{dec_forward.6} parent=5 // pred_fallthru
        _
      %p2374 = scmp.le.s32.totalorder 2, %s9
      // Predicated region
      $region79: #{dec_forward.6} parent=5 // pred_check
        %p2375 = pneg %p2374
      $region80: #{dec_forward.6} parent=5 // pred_check_branch
        %2377 = sbr.rel (%p2375) target = $region82
      $region81: #{dec_forward.6} parent=5 // pred_region
        %s2378 = ssub.s32 %s9, 2
        // Predicated region
        $region83: #{dec_forward.6} parent=81 // pred_check
          %p2379 = pneg %p132
        $region84: #{dec_forward.6} parent=81 // pred_check_branch
          %2381 = sbr.rel (%p2379) target = $region86
        $region85: #{dec_forward.6} parent=81 // pred_region
          %s2382 = sand.u32 %s117, 1
          %s2383 = sand.u32 %s117, 1
          %s2384 = smul.addr %s2383, 64
          %s2385 = scalar_lea.vmem [#allocation3], %s2384
        $region86: #{dec_forward.6} parent=81 // pred_fallthru
          _
      $region82: #{dec_forward.6} parent=5 // pred_fallthru
        _
    $region6: #{dec_forward.6} parent=1 // loop_footer
      %s13 = sadd.s32 1, %s9
    $region7: #{dec_forward.6} parent=1 // loop_footer_branch
      %8 = sbr.rel target = $region3
    $region8: #{dec_forward.6} parent=1 // loop_exit
      _

// kernel: dec_forward.7
$region0: #{dec_forward.7}
  #allocation0 [shape = 'u32[]', space=smem, size = 0x4, offset = 0x4, fixed_abs, tag = 'smem constant byte address 0x4 - core index']
  #allocation1 [shape = 'u32[144,128]{1,0:T(1,128)}', space=vmem, size = 0x12000, scoped, tag = 'internal scratch']
  %s0 = inlined_call_operand.vmem [shape: bf16[2,8,400], index: 0, kind: input, shape index: {}]
  %s1 = inlined_call_operand.vmem [shape: bf16[2,400,32768], index: 1, kind: input, shape index: {}]
  %s2 = inlined_call_operand.vmem [shape: f32[2,8,1], index: 2, kind: input, shape index: {}]
  %s3 = inlined_call_operand.vmem [shape: f32[2,8,32768], index: 3, kind: output, shape index: {}]
  %s4 = sld [smem:[#allocation0]]
  $region68: #{dec_forward.7} parent=0
    _
  %s6 = ssub.s32 1, %s4
  %s7 = scalar_select 0, %s6, %s4
  $region1: #{dec_forward.7} parent=0
    #allocation2 [shape = 'u8[1638400]{0}', space=vmem, size = 0x190000, scoped, tag = 'input window, operand 1']
    loop: start=0, step=1, limit=66
    $region2: #{dec_forward.7} parent=1 // loop_pre_header
      _
    $region3: #{dec_forward.7} parent=1 // loop_header
      %s9 = sphi 0, %s13
      %p10 = scmp.ge.s32.totalorder %s9, 66
      %s16 = sphi 0, %s28
      %s17 = sphi 0, %s24
      %s18 = sphi 0, %s16
      %s19 = sphi 0, %s17
      %s20 = sphi 0, %s18
      %s21 = sphi 0, %s19
      %s31 = sphi 0, %s33
      %s34 = sphi 0, %s31
      %s35 = sphi 0, %s34
      %s51 = sphi 0, %s35
      %s59 = sphi 0, %s61
      %s62 = sphi 0, %s59
      %s63 = sphi 0, %s62
      %s79 = sphi 0, %s63
      %s85 = sphi 0, %s87
      %s88 = sphi 0, %s85
      %s89 = sphi 0, %s88
      %s105 = sphi 0, %s89
      %s113 = sphi 0, %s115
      %s116 = sphi 0, %s113
      %s117 = sphi 0, %s116
      %s133 = sphi 0, %s117
    $region4: #{dec_forward.7} parent=1 // loop_header_branch
      %12 = sbr.rel (%p10) target = $region8
    $region5: #{dec_forward.7} parent=1 // loop_body
      %s14 = ssub.s32 %s9, 1
      %s15 = ssub.s32 %s9, 2
      %s22 = sadd.s32 1, %s17
      %p23 = scmp.ge.s32.totalorder %s22, 32
      %s24 = scalar_select %p23, 0, %s22
      %s25 = sadd.s32 1, %s16
      %s26 = scalar_select %p23, %s25, %s16
      %p27 = scmp.ge.s32.totalorder %s26, 2
      %s28 = scalar_select %p27, 0, %s26
      %s29 = ssub.s32 %s16, %s28
      %p30 = scmp.eq.s32.totalorder %s29, 0
      %s32 = sadd.s32 %s31, 1
      %s33 = scalar_select %p30, %s31, %s32
      %p36 = pneg %p30
      %p37 = scmp.eq.s32.totalorder %s9, 63
      %p38 = por %p36, %p37
      %p39 = scmp.ne.s32.totalorder %s31, %s34
      %p40 = scmp.eq.s32.totalorder %s9, 0
      %p41 = por %p39, %p40
      %p42 = scmp.ne.s32.totalorder %s31, %s34
      %p43 = scmp.eq.s32.totalorder %s14, 63
      %p44 = por %p42, %p43
      %p45 = scmp.ne.s32.totalorder %s34, %s35
      %p46 = scmp.eq.s32.totalorder %s14, 0
      %p47 = por %p45, %p46
      %p48 = scmp.ne.s32.totalorder %s34, %s35
      %p49 = scmp.eq.s32.totalorder %s15, 63
      %p50 = por %p48, %p49
      %p52 = scmp.ne.s32.totalorder %s35, %s51
      %p53 = scmp.eq.s32.totalorder %s15, 0
      %p54 = por %p52, %p53
      %s55 = ssub.s32 %s16, %s28
      %s56 = ssub.s32 %s17, %s24
      %s57 = sor.u32 %s55, %s56
      %p58 = scmp.eq.s32.totalorder %s57, 0
      %s60 = sadd.s32 %s59, 1
      %s61 = scalar_select %p58, %s59, %s60
      %p64 = pneg %p58
      %p65 = scmp.eq.s32.totalorder %s9, 63
      %p66 = por %p64, %p65
      %p67 = scmp.ne.s32.totalorder %s59, %s62
      %p68 = scmp.eq.s32.totalorder %s9, 0
      %p69 = por %p67, %p68
      %p70 = scmp.ne.s32.totalorder %s59, %s62
      %p71 = scmp.eq.s32.totalorder %s14, 63
      %p72 = por %p70, %p71
      %p73 = scmp.ne.s32.totalorder %s62, %s63
      %p74 = scmp.eq.s32.totalorder %s14, 0
      %p75 = por %p73, %p74
      %p76 = scmp.ne.s32.totalorder %s62, %s63
      %p77 = scmp.eq.s32.totalorder %s15, 63
      %p78 = por %p76, %p77
      %p80 = scmp.ne.s32.totalorder %s63, %s79
      %p81 = scmp.eq.s32.totalorder %s15, 0
      %p82 = por %p80, %p81
      %s83 = ssub.s32 %s16, %s28
      %p84 = scmp.eq.s32.totalorder %s83, 0
      %s86 = sadd.s32 %s85, 1
      %s87 = scalar_select %p84, %s85, %s86
      %p90 = pneg %p84
      %p91 = scmp.eq.s32.totalorder %s9, 63
      %p92 = por %p90, %p91
      %p93 = scmp.ne.s32.totalorder %s85, %s88
      %p94 = scmp.eq.s32.totalorder %s9, 0
      %p95 = por %p93, %p94
      %p96 = scmp.ne.s32.totalorder %s85, %s88
      %p97 = scmp.eq.s32.totalorder %s14, 63
      %p98 = por %p96, %p97
      %p99 = scmp.ne.s32.totalorder %s88, %s89
      %p100 = scmp.eq.s32.totalorder %s14, 0
      %p101 = por %p99, %p100
      %p102 = scmp.ne.s32.totalorder %s88, %s89
      %p103 = scmp.eq.s32.totalorder %s15, 63
      %p104 = por %p102, %p103
      %p106 = scmp.ne.s32.totalorder %s89, %s105
      %p107 = scmp.eq.s32.totalorder %s15, 0
      %p108 = por %p106, %p107
      %s109 = ssub.s32 %s16, %s28
      %s110 = ssub.s32 %s17, %s24
      %s111 = sor.u32 %s109, %s110
      %p112 = scmp.eq.s32.totalorder %s111, 0
      %s114 = sadd.s32 %s113, 1
      %s115 = scalar_select %p112, %s113, %s114
      %p118 = pneg %p112
      %p119 = scmp.eq.s32.totalorder %s9, 63
      %p120 = por %p118, %p119
      %p121 = scmp.ne.s32.totalorder %s113, %s116
      %p122 = scmp.eq.s32.totalorder %s9, 0
      %p123 = por %p121, %p122
      %p124 = scmp.ne.s32.totalorder %s113, %s116
      %p125 = scmp.eq.s32.totalorder %s14, 63
      %p126 = por %p124, %p125
      %p127 = scmp.ne.s32.totalorder %s116, %s117
      %p128 = scmp.eq.s32.totalorder %s14, 0
      %p129 = por %p127, %p128
      %p130 = scmp.ne.s32.totalorder %s116, %s117
      %p131 = scmp.eq.s32.totalorder %s15, 63
      %p132 = por %p130, %p131
      %p134 = scmp.ne.s32.totalorder %s117, %s133
      %p135 = scmp.eq.s32.totalorder %s15, 0
      %p136 = por %p134, %p135
      %p137 = scmp.le.s32.totalorder 1, %s9
      %p138 = scmp.lt.s32.totalorder %s9, 65
      %p139 = pnand %p137, %p138
      %p140 = pneg %p139
      // Predicated region
      $region9: #{dec_forward.7} parent=5 // pred_check
        _
      $region10: #{dec_forward.7} parent=5 // pred_check_branch
        %142 = sbr.rel (%p139) target = $region12
      $region11: #{dec_forward.7} parent=5 // pred_region
        %s143 = ssub.s32 %s9, 1
      $region12: #{dec_forward.7} parent=5 // pred_fallthru
        _
      %p144 = scmp.lt.s32.totalorder %s9, 64
      // Predicated region
      $region13: #{dec_forward.7} parent=5 // pred_check
        %p145 = pneg %p144
      $region14: #{dec_forward.7} parent=5 // pred_check_branch
        %147 = sbr.rel (%p145) target = $region16
      $region15: #{dec_forward.7} parent=5 // pred_region
        // Predicated region
        $region17: #{dec_forward.7} parent=15 // pred_check
          %p148 = pneg %p41
        $region18: #{dec_forward.7} parent=15 // pred_check_branch
          %150 = sbr.rel (%p148) target = $region20
        $region19: #{dec_forward.7} parent=15 // pred_region
          %p151 = scmp.lt.s32.totalorder %s16, 1
          %s152 = scalar_select %p151, %s16, 1
          %s153 = smul.addr %s152, 4
          %s154 = smul.addr %s153, 4
          %s155 = scalar_lea.vmem %s0, %s154
        $region20: #{dec_forward.7} parent=15 // pred_fallthru
          _
        // Predicated region
        $region21: #{dec_forward.7} parent=15 // pred_check
          %p156 = pneg %p69
        $region22: #{dec_forward.7} parent=15 // pred_check_branch
          %158 = sbr.rel (%p156) target = $region24
        $region23: #{dec_forward.7} parent=15 // pred_region
          %s159 = sand.u32 %s59, 1
          %s160 = sand.u32 %s59, 1
          %s161 = smul.addr %s160, 1600
          %s162 = scalar_lea.vmem [#allocation2], %s161
          %s163 = smul.u32 8, %s17
          %s164 = smul.addr %s16, 12800
          %s165 = sadd.s32 %s163, %s164
          %s166 = smul.addr %s165, 4
          %s167 = scalar_lea.vmem %s1, %s166
          // Predicated region
          $region25: #{dec_forward.7} parent=23 // pred_check
            _
          $region26: #{dec_forward.7} parent=23 // pred_check_branch
            %169 = sbr.rel (0) target = $region28
          $region27: #{dec_forward.7} parent=23 // pred_region
            // Predicated region
            $region29: #{dec_forward.7} parent=27 // pred_check
              _
            $region30: #{dec_forward.7} parent=27 // pred_check_branch
              %171 = sbr.rel (0) target = $region32
            $region31: #{dec_forward.7} parent=27 // pred_region
              loop: start=0, step=1, limit=1
              $region33: #{dec_forward.7} parent=31 // loop_pre_header
                _
              $region34: #{dec_forward.7} parent=31 // loop_header
                %s173 = sphi 0, %s177
                %p174 = scmp.ge.s32.totalorder %s173, 1
                %s178 = sphi %s167, %s167
                %s179 = sphi %s162, %s162
              $region35: #{dec_forward.7} parent=31 // loop_header_branch
                %176 = sbr.rel (%p174) target = $region39
              $region36: #{dec_forward.7} parent=31 // loop_body
                %v180 = vld [vmem:[%s178] sm:$0xff]
                %181 = vst [vmem:[%s179] sm:$0xff] %v180
                %v182 = vld [vmem:[%s178 + $0x8] sm:$0xff]
                %183 = vst [vmem:[%s179 + $0x8] sm:$0xff] %v182
                %v184 = vld [vmem:[%s178 + $0x10] sm:$0xff]
                %185 = vst [vmem:[%s179 + $0x10] sm:$0xff] %v184
                %v186 = vld [vmem:[%s178 + $0x18] sm:$0xff]
                %187 = vst [vmem:[%s179 + $0x18] sm:$0xff] %v186
                %v188 = vld [vmem:[%s178 + $0x400] sm:$0xff]
                %189 = vst [vmem:[%s179 + $0x20] sm:$0xff] %v188
                %v190 = vld [vmem:[%s178 + $0x408] sm:$0xff]
                %191 = vst [vmem:[%s179 + $0x28] sm:$0xff] %v190
                %v192 = vld [vmem:[%s178 + $0x410] sm:$0xff]
                %193 = vst [vmem:[%s179 + $0x30] sm:$0xff] %v192
                %v194 = vld [vmem:[%s178 + $0x418] sm:$0xff]
                %195 = vst [vmem:[%s179 + $0x38] sm:$0xff] %v194
                %v196 = vld [vmem:[%s178 + $0x800] sm:$0xff]
                %197 = vst [vmem:[%s179 + $0x40] sm:$0xff] %v196
                %v198 = vld [vmem:[%s178 + $0x808] sm:$0xff]
                %199 = vst [vmem:[%s179 + $0x48] sm:$0xff] %v198
                %v200 = vld [vmem:[%s178 + $0x810] sm:$0xff]
                %201 = vst [vmem:[%s179 + $0x50] sm:$0xff] %v200
                %v202 = vld [vmem:[%s178 + $0x818] sm:$0xff]
                %203 = vst [vmem:[%s179 + $0x58] sm:$0xff] %v202
                %v204 = vld [vmem:[%s178 + $0xc00] sm:$0xff]
                %205 = vst [vmem:[%s179 + $0x60] sm:$0xff] %v204
                %v206 = vld [vmem:[%s178 + $0xc08] sm:$0xff]
                %207 = vst [vmem:[%s179 + $0x68] sm:$0xff] %v206
                %v208 = vld [vmem:[%s178 + $0xc10] sm:$0xff]
                %209 = vst [vmem:[%s179 + $0x70] sm:$0xff] %v208
                %v210 = vld [vmem:[%s178 + $0xc18] sm:$0xff]
                %211 = vst [vmem:[%s179 + $0x78] sm:$0xff] %v210
                %v212 = vld [vmem:[%s178 + $0x1000] sm:$0xff]
                %213 = vst [vmem:[%s179 + $0x80] sm:$0xff] %v212
                %v214 = vld [vmem:[%s178 + $0x1008] sm:$0xff]
                %215 = vst [vmem:[%s179 + $0x88] sm:$0xff] %v214
                %v216 = vld [vmem:[%s178 + $0x1010] sm:$0xff]
                %217 = vst [vmem:[%s179 + $0x90] sm:$0xff] %v216
                %v218 = vld [vmem:[%s178 + $0x1018] sm:$0xff]
                %219 = vst [vmem:[%s179 + $0x98] sm:$0xff] %v218
                %v220 = vld [vmem:[%s178 + $0x1400] sm:$0xff]
                %221 = vst [vmem:[%s179 + $0xa0] sm:$0xff] %v220
                %v222 = vld [vmem:[%s178 + $0x1408] sm:$0xff]
                %223 = vst [vmem:[%s179 + $0xa8] sm:$0xff] %v222
                %v224 = vld [vmem:[%s178 + $0x1410] sm:$0xff]
                %225 = vst [vmem:[%s179 + $0xb0] sm:$0xff] %v224
                %v226 = vld [vmem:[%s178 + $0x1418] sm:$0xff]
                %227 = vst [vmem:[%s179 + $0xb8] sm:$0xff] %v226
                %v228 = vld [vmem:[%s178 + $0x1800] sm:$0xff]
                %229 = vst [vmem:[%s179 + $0xc0] sm:$0xff] %v228
                %v230 = vld [vmem:[%s178 + $0x1808] sm:$0xff]
                %231 = vst [vmem:[%s179 + $0xc8] sm:$0xff] %v230
                %v232 = vld [vmem:[%s178 + $0x1810] sm:$0xff]
                %233 = vst [vmem:[%s179 + $0xd0] sm:$0xff] %v232
                %v234 = vld [vmem:[%s178 + $0x1818] sm:$0xff]
                %235 = vst [vmem:[%s179 + $0xd8] sm:$0xff] %v234
                %v236 = vld [vmem:[%s178 + $0x1c00] sm:$0xff]
                %237 = vst [vmem:[%s179 + $0xe0] sm:$0xff] %v236
                %v238 = vld [vmem:[%s178 + $0x1c08] sm:$0xff]
                %239 = vst [vmem:[%s179 + $0xe8] sm:$0xff] %v238
                %v240 = vld [vmem:[%s178 + $0x1c10] sm:$0xff]
                %241 = vst [vmem:[%s179 + $0xf0] sm:$0xff] %v240
                %v242 = vld [vmem:[%s178 + $0x1c18] sm:$0xff]
                %243 = vst [vmem:[%s179 + $0xf8] sm:$0xff] %v242
                %v244 = vld [vmem:[%s178 + $0x2000] sm:$0xff]
                %245 = vst [vmem:[%s179 + $0x100] sm:$0xff] %v244
                %v246 = vld [vmem:[%s178 + $0x2008] sm:$0xff]
                %247 = vst [vmem:[%s179 + $0x108] sm:$0xff] %v246
                %v248 = vld [vmem:[%s178 + $0x2010] sm:$0xff]
                %249 = vst [vmem:[%s179 + $0x110] sm:$0xff] %v248
                %v250 = vld [vmem:[%s178 + $0x2018] sm:$0xff]
                %251 = vst [vmem:[%s179 + $0x118] sm:$0xff] %v250
                %v252 = vld [vmem:[%s178 + $0x2400] sm:$0xff]
                %253 = vst [vmem:[%s179 + $0x120] sm:$0xff] %v252
                %v254 = vld [vmem:[%s178 + $0x2408] sm:$0xff]
                %255 = vst [vmem:[%s179 + $0x128] sm:$0xff] %v254
                %v256 = vld [vmem:[%s178 + $0x2410] sm:$0xff]
                %257 = vst [vmem:[%s179 + $0x130] sm:$0xff] %v256
                %v258 = vld [vmem:[%s178 + $0x2418] sm:$0xff]
                %259 = vst [vmem:[%s179 + $0x138] sm:$0xff] %v258
                %v260 = vld [vmem:[%s178 + $0x2800] sm:$0xff]
                %261 = vst [vmem:[%s179 + $0x140] sm:$0xff] %v260
                %v262 = vld [vmem:[%s178 + $0x2808] sm:$0xff]
                %263 = vst [vmem:[%s179 + $0x148] sm:$0xff] %v262
                %v264 = vld [vmem:[%s178 + $0x2810] sm:$0xff]
                %265 = vst [vmem:[%s179 + $0x150] sm:$0xff] %v264
                %v266 = vld [vmem:[%s178 + $0x2818] sm:$0xff]
                %267 = vst [vmem:[%s179 + $0x158] sm:$0xff] %v266
                %v268 = vld [vmem:[%s178 + $0x2c00] sm:$0xff]
                %269 = vst [vmem:[%s179 + $0x160] sm:$0xff] %v268
                %v270 = vld [vmem:[%s178 + $0x2c08] sm:$0xff]
                %271 = vst [vmem:[%s179 + $0x168] sm:$0xff] %v270
                %v272 = vld [vmem:[%s178 + $0x2c10] sm:$0xff]
                %273 = vst [vmem:[%s179 + $0x170] sm:$0xff] %v272
                %v274 = vld [vmem:[%s178 + $0x2c18] sm:$0xff]
                %275 = vst [vmem:[%s179 + $0x178] sm:$0xff] %v274
                %v276 = vld [vmem:[%s178 + $0x3000] sm:$0xff]
                %277 = vst [vmem:[%s179 + $0x180] sm:$0xff] %v276
                %v278 = vld [vmem:[%s178 + $0x3008] sm:$0xff]
                %279 = vst [vmem:[%s179 + $0x188] sm:$0xff] %v278
                %v280 = vld [vmem:[%s178 + $0x3010] sm:$0xff]
                %281 = vst [vmem:[%s179 + $0x190] sm:$0xff] %v280
                %v282 = vld [vmem:[%s178 + $0x3018] sm:$0xff]
                %283 = vst [vmem:[%s179 + $0x198] sm:$0xff] %v282
                %v284 = vld [vmem:[%s178 + $0x3400] sm:$0xff]
                %285 = vst [vmem:[%s179 + $0x1a0] sm:$0xff] %v284
                %v286 = vld [vmem:[%s178 + $0x3408] sm:$0xff]
                %287 = vst [vmem:[%s179 + $0x1a8] sm:$0xff] %v286
                %v288 = vld [vmem:[%s178 + $0x3410] sm:$0xff]
                %289 = vst [vmem:[%s179 + $0x1b0] sm:$0xff] %v288
                %v290 = vld [vmem:[%s178 + $0x3418] sm:$0xff]
                %291 = vst [vmem:[%s179 + $0x1b8] sm:$0xff] %v290
                %v292 = vld [vmem:[%s178 + $0x3800] sm:$0xff]
                %293 = vst [vmem:[%s179 + $0x1c0] sm:$0xff] %v292
                %v294 = vld [vmem:[%s178 + $0x3808] sm:$0xff]
                %295 = vst [vmem:[%s179 + $0x1c8] sm:$0xff] %v294
                %v296 = vld [vmem:[%s178 + $0x3810] sm:$0xff]
                %297 = vst [vmem:[%s179 + $0x1d0] sm:$0xff] %v296
                %v298 = vld [vmem:[%s178 + $0x3818] sm:$0xff]
                %299 = vst [vmem:[%s179 + $0x1d8] sm:$0xff] %v298
                %v300 = vld [vmem:[%s178 + $0x3c00] sm:$0xff]
                %301 = vst [vmem:[%s179 + $0x1e0] sm:$0xff] %v300
                %v302 = vld [vmem:[%s178 + $0x3c08] sm:$0xff]
                %303 = vst [vmem:[%s179 + $0x1e8] sm:$0xff] %v302
                %v304 = vld [vmem:[%s178 + $0x3c10] sm:$0xff]
                %305 = vst [vmem:[%s179 + $0x1f0] sm:$0xff] %v304
                %v306 = vld [vmem:[%s178 + $0x3c18] sm:$0xff]
                %307 = vst [vmem:[%s179 + $0x1f8] sm:$0xff] %v306
                %v308 = vld [vmem:[%s178 + $0x4000] sm:$0xff]
                %309 = vst [vmem:[%s179 + $0x200] sm:$0xff] %v308
                %v310 = vld [vmem:[%s178 + $0x4008] sm:$0xff]
                %311 = vst [vmem:[%s179 + $0x208] sm:$0xff] %v310
                %v312 = vld [vmem:[%s178 + $0x4010] sm:$0xff]
                %313 = vst [vmem:[%s179 + $0x210] sm:$0xff] %v312
                %v314 = vld [vmem:[%s178 + $0x4018] sm:$0xff]
                %315 = vst [vmem:[%s179 + $0x218] sm:$0xff] %v314
                %v316 = vld [vmem:[%s178 + $0x4400] sm:$0xff]
                %317 = vst [vmem:[%s179 + $0x220] sm:$0xff] %v316
                %v318 = vld [vmem:[%s178 + $0x4408] sm:$0xff]
                %319 = vst [vmem:[%s179 + $0x228] sm:$0xff] %v318
                %v320 = vld [vmem:[%s178 + $0x4410] sm:$0xff]
                %321 = vst [vmem:[%s179 + $0x230] sm:$0xff] %v320
                %v322 = vld [vmem:[%s178 + $0x4418] sm:$0xff]
                %323 = vst [vmem:[%s179 + $0x238] sm:$0xff] %v322
                %v324 = vld [vmem:[%s178 + $0x4800] sm:$0xff]
                %325 = vst [vmem:[%s179 + $0x240] sm:$0xff] %v324
                %v326 = vld [vmem:[%s178 + $0x4808] sm:$0xff]
                %327 = vst [vmem:[%s179 + $0x248] sm:$0xff] %v326
                %v328 = vld [vmem:[%s178 + $0x4810] sm:$0xff]
                %329 = vst [vmem:[%s179 + $0x250] sm:$0xff] %v328
                %v330 = vld [vmem:[%s178 + $0x4818] sm:$0xff]
                %331 = vst [vmem:[%s179 + $0x258] sm:$0xff] %v330
                %v332 = vld [vmem:[%s178 + $0x4c00] sm:$0xff]
                %333 = vst [vmem:[%s179 + $0x260] sm:$0xff] %v332
                %v334 = vld [vmem:[%s178 + $0x4c08] sm:$0xff]
                %335 = vst [vmem:[%s179 + $0x268] sm:$0xff] %v334
                %v336 = vld [vmem:[%s178 + $0x4c10] sm:$0xff]
                %337 = vst [vmem:[%s179 + $0x270] sm:$0xff] %v336
                %v338 = vld [vmem:[%s178 + $0x4c18] sm:$0xff]
                %339 = vst [vmem:[%s179 + $0x278] sm:$0xff] %v338
                %v340 = vld [vmem:[%s178 + $0x5000] sm:$0xff]
                %341 = vst [vmem:[%s179 + $0x280] sm:$0xff] %v340
                %v342 = vld [vmem:[%s178 + $0x5008] sm:$0xff]
                %343 = vst [vmem:[%s179 + $0x288] sm:$0xff] %v342
                %v344 = vld [vmem:[%s178 + $0x5010] sm:$0xff]
                %345 = vst [vmem:[%s179 + $0x290] sm:$0xff] %v344
                %v346 = vld [vmem:[%s178 + $0x5018] sm:$0xff]
                %347 = vst [vmem:[%s179 + $0x298] sm:$0xff] %v346
                %v348 = vld [vmem:[%s178 + $0x5400] sm:$0xff]
                %349 = vst [vmem:[%s179 + $0x2a0] sm:$0xff] %v348
                %v350 = vld [vmem:[%s178 + $0x5408] sm:$0xff]
                %351 = vst [vmem:[%s179 + $0x2a8] sm:$0xff] %v350
                %v352 = vld [vmem:[%s178 + $0x5410] sm:$0xff]
                %353 = vst [vmem:[%s179 + $0x2b0] sm:$0xff] %v352
                %v354 = vld [vmem:[%s178 + $0x5418] sm:$0xff]
                %355 = vst [vmem:[%s179 + $0x2b8] sm:$0xff] %v354
                %v356 = vld [vmem:[%s178 + $0x5800] sm:$0xff]
                %357 = vst [vmem:[%s179 + $0x2c0] sm:$0xff] %v356
                %v358 = vld [vmem:[%s178 + $0x5808] sm:$0xff]
                %359 = vst [vmem:[%s179 + $0x2c8] sm:$0xff] %v358
                %v360 = vld [vmem:[%s178 + $0x5810] sm:$0xff]
                %361 = vst [vmem:[%s179 + $0x2d0] sm:$0xff] %v360
                %v362 = vld [vmem:[%s178 + $0x5818] sm:$0xff]
                %363 = vst [vmem:[%s179 + $0x2d8] sm:$0xff] %v362
                %v364 = vld [vmem:[%s178 + $0x5c00] sm:$0xff]
                %365 = vst [vmem:[%s179 + $0x2e0] sm:$0xff] %v364
                %v366 = vld [vmem:[%s178 + $0x5c08] sm:$0xff]
                %367 = vst [vmem:[%s179 + $0x2e8] sm:$0xff] %v366
                %v368 = vld [vmem:[%s178 + $0x5c10] sm:$0xff]
                %369 = vst [vmem:[%s179 + $0x2f0] sm:$0xff] %v368
                %v370 = vld [vmem:[%s178 + $0x5c18] sm:$0xff]
                %371 = vst [vmem:[%s179 + $0x2f8] sm:$0xff] %v370
                %v372 = vld [vmem:[%s178 + $0x6000] sm:$0xff]
                %373 = vst [vmem:[%s179 + $0x300] sm:$0xff] %v372
                %v374 = vld [vmem:[%s178 + $0x6008] sm:$0xff]
                %375 = vst [vmem:[%s179 + $0x308] sm:$0xff] %v374
                %v376 = vld [vmem:[%s178 + $0x6010] sm:$0xff]
                %377 = vst [vmem:[%s179 + $0x310] sm:$0xff] %v376
                %v378 = vld [vmem:[%s178 + $0x6018] sm:$0xff]
                %379 = vst [vmem:[%s179 + $0x318] sm:$0xff] %v378
                %v380 = vld [vmem:[%s178 + $0x6400] sm:$0xff]
                %381 = vst [vmem:[%s179 + $0x320] sm:$0xff] %v380
                %v382 = vld [vmem:[%s178 + $0x6408] sm:$0xff]
                %383 = vst [vmem:[%s179 + $0x328] sm:$0xff] %v382
                %v384 = vld [vmem:[%s178 + $0x6410] sm:$0xff]
                %385 = vst [vmem:[%s179 + $0x330] sm:$0xff] %v384
                %v386 = vld [vmem:[%s178 + $0x6418] sm:$0xff]
                %387 = vst [vmem:[%s179 + $0x338] sm:$0xff] %v386
                %v388 = vld [vmem:[%s178 + $0x6800] sm:$0xff]
                %389 = vst [vmem:[%s179 + $0x340] sm:$0xff] %v388
                %v390 = vld [vmem:[%s178 + $0x6808] sm:$0xff]
                %391 = vst [vmem:[%s179 + $0x348] sm:$0xff] %v390
                %v392 = vld [vmem:[%s178 + $0x6810] sm:$0xff]
                %393 = vst [vmem:[%s179 + $0x350] sm:$0xff] %v392
                %v394 = vld [vmem:[%s178 + $0x6818] sm:$0xff]
                %395 = vst [vmem:[%s179 + $0x358] sm:$0xff] %v394
                %v396 = vld [vmem:[%s178 + $0x6c00] sm:$0xff]
                %397 = vst [vmem:[%s179 + $0x360] sm:$0xff] %v396
                %v398 = vld [vmem:[%s178 + $0x6c08] sm:$0xff]
                %399 = vst [vmem:[%s179 + $0x368] sm:$0xff] %v398
                %v400 = vld [vmem:[%s178 + $0x6c10] sm:$0xff]
                %401 = vst [vmem:[%s179 + $0x370] sm:$0xff] %v400
                %v402 = vld [vmem:[%s178 + $0x6c18] sm:$0xff]
                %403 = vst [vmem:[%s179 + $0x378] sm:$0xff] %v402
                %v404 = vld [vmem:[%s178 + $0x7000] sm:$0xff]
                %405 = vst [vmem:[%s179 + $0x380] sm:$0xff] %v404
                %v406 = vld [vmem:[%s178 + $0x7008] sm:$0xff]
                %407 = vst [vmem:[%s179 + $0x388] sm:$0xff] %v406
                %v408 = vld [vmem:[%s178 + $0x7010] sm:$0xff]
                %409 = vst [vmem:[%s179 + $0x390] sm:$0xff] %v408
                %v410 = vld [vmem:[%s178 + $0x7018] sm:$0xff]
                %411 = vst [vmem:[%s179 + $0x398] sm:$0xff] %v410
                %v412 = vld [vmem:[%s178 + $0x7400] sm:$0xff]
                %413 = vst [vmem:[%s179 + $0x3a0] sm:$0xff] %v412
                %v414 = vld [vmem:[%s178 + $0x7408] sm:$0xff]
                %415 = vst [vmem:[%s179 + $0x3a8] sm:$0xff] %v414
                %v416 = vld [vmem:[%s178 + $0x7410] sm:$0xff]
                %417 = vst [vmem:[%s179 + $0x3b0] sm:$0xff] %v416
                %v418 = vld [vmem:[%s178 + $0x7418] sm:$0xff]
                %419 = vst [vmem:[%s179 + $0x3b8] sm:$0xff] %v418
                %v420 = vld [vmem:[%s178 + $0x7800] sm:$0xff]
                %421 = vst [vmem:[%s179 + $0x3c0] sm:$0xff] %v420
                %v422 = vld [vmem:[%s178 + $0x7808] sm:$0xff]
                %423 = vst [vmem:[%s179 + $0x3c8] sm:$0xff] %v422
                %v424 = vld [vmem:[%s178 + $0x7810] sm:$0xff]
                %425 = vst [vmem:[%s179 + $0x3d0] sm:$0xff] %v424
                %v426 = vld [vmem:[%s178 + $0x7818] sm:$0xff]
                %427 = vst [vmem:[%s179 + $0x3d8] sm:$0xff] %v426
                %v428 = vld [vmem:[%s178 + $0x7c00] sm:$0xff]
                %429 = vst [vmem:[%s179 + $0x3e0] sm:$0xff] %v428
                %v430 = vld [vmem:[%s178 + $0x7c08] sm:$0xff]
                %431 = vst [vmem:[%s179 + $0x3e8] sm:$0xff] %v430
                %v432 = vld [vmem:[%s178 + $0x7c10] sm:$0xff]
                %433 = vst [vmem:[%s179 + $0x3f0] sm:$0xff] %v432
                %v434 = vld [vmem:[%s178 + $0x7c18] sm:$0xff]
                %435 = vst [vmem:[%s179 + $0x3f8] sm:$0xff] %v434
                %v436 = vld [vmem:[%s178 + $0x8000] sm:$0xff]
                %437 = vst [vmem:[%s179 + $0x400] sm:$0xff] %v436
                %v438 = vld [vmem:[%s178 + $0x8008] sm:$0xff]
                %439 = vst [vmem:[%s179 + $0x408] sm:$0xff] %v438
                %v440 = vld [vmem:[%s178 + $0x8010] sm:$0xff]
                %441 = vst [vmem:[%s179 + $0x410] sm:$0xff] %v440
                %v442 = vld [vmem:[%s178 + $0x8018] sm:$0xff]
                %443 = vst [vmem:[%s179 + $0x418] sm:$0xff] %v442
                %v444 = vld [vmem:[%s178 + $0x8400] sm:$0xff]
                %445 = vst [vmem:[%s179 + $0x420] sm:$0xff] %v444
                %v446 = vld [vmem:[%s178 + $0x8408] sm:$0xff]
                %447 = vst [vmem:[%s179 + $0x428] sm:$0xff] %v446
                %v448 = vld [vmem:[%s178 + $0x8410] sm:$0xff]
                %449 = vst [vmem:[%s179 + $0x430] sm:$0xff] %v448
                %v450 = vld [vmem:[%s178 + $0x8418] sm:$0xff]
                %451 = vst [vmem:[%s179 + $0x438] sm:$0xff] %v450
                %v452 = vld [vmem:[%s178 + $0x8800] sm:$0xff]
                %453 = vst [vmem:[%s179 + $0x440] sm:$0xff] %v452
                %v454 = vld [vmem:[%s178 + $0x8808] sm:$0xff]
                %455 = vst [vmem:[%s179 + $0x448] sm:$0xff] %v454
                %v456 = vld [vmem:[%s178 + $0x8810] sm:$0xff]
                %457 = vst [vmem:[%s179 + $0x450] sm:$0xff] %v456
                %v458 = vld [vmem:[%s178 + $0x8818] sm:$0xff]
                %459 = vst [vmem:[%s179 + $0x458] sm:$0xff] %v458
                %v460 = vld [vmem:[%s178 + $0x8c00] sm:$0xff]
                %461 = vst [vmem:[%s179 + $0x460] sm:$0xff] %v460
                %v462 = vld [vmem:[%s178 + $0x8c08] sm:$0xff]
                %463 = vst [vmem:[%s179 + $0x468] sm:$0xff] %v462
                %v464 = vld [vmem:[%s178 + $0x8c10] sm:$0xff]
                %465 = vst [vmem:[%s179 + $0x470] sm:$0xff] %v464
                %v466 = vld [vmem:[%s178 + $0x8c18] sm:$0xff]
                %467 = vst [vmem:[%s179 + $0x478] sm:$0xff] %v466
                %v468 = vld [vmem:[%s178 + $0x9000] sm:$0xff]
                %469 = vst [vmem:[%s179 + $0x480] sm:$0xff] %v468
                %v470 = vld [vmem:[%s178 + $0x9008] sm:$0xff]
                %471 = vst [vmem:[%s179 + $0x488] sm:$0xff] %v470
                %v472 = vld [vmem:[%s178 + $0x9010] sm:$0xff]
                %473 = vst [vmem:[%s179 + $0x490] sm:$0xff] %v472
                %v474 = vld [vmem:[%s178 + $0x9018] sm:$0xff]
                %475 = vst [vmem:[%s179 + $0x498] sm:$0xff] %v474
                %v476 = vld [vmem:[%s178 + $0x9400] sm:$0xff]
                %477 = vst [vmem:[%s179 + $0x4a0] sm:$0xff] %v476
                %v478 = vld [vmem:[%s178 + $0x9408] sm:$0xff]
                %479 = vst [vmem:[%s179 + $0x4a8] sm:$0xff] %v478
                %v480 = vld [vmem:[%s178 + $0x9410] sm:$0xff]
                %481 = vst [vmem:[%s179 + $0x4b0] sm:$0xff] %v480
                %v482 = vld [vmem:[%s178 + $0x9418] sm:$0xff]
                %483 = vst [vmem:[%s179 + $0x4b8] sm:$0xff] %v482
                %v484 = vld [vmem:[%s178 + $0x9800] sm:$0xff]
                %485 = vst [vmem:[%s179 + $0x4c0] sm:$0xff] %v484
                %v486 = vld [vmem:[%s178 + $0x9808] sm:$0xff]
                %487 = vst [vmem:[%s179 + $0x4c8] sm:$0xff] %v486
                %v488 = vld [vmem:[%s178 + $0x9810] sm:$0xff]
                %489 = vst [vmem:[%s179 + $0x4d0] sm:$0xff] %v488
                %v490 = vld [vmem:[%s178 + $0x9818] sm:$0xff]
                %491 = vst [vmem:[%s179 + $0x4d8] sm:$0xff] %v490
                %v492 = vld [vmem:[%s178 + $0x9c00] sm:$0xff]
                %493 = vst [vmem:[%s179 + $0x4e0] sm:$0xff] %v492
                %v494 = vld [vmem:[%s178 + $0x9c08] sm:$0xff]
                %495 = vst [vmem:[%s179 + $0x4e8] sm:$0xff] %v494
                %v496 = vld [vmem:[%s178 + $0x9c10] sm:$0xff]
                %497 = vst [vmem:[%s179 + $0x4f0] sm:$0xff] %v496
                %v498 = vld [vmem:[%s178 + $0x9c18] sm:$0xff]
                %499 = vst [vmem:[%s179 + $0x4f8] sm:$0xff] %v498
                %v500 = vld [vmem:[%s178 + $0xa000] sm:$0xff]
                %501 = vst [vmem:[%s179 + $0x500] sm:$0xff] %v500
                %v502 = vld [vmem:[%s178 + $0xa008] sm:$0xff]
                %503 = vst [vmem:[%s179 + $0x508] sm:$0xff] %v502
                %v504 = vld [vmem:[%s178 + $0xa010] sm:$0xff]
                %505 = vst [vmem:[%s179 + $0x510] sm:$0xff] %v504
                %v506 = vld [vmem:[%s178 + $0xa018] sm:$0xff]
                %507 = vst [vmem:[%s179 + $0x518] sm:$0xff] %v506
                %v508 = vld [vmem:[%s178 + $0xa400] sm:$0xff]
                %509 = vst [vmem:[%s179 + $0x520] sm:$0xff] %v508
                %v510 = vld [vmem:[%s178 + $0xa408] sm:$0xff]
                %511 = vst [vmem:[%s179 + $0x528] sm:$0xff] %v510
                %v512 = vld [vmem:[%s178 + $0xa410] sm:$0xff]
                %513 = vst [vmem:[%s179 + $0x530] sm:$0xff] %v512
                %v514 = vld [vmem:[%s178 + $0xa418] sm:$0xff]
                %515 = vst [vmem:[%s179 + $0x538] sm:$0xff] %v514
                %v516 = vld [vmem:[%s178 + $0xa800] sm:$0xff]
                %517 = vst [vmem:[%s179 + $0x540] sm:$0xff] %v516
                %v518 = vld [vmem:[%s178 + $0xa808] sm:$0xff]
                %519 = vst [vmem:[%s179 + $0x548] sm:$0xff] %v518
                %v520 = vld [vmem:[%s178 + $0xa810] sm:$0xff]
                %521 = vst [vmem:[%s179 + $0x550] sm:$0xff] %v520
                %v522 = vld [vmem:[%s178 + $0xa818] sm:$0xff]
                %523 = vst [vmem:[%s179 + $0x558] sm:$0xff] %v522
                %v524 = vld [vmem:[%s178 + $0xac00] sm:$0xff]
                %525 = vst [vmem:[%s179 + $0x560] sm:$0xff] %v524
                %v526 = vld [vmem:[%s178 + $0xac08] sm:$0xff]
                %527 = vst [vmem:[%s179 + $0x568] sm:$0xff] %v526
                %v528 = vld [vmem:[%s178 + $0xac10] sm:$0xff]
                %529 = vst [vmem:[%s179 + $0x570] sm:$0xff] %v528
                %v530 = vld [vmem:[%s178 + $0xac18] sm:$0xff]
                %531 = vst [vmem:[%s179 + $0x578] sm:$0xff] %v530
                %v532 = vld [vmem:[%s178 + $0xb000] sm:$0xff]
                %533 = vst [vmem:[%s179 + $0x580] sm:$0xff] %v532
                %v534 = vld [vmem:[%s178 + $0xb008] sm:$0xff]
                %535 = vst [vmem:[%s179 + $0x588] sm:$0xff] %v534
                %v536 = vld [vmem:[%s178 + $0xb010] sm:$0xff]
                %537 = vst [vmem:[%s179 + $0x590] sm:$0xff] %v536
                %v538 = vld [vmem:[%s178 + $0xb018] sm:$0xff]
                %539 = vst [vmem:[%s179 + $0x598] sm:$0xff] %v538
                %v540 = vld [vmem:[%s178 + $0xb400] sm:$0xff]
                %541 = vst [vmem:[%s179 + $0x5a0] sm:$0xff] %v540
                %v542 = vld [vmem:[%s178 + $0xb408] sm:$0xff]
                %543 = vst [vmem:[%s179 + $0x5a8] sm:$0xff] %v542
                %v544 = vld [vmem:[%s178 + $0xb410] sm:$0xff]
                %545 = vst [vmem:[%s179 + $0x5b0] sm:$0xff] %v544
                %v546 = vld [vmem:[%s178 + $0xb418] sm:$0xff]
                %547 = vst [vmem:[%s179 + $0x5b8] sm:$0xff] %v546
                %v548 = vld [vmem:[%s178 + $0xb800] sm:$0xff]
                %549 = vst [vmem:[%s179 + $0x5c0] sm:$0xff] %v548
                %v550 = vld [vmem:[%s178 + $0xb808] sm:$0xff]
                %551 = vst [vmem:[%s179 + $0x5c8] sm:$0xff] %v550
                %v552 = vld [vmem:[%s178 + $0xb810] sm:$0xff]
                %553 = vst [vmem:[%s179 + $0x5d0] sm:$0xff] %v552
                %v554 = vld [vmem:[%s178 + $0xb818] sm:$0xff]
                %555 = vst [vmem:[%s179 + $0x5d8] sm:$0xff] %v554
                %v556 = vld [vmem:[%s178 + $0xbc00] sm:$0xff]
                %557 = vst [vmem:[%s179 + $0x5e0] sm:$0xff] %v556
                %v558 = vld [vmem:[%s178 + $0xbc08] sm:$0xff]
                %559 = vst [vmem:[%s179 + $0x5e8] sm:$0xff] %v558
                %v560 = vld [vmem:[%s178 + $0xbc10] sm:$0xff]
                %561 = vst [vmem:[%s179 + $0x5f0] sm:$0xff] %v560
                %v562 = vld [vmem:[%s178 + $0xbc18] sm:$0xff]
                %563 = vst [vmem:[%s179 + $0x5f8] sm:$0xff] %v562
                %v564 = vld [vmem:[%s178 + $0xc000] sm:$0xff]
                %565 = vst [vmem:[%s179 + $0x600] sm:$0xff] %v564
                %v566 = vld [vmem:[%s178 + $0xc008] sm:$0xff]
                %567 = vst [vmem:[%s179 + $0x608] sm:$0xff] %v566
                %v568 = vld [vmem:[%s178 + $0xc010] sm:$0xff]
                %569 = vst [vmem:[%s179 + $0x610] sm:$0xff] %v568
                %v570 = vld [vmem:[%s178 + $0xc018] sm:$0xff]
                %571 = vst [vmem:[%s179 + $0x618] sm:$0xff] %v570
                %v572 = vld [vmem:[%s178 + $0xc400] sm:$0xff]
                %573 = vst [vmem:[%s179 + $0x620] sm:$0xff] %v572
                %v574 = vld [vmem:[%s178 + $0xc408] sm:$0xff]
                %575 = vst [vmem:[%s179 + $0x628] sm:$0xff] %v574
                %v576 = vld [vmem:[%s178 + $0xc410] sm:$0xff]
                %577 = vst [vmem:[%s179 + $0x630] sm:$0xff] %v576
                %v578 = vld [vmem:[%s178 + $0xc418] sm:$0xff]
                %579 = vst [vmem:[%s179 + $0x638] sm:$0xff] %v578
              $region37: #{dec_forward.7} parent=31 // loop_footer
                %s177 = sadd.s32 1, %s173
              $region38: #{dec_forward.7} parent=31 // loop_footer_branch
                %172 = sbr.rel target = $region34
              $region39: #{dec_forward.7} parent=31 // loop_exit
                _
            $region32: #{dec_forward.7} parent=27 // pred_fallthru
              _
            // Predicated region
            $region40: #{dec_forward.7} parent=27 // pred_check
              _
            $region41: #{dec_forward.7} parent=27 // pred_check_branch
              %581 = sbr.rel target = $region43
            $region42: #{dec_forward.7} parent=27 // pred_region
              _
            $region43: #{dec_forward.7} parent=27 // pred_fallthru
              _
          $region28: #{dec_forward.7} parent=23 // pred_fallthru
            _
          %582 = vnop
        $region24: #{dec_forward.7} parent=15 // pred_fallthru
          _
        // Predicated region
        $region44: #{dec_forward.7} parent=15 // pred_check
          %p583 = pneg %p95
        $region45: #{dec_forward.7} parent=15 // pred_check_branch
          %585 = sbr.rel (%p583) target = $region47
        $region46: #{dec_forward.7} parent=15 // pred_region
          %p586 = scmp.lt.s32.totalorder %s16, 1
          %s587 = scalar_select %p586, %s16, 1
          %s588 = smul.addr %s587, 8
          %s589 = scalar_lea.vmem %s2, %s588
        $region47: #{dec_forward.7} parent=15 // pred_fallthru
          _
      $region16: #{dec_forward.7} parent=5 // pred_fallthru
        _
      %p590 = scmp.le.s32.totalorder 1, %s9
      %p591 = scmp.lt.s32.totalorder %s9, 65
      %p592 = pnand %p590, %p591
      %p593 = pneg %p592
      // Predicated region
      $region48: #{dec_forward.7} parent=5 // pred_check
        _
      $region49: #{dec_forward.7} parent=5 // pred_check_branch
        %595 = sbr.rel (%p592) target = $region51
      $region50: #{dec_forward.7} parent=5 // pred_region
        %s596 = ssub.s32 %s9, 1
        %s597 = sand.u32 %s62, 1
        %s598 = sand.u32 %s62, 1
        %s599 = smul.addr %s598, 1600
        %s600 = scalar_lea.vmem [#allocation2], %s599
        // Predicated region
        $region52: #{dec_forward.7} parent=50 // pred_check
          %p601 = pneg %p75
        $region53: #{dec_forward.7} parent=50 // pred_check_branch
          %603 = sbr.rel (%p601) target = $region55
        $region54: #{dec_forward.7} parent=50 // pred_region
          _
        $region55: #{dec_forward.7} parent=50 // pred_fallthru
          _
        %p604 = scmp.lt.s32.totalorder %s18, 1
        %s605 = scalar_select %p604, %s18, 1
        %s606 = smul.addr %s605, 4
        %s607 = smul.addr %s606, 4
        %s608 = scalar_lea.vmem %s0, %s607
        %p609 = pneg %p47
        %p610 = pneg %p44
        %s611 = sand.u32 %s62, 1
        %s612 = sand.u32 %s62, 1
        %s613 = smul.addr %s612, 1600
        %s614 = scalar_lea.vmem [#allocation2], %s613
        %p615 = pneg %p75
        %p616 = pneg %p72
        %p617 = scmp.lt.s32.totalorder %s18, 1
        %s618 = scalar_select %p617, %s18, 1
        %s619 = smul.addr %s618, 8
        %s620 = scalar_lea.vmem %s2, %s619
        %p621 = pneg %p101
        %p622 = pneg %p98
        %p623 = pneg %p129
        %p624 = pneg %p126
        %s625 = smul.u32 8, %s19
        %p626 = scmp.lt.s32.totalorder %s18, 1
        %s627 = scalar_select %p626, %s18, 1
        %p628 = scmp.lt.s32.totalorder %s625, 255
        %s629 = scalar_select %p628, %s625, 255
        %s630 = smul.addr %s627, 256
        %s631 = sadd.s32 %s629, %s630
        %s632 = smul.addr %s631, 8
        %s633 = scalar_lea.vmem %s3, %s632
        %p634 = scmp.lt.s32.totalorder %s18, 1
        %s635 = scalar_select %p634, %s18, 1
        %s636 = smul.addr %s635, 4
        %s637 = smul.addr %s636, 4
        %s638 = scalar_lea.vmem %s0, %s637
        %s639 = smul.u32 8, %s19
        %p640 = scmp.lt.s32.totalorder %s18, 1
        %s641 = scalar_select %p640, %s18, 1
        %s642 = smul.addr %s641, 8
        %s643 = scalar_lea.vmem %s2, %s642
        %s644 = smul.u32 8, %s19
        %p645 = scmp.lt.s32.totalorder %s18, 1
        %s646 = scalar_select %p645, %s18, 1
        %p647 = scmp.lt.s32.totalorder %s644, 255
        %s648 = scalar_select %p647, %s644, 255
        %s649 = smul.addr %s646, 256
        %s650 = sadd.s32 %s648, %s649
        %s651 = smul.addr %s650, 8
        %s652 = scalar_lea.vmem %s3, %s651
        %s653 = smul.u32 8, %s19
        %v655 = vld [vmem:[%s638] sm:$0xff]
        %v656 = vld [vmem:[%s638 + $0x8] sm:$0xff]
        %v657 = vld [vmem:[%s600] sm:$0xff]
        %v658 = vld [vmem:[%s600 + $0x8] sm:$0xff]
        %v659 = vld [vmem:[%s600 + $0x10] sm:$0xff]
        %v660 = vld [vmem:[%s600 + $0x18] sm:$0xff]
        %v661 = vld [vmem:[%s600 + $0x20] sm:$0xff]
        %v662 = vld [vmem:[%s600 + $0x28] sm:$0xff]
        %v663 = vld [vmem:[%s600 + $0x30] sm:$0xff]
        %v664 = vld [vmem:[%s600 + $0x38] sm:$0xff]
        %v665 = vld [vmem:[%s600 + $0x40] sm:$0xff]
        %v666 = vld [vmem:[%s600 + $0x48] sm:$0xff]
        %v667 = vld [vmem:[%s600 + $0x50] sm:$0xff]
        %v668 = vld [vmem:[%s600 + $0x58] sm:$0xff]
        %v669 = vld [vmem:[%s600 + $0x60] sm:$0xff]
        %v670 = vld [vmem:[%s600 + $0x68] sm:$0xff]
        %v671 = vld [vmem:[%s600 + $0x70] sm:$0xff]
        %v672 = vld [vmem:[%s600 + $0x78] sm:$0xff]
        %v673 = vld [vmem:[%s600 + $0x80] sm:$0xff]
        %v674 = vld [vmem:[%s600 + $0x88] sm:$0xff]
        %v675 = vld [vmem:[%s600 + $0x90] sm:$0xff]
        %v676 = vld [vmem:[%s600 + $0x98] sm:$0xff]
        %v677 = vld [vmem:[%s600 + $0xa0] sm:$0xff]
        %v678 = vld [vmem:[%s600 + $0xa8] sm:$0xff]
        %v679 = vld [vmem:[%s600 + $0xb0] sm:$0xff]
        %v680 = vld [vmem:[%s600 + $0xb8] sm:$0xff]
        %v681 = vld [vmem:[%s600 + $0xc0] sm:$0xff]
        %v682 = vld [vmem:[%s600 + $0xc8] sm:$0xff]
        %v683 = vld [vmem:[%s600 + $0xd0] sm:$0xff]
        %v684 = vld [vmem:[%s600 + $0xd8] sm:$0xff]
        %v685 = vld [vmem:[%s600 + $0xe0] sm:$0xff]
        %v686 = vld [vmem:[%s600 + $0xe8] sm:$0xff]
        %v687 = vld [vmem:[%s600 + $0xf0] sm:$0xff]
        %v688 = vld [vmem:[%s600 + $0xf8] sm:$0xff]
        %v689 = vld [vmem:[%s600 + $0x100] sm:$0xff]
        %v690 = vld [vmem:[%s600 + $0x108] sm:$0xff]
        %v691 = vld [vmem:[%s600 + $0x110] sm:$0xff]
        %v692 = vld [vmem:[%s600 + $0x118] sm:$0xff]
        %v693 = vld [vmem:[%s600 + $0x120] sm:$0xff]
        %v694 = vld [vmem:[%s600 + $0x128] sm:$0xff]
        %v695 = vld [vmem:[%s600 + $0x130] sm:$0xff]
        %v696 = vld [vmem:[%s600 + $0x138] sm:$0xff]
        %v697 = vld [vmem:[%s600 + $0x140] sm:$0xff]
        %v698 = vld [vmem:[%s600 + $0x148] sm:$0xff]
        %v699 = vld [vmem:[%s600 + $0x150] sm:$0xff]
        %v700 = vld [vmem:[%s600 + $0x158] sm:$0xff]
        %v701 = vld [vmem:[%s600 + $0x160] sm:$0xff]
        %v702 = vld [vmem:[%s600 + $0x168] sm:$0xff]
        %v703 = vld [vmem:[%s600 + $0x170] sm:$0xff]
        %v704 = vld [vmem:[%s600 + $0x178] sm:$0xff]
        %v705 = vld [vmem:[%s600 + $0x180] sm:$0xff]
        %v706 = vld [vmem:[%s600 + $0x188] sm:$0xff]
        %v707 = vld [vmem:[%s600 + $0x190] sm:$0xff]
        %v708 = vld [vmem:[%s600 + $0x198] sm:$0xff]
        %v709 = vld [vmem:[%s600 + $0x1a0] sm:$0xff]
        %v710 = vld [vmem:[%s600 + $0x1a8] sm:$0xff]
        %v711 = vld [vmem:[%s600 + $0x1b0] sm:$0xff]
        %v712 = vld [vmem:[%s600 + $0x1b8] sm:$0xff]
        %v713 = vld [vmem:[%s600 + $0x1c0] sm:$0xff]
        %v714 = vld [vmem:[%s600 + $0x1c8] sm:$0xff]
        %v715 = vld [vmem:[%s600 + $0x1d0] sm:$0xff]
        %v716 = vld [vmem:[%s600 + $0x1d8] sm:$0xff]
        %v717 = vld [vmem:[%s600 + $0x1e0] sm:$0xff]
        %v718 = vld [vmem:[%s600 + $0x1e8] sm:$0xff]
        %v719 = vld [vmem:[%s600 + $0x1f0] sm:$0xff]
        %v720 = vld [vmem:[%s600 + $0x1f8] sm:$0xff]
        %v721 = vld [vmem:[%s600 + $0x200] sm:$0xff]
        %v722 = vld [vmem:[%s600 + $0x208] sm:$0xff]
        %v723 = vld [vmem:[%s600 + $0x210] sm:$0xff]
        %v724 = vld [vmem:[%s600 + $0x218] sm:$0xff]
        %v725 = vld [vmem:[%s600 + $0x220] sm:$0xff]
        %v726 = vld [vmem:[%s600 + $0x228] sm:$0xff]
        %v727 = vld [vmem:[%s600 + $0x230] sm:$0xff]
        %v728 = vld [vmem:[%s600 + $0x238] sm:$0xff]
        %v729 = vld [vmem:[%s600 + $0x240] sm:$0xff]
        %v730 = vld [vmem:[%s600 + $0x248] sm:$0xff]
        %v731 = vld [vmem:[%s600 + $0x250] sm:$0xff]
        %v732 = vld [vmem:[%s600 + $0x258] sm:$0xff]
        %v733 = vld [vmem:[%s600 + $0x260] sm:$0xff]
        %v734 = vld [vmem:[%s600 + $0x268] sm:$0xff]
        %v735 = vld [vmem:[%s600 + $0x270] sm:$0xff]
        %v736 = vld [vmem:[%s600 + $0x278] sm:$0xff]
        %v737 = vld [vmem:[%s600 + $0x280] sm:$0xff]
        %v738 = vld [vmem:[%s600 + $0x288] sm:$0xff]
        %v739 = vld [vmem:[%s600 + $0x290] sm:$0xff]
        %v740 = vld [vmem:[%s600 + $0x298] sm:$0xff]
        %v741 = vld [vmem:[%s600 + $0x2a0] sm:$0xff]
        %v742 = vld [vmem:[%s600 + $0x2a8] sm:$0xff]
        %v743 = vld [vmem:[%s600 + $0x2b0] sm:$0xff]
        %v744 = vld [vmem:[%s600 + $0x2b8] sm:$0xff]
        %v745 = vld [vmem:[%s600 + $0x2c0] sm:$0xff]
        %v746 = vld [vmem:[%s600 + $0x2c8] sm:$0xff]
        %v747 = vld [vmem:[%s600 + $0x2d0] sm:$0xff]
        %v748 = vld [vmem:[%s600 + $0x2d8] sm:$0xff]
        %v749 = vld [vmem:[%s600 + $0x2e0] sm:$0xff]
        %v750 = vld [vmem:[%s600 + $0x2e8] sm:$0xff]
        %v751 = vld [vmem:[%s600 + $0x2f0] sm:$0xff]
        %v752 = vld [vmem:[%s600 + $0x2f8] sm:$0xff]
        %v753 = vld [vmem:[%s600 + $0x300] sm:$0xff]
        %v754 = vld [vmem:[%s600 + $0x308] sm:$0xff]
        %v755 = vld [vmem:[%s600 + $0x310] sm:$0xff]
        %v756 = vld [vmem:[%s600 + $0x318] sm:$0xff]
        %v757 = vld [vmem:[%s600 + $0x320] sm:$0xff]
        %v758 = vld [vmem:[%s600 + $0x328] sm:$0xff]
        %v759 = vld [vmem:[%s600 + $0x330] sm:$0xff]
        %v760 = vld [vmem:[%s600 + $0x338] sm:$0xff]
        %v761 = vld [vmem:[%s600 + $0x340] sm:$0xff]
        %v762 = vld [vmem:[%s600 + $0x348] sm:$0xff]
        %v763 = vld [vmem:[%s600 + $0x350] sm:$0xff]
        %v764 = vld [vmem:[%s600 + $0x358] sm:$0xff]
        %v765 = vld [vmem:[%s600 + $0x360] sm:$0xff]
        %v766 = vld [vmem:[%s600 + $0x368] sm:$0xff]
        %v767 = vld [vmem:[%s600 + $0x370] sm:$0xff]
        %v768 = vld [vmem:[%s600 + $0x378] sm:$0xff]
        %v769 = vld [vmem:[%s600 + $0x380] sm:$0xff]
        %v770 = vld [vmem:[%s600 + $0x388] sm:$0xff]
        %v771 = vld [vmem:[%s600 + $0x390] sm:$0xff]
        %v772 = vld [vmem:[%s600 + $0x398] sm:$0xff]
        %v773 = vld [vmem:[%s600 + $0x3a0] sm:$0xff]
        %v774 = vld [vmem:[%s600 + $0x3a8] sm:$0xff]
        %v775 = vld [vmem:[%s600 + $0x3b0] sm:$0xff]
        %v776 = vld [vmem:[%s600 + $0x3b8] sm:$0xff]
        %v777 = vld [vmem:[%s600 + $0x3c0] sm:$0xff]
        %v778 = vld [vmem:[%s600 + $0x3c8] sm:$0xff]
        %v779 = vld [vmem:[%s600 + $0x3d0] sm:$0xff]
        %v780 = vld [vmem:[%s600 + $0x3d8] sm:$0xff]
        %v781 = vld [vmem:[%s600 + $0x3e0] sm:$0xff]
        %v782 = vld [vmem:[%s600 + $0x3e8] sm:$0xff]
        %v783 = vld [vmem:[%s600 + $0x3f0] sm:$0xff]
        %v784 = vld [vmem:[%s600 + $0x3f8] sm:$0xff]
        %v785 = vld [vmem:[%s600 + $0x400] sm:$0xff]
        %v786 = vld [vmem:[%s600 + $0x408] sm:$0xff]
        %v787 = vld [vmem:[%s600 + $0x410] sm:$0xff]
        %v788 = vld [vmem:[%s600 + $0x418] sm:$0xff]
        %v789 = vld [vmem:[%s600 + $0x420] sm:$0xff]
        %v790 = vld [vmem:[%s600 + $0x428] sm:$0xff]
        %v791 = vld [vmem:[%s600 + $0x430] sm:$0xff]
        %v792 = vld [vmem:[%s600 + $0x438] sm:$0xff]
        %v793 = vld [vmem:[%s600 + $0x440] sm:$0xff]
        %v794 = vld [vmem:[%s600 + $0x448] sm:$0xff]
        %v795 = vld [vmem:[%s600 + $0x450] sm:$0xff]
        %v796 = vld [vmem:[%s600 + $0x458] sm:$0xff]
        %v797 = vld [vmem:[%s600 + $0x460] sm:$0xff]
        %v798 = vld [vmem:[%s600 + $0x468] sm:$0xff]
        %v799 = vld [vmem:[%s600 + $0x470] sm:$0xff]
        %v800 = vld [vmem:[%s600 + $0x478] sm:$0xff]
        %v801 = vld [vmem:[%s600 + $0x480] sm:$0xff]
        %v802 = vld [vmem:[%s600 + $0x488] sm:$0xff]
        %v803 = vld [vmem:[%s600 + $0x490] sm:$0xff]
        %v804 = vld [vmem:[%s600 + $0x498] sm:$0xff]
        %v805 = vld [vmem:[%s600 + $0x4a0] sm:$0xff]
        %v806 = vld [vmem:[%s600 + $0x4a8] sm:$0xff]
        %v807 = vld [vmem:[%s600 + $0x4b0] sm:$0xff]
        %v808 = vld [vmem:[%s600 + $0x4b8] sm:$0xff]
        %v809 = vld [vmem:[%s600 + $0x4c0] sm:$0xff]
        %v810 = vld [vmem:[%s600 + $0x4c8] sm:$0xff]
        %v811 = vld [vmem:[%s600 + $0x4d0] sm:$0xff]
        %v812 = vld [vmem:[%s600 + $0x4d8] sm:$0xff]
        %v813 = vld [vmem:[%s600 + $0x4e0] sm:$0xff]
        %v814 = vld [vmem:[%s600 + $0x4e8] sm:$0xff]
        %v815 = vld [vmem:[%s600 + $0x4f0] sm:$0xff]
        %v816 = vld [vmem:[%s600 + $0x4f8] sm:$0xff]
        %v817 = vld [vmem:[%s600 + $0x500] sm:$0xff]
        %v818 = vld [vmem:[%s600 + $0x508] sm:$0xff]
        %v819 = vld [vmem:[%s600 + $0x510] sm:$0xff]
        %v820 = vld [vmem:[%s600 + $0x518] sm:$0xff]
        %v821 = vld [vmem:[%s600 + $0x520] sm:$0xff]
        %v822 = vld [vmem:[%s600 + $0x528] sm:$0xff]
        %v823 = vld [vmem:[%s600 + $0x530] sm:$0xff]
        %v824 = vld [vmem:[%s600 + $0x538] sm:$0xff]
        %v825 = vld [vmem:[%s600 + $0x540] sm:$0xff]
        %v826 = vld [vmem:[%s600 + $0x548] sm:$0xff]
        %v827 = vld [vmem:[%s600 + $0x550] sm:$0xff]
        %v828 = vld [vmem:[%s600 + $0x558] sm:$0xff]
        %v829 = vld [vmem:[%s600 + $0x560] sm:$0xff]
        %v830 = vld [vmem:[%s600 + $0x568] sm:$0xff]
        %v831 = vld [vmem:[%s600 + $0x570] sm:$0xff]
        %v832 = vld [vmem:[%s600 + $0x578] sm:$0xff]
        %v833 = vld [vmem:[%s600 + $0x580] sm:$0xff]
        %v834 = vld [vmem:[%s600 + $0x588] sm:$0xff]
        %v835 = vld [vmem:[%s600 + $0x590] sm:$0xff]
        %v836 = vld [vmem:[%s600 + $0x598] sm:$0xff]
        %v837 = vld [vmem:[%s600 + $0x5a0] sm:$0xff]
        %v838 = vld [vmem:[%s600 + $0x5a8] sm:$0xff]
        %v839 = vld [vmem:[%s600 + $0x5b0] sm:$0xff]
        %v840 = vld [vmem:[%s600 + $0x5b8] sm:$0xff]
        %v841 = vld [vmem:[%s600 + $0x5c0] sm:$0xff]
        %v842 = vld [vmem:[%s600 + $0x5c8] sm:$0xff]
        %v843 = vld [vmem:[%s600 + $0x5d0] sm:$0xff]
        %v844 = vld [vmem:[%s600 + $0x5d8] sm:$0xff]
        %v845 = vld [vmem:[%s600 + $0x5e0] sm:$0xff]
        %v846 = vld [vmem:[%s600 + $0x5e8] sm:$0xff]
        %v847 = vld [vmem:[%s600 + $0x5f0] sm:$0xff]
        %v848 = vld [vmem:[%s600 + $0x5f8] sm:$0xff]
        %v849 = vld [vmem:[%s600 + $0x600] sm:$0xff]
        %v850 = vld [vmem:[%s600 + $0x608] sm:$0xff]
        %v851 = vld [vmem:[%s600 + $0x610] sm:$0xff]
        %v852 = vld [vmem:[%s600 + $0x618] sm:$0xff]
        %v853 = vld [vmem:[%s600 + $0x620] sm:$0xff]
        %v854 = vld [vmem:[%s600 + $0x628] sm:$0xff]
        %v855 = vld [vmem:[%s600 + $0x630] sm:$0xff]
        %v856 = vld [vmem:[%s600 + $0x638] sm:$0xff]
        %v857 = vld [vmem:[%s643] sm:$0xff]
        %859 = vset.pattern.permute.xlu0 0
        %860 = vperm.xlu0 %859, %v857
        %v861 = vpop.permute.xlu0 %860
        %v865 = vunpack.c.l.b16 %v655
        %v866 = vunpack.c.h.b16 %v655
        %v867 = vunpack.c.l.b16 %v656
        %v868 = vunpack.c.h.b16 %v656
        %v869 = vpack.c.b16 %v865, %v865
        %v870 = vpack.c.b16 %v866, %v866
        %v871 = vpack.c.b16 %v867, %v867
        %v872 = vpack.c.b16 %v868, %v868
        %v1076 = vunpack.c.l.b16 %v657
        %v1077 = vunpack.c.h.b16 %v657
        %v1078 = vunpack.c.l.b16 %v658
        %v1079 = vunpack.c.h.b16 %v658
        %v1080 = vunpack.c.l.b16 %v659
        %v1081 = vunpack.c.h.b16 %v659
        %v1082 = vunpack.c.l.b16 %v660
        %v1083 = vunpack.c.h.b16 %v660
        %v1084 = vunpack.c.l.b16 %v661
        %v1085 = vunpack.c.h.b16 %v661
        %v1086 = vunpack.c.l.b16 %v662
        %v1087 = vunpack.c.h.b16 %v662
        %v1088 = vunpack.c.l.b16 %v663
        %v1089 = vunpack.c.h.b16 %v663
        %v1090 = vunpack.c.l.b16 %v664
        %v1091 = vunpack.c.h.b16 %v664
        %v1092 = vunpack.c.l.b16 %v665
        %v1093 = vunpack.c.h.b16 %v665
        %v1094 = vunpack.c.l.b16 %v666
        %v1095 = vunpack.c.h.b16 %v666
        %v1096 = vunpack.c.l.b16 %v667
        %v1097 = vunpack.c.h.b16 %v667
        %v1098 = vunpack.c.l.b16 %v668
        %v1099 = vunpack.c.h.b16 %v668
        %v1100 = vunpack.c.l.b16 %v669
        %v1101 = vunpack.c.h.b16 %v669
        %v1102 = vunpack.c.l.b16 %v670
        %v1103 = vunpack.c.h.b16 %v670
        %v1104 = vunpack.c.l.b16 %v671
        %v1105 = vunpack.c.h.b16 %v671
        %v1106 = vunpack.c.l.b16 %v672
        %v1107 = vunpack.c.h.b16 %v672
        %v1108 = vunpack.c.l.b16 %v673
        %v1109 = vunpack.c.h.b16 %v673
        %v1110 = vunpack.c.l.b16 %v674
        %v1111 = vunpack.c.h.b16 %v674
        %v1112 = vunpack.c.l.b16 %v675
        %v1113 = vunpack.c.h.b16 %v675
        %v1114 = vunpack.c.l.b16 %v676
        %v1115 = vunpack.c.h.b16 %v676
        %v1116 = vunpack.c.l.b16 %v677
        %v1117 = vunpack.c.h.b16 %v677
        %v1118 = vunpack.c.l.b16 %v678
        %v1119 = vunpack.c.h.b16 %v678
        %v1120 = vunpack.c.l.b16 %v679
        %v1121 = vunpack.c.h.b16 %v679
        %v1122 = vunpack.c.l.b16 %v680
        %v1123 = vunpack.c.h.b16 %v680
        %v1124 = vunpack.c.l.b16 %v681
        %v1125 = vunpack.c.h.b16 %v681
        %v1126 = vunpack.c.l.b16 %v682
        %v1127 = vunpack.c.h.b16 %v682
        %v1128 = vunpack.c.l.b16 %v683
        %v1129 = vunpack.c.h.b16 %v683
        %v1130 = vunpack.c.l.b16 %v684
        %v1131 = vunpack.c.h.b16 %v684
        %v1132 = vunpack.c.l.b16 %v685
        %v1133 = vunpack.c.h.b16 %v685
        %v1134 = vunpack.c.l.b16 %v686
        %v1135 = vunpack.c.h.b16 %v686
        %v1136 = vunpack.c.l.b16 %v687
        %v1137 = vunpack.c.h.b16 %v687
        %v1138 = vunpack.c.l.b16 %v688
        %v1139 = vunpack.c.h.b16 %v688
        %v1140 = vunpack.c.l.b16 %v689
        %v1141 = vunpack.c.h.b16 %v689
        %v1142 = vunpack.c.l.b16 %v690
        %v1143 = vunpack.c.h.b16 %v690
        %v1144 = vunpack.c.l.b16 %v691
        %v1145 = vunpack.c.h.b16 %v691
        %v1146 = vunpack.c.l.b16 %v692
        %v1147 = vunpack.c.h.b16 %v692
        %v1148 = vunpack.c.l.b16 %v693
        %v1149 = vunpack.c.h.b16 %v693
        %v1150 = vunpack.c.l.b16 %v694
        %v1151 = vunpack.c.h.b16 %v694
        %v1152 = vunpack.c.l.b16 %v695
        %v1153 = vunpack.c.h.b16 %v695
        %v1154 = vunpack.c.l.b16 %v696
        %v1155 = vunpack.c.h.b16 %v696
        %v1156 = vunpack.c.l.b16 %v697
        %v1157 = vunpack.c.h.b16 %v697
        %v1158 = vunpack.c.l.b16 %v698
        %v1159 = vunpack.c.h.b16 %v698
        %v1160 = vunpack.c.l.b16 %v699
        %v1161 = vunpack.c.h.b16 %v699
        %v1162 = vunpack.c.l.b16 %v700
        %v1163 = vunpack.c.h.b16 %v700
        %v1164 = vunpack.c.l.b16 %v701
        %v1165 = vunpack.c.h.b16 %v701
        %v1166 = vunpack.c.l.b16 %v702
        %v1167 = vunpack.c.h.b16 %v702
        %v1168 = vunpack.c.l.b16 %v703
        %v1169 = vunpack.c.h.b16 %v703
        %v1170 = vunpack.c.l.b16 %v704
        %v1171 = vunpack.c.h.b16 %v704
        %v1172 = vunpack.c.l.b16 %v705
        %v1173 = vunpack.c.h.b16 %v705
        %v1174 = vunpack.c.l.b16 %v706
        %v1175 = vunpack.c.h.b16 %v706
        %v1176 = vunpack.c.l.b16 %v707
        %v1177 = vunpack.c.h.b16 %v707
        %v1178 = vunpack.c.l.b16 %v708
        %v1179 = vunpack.c.h.b16 %v708
        %v1180 = vunpack.c.l.b16 %v709
        %v1181 = vunpack.c.h.b16 %v709
        %v1182 = vunpack.c.l.b16 %v710
        %v1183 = vunpack.c.h.b16 %v710
        %v1184 = vunpack.c.l.b16 %v711
        %v1185 = vunpack.c.h.b16 %v711
        %v1186 = vunpack.c.l.b16 %v712
        %v1187 = vunpack.c.h.b16 %v712
        %v1188 = vunpack.c.l.b16 %v713
        %v1189 = vunpack.c.h.b16 %v713
        %v1190 = vunpack.c.l.b16 %v714
        %v1191 = vunpack.c.h.b16 %v714
        %v1192 = vunpack.c.l.b16 %v715
        %v1193 = vunpack.c.h.b16 %v715
        %v1194 = vunpack.c.l.b16 %v716
        %v1195 = vunpack.c.h.b16 %v716
        %v1196 = vunpack.c.l.b16 %v717
        %v1197 = vunpack.c.h.b16 %v717
        %v1198 = vunpack.c.l.b16 %v718
        %v1199 = vunpack.c.h.b16 %v718
        %v1200 = vunpack.c.l.b16 %v719
        %v1201 = vunpack.c.h.b16 %v719
        %v1202 = vunpack.c.l.b16 %v720
        %v1203 = vunpack.c.h.b16 %v720
        %v1204 = vunpack.c.l.b16 %v721
        %v1205 = vunpack.c.h.b16 %v721
        %v1206 = vunpack.c.l.b16 %v722
        %v1207 = vunpack.c.h.b16 %v722
        %v1208 = vunpack.c.l.b16 %v723
        %v1209 = vunpack.c.h.b16 %v723
        %v1210 = vunpack.c.l.b16 %v724
        %v1211 = vunpack.c.h.b16 %v724
        %v1212 = vunpack.c.l.b16 %v725
        %v1213 = vunpack.c.h.b16 %v725
        %v1214 = vunpack.c.l.b16 %v726
        %v1215 = vunpack.c.h.b16 %v726
        %v1216 = vunpack.c.l.b16 %v727
        %v1217 = vunpack.c.h.b16 %v727
        %v1218 = vunpack.c.l.b16 %v728
        %v1219 = vunpack.c.h.b16 %v728
        %v1220 = vunpack.c.l.b16 %v729
        %v1221 = vunpack.c.h.b16 %v729
        %v1222 = vunpack.c.l.b16 %v730
        %v1223 = vunpack.c.h.b16 %v730
        %v1224 = vunpack.c.l.b16 %v731
        %v1225 = vunpack.c.h.b16 %v731
        %v1226 = vunpack.c.l.b16 %v732
        %v1227 = vunpack.c.h.b16 %v732
        %v1228 = vunpack.c.l.b16 %v733
        %v1229 = vunpack.c.h.b16 %v733
        %v1230 = vunpack.c.l.b16 %v734
        %v1231 = vunpack.c.h.b16 %v734
        %v1232 = vunpack.c.l.b16 %v735
        %v1233 = vunpack.c.h.b16 %v735
        %v1234 = vunpack.c.l.b16 %v736
        %v1235 = vunpack.c.h.b16 %v736
        %v1236 = vunpack.c.l.b16 %v737
        %v1237 = vunpack.c.h.b16 %v737
        %v1238 = vunpack.c.l.b16 %v738
        %v1239 = vunpack.c.h.b16 %v738
        %v1240 = vunpack.c.l.b16 %v739
        %v1241 = vunpack.c.h.b16 %v739
        %v1242 = vunpack.c.l.b16 %v740
        %v1243 = vunpack.c.h.b16 %v740
        %v1244 = vunpack.c.l.b16 %v741
        %v1245 = vunpack.c.h.b16 %v741
        %v1246 = vunpack.c.l.b16 %v742
        %v1247 = vunpack.c.h.b16 %v742
        %v1248 = vunpack.c.l.b16 %v743
        %v1249 = vunpack.c.h.b16 %v743
        %v1250 = vunpack.c.l.b16 %v744
        %v1251 = vunpack.c.h.b16 %v744
        %v1252 = vunpack.c.l.b16 %v745
        %v1253 = vunpack.c.h.b16 %v745
        %v1254 = vunpack.c.l.b16 %v746
        %v1255 = vunpack.c.h.b16 %v746
        %v1256 = vunpack.c.l.b16 %v747
        %v1257 = vunpack.c.h.b16 %v747
        %v1258 = vunpack.c.l.b16 %v748
        %v1259 = vunpack.c.h.b16 %v748
        %v1260 = vunpack.c.l.b16 %v749
        %v1261 = vunpack.c.h.b16 %v749
        %v1262 = vunpack.c.l.b16 %v750
        %v1263 = vunpack.c.h.b16 %v750
        %v1264 = vunpack.c.l.b16 %v751
        %v1265 = vunpack.c.h.b16 %v751
        %v1266 = vunpack.c.l.b16 %v752
        %v1267 = vunpack.c.h.b16 %v752
        %v1268 = vunpack.c.l.b16 %v753
        %v1269 = vunpack.c.h.b16 %v753
        %v1270 = vunpack.c.l.b16 %v754
        %v1271 = vunpack.c.h.b16 %v754
        %v1272 = vunpack.c.l.b16 %v755
        %v1273 = vunpack.c.h.b16 %v755
        %v1274 = vunpack.c.l.b16 %v756
        %v1275 = vunpack.c.h.b16 %v756
        %v1276 = vunpack.c.l.b16 %v757
        %v1277 = vunpack.c.h.b16 %v757
        %v1278 = vunpack.c.l.b16 %v758
        %v1279 = vunpack.c.h.b16 %v758
        %v1280 = vunpack.c.l.b16 %v759
        %v1281 = vunpack.c.h.b16 %v759
        %v1282 = vunpack.c.l.b16 %v760
        %v1283 = vunpack.c.h.b16 %v760
        %v1284 = vunpack.c.l.b16 %v761
        %v1285 = vunpack.c.h.b16 %v761
        %v1286 = vunpack.c.l.b16 %v762
        %v1287 = vunpack.c.h.b16 %v762
        %v1288 = vunpack.c.l.b16 %v763
        %v1289 = vunpack.c.h.b16 %v763
        %v1290 = vunpack.c.l.b16 %v764
        %v1291 = vunpack.c.h.b16 %v764
        %v1292 = vunpack.c.l.b16 %v765
        %v1293 = vunpack.c.h.b16 %v765
        %v1294 = vunpack.c.l.b16 %v766
        %v1295 = vunpack.c.h.b16 %v766
        %v1296 = vunpack.c.l.b16 %v767
        %v1297 = vunpack.c.h.b16 %v767
        %v1298 = vunpack.c.l.b16 %v768
        %v1299 = vunpack.c.h.b16 %v768
        %v1300 = vunpack.c.l.b16 %v769
        %v1301 = vunpack.c.h.b16 %v769
        %v1302 = vunpack.c.l.b16 %v770
        %v1303 = vunpack.c.h.b16 %v770
        %v1304 = vunpack.c.l.b16 %v771
        %v1305 = vunpack.c.h.b16 %v771
        %v1306 = vunpack.c.l.b16 %v772
        %v1307 = vunpack.c.h.b16 %v772
        %v1308 = vunpack.c.l.b16 %v773
        %v1309 = vunpack.c.h.b16 %v773
        %v1310 = vunpack.c.l.b16 %v774
        %v1311 = vunpack.c.h.b16 %v774
        %v1312 = vunpack.c.l.b16 %v775
        %v1313 = vunpack.c.h.b16 %v775
        %v1314 = vunpack.c.l.b16 %v776
        %v1315 = vunpack.c.h.b16 %v776
        %v1316 = vunpack.c.l.b16 %v777
        %v1317 = vunpack.c.h.b16 %v777
        %v1318 = vunpack.c.l.b16 %v778
        %v1319 = vunpack.c.h.b16 %v778
        %v1320 = vunpack.c.l.b16 %v779
        %v1321 = vunpack.c.h.b16 %v779
        %v1322 = vunpack.c.l.b16 %v780
        %v1323 = vunpack.c.h.b16 %v780
        %v1324 = vunpack.c.l.b16 %v781
        %v1325 = vunpack.c.h.b16 %v781
        %v1326 = vunpack.c.l.b16 %v782
        %v1327 = vunpack.c.h.b16 %v782
        %v1328 = vunpack.c.l.b16 %v783
        %v1329 = vunpack.c.h.b16 %v783
        %v1330 = vunpack.c.l.b16 %v784
        %v1331 = vunpack.c.h.b16 %v784
        %v1332 = vunpack.c.l.b16 %v785
        %v1333 = vunpack.c.h.b16 %v785
        %v1334 = vunpack.c.l.b16 %v786
        %v1335 = vunpack.c.h.b16 %v786
        %v1336 = vunpack.c.l.b16 %v787
        %v1337 = vunpack.c.h.b16 %v787
        %v1338 = vunpack.c.l.b16 %v788
        %v1339 = vunpack.c.h.b16 %v788
        %v1340 = vunpack.c.l.b16 %v789
        %v1341 = vunpack.c.h.b16 %v789
        %v1342 = vunpack.c.l.b16 %v790
        %v1343 = vunpack.c.h.b16 %v790
        %v1344 = vunpack.c.l.b16 %v791
        %v1345 = vunpack.c.h.b16 %v791
        %v1346 = vunpack.c.l.b16 %v792
        %v1347 = vunpack.c.h.b16 %v792
        %v1348 = vunpack.c.l.b16 %v793
        %v1349 = vunpack.c.h.b16 %v793
        %v1350 = vunpack.c.l.b16 %v794
        %v1351 = vunpack.c.h.b16 %v794
        %v1352 = vunpack.c.l.b16 %v795
        %v1353 = vunpack.c.h.b16 %v795
        %v1354 = vunpack.c.l.b16 %v796
        %v1355 = vunpack.c.h.b16 %v796
        %v1356 = vunpack.c.l.b16 %v797
        %v1357 = vunpack.c.h.b16 %v797
        %v1358 = vunpack.c.l.b16 %v798
        %v1359 = vunpack.c.h.b16 %v798
        %v1360 = vunpack.c.l.b16 %v799
        %v1361 = vunpack.c.h.b16 %v799
        %v1362 = vunpack.c.l.b16 %v800
        %v1363 = vunpack.c.h.b16 %v800
        %v1364 = vunpack.c.l.b16 %v801
        %v1365 = vunpack.c.h.b16 %v801
        %v1366 = vunpack.c.l.b16 %v802
        %v1367 = vunpack.c.h.b16 %v802
        %v1368 = vunpack.c.l.b16 %v803
        %v1369 = vunpack.c.h.b16 %v803
        %v1370 = vunpack.c.l.b16 %v804
        %v1371 = vunpack.c.h.b16 %v804
        %v1372 = vunpack.c.l.b16 %v805
        %v1373 = vunpack.c.h.b16 %v805
        %v1374 = vunpack.c.l.b16 %v806
        %v1375 = vunpack.c.h.b16 %v806
        %v1376 = vunpack.c.l.b16 %v807
        %v1377 = vunpack.c.h.b16 %v807
        %v1378 = vunpack.c.l.b16 %v808
        %v1379 = vunpack.c.h.b16 %v808
        %v1380 = vunpack.c.l.b16 %v809
        %v1381 = vunpack.c.h.b16 %v809
        %v1382 = vunpack.c.l.b16 %v810
        %v1383 = vunpack.c.h.b16 %v810
        %v1384 = vunpack.c.l.b16 %v811
        %v1385 = vunpack.c.h.b16 %v811
        %v1386 = vunpack.c.l.b16 %v812
        %v1387 = vunpack.c.h.b16 %v812
        %v1388 = vunpack.c.l.b16 %v813
        %v1389 = vunpack.c.h.b16 %v813
        %v1390 = vunpack.c.l.b16 %v814
        %v1391 = vunpack.c.h.b16 %v814
        %v1392 = vunpack.c.l.b16 %v815
        %v1393 = vunpack.c.h.b16 %v815
        %v1394 = vunpack.c.l.b16 %v816
        %v1395 = vunpack.c.h.b16 %v816
        %v1396 = vunpack.c.l.b16 %v817
        %v1397 = vunpack.c.h.b16 %v817
        %v1398 = vunpack.c.l.b16 %v818
        %v1399 = vunpack.c.h.b16 %v818
        %v1400 = vunpack.c.l.b16 %v819
        %v1401 = vunpack.c.h.b16 %v819
        %v1402 = vunpack.c.l.b16 %v820
        %v1403 = vunpack.c.h.b16 %v820
        %v1404 = vunpack.c.l.b16 %v821
        %v1405 = vunpack.c.h.b16 %v821
        %v1406 = vunpack.c.l.b16 %v822
        %v1407 = vunpack.c.h.b16 %v822
        %v1408 = vunpack.c.l.b16 %v823
        %v1409 = vunpack.c.h.b16 %v823
        %v1410 = vunpack.c.l.b16 %v824
        %v1411 = vunpack.c.h.b16 %v824
        %v1412 = vunpack.c.l.b16 %v825
        %v1413 = vunpack.c.h.b16 %v825
        %v1414 = vunpack.c.l.b16 %v826
        %v1415 = vunpack.c.h.b16 %v826
        %v1416 = vunpack.c.l.b16 %v827
        %v1417 = vunpack.c.h.b16 %v827
        %v1418 = vunpack.c.l.b16 %v828
        %v1419 = vunpack.c.h.b16 %v828
        %v1420 = vunpack.c.l.b16 %v829
        %v1421 = vunpack.c.h.b16 %v829
        %v1422 = vunpack.c.l.b16 %v830
        %v1423 = vunpack.c.h.b16 %v830
        %v1424 = vunpack.c.l.b16 %v831
        %v1425 = vunpack.c.h.b16 %v831
        %v1426 = vunpack.c.l.b16 %v832
        %v1427 = vunpack.c.h.b16 %v832
        %v1428 = vunpack.c.l.b16 %v833
        %v1429 = vunpack.c.h.b16 %v833
        %v1430 = vunpack.c.l.b16 %v834
        %v1431 = vunpack.c.h.b16 %v834
        %v1432 = vunpack.c.l.b16 %v835
        %v1433 = vunpack.c.h.b16 %v835
        %v1434 = vunpack.c.l.b16 %v836
        %v1435 = vunpack.c.h.b16 %v836
        %v1436 = vunpack.c.l.b16 %v837
        %v1437 = vunpack.c.h.b16 %v837
        %v1438 = vunpack.c.l.b16 %v838
        %v1439 = vunpack.c.h.b16 %v838
        %v1440 = vunpack.c.l.b16 %v839
        %v1441 = vunpack.c.h.b16 %v839
        %v1442 = vunpack.c.l.b16 %v840
        %v1443 = vunpack.c.h.b16 %v840
        %v1444 = vunpack.c.l.b16 %v841
        %v1445 = vunpack.c.h.b16 %v841
        %v1446 = vunpack.c.l.b16 %v842
        %v1447 = vunpack.c.h.b16 %v842
        %v1448 = vunpack.c.l.b16 %v843
        %v1449 = vunpack.c.h.b16 %v843
        %v1450 = vunpack.c.l.b16 %v844
        %v1451 = vunpack.c.h.b16 %v844
        %v1452 = vunpack.c.l.b16 %v845
        %v1453 = vunpack.c.h.b16 %v845
        %v1454 = vunpack.c.l.b16 %v846
        %v1455 = vunpack.c.h.b16 %v846
        %v1456 = vunpack.c.l.b16 %v847
        %v1457 = vunpack.c.h.b16 %v847
        %v1458 = vunpack.c.l.b16 %v848
        %v1459 = vunpack.c.h.b16 %v848
        %v1460 = vunpack.c.l.b16 %v849
        %v1461 = vunpack.c.h.b16 %v849
        %v1462 = vunpack.c.l.b16 %v850
        %v1463 = vunpack.c.h.b16 %v850
        %v1464 = vunpack.c.l.b16 %v851
        %v1465 = vunpack.c.h.b16 %v851
        %v1466 = vunpack.c.l.b16 %v852
        %v1467 = vunpack.c.h.b16 %v852
        %v1468 = vunpack.c.l.b16 %v853
        %v1469 = vunpack.c.h.b16 %v853
        %v1470 = vunpack.c.l.b16 %v854
        %v1471 = vunpack.c.h.b16 %v854
        %v1472 = vunpack.c.l.b16 %v855
        %v1473 = vunpack.c.h.b16 %v855
        %v1474 = vunpack.c.l.b16 %v856
        %v1475 = vunpack.c.h.b16 %v856
        %v1476 = vpack.c.b16 %v1084, %v1076
        %v1477 = vpack.c.b16 %v1085, %v1077
        %v1478 = vpack.c.b16 %v1086, %v1078
        %v1479 = vpack.c.b16 %v1087, %v1079
        %v1480 = vpack.c.b16 %v1088, %v1080
        %v1481 = vpack.c.b16 %v1089, %v1081
        %v1482 = vpack.c.b16 %v1090, %v1082
        %v1483 = vpack.c.b16 %v1091, %v1083
        %v1484 = vpack.c.b16 %v1100, %v1092
        %v1485 = vpack.c.b16 %v1101, %v1093
        %v1486 = vpack.c.b16 %v1102, %v1094
        %v1487 = vpack.c.b16 %v1103, %v1095
        %v1488 = vpack.c.b16 %v1104, %v1096
        %v1489 = vpack.c.b16 %v1105, %v1097
        %v1490 = vpack.c.b16 %v1106, %v1098
        %v1491 = vpack.c.b16 %v1107, %v1099
        %v1492 = vpack.c.b16 %v1116, %v1108
        %v1493 = vpack.c.b16 %v1117, %v1109
        %v1494 = vpack.c.b16 %v1118, %v1110
        %v1495 = vpack.c.b16 %v1119, %v1111
        %v1496 = vpack.c.b16 %v1120, %v1112
        %v1497 = vpack.c.b16 %v1121, %v1113
        %v1498 = vpack.c.b16 %v1122, %v1114
        %v1499 = vpack.c.b16 %v1123, %v1115
        %v1500 = vpack.c.b16 %v1132, %v1124
        %v1501 = vpack.c.b16 %v1133, %v1125
        %v1502 = vpack.c.b16 %v1134, %v1126
        %v1503 = vpack.c.b16 %v1135, %v1127
        %v1504 = vpack.c.b16 %v1136, %v1128
        %v1505 = vpack.c.b16 %v1137, %v1129
        %v1506 = vpack.c.b16 %v1138, %v1130
        %v1507 = vpack.c.b16 %v1139, %v1131
        %v1508 = vpack.c.b16 %v1148, %v1140
        %v1509 = vpack.c.b16 %v1149, %v1141
        %v1510 = vpack.c.b16 %v1150, %v1142
        %v1511 = vpack.c.b16 %v1151, %v1143
        %v1512 = vpack.c.b16 %v1152, %v1144
        %v1513 = vpack.c.b16 %v1153, %v1145
        %v1514 = vpack.c.b16 %v1154, %v1146
        %v1515 = vpack.c.b16 %v1155, %v1147
        %v1516 = vpack.c.b16 %v1164, %v1156
        %v1517 = vpack.c.b16 %v1165, %v1157
        %v1518 = vpack.c.b16 %v1166, %v1158
        %v1519 = vpack.c.b16 %v1167, %v1159
        %v1520 = vpack.c.b16 %v1168, %v1160
        %v1521 = vpack.c.b16 %v1169, %v1161
        %v1522 = vpack.c.b16 %v1170, %v1162
        %v1523 = vpack.c.b16 %v1171, %v1163
        %v1524 = vpack.c.b16 %v1180, %v1172
        %v1525 = vpack.c.b16 %v1181, %v1173
        %v1526 = vpack.c.b16 %v1182, %v1174
        %v1527 = vpack.c.b16 %v1183, %v1175
        %v1528 = vpack.c.b16 %v1184, %v1176
        %v1529 = vpack.c.b16 %v1185, %v1177
        %v1530 = vpack.c.b16 %v1186, %v1178
        %v1531 = vpack.c.b16 %v1187, %v1179
        %v1532 = vpack.c.b16 %v1196, %v1188
        %v1533 = vpack.c.b16 %v1197, %v1189
        %v1534 = vpack.c.b16 %v1198, %v1190
        %v1535 = vpack.c.b16 %v1199, %v1191
        %v1536 = vpack.c.b16 %v1200, %v1192
        %v1537 = vpack.c.b16 %v1201, %v1193
        %v1538 = vpack.c.b16 %v1202, %v1194
        %v1539 = vpack.c.b16 %v1203, %v1195
        %v1540 = vpack.c.b16 %v1212, %v1204
        %v1541 = vpack.c.b16 %v1213, %v1205
        %v1542 = vpack.c.b16 %v1214, %v1206
        %v1543 = vpack.c.b16 %v1215, %v1207
        %v1544 = vpack.c.b16 %v1216, %v1208
        %v1545 = vpack.c.b16 %v1217, %v1209
        %v1546 = vpack.c.b16 %v1218, %v1210
        %v1547 = vpack.c.b16 %v1219, %v1211
        %v1548 = vpack.c.b16 %v1228, %v1220
        %v1549 = vpack.c.b16 %v1229, %v1221
        %v1550 = vpack.c.b16 %v1230, %v1222
        %v1551 = vpack.c.b16 %v1231, %v1223
        %v1552 = vpack.c.b16 %v1232, %v1224
        %v1553 = vpack.c.b16 %v1233, %v1225
        %v1554 = vpack.c.b16 %v1234, %v1226
        %v1555 = vpack.c.b16 %v1235, %v1227
        %v1556 = vpack.c.b16 %v1244, %v1236
        %v1557 = vpack.c.b16 %v1245, %v1237
        %v1558 = vpack.c.b16 %v1246, %v1238
        %v1559 = vpack.c.b16 %v1247, %v1239
        %v1560 = vpack.c.b16 %v1248, %v1240
        %v1561 = vpack.c.b16 %v1249, %v1241
        %v1562 = vpack.c.b16 %v1250, %v1242
        %v1563 = vpack.c.b16 %v1251, %v1243
        %v1564 = vpack.c.b16 %v1260, %v1252
        %v1565 = vpack.c.b16 %v1261, %v1253
        %v1566 = vpack.c.b16 %v1262, %v1254
        %v1567 = vpack.c.b16 %v1263, %v1255
        %v1568 = vpack.c.b16 %v1264, %v1256
        %v1569 = vpack.c.b16 %v1265, %v1257
        %v1570 = vpack.c.b16 %v1266, %v1258
        %v1571 = vpack.c.b16 %v1267, %v1259
        %v1572 = vpack.c.b16 %v1276, %v1268
        %v1573 = vpack.c.b16 %v1277, %v1269
        %v1574 = vpack.c.b16 %v1278, %v1270
        %v1575 = vpack.c.b16 %v1279, %v1271
        %v1576 = vpack.c.b16 %v1280, %v1272
        %v1577 = vpack.c.b16 %v1281, %v1273
        %v1578 = vpack.c.b16 %v1282, %v1274
        %v1579 = vpack.c.b16 %v1283, %v1275
        %v1580 = vpack.c.b16 %v1292, %v1284
        %v1581 = vpack.c.b16 %v1293, %v1285
        %v1582 = vpack.c.b16 %v1294, %v1286
        %v1583 = vpack.c.b16 %v1295, %v1287
        %v1584 = vpack.c.b16 %v1296, %v1288
        %v1585 = vpack.c.b16 %v1297, %v1289
        %v1586 = vpack.c.b16 %v1298, %v1290
        %v1587 = vpack.c.b16 %v1299, %v1291
        %v1588 = vpack.c.b16 %v1308, %v1300
        %v1589 = vpack.c.b16 %v1309, %v1301
        %v1590 = vpack.c.b16 %v1310, %v1302
        %v1591 = vpack.c.b16 %v1311, %v1303
        %v1592 = vpack.c.b16 %v1312, %v1304
        %v1593 = vpack.c.b16 %v1313, %v1305
        %v1594 = vpack.c.b16 %v1314, %v1306
        %v1595 = vpack.c.b16 %v1315, %v1307
        %v1596 = vpack.c.b16 %v1324, %v1316
        %v1597 = vpack.c.b16 %v1325, %v1317
        %v1598 = vpack.c.b16 %v1326, %v1318
        %v1599 = vpack.c.b16 %v1327, %v1319
        %v1600 = vpack.c.b16 %v1328, %v1320
        %v1601 = vpack.c.b16 %v1329, %v1321
        %v1602 = vpack.c.b16 %v1330, %v1322
        %v1603 = vpack.c.b16 %v1331, %v1323
        %v1604 = vpack.c.b16 %v1340, %v1332
        %v1605 = vpack.c.b16 %v1341, %v1333
        %v1606 = vpack.c.b16 %v1342, %v1334
        %v1607 = vpack.c.b16 %v1343, %v1335
        %v1608 = vpack.c.b16 %v1344, %v1336
        %v1609 = vpack.c.b16 %v1345, %v1337
        %v1610 = vpack.c.b16 %v1346, %v1338
        %v1611 = vpack.c.b16 %v1347, %v1339
        %v1612 = vpack.c.b16 %v1356, %v1348
        %v1613 = vpack.c.b16 %v1357, %v1349
        %v1614 = vpack.c.b16 %v1358, %v1350
        %v1615 = vpack.c.b16 %v1359, %v1351
        %v1616 = vpack.c.b16 %v1360, %v1352
        %v1617 = vpack.c.b16 %v1361, %v1353
        %v1618 = vpack.c.b16 %v1362, %v1354
        %v1619 = vpack.c.b16 %v1363, %v1355
        %v1620 = vpack.c.b16 %v1372, %v1364
        %v1621 = vpack.c.b16 %v1373, %v1365
        %v1622 = vpack.c.b16 %v1374, %v1366
        %v1623 = vpack.c.b16 %v1375, %v1367
        %v1624 = vpack.c.b16 %v1376, %v1368
        %v1625 = vpack.c.b16 %v1377, %v1369
        %v1626 = vpack.c.b16 %v1378, %v1370
        %v1627 = vpack.c.b16 %v1379, %v1371
        %v1628 = vpack.c.b16 %v1388, %v1380
        %v1629 = vpack.c.b16 %v1389, %v1381
        %v1630 = vpack.c.b16 %v1390, %v1382
        %v1631 = vpack.c.b16 %v1391, %v1383
        %v1632 = vpack.c.b16 %v1392, %v1384
        %v1633 = vpack.c.b16 %v1393, %v1385
        %v1634 = vpack.c.b16 %v1394, %v1386
        %v1635 = vpack.c.b16 %v1395, %v1387
        %v1636 = vpack.c.b16 %v1404, %v1396
        %v1637 = vpack.c.b16 %v1405, %v1397
        %v1638 = vpack.c.b16 %v1406, %v1398
        %v1639 = vpack.c.b16 %v1407, %v1399
        %v1640 = vpack.c.b16 %v1408, %v1400
        %v1641 = vpack.c.b16 %v1409, %v1401
        %v1642 = vpack.c.b16 %v1410, %v1402
        %v1643 = vpack.c.b16 %v1411, %v1403
        %v1644 = vpack.c.b16 %v1420, %v1412
        %v1645 = vpack.c.b16 %v1421, %v1413
        %v1646 = vpack.c.b16 %v1422, %v1414
        %v1647 = vpack.c.b16 %v1423, %v1415
        %v1648 = vpack.c.b16 %v1424, %v1416
        %v1649 = vpack.c.b16 %v1425, %v1417
        %v1650 = vpack.c.b16 %v1426, %v1418
        %v1651 = vpack.c.b16 %v1427, %v1419
        %v1652 = vpack.c.b16 %v1436, %v1428
        %v1653 = vpack.c.b16 %v1437, %v1429
        %v1654 = vpack.c.b16 %v1438, %v1430
        %v1655 = vpack.c.b16 %v1439, %v1431
        %v1656 = vpack.c.b16 %v1440, %v1432
        %v1657 = vpack.c.b16 %v1441, %v1433
        %v1658 = vpack.c.b16 %v1442, %v1434
        %v1659 = vpack.c.b16 %v1443, %v1435
        %v1660 = vpack.c.b16 %v1452, %v1444
        %v1661 = vpack.c.b16 %v1453, %v1445
        %v1662 = vpack.c.b16 %v1454, %v1446
        %v1663 = vpack.c.b16 %v1455, %v1447
        %v1664 = vpack.c.b16 %v1456, %v1448
        %v1665 = vpack.c.b16 %v1457, %v1449
        %v1666 = vpack.c.b16 %v1458, %v1450
        %v1667 = vpack.c.b16 %v1459, %v1451
        %v1668 = vpack.c.b16 %v1468, %v1460
        %v1669 = vpack.c.b16 %v1469, %v1461
        %v1670 = vpack.c.b16 %v1470, %v1462
        %v1671 = vpack.c.b16 %v1471, %v1463
        %v1672 = vpack.c.b16 %v1472, %v1464
        %v1673 = vpack.c.b16 %v1473, %v1465
        %v1674 = vpack.c.b16 %v1474, %v1466
        %v1675 = vpack.c.b16 %v1475, %v1467
        %vm1876 = vcmask 130048
        %v1878 = vsel %vm1876, %v872, 0
        %1880 = vmatprep.subr.bf16.mxu0 %v1533
        %1881 = vmatpush1.bf16.msra.mxu0 %v1532
        %1882 = vmatprep.subr.bf16.mxu0 %v1525
        %1883 = vmatpush1.bf16.msra.mxu0 %v1524
        %1884 = vmatprep.subr.bf16.mxu0 %v1517
        %1885 = vmatpush1.bf16.msra.mxu0 %v1516
        %1886 = vmatprep.subr.bf16.mxu0 %v1509
        %1887 = vmatpush1.bf16.msra.mxu0 %v1508
        %1888 = vmatprep.subr.bf16.mxu0 %v1501
        %1889 = vmatpush1.bf16.msra.mxu0 %v1500
        %1890 = vmatprep.subr.bf16.mxu0 %v1493
        %1891 = vmatpush1.bf16.msra.mxu0 %v1492
        %1892 = vmatprep.subr.bf16.mxu0 %v1485
        %1893 = vmatpush1.bf16.msra.mxu0 %v1484
        %1894 = vmatprep.subr.bf16.mxu0 %v1477
        %1895 = vmatpush1.bf16.msra.mxu0 %v1476
        %1896 = vmatprep.subr.bf16.mxu0 %v1597
        %1897 = vmatpush2.bf16.msra.mxu0 %v1596
        %1898 = vmatprep.subr.bf16.mxu0 %v1589
        %1899 = vmatpush2.bf16.msra.mxu0 %v1588
        %1900 = vmatprep.subr.bf16.mxu0 %v1581
        %1901 = vmatpush2.bf16.msra.mxu0 %v1580
        %1902 = vmatprep.subr.bf16.mxu0 %v1573
        %1903 = vmatpush2.bf16.msra.mxu0 %v1572
        %1904 = vmatprep.subr.bf16.mxu0 %v1565
        %1905 = vmatpush2.bf16.msra.mxu0 %v1564
        %1906 = vmatprep.subr.bf16.mxu0 %v1557
        %1907 = vmatpush2.bf16.msra.mxu0 %v1556
        %1908 = vmatprep.subr.bf16.mxu0 %v1549
        %1909 = vmatpush2.bf16.msra.mxu0 %v1548
        %1910 = vmatprep.subr.bf16.mxu0 %v1541
        %1911 = vmatpush2.bf16.msra.mxu0 %v1540
        %1912 = vmatprep.mubr.bf16.mxu0 %v870
        %1913 = vmatmul.mubr.bf16.gmra.mxu0 %v869
        %v1914 = vpop.f32.mrf.mxu0
        %v1915 = vadd.f32 %v861, %v1914
        %v1916 = vpop.f32.mrf.mxu0
        %v1917 = vadd.f32 %v861, %v1916
        %v1918 = vpop.f32.mrf.mxu0
        %v1919 = vpop.f32.mrf.mxu0
        %1920 = vdwg.mxu0
        %1921 = vmatprep.subr.bf16.mxu0 %v1661
        %1922 = vmatpush1.bf16.msra.mxu0 %v1660
        %1923 = vmatprep.subr.bf16.mxu0 %v1653
        %1924 = vmatpush1.bf16.msra.mxu0 %v1652
        %1925 = vmatprep.subr.bf16.mxu0 %v1645
        %1926 = vmatpush1.bf16.msra.mxu0 %v1644
        %1927 = vmatprep.subr.bf16.mxu0 %v1637
        %1928 = vmatpush1.bf16.msra.mxu0 %v1636
        %1929 = vmatprep.subr.bf16.mxu0 %v1629
        %1930 = vmatpush1.bf16.msra.mxu0 %v1628
        %1931 = vmatprep.subr.bf16.mxu0 %v1621
        %1932 = vmatpush1.bf16.msra.mxu0 %v1620
        %1933 = vmatprep.subr.bf16.mxu0 %v1613
        %1934 = vmatpush1.bf16.msra.mxu0 %v1612
        %1935 = vmatprep.subr.bf16.mxu0 %v1605
        %1936 = vmatpush1.bf16.msra.mxu0 %v1604
        %1937 = vmatprep.subr.bf16.mxu0 0
        %1938 = vmatpush2.bf16.msra.mxu0 0
        %1939 = vmatprep.subr.bf16.mxu0 0
        %1940 = vmatpush2.bf16.msra.mxu0 0
        %1941 = vmatprep.subr.bf16.mxu0 0
        %1942 = vmatpush2.bf16.msra.mxu0 0
        %1943 = vmatprep.subr.bf16.mxu0 0
        %1944 = vmatpush2.bf16.msra.mxu0 0
        %1945 = vmatprep.subr.bf16.mxu0 0
        %1946 = vmatpush2.bf16.msra.mxu0 0
        %1947 = vmatprep.subr.bf16.mxu0 0
        %1948 = vmatpush2.bf16.msra.mxu0 0
        %1949 = vmatprep.subr.bf16.mxu0 0
        %1950 = vmatpush2.bf16.msra.mxu0 0
        %1951 = vmatprep.subr.bf16.mxu0 %v1669
        %1952 = vmatpush2.bf16.msra.mxu0 %v1668
        %1953 = vmatprep.mubr.bf16.mxu0 %v1878
        %1954 = vmatmul.mubr.bf16.gmra.mxu0 %v871
        %v1955 = vpop.f32.mrf.mxu0
        %v1956 = vadd.f32 %v1915, %v1955
        %v1957 = vpop.f32.mrf.mxu0
        %v1958 = vadd.f32 %v1917, %v1957
        %v1959 = vpop.f32.mrf.mxu0
        %v1960 = vpop.f32.mrf.mxu0
        %1961 = vdwg.mxu0
        %1962 = vmatprep.subr.bf16.mxu0 %v1535
        %1963 = vmatpush1.bf16.msra.mxu0 %v1534
        %1964 = vmatprep.subr.bf16.mxu0 %v1527
        %1965 = vmatpush1.bf16.msra.mxu0 %v1526
        %1966 = vmatprep.subr.bf16.mxu0 %v1519
        %1967 = vmatpush1.bf16.msra.mxu0 %v1518
        %1968 = vmatprep.subr.bf16.mxu0 %v1511
        %1969 = vmatpush1.bf16.msra.mxu0 %v1510
        %1970 = vmatprep.subr.bf16.mxu0 %v1503
        %1971 = vmatpush1.bf16.msra.mxu0 %v1502
        %1972 = vmatprep.subr.bf16.mxu0 %v1495
        %1973 = vmatpush1.bf16.msra.mxu0 %v1494
        %1974 = vmatprep.subr.bf16.mxu0 %v1487
        %1975 = vmatpush1.bf16.msra.mxu0 %v1486
        %1976 = vmatprep.subr.bf16.mxu0 %v1479
        %1977 = vmatpush1.bf16.msra.mxu0 %v1478
        %1978 = vmatprep.subr.bf16.mxu0 %v1599
        %1979 = vmatpush2.bf16.msra.mxu0 %v1598
        %1980 = vmatprep.subr.bf16.mxu0 %v1591
        %1981 = vmatpush2.bf16.msra.mxu0 %v1590
        %1982 = vmatprep.subr.bf16.mxu0 %v1583
        %1983 = vmatpush2.bf16.msra.mxu0 %v1582
        %1984 = vmatprep.subr.bf16.mxu0 %v1575
        %1985 = vmatpush2.bf16.msra.mxu0 %v1574
        %1986 = vmatprep.subr.bf16.mxu0 %v1567
        %1987 = vmatpush2.bf16.msra.mxu0 %v1566
        %1988 = vmatprep.subr.bf16.mxu0 %v1559
        %1989 = vmatpush2.bf16.msra.mxu0 %v1558
        %1990 = vmatprep.subr.bf16.mxu0 %v1551
        %1991 = vmatpush2.bf16.msra.mxu0 %v1550
        %1992 = vmatprep.subr.bf16.mxu0 %v1543
        %1993 = vmatpush2.bf16.msra.mxu0 %v1542
        %1994 = vmatprep.mubr.bf16.mxu0 %v870
        %1995 = vmatmul.mubr.bf16.gmra.mxu0 %v869
        %v1996 = vpop.f32.mrf.mxu0
        %v1997 = vadd.f32 %v861, %v1996
        %v1998 = vpop.f32.mrf.mxu0
        %v1999 = vadd.f32 %v861, %v1998
        %v2000 = vpop.f32.mrf.mxu0
        %v2001 = vpop.f32.mrf.mxu0
        %2002 = vdwg.mxu0
        %2003 = vmatprep.subr.bf16.mxu0 %v1663
        %2004 = vmatpush1.bf16.msra.mxu0 %v1662
        %2005 = vmatprep.subr.bf16.mxu0 %v1655
        %2006 = vmatpush1.bf16.msra.mxu0 %v1654
        %2007 = vmatprep.subr.bf16.mxu0 %v1647
        %2008 = vmatpush1.bf16.msra.mxu0 %v1646
        %2009 = vmatprep.subr.bf16.mxu0 %v1639
        %2010 = vmatpush1.bf16.msra.mxu0 %v1638
        %2011 = vmatprep.subr.bf16.mxu0 %v1631
        %2012 = vmatpush1.bf16.msra.mxu0 %v1630
        %2013 = vmatprep.subr.bf16.mxu0 %v1623
        %2014 = vmatpush1.bf16.msra.mxu0 %v1622
        %2015 = vmatprep.subr.bf16.mxu0 %v1615
        %2016 = vmatpush1.bf16.msra.mxu0 %v1614
        %2017 = vmatprep.subr.bf16.mxu0 %v1607
        %2018 = vmatpush1.bf16.msra.mxu0 %v1606
        %2019 = vmatprep.subr.bf16.mxu0 0
        %2020 = vmatpush2.bf16.msra.mxu0 0
        %2021 = vmatprep.subr.bf16.mxu0 0
        %2022 = vmatpush2.bf16.msra.mxu0 0
        %2023 = vmatprep.subr.bf16.mxu0 0
        %2024 = vmatpush2.bf16.msra.mxu0 0
        %2025 = vmatprep.subr.bf16.mxu0 0
        %2026 = vmatpush2.bf16.msra.mxu0 0
        %2027 = vmatprep.subr.bf16.mxu0 0
        %2028 = vmatpush2.bf16.msra.mxu0 0
        %2029 = vmatprep.subr.bf16.mxu0 0
        %2030 = vmatpush2.bf16.msra.mxu0 0
        %2031 = vmatprep.subr.bf16.mxu0 0
        %2032 = vmatpush2.bf16.msra.mxu0 0
        %2033 = vmatprep.subr.bf16.mxu0 %v1671
        %2034 = vmatpush2.bf16.msra.mxu0 %v1670
        %2035 = vmatprep.mubr.bf16.mxu0 %v1878
        %2036 = vmatmul.mubr.bf16.gmra.mxu0 %v871
        %v2037 = vpop.f32.mrf.mxu0
        %v2038 = vadd.f32 %v1997, %v2037
        %v2039 = vpop.f32.mrf.mxu0
        %v2040 = vadd.f32 %v1999, %v2039
        %v2041 = vpop.f32.mrf.mxu0
        %v2042 = vpop.f32.mrf.mxu0
        %2043 = vdwg.mxu0
        %2044 = vmatprep.subr.bf16.mxu0 %v1537
        %2045 = vmatpush1.bf16.msra.mxu0 %v1536
        %2046 = vmatprep.subr.bf16.mxu0 %v1529
        %2047 = vmatpush1.bf16.msra.mxu0 %v1528
        %2048 = vmatprep.subr.bf16.mxu0 %v1521
        %2049 = vmatpush1.bf16.msra.mxu0 %v1520
        %2050 = vmatprep.subr.bf16.mxu0 %v1513
        %2051 = vmatpush1.bf16.msra.mxu0 %v1512
        %2052 = vmatprep.subr.bf16.mxu0 %v1505
        %2053 = vmatpush1.bf16.msra.mxu0 %v1504
        %2054 = vmatprep.subr.bf16.mxu0 %v1497
        %2055 = vmatpush1.bf16.msra.mxu0 %v1496
        %2056 = vmatprep.subr.bf16.mxu0 %v1489
        %2057 = vmatpush1.bf16.msra.mxu0 %v1488
        %2058 = vmatprep.subr.bf16.mxu0 %v1481
        %2059 = vmatpush1.bf16.msra.mxu0 %v1480
        %2060 = vmatprep.subr.bf16.mxu0 %v1601
        %2061 = vmatpush2.bf16.msra.mxu0 %v1600
        %2062 = vmatprep.subr.bf16.mxu0 %v1593
        %2063 = vmatpush2.bf16.msra.mxu0 %v1592
        %2064 = vmatprep.subr.bf16.mxu0 %v1585
        %2065 = vmatpush2.bf16.msra.mxu0 %v1584
        %2066 = vmatprep.subr.bf16.mxu0 %v1577
        %2067 = vmatpush2.bf16.msra.mxu0 %v1576
        %2068 = vmatprep.subr.bf16.mxu0 %v1569
        %2069 = vmatpush2.bf16.msra.mxu0 %v1568
        %2070 = vmatprep.subr.bf16.mxu0 %v1561
        %2071 = vmatpush2.bf16.msra.mxu0 %v1560
        %2072 = vmatprep.subr.bf16.mxu0 %v1553
        %2073 = vmatpush2.bf16.msra.mxu0 %v1552
        %2074 = vmatprep.subr.bf16.mxu0 %v1545
        %2075 = vmatpush2.bf16.msra.mxu0 %v1544
        %2076 = vmatprep.mubr.bf16.mxu0 %v870
        %2077 = vmatmul.mubr.bf16.gmra.mxu0 %v869
        %v2078 = vpop.f32.mrf.mxu0
        %v2079 = vadd.f32 %v861, %v2078
        %v2080 = vpop.f32.mrf.mxu0
        %v2081 = vadd.f32 %v861, %v2080
        %v2082 = vpop.f32.mrf.mxu0
        %v2083 = vpop.f32.mrf.mxu0
        %2084 = vdwg.mxu0
        %2085 = vmatprep.subr.bf16.mxu0 %v1665
        %2086 = vmatpush1.bf16.msra.mxu0 %v1664
        %2087 = vmatprep.subr.bf16.mxu0 %v1657
        %2088 = vmatpush1.bf16.msra.mxu0 %v1656
        %2089 = vmatprep.subr.bf16.mxu0 %v1649
        %2090 = vmatpush1.bf16.msra.mxu0 %v1648
        %2091 = vmatprep.subr.bf16.mxu0 %v1641
        %2092 = vmatpush1.bf16.msra.mxu0 %v1640
        %2093 = vmatprep.subr.bf16.mxu0 %v1633
        %2094 = vmatpush1.bf16.msra.mxu0 %v1632
        %2095 = vmatprep.subr.bf16.mxu0 %v1625
        %2096 = vmatpush1.bf16.msra.mxu0 %v1624
        %2097 = vmatprep.subr.bf16.mxu0 %v1617
        %2098 = vmatpush1.bf16.msra.mxu0 %v1616
        %2099 = vmatprep.subr.bf16.mxu0 %v1609
        %2100 = vmatpush1.bf16.msra.mxu0 %v1608
        %2101 = vmatprep.subr.bf16.mxu0 0
        %2102 = vmatpush2.bf16.msra.mxu0 0
        %2103 = vmatprep.subr.bf16.mxu0 0
        %2104 = vmatpush2.bf16.msra.mxu0 0
        %2105 = vmatprep.subr.bf16.mxu0 0
        %2106 = vmatpush2.bf16.msra.mxu0 0
        %2107 = vmatprep.subr.bf16.mxu0 0
        %2108 = vmatpush2.bf16.msra.mxu0 0
        %2109 = vmatprep.subr.bf16.mxu0 0
        %2110 = vmatpush2.bf16.msra.mxu0 0
        %2111 = vmatprep.subr.bf16.mxu0 0
        %2112 = vmatpush2.bf16.msra.mxu0 0
        %2113 = vmatprep.subr.bf16.mxu0 0
        %2114 = vmatpush2.bf16.msra.mxu0 0
        %2115 = vmatprep.subr.bf16.mxu0 %v1673
        %2116 = vmatpush2.bf16.msra.mxu0 %v1672
        %2117 = vmatprep.mubr.bf16.mxu0 %v1878
        %2118 = vmatmul.mubr.bf16.gmra.mxu0 %v871
        %v2119 = vpop.f32.mrf.mxu0
        %v2120 = vadd.f32 %v2079, %v2119
        %v2121 = vpop.f32.mrf.mxu0
        %v2122 = vadd.f32 %v2081, %v2121
        %v2123 = vpop.f32.mrf.mxu0
        %v2124 = vpop.f32.mrf.mxu0
        %2125 = vdwg.mxu0
        %2126 = vmatprep.subr.bf16.mxu0 %v1539
        %2127 = vmatpush1.bf16.msra.mxu0 %v1538
        %2128 = vmatprep.subr.bf16.mxu0 %v1531
        %2129 = vmatpush1.bf16.msra.mxu0 %v1530
        %2130 = vmatprep.subr.bf16.mxu0 %v1523
        %2131 = vmatpush1.bf16.msra.mxu0 %v1522
        %2132 = vmatprep.subr.bf16.mxu0 %v1515
        %2133 = vmatpush1.bf16.msra.mxu0 %v1514
        %2134 = vmatprep.subr.bf16.mxu0 %v1507
        %2135 = vmatpush1.bf16.msra.mxu0 %v1506
        %2136 = vmatprep.subr.bf16.mxu0 %v1499
        %2137 = vmatpush1.bf16.msra.mxu0 %v1498
        %2138 = vmatprep.subr.bf16.mxu0 %v1491
        %2139 = vmatpush1.bf16.msra.mxu0 %v1490
        %2140 = vmatprep.subr.bf16.mxu0 %v1483
        %2141 = vmatpush1.bf16.msra.mxu0 %v1482
        %2142 = vmatprep.subr.bf16.mxu0 %v1603
        %2143 = vmatpush2.bf16.msra.mxu0 %v1602
        %2144 = vmatprep.subr.bf16.mxu0 %v1595
        %2145 = vmatpush2.bf16.msra.mxu0 %v1594
        %2146 = vmatprep.subr.bf16.mxu0 %v1587
        %2147 = vmatpush2.bf16.msra.mxu0 %v1586
        %2148 = vmatprep.subr.bf16.mxu0 %v1579
        %2149 = vmatpush2.bf16.msra.mxu0 %v1578
        %2150 = vmatprep.subr.bf16.mxu0 %v1571
        %2151 = vmatpush2.bf16.msra.mxu0 %v1570
        %2152 = vmatprep.subr.bf16.mxu0 %v1563
        %2153 = vmatpush2.bf16.msra.mxu0 %v1562
        %2154 = vmatprep.subr.bf16.mxu0 %v1555
        %2155 = vmatpush2.bf16.msra.mxu0 %v1554
        %2156 = vmatprep.subr.bf16.mxu0 %v1547
        %2157 = vmatpush2.bf16.msra.mxu0 %v1546
        %2158 = vmatprep.mubr.bf16.mxu0 %v870
        %2159 = vmatmul.mubr.bf16.gmra.mxu0 %v869
        %v2160 = vpop.f32.mrf.mxu0
        %v2161 = vadd.f32 %v861, %v2160
        %v2162 = vpop.f32.mrf.mxu0
        %v2163 = vadd.f32 %v861, %v2162
        %v2164 = vpop.f32.mrf.mxu0
        %v2165 = vpop.f32.mrf.mxu0
        %2166 = vdwg.mxu0
        %2167 = vmatprep.subr.bf16.mxu0 %v1667
        %2168 = vmatpush1.bf16.msra.mxu0 %v1666
        %2169 = vmatprep.subr.bf16.mxu0 %v1659
        %2170 = vmatpush1.bf16.msra.mxu0 %v1658
        %2171 = vmatprep.subr.bf16.mxu0 %v1651
        %2172 = vmatpush1.bf16.msra.mxu0 %v1650
        %2173 = vmatprep.subr.bf16.mxu0 %v1643
        %2174 = vmatpush1.bf16.msra.mxu0 %v1642
        %2175 = vmatprep.subr.bf16.mxu0 %v1635
        %2176 = vmatpush1.bf16.msra.mxu0 %v1634
        %2177 = vmatprep.subr.bf16.mxu0 %v1627
        %2178 = vmatpush1.bf16.msra.mxu0 %v1626
        %2179 = vmatprep.subr.bf16.mxu0 %v1619
        %2180 = vmatpush1.bf16.msra.mxu0 %v1618
        %2181 = vmatprep.subr.bf16.mxu0 %v1611
        %2182 = vmatpush1.bf16.msra.mxu0 %v1610
        %2183 = vmatprep.subr.bf16.mxu0 0
        %2184 = vmatpush2.bf16.msra.mxu0 0
        %2185 = vmatprep.subr.bf16.mxu0 0
        %2186 = vmatpush2.bf16.msra.mxu0 0
        %2187 = vmatprep.subr.bf16.mxu0 0
        %2188 = vmatpush2.bf16.msra.mxu0 0
        %2189 = vmatprep.subr.bf16.mxu0 0
        %2190 = vmatpush2.bf16.msra.mxu0 0
        %2191 = vmatprep.subr.bf16.mxu0 0
        %2192 = vmatpush2.bf16.msra.mxu0 0
        %2193 = vmatprep.subr.bf16.mxu0 0
        %2194 = vmatpush2.bf16.msra.mxu0 0
        %2195 = vmatprep.subr.bf16.mxu0 0
        %2196 = vmatpush2.bf16.msra.mxu0 0
        %2197 = vmatprep.subr.bf16.mxu0 %v1675
        %2198 = vmatpush2.bf16.msra.mxu0 %v1674
        %2199 = vmatprep.mubr.bf16.mxu0 %v1878
        %2200 = vmatmul.mubr.bf16.gmra.mxu0 %v871
        %v2201 = vpop.f32.mrf.mxu0
        %v2202 = vadd.f32 %v2161, %v2201
        %v2203 = vpop.f32.mrf.mxu0
        %v2204 = vadd.f32 %v2163, %v2203
        %v2205 = vpop.f32.mrf.mxu0
        %v2206 = vpop.f32.mrf.mxu0
        %2207 = vdwg.mxu0
        %2208 = vst [vmem:[%s652] sm:$0xff] %v1956
        %2209 = vst [vmem:[%s652 + $0x8] sm:$0xff] %v1958
        %2210 = vst [vmem:[%s652 + $0x10] sm:$0xff] %v2038
        %2211 = vst [vmem:[%s652 + $0x18] sm:$0xff] %v2040
        %2212 = vst [vmem:[%s652 + $0x20] sm:$0xff] %v2120
        %2213 = vst [vmem:[%s652 + $0x28] sm:$0xff] %v2122
        %2214 = vst [vmem:[%s652 + $0x30] sm:$0xff] %v2202
        %2215 = vst [vmem:[%s652 + $0x38] sm:$0xff] %v2204
        %s2216 = smul.u32 8, %s19
        %p2217 = scmp.lt.s32.totalorder %s18, 1
        %s2218 = scalar_select %p2217, %s18, 1
        %p2219 = scmp.lt.s32.totalorder %s2216, 255
        %s2220 = scalar_select %p2219, %s2216, 255
        %s2221 = smul.addr %s2218, 256
        %s2222 = sadd.s32 %s2220, %s2221
        %s2223 = smul.addr %s2222, 8
        %s2224 = scalar_lea.vmem %s3, %s2223
        // Predicated region
        $region56: #{dec_forward.7} parent=50 // pred_check
          %p2225 = pneg %p126
        $region57: #{dec_forward.7} parent=50 // pred_check_branch
          %2227 = sbr.rel (%p2225) target = $region59
        $region58: #{dec_forward.7} parent=50 // pred_region
          %s2228 = smul.u32 8, %s19
        $region59: #{dec_forward.7} parent=50 // pred_fallthru
          _
      $region51: #{dec_forward.7} parent=5 // pred_fallthru
        _
      %p2229 = scmp.le.s32.totalorder 2, %s9
      // Predicated region
      $region60: #{dec_forward.7} parent=5 // pred_check
        %p2230 = pneg %p2229
      $region61: #{dec_forward.7} parent=5 // pred_check_branch
        %2232 = sbr.rel (%p2230) target = $region63
      $region62: #{dec_forward.7} parent=5 // pred_region
        %s2233 = ssub.s32 %s9, 2
        // Predicated region
        $region64: #{dec_forward.7} parent=62 // pred_check
          %p2234 = pneg %p132
        $region65: #{dec_forward.7} parent=62 // pred_check_branch
          %2236 = sbr.rel (%p2234) target = $region67
        $region66: #{dec_forward.7} parent=62 // pred_region
          %s2237 = smul.u32 8, %s21
          %p2238 = scmp.lt.s32.totalorder %s20, 1
          %s2239 = scalar_select %p2238, %s20, 1
          %p2240 = scmp.lt.s32.totalorder %s2237, 255
          %s2241 = scalar_select %p2240, %s2237, 255
          %s2242 = smul.addr %s2239, 256
          %s2243 = sadd.s32 %s2241, %s2242
          %s2244 = smul.addr %s2243, 8
          %s2245 = scalar_lea.vmem %s3, %s2244
        $region67: #{dec_forward.7} parent=62 // pred_fallthru
          _
      $region63: #{dec_forward.7} parent=5 // pred_fallthru
        _
    $region6: #{dec_forward.7} parent=1 // loop_footer
      %s13 = sadd.s32 1, %s9
    $region7: #{dec_forward.7} parent=1 // loop_footer_branch
      %8 = sbr.rel target = $region3
    $region8: #{dec_forward.7} parent=1 // loop_exit
      _

// kernel: squeeze.2
$region0: #{squeeze.2}
  %s0 = inlined_call_operand.vmem [shape: f32[1,3,32768], index: 0, kind: input, shape index: {}]
  %s1 = inlined_call_operand.vmem [shape: f32[3,2,128,128], index: 1, kind: output, shape index: {}]
  $region1: #{squeeze.2} parent=0
    #allocation0 [shape = 'u8[1048576]{0}', space=vmem, size = 0x100000, scoped, tag = 'scoped mem for input reshape']
    %s3 = sshll.u32 1, 4
    %s4 = ssub.s32 %s3, 1
    %s5 = smul.addr 4, 255
    %s6 = scalar_lea.vmem %s0, %s5
    %v7 = vld [vmem:[%s6] sm:%s4]
    %s8 = scalar_lea.vmem [#allocation0], 2040
    %9 = vst [vmem:[%s8] sm:%s4] %v7
    %s10 = smul.addr 4, 254
    %s11 = scalar_lea.vmem %s0, %s10
    %v12 = vld [vmem:[%s11] sm:%s4]
    %s13 = scalar_lea.vmem [#allocation0], 2032
    %14 = vst [vmem:[%s13] sm:%s4] %v12
    %s15 = smul.addr 4, 253
    %s16 = scalar_lea.vmem %s0, %s15
    %v17 = vld [vmem:[%s16] sm:%s4]
    %s18 = scalar_lea.vmem [#allocation0], 2024
    %19 = vst [vmem:[%s18] sm:%s4] %v17
    %s20 = smul.addr 4, 252
    %s21 = scalar_lea.vmem %s0, %s20
    %v22 = vld [vmem:[%s21] sm:%s4]
    %s23 = scalar_lea.vmem [#allocation0], 2016
    %24 = vst [vmem:[%s23] sm:%s4] %v22
    %s25 = smul.addr 4, 251
    %s26 = scalar_lea.vmem %s0, %s25
    %v27 = vld [vmem:[%s26] sm:%s4]
    %s28 = scalar_lea.vmem [#allocation0], 2008
    %29 = vst [vmem:[%s28] sm:%s4] %v27
    %s30 = smul.addr 4, 250
    %s31 = scalar_lea.vmem %s0, %s30
    %v32 = vld [vmem:[%s31] sm:%s4]
    %s33 = scalar_lea.vmem [#allocation0], 2000
    %34 = vst [vmem:[%s33] sm:%s4] %v32
    %s35 = smul.addr 4, 249
    %s36 = scalar_lea.vmem %s0, %s35
    %v37 = vld [vmem:[%s36] sm:%s4]
    %s38 = scalar_lea.vmem [#allocation0], 1992
    %39 = vst [vmem:[%s38] sm:%s4] %v37
    %s40 = smul.addr 4, 248
    %s41 = scalar_lea.vmem %s0, %s40
    %v42 = vld [vmem:[%s41] sm:%s4]
    %s43 = scalar_lea.vmem [#allocation0], 1984
    %44 = vst [vmem:[%s43] sm:%s4] %v42
    %s45 = smul.addr 4, 247
    %s46 = scalar_lea.vmem %s0, %s45
    %v47 = vld [vmem:[%s46] sm:%s4]
    %s48 = scalar_lea.vmem [#allocation0], 1976
    %49 = vst [vmem:[%s48] sm:%s4] %v47
    %s50 = smul.addr 4, 246
    %s51 = scalar_lea.vmem %s0, %s50
    %v52 = vld [vmem:[%s51] sm:%s4]
    %s53 = scalar_lea.vmem [#allocation0], 1968
    %54 = vst [vmem:[%s53] sm:%s4] %v52
    %s55 = smul.addr 4, 245
    %s56 = scalar_lea.vmem %s0, %s55
    %v57 = vld [vmem:[%s56] sm:%s4]
    %s58 = scalar_lea.vmem [#allocation0], 1960
    %59 = vst [vmem:[%s58] sm:%s4] %v57
    %s60 = smul.addr 4, 244
    %s61 = scalar_lea.vmem %s0, %s60
    %v62 = vld [vmem:[%s61] sm:%s4]
    %s63 = scalar_lea.vmem [#allocation0], 1952
    %64 = vst [vmem:[%s63] sm:%s4] %v62
    %s65 = smul.addr 4, 243
    %s66 = scalar_lea.vmem %s0, %s65
    %v67 = vld [vmem:[%s66] sm:%s4]
    %s68 = scalar_lea.vmem [#allocation0], 1944
    %69 = vst [vmem:[%s68] sm:%s4] %v67
    %s70 = smul.addr 4, 242
    %s71 = scalar_lea.vmem %s0, %s70
    %v72 = vld [vmem:[%s71] sm:%s4]
    %s73 = scalar_lea.vmem [#allocation0], 1936
    %74 = vst [vmem:[%s73] sm:%s4] %v72
    %s75 = smul.addr 4, 241
    %s76 = scalar_lea.vmem %s0, %s75
    %v77 = vld [vmem:[%s76] sm:%s4]
    %s78 = scalar_lea.vmem [#allocation0], 1928
    %79 = vst [vmem:[%s78] sm:%s4] %v77
    %s80 = smul.addr 4, 240
    %s81 = scalar_lea.vmem %s0, %s80
    %v82 = vld [vmem:[%s81] sm:%s4]
    %s83 = scalar_lea.vmem [#allocation0], 1920
    %84 = vst [vmem:[%s83] sm:%s4] %v82
    %s85 = smul.addr 4, 239
    %s86 = scalar_lea.vmem %s0, %s85
    %v87 = vld [vmem:[%s86] sm:%s4]
    %s88 = scalar_lea.vmem [#allocation0], 1912
    %89 = vst [vmem:[%s88] sm:%s4] %v87
    %s90 = smul.addr 4, 238
    %s91 = scalar_lea.vmem %s0, %s90
    %v92 = vld [vmem:[%s91] sm:%s4]
    %s93 = scalar_lea.vmem [#allocation0], 1904
    %94 = vst [vmem:[%s93] sm:%s4] %v92
    %s95 = smul.addr 4, 237
    %s96 = scalar_lea.vmem %s0, %s95
    %v97 = vld [vmem:[%s96] sm:%s4]
    %s98 = scalar_lea.vmem [#allocation0], 1896
    %99 = vst [vmem:[%s98] sm:%s4] %v97
    %s100 = smul.addr 4, 236
    %s101 = scalar_lea.vmem %s0, %s100
    %v102 = vld [vmem:[%s101] sm:%s4]
    %s103 = scalar_lea.vmem [#allocation0], 1888
    %104 = vst [vmem:[%s103] sm:%s4] %v102
    %s105 = smul.addr 4, 235
    %s106 = scalar_lea.vmem %s0, %s105
    %v107 = vld [vmem:[%s106] sm:%s4]
    %s108 = scalar_lea.vmem [#allocation0], 1880
    %109 = vst [vmem:[%s108] sm:%s4] %v107
    %s110 = smul.addr 4, 234
    %s111 = scalar_lea.vmem %s0, %s110
    %v112 = vld [vmem:[%s111] sm:%s4]
    %s113 = scalar_lea.vmem [#allocation0], 1872
    %114 = vst [vmem:[%s113] sm:%s4] %v112
    %s115 = smul.addr 4, 233
    %s116 = scalar_lea.vmem %s0, %s115
    %v117 = vld [vmem:[%s116] sm:%s4]
    %s118 = scalar_lea.vmem [#allocation0], 1864
    %119 = vst [vmem:[%s118] sm:%s4] %v117
    %s120 = smul.addr 4, 232
    %s121 = scalar_lea.vmem %s0, %s120
    %v122 = vld [vmem:[%s121] sm:%s4]
    %s123 = scalar_lea.vmem [#allocation0], 1856
    %124 = vst [vmem:[%s123] sm:%s4] %v122
    %s125 = smul.addr 4, 231
    %s126 = scalar_lea.vmem %s0, %s125
    %v127 = vld [vmem:[%s126] sm:%s4]
    %s128 = scalar_lea.vmem [#allocation0], 1848
    %129 = vst [vmem:[%s128] sm:%s4] %v127
    %s130 = smul.addr 4, 230
    %s131 = scalar_lea.vmem %s0, %s130
    %v132 = vld [vmem:[%s131] sm:%s4]
    %s133 = scalar_lea.vmem [#allocation0], 1840
    %134 = vst [vmem:[%s133] sm:%s4] %v132
    %s135 = smul.addr 4, 229
    %s136 = scalar_lea.vmem %s0, %s135
    %v137 = vld [vmem:[%s136] sm:%s4]
    %s138 = scalar_lea.vmem [#allocation0], 1832
    %139 = vst [vmem:[%s138] sm:%s4] %v137
    %s140 = smul.addr 4, 228
    %s141 = scalar_lea.vmem %s0, %s140
    %v142 = vld [vmem:[%s141] sm:%s4]
    %s143 = scalar_lea.vmem [#allocation0], 1824
    %144 = vst [vmem:[%s143] sm:%s4] %v142
    %s145 = smul.addr 4, 227
    %s146 = scalar_lea.vmem %s0, %s145
    %v147 = vld [vmem:[%s146] sm:%s4]
    %s148 = scalar_lea.vmem [#allocation0], 1816
    %149 = vst [vmem:[%s148] sm:%s4] %v147
    %s150 = smul.addr 4, 226
    %s151 = scalar_lea.vmem %s0, %s150
    %v152 = vld [vmem:[%s151] sm:%s4]
    %s153 = scalar_lea.vmem [#allocation0], 1808
    %154 = vst [vmem:[%s153] sm:%s4] %v152
    %s155 = smul.addr 4, 225
    %s156 = scalar_lea.vmem %s0, %s155
    %v157 = vld [vmem:[%s156] sm:%s4]
    %s158 = scalar_lea.vmem [#allocation0], 1800
    %159 = vst [vmem:[%s158] sm:%s4] %v157
    %s160 = smul.addr 4, 224
    %s161 = scalar_lea.vmem %s0, %s160
    %v162 = vld [vmem:[%s161] sm:%s4]
    %s163 = scalar_lea.vmem [#allocation0], 1792
    %164 = vst [vmem:[%s163] sm:%s4] %v162
    %s165 = smul.addr 4, 223
    %s166 = scalar_lea.vmem %s0, %s165
    %v167 = vld [vmem:[%s166] sm:%s4]
    %s168 = scalar_lea.vmem [#allocation0], 1784
    %169 = vst [vmem:[%s168] sm:%s4] %v167
    %s170 = smul.addr 4, 222
    %s171 = scalar_lea.vmem %s0, %s170
    %v172 = vld [vmem:[%s171] sm:%s4]
    %s173 = scalar_lea.vmem [#allocation0], 1776
    %174 = vst [vmem:[%s173] sm:%s4] %v172
    %s175 = smul.addr 4, 221
    %s176 = scalar_lea.vmem %s0, %s175
    %v177 = vld [vmem:[%s176] sm:%s4]
    %s178 = scalar_lea.vmem [#allocation0], 1768
    %179 = vst [vmem:[%s178] sm:%s4] %v177
    %s180 = smul.addr 4, 220
    %s181 = scalar_lea.vmem %s0, %s180
    %v182 = vld [vmem:[%s181] sm:%s4]
    %s183 = scalar_lea.vmem [#allocation0], 1760
    %184 = vst [vmem:[%s183] sm:%s4] %v182
    %s185 = smul.addr 4, 219
    %s186 = scalar_lea.vmem %s0, %s185
    %v187 = vld [vmem:[%s186] sm:%s4]
    %s188 = scalar_lea.vmem [#allocation0], 1752
    %189 = vst [vmem:[%s188] sm:%s4] %v187
    %s190 = smul.addr 4, 218
    %s191 = scalar_lea.vmem %s0, %s190
    %v192 = vld [vmem:[%s191] sm:%s4]
    %s193 = scalar_lea.vmem [#allocation0], 1744
    %194 = vst [vmem:[%s193] sm:%s4] %v192
    %s195 = smul.addr 4, 217
    %s196 = scalar_lea.vmem %s0, %s195
    %v197 = vld [vmem:[%s196] sm:%s4]
    %s198 = scalar_lea.vmem [#allocation0], 1736
    %199 = vst [vmem:[%s198] sm:%s4] %v197
    %s200 = smul.addr 4, 216
    %s201 = scalar_lea.vmem %s0, %s200
    %v202 = vld [vmem:[%s201] sm:%s4]
    %s203 = scalar_lea.vmem [#allocation0], 1728
    %204 = vst [vmem:[%s203] sm:%s4] %v202
    %s205 = smul.addr 4, 215
    %s206 = scalar_lea.vmem %s0, %s205
    %v207 = vld [vmem:[%s206] sm:%s4]
    %s208 = scalar_lea.vmem [#allocation0], 1720
    %209 = vst [vmem:[%s208] sm:%s4] %v207
    %s210 = smul.addr 4, 214
    %s211 = scalar_lea.vmem %s0, %s210
    %v212 = vld [vmem:[%s211] sm:%s4]
    %s213 = scalar_lea.vmem [#allocation0], 1712
    %214 = vst [vmem:[%s213] sm:%s4] %v212
    %s215 = smul.addr 4, 213
    %s216 = scalar_lea.vmem %s0, %s215
    %v217 = vld [vmem:[%s216] sm:%s4]
    %s218 = scalar_lea.vmem [#allocation0], 1704
    %219 = vst [vmem:[%s218] sm:%s4] %v217
    %s220 = smul.addr 4, 212
    %s221 = scalar_lea.vmem %s0, %s220
    %v222 = vld [vmem:[%s221] sm:%s4]
    %s223 = scalar_lea.vmem [#allocation0], 1696
    %224 = vst [vmem:[%s223] sm:%s4] %v222
    %s225 = smul.addr 4, 211
    %s226 = scalar_lea.vmem %s0, %s225
    %v227 = vld [vmem:[%s226] sm:%s4]
    %s228 = scalar_lea.vmem [#allocation0], 1688
    %229 = vst [vmem:[%s228] sm:%s4] %v227
    %s230 = smul.addr 4, 210
    %s231 = scalar_lea.vmem %s0, %s230
    %v232 = vld [vmem:[%s231] sm:%s4]
    %s233 = scalar_lea.vmem [#allocation0], 1680
    %234 = vst [vmem:[%s233] sm:%s4] %v232
    %s235 = smul.addr 4, 209
    %s236 = scalar_lea.vmem %s0, %s235
    %v237 = vld [vmem:[%s236] sm:%s4]
    %s238 = scalar_lea.vmem [#allocation0], 1672
    %239 = vst [vmem:[%s238] sm:%s4] %v237
    %s240 = smul.addr 4, 208
    %s241 = scalar_lea.vmem %s0, %s240
    %v242 = vld [vmem:[%s241] sm:%s4]
    %s243 = scalar_lea.vmem [#allocation0], 1664
    %244 = vst [vmem:[%s243] sm:%s4] %v242
    %s245 = smul.addr 4, 207
    %s246 = scalar_lea.vmem %s0, %s245
    %v247 = vld [vmem:[%s246] sm:%s4]
    %s248 = scalar_lea.vmem [#allocation0], 1656
    %249 = vst [vmem:[%s248] sm:%s4] %v247
    %s250 = smul.addr 4, 206
    %s251 = scalar_lea.vmem %s0, %s250
    %v252 = vld [vmem:[%s251] sm:%s4]
    %s253 = scalar_lea.vmem [#allocation0], 1648
    %254 = vst [vmem:[%s253] sm:%s4] %v252
    %s255 = smul.addr 4, 205
    %s256 = scalar_lea.vmem %s0, %s255
    %v257 = vld [vmem:[%s256] sm:%s4]
    %s258 = scalar_lea.vmem [#allocation0], 1640
    %259 = vst [vmem:[%s258] sm:%s4] %v257
    %s260 = smul.addr 4, 204
    %s261 = scalar_lea.vmem %s0, %s260
    %v262 = vld [vmem:[%s261] sm:%s4]
    %s263 = scalar_lea.vmem [#allocation0], 1632
    %264 = vst [vmem:[%s263] sm:%s4] %v262
    %s265 = smul.addr 4, 203
    %s266 = scalar_lea.vmem %s0, %s265
    %v267 = vld [vmem:[%s266] sm:%s4]
    %s268 = scalar_lea.vmem [#allocation0], 1624
    %269 = vst [vmem:[%s268] sm:%s4] %v267
    %s270 = smul.addr 4, 202
    %s271 = scalar_lea.vmem %s0, %s270
    %v272 = vld [vmem:[%s271] sm:%s4]
    %s273 = scalar_lea.vmem [#allocation0], 1616
    %274 = vst [vmem:[%s273] sm:%s4] %v272
    %s275 = smul.addr 4, 201
    %s276 = scalar_lea.vmem %s0, %s275
    %v277 = vld [vmem:[%s276] sm:%s4]
    %s278 = scalar_lea.vmem [#allocation0], 1608
    %279 = vst [vmem:[%s278] sm:%s4] %v277
    %s280 = smul.addr 4, 200
    %s281 = scalar_lea.vmem %s0, %s280
    %v282 = vld [vmem:[%s281] sm:%s4]
    %s283 = scalar_lea.vmem [#allocation0], 1600
    %284 = vst [vmem:[%s283] sm:%s4] %v282
    %s285 = smul.addr 4, 199
    %s286 = scalar_lea.vmem %s0, %s285
    %v287 = vld [vmem:[%s286] sm:%s4]
    %s288 = scalar_lea.vmem [#allocation0], 1592
    %289 = vst [vmem:[%s288] sm:%s4] %v287
    %s290 = smul.addr 4, 198
    %s291 = scalar_lea.vmem %s0, %s290
    %v292 = vld [vmem:[%s291] sm:%s4]
    %s293 = scalar_lea.vmem [#allocation0], 1584
    %294 = vst [vmem:[%s293] sm:%s4] %v292
    %s295 = smul.addr 4, 197
    %s296 = scalar_lea.vmem %s0, %s295
    %v297 = vld [vmem:[%s296] sm:%s4]
    %s298 = scalar_lea.vmem [#allocation0], 1576
    %299 = vst [vmem:[%s298] sm:%s4] %v297
    %s300 = smul.addr 4, 196
    %s301 = scalar_lea.vmem %s0, %s300
    %v302 = vld [vmem:[%s301] sm:%s4]
    %s303 = scalar_lea.vmem [#allocation0], 1568
    %304 = vst [vmem:[%s303] sm:%s4] %v302
    %s305 = smul.addr 4, 195
    %s306 = scalar_lea.vmem %s0, %s305
    %v307 = vld [vmem:[%s306] sm:%s4]
    %s308 = scalar_lea.vmem [#allocation0], 1560
    %309 = vst [vmem:[%s308] sm:%s4] %v307
    %s310 = smul.addr 4, 194
    %s311 = scalar_lea.vmem %s0, %s310
    %v312 = vld [vmem:[%s311] sm:%s4]
    %s313 = scalar_lea.vmem [#allocation0], 1552
    %314 = vst [vmem:[%s313] sm:%s4] %v312
    %s315 = smul.addr 4, 193
    %s316 = scalar_lea.vmem %s0, %s315
    %v317 = vld [vmem:[%s316] sm:%s4]
    %s318 = scalar_lea.vmem [#allocation0], 1544
    %319 = vst [vmem:[%s318] sm:%s4] %v317
    %s320 = smul.addr 4, 192
    %s321 = scalar_lea.vmem %s0, %s320
    %v322 = vld [vmem:[%s321] sm:%s4]
    %s323 = scalar_lea.vmem [#allocation0], 1536
    %324 = vst [vmem:[%s323] sm:%s4] %v322
    %s325 = smul.addr 4, 191
    %s326 = scalar_lea.vmem %s0, %s325
    %v327 = vld [vmem:[%s326] sm:%s4]
    %s328 = scalar_lea.vmem [#allocation0], 1528
    %329 = vst [vmem:[%s328] sm:%s4] %v327
    %s330 = smul.addr 4, 190
    %s331 = scalar_lea.vmem %s0, %s330
    %v332 = vld [vmem:[%s331] sm:%s4]
    %s333 = scalar_lea.vmem [#allocation0], 1520
    %334 = vst [vmem:[%s333] sm:%s4] %v332
    %s335 = smul.addr 4, 189
    %s336 = scalar_lea.vmem %s0, %s335
    %v337 = vld [vmem:[%s336] sm:%s4]
    %s338 = scalar_lea.vmem [#allocation0], 1512
    %339 = vst [vmem:[%s338] sm:%s4] %v337
    %s340 = smul.addr 4, 188
    %s341 = scalar_lea.vmem %s0, %s340
    %v342 = vld [vmem:[%s341] sm:%s4]
    %s343 = scalar_lea.vmem [#allocation0], 1504
    %344 = vst [vmem:[%s343] sm:%s4] %v342
    %s345 = smul.addr 4, 187
    %s346 = scalar_lea.vmem %s0, %s345
    %v347 = vld [vmem:[%s346] sm:%s4]
    %s348 = scalar_lea.vmem [#allocation0], 1496
    %349 = vst [vmem:[%s348] sm:%s4] %v347
    %s350 = smul.addr 4, 186
    %s351 = scalar_lea.vmem %s0, %s350
    %v352 = vld [vmem:[%s351] sm:%s4]
    %s353 = scalar_lea.vmem [#allocation0], 1488
    %354 = vst [vmem:[%s353] sm:%s4] %v352
    %s355 = smul.addr 4, 185
    %s356 = scalar_lea.vmem %s0, %s355
    %v357 = vld [vmem:[%s356] sm:%s4]
    %s358 = scalar_lea.vmem [#allocation0], 1480
    %359 = vst [vmem:[%s358] sm:%s4] %v357
    %s360 = smul.addr 4, 184
    %s361 = scalar_lea.vmem %s0, %s360
    %v362 = vld [vmem:[%s361] sm:%s4]
    %s363 = scalar_lea.vmem [#allocation0], 1472
    %364 = vst [vmem:[%s363] sm:%s4] %v362
    %s365 = smul.addr 4, 183
    %s366 = scalar_lea.vmem %s0, %s365
    %v367 = vld [vmem:[%s366] sm:%s4]
    %s368 = scalar_lea.vmem [#allocation0], 1464
    %369 = vst [vmem:[%s368] sm:%s4] %v367
    %s370 = smul.addr 4, 182
    %s371 = scalar_lea.vmem %s0, %s370
    %v372 = vld [vmem:[%s371] sm:%s4]
    %s373 = scalar_lea.vmem [#allocation0], 1456
    %374 = vst [vmem:[%s373] sm:%s4] %v372
    %s375 = smul.addr 4, 181
    %s376 = scalar_lea.vmem %s0, %s375
    %v377 = vld [vmem:[%s376] sm:%s4]
    %s378 = scalar_lea.vmem [#allocation0], 1448
    %379 = vst [vmem:[%s378] sm:%s4] %v377
    %s380 = smul.addr 4, 180
    %s381 = scalar_lea.vmem %s0, %s380
    %v382 = vld [vmem:[%s381] sm:%s4]
    %s383 = scalar_lea.vmem [#allocation0], 1440
    %384 = vst [vmem:[%s383] sm:%s4] %v382
    %s385 = smul.addr 4, 179
    %s386 = scalar_lea.vmem %s0, %s385
    %v387 = vld [vmem:[%s386] sm:%s4]
    %s388 = scalar_lea.vmem [#allocation0], 1432
    %389 = vst [vmem:[%s388] sm:%s4] %v387
    %s390 = smul.addr 4, 178
    %s391 = scalar_lea.vmem %s0, %s390
    %v392 = vld [vmem:[%s391] sm:%s4]
    %s393 = scalar_lea.vmem [#allocation0], 1424
    %394 = vst [vmem:[%s393] sm:%s4] %v392
    %s395 = smul.addr 4, 177
    %s396 = scalar_lea.vmem %s0, %s395
    %v397 = vld [vmem:[%s396] sm:%s4]
    %s398 = scalar_lea.vmem [#allocation0], 1416
    %399 = vst [vmem:[%s398] sm:%s4] %v397
    %s400 = smul.addr 4, 176
    %s401 = scalar_lea.vmem %s0, %s400
    %v402 = vld [vmem:[%s401] sm:%s4]
    %s403 = scalar_lea.vmem [#allocation0], 1408
    %404 = vst [vmem:[%s403] sm:%s4] %v402
    %s405 = smul.addr 4, 175
    %s406 = scalar_lea.vmem %s0, %s405
    %v407 = vld [vmem:[%s406] sm:%s4]
    %s408 = scalar_lea.vmem [#allocation0], 1400
    %409 = vst [vmem:[%s408] sm:%s4] %v407
    %s410 = smul.addr 4, 174
    %s411 = scalar_lea.vmem %s0, %s410
    %v412 = vld [vmem:[%s411] sm:%s4]
    %s413 = scalar_lea.vmem [#allocation0], 1392
    %414 = vst [vmem:[%s413] sm:%s4] %v412
    %s415 = smul.addr 4, 173
    %s416 = scalar_lea.vmem %s0, %s415
    %v417 = vld [vmem:[%s416] sm:%s4]
    %s418 = scalar_lea.vmem [#allocation0], 1384
    %419 = vst [vmem:[%s418] sm:%s4] %v417
    %s420 = smul.addr 4, 172
    %s421 = scalar_lea.vmem %s0, %s420
    %v422 = vld [vmem:[%s421] sm:%s4]
    %s423 = scalar_lea.vmem [#allocation0], 1376
    %424 = vst [vmem:[%s423] sm:%s4] %v422
    %s425 = smul.addr 4, 171
    %s426 = scalar_lea.vmem %s0, %s425
    %v427 = vld [vmem:[%s426] sm:%s4]
    %s428 = scalar_lea.vmem [#allocation0], 1368
    %429 = vst [vmem:[%s428] sm:%s4] %v427
    %s430 = smul.addr 4, 170
    %s431 = scalar_lea.vmem %s0, %s430
    %v432 = vld [vmem:[%s431] sm:%s4]
    %s433 = scalar_lea.vmem [#allocation0], 1360
    %434 = vst [vmem:[%s433] sm:%s4] %v432
    %s435 = smul.addr 4, 169
    %s436 = scalar_lea.vmem %s0, %s435
    %v437 = vld [vmem:[%s436] sm:%s4]
    %s438 = scalar_lea.vmem [#allocation0], 1352
    %439 = vst [vmem:[%s438] sm:%s4] %v437
    %s440 = smul.addr 4, 168
    %s441 = scalar_lea.vmem %s0, %s440
    %v442 = vld [vmem:[%s441] sm:%s4]
    %s443 = scalar_lea.vmem [#allocation0], 1344
    %444 = vst [vmem:[%s443] sm:%s4] %v442
    %s445 = smul.addr 4, 167
    %s446 = scalar_lea.vmem %s0, %s445
    %v447 = vld [vmem:[%s446] sm:%s4]
    %s448 = scalar_lea.vmem [#allocation0], 1336
    %449 = vst [vmem:[%s448] sm:%s4] %v447
    %s450 = smul.addr 4, 166
    %s451 = scalar_lea.vmem %s0, %s450
    %v452 = vld [vmem:[%s451] sm:%s4]
    %s453 = scalar_lea.vmem [#allocation0], 1328
    %454 = vst [vmem:[%s453] sm:%s4] %v452
    %s455 = smul.addr 4, 165
    %s456 = scalar_lea.vmem %s0, %s455
    %v457 = vld [vmem:[%s456] sm:%s4]
    %s458 = scalar_lea.vmem [#allocation0], 1320
    %459 = vst [vmem:[%s458] sm:%s4] %v457
    %s460 = smul.addr 4, 164
    %s461 = scalar_lea.vmem %s0, %s460
    %v462 = vld [vmem:[%s461] sm:%s4]
    %s463 = scalar_lea.vmem [#allocation0], 1312
    %464 = vst [vmem:[%s463] sm:%s4] %v462
    %s465 = smul.addr 4, 163
    %s466 = scalar_lea.vmem %s0, %s465
    %v467 = vld [vmem:[%s466] sm:%s4]
    %s468 = scalar_lea.vmem [#allocation0], 1304
    %469 = vst [vmem:[%s468] sm:%s4] %v467
    %s470 = smul.addr 4, 162
    %s471 = scalar_lea.vmem %s0, %s470
    %v472 = vld [vmem:[%s471] sm:%s4]
    %s473 = scalar_lea.vmem [#allocation0], 1296
    %474 = vst [vmem:[%s473] sm:%s4] %v472
    %s475 = smul.addr 4, 161
    %s476 = scalar_lea.vmem %s0, %s475
    %v477 = vld [vmem:[%s476] sm:%s4]
    %s478 = scalar_lea.vmem [#allocation0], 1288
    %479 = vst [vmem:[%s478] sm:%s4] %v477
    %s480 = smul.addr 4, 160
    %s481 = scalar_lea.vmem %s0, %s480
    %v482 = vld [vmem:[%s481] sm:%s4]
    %s483 = scalar_lea.vmem [#allocation0], 1280
    %484 = vst [vmem:[%s483] sm:%s4] %v482
    %s485 = smul.addr 4, 159
    %s486 = scalar_lea.vmem %s0, %s485
    %v487 = vld [vmem:[%s486] sm:%s4]
    %s488 = scalar_lea.vmem [#allocation0], 1272
    %489 = vst [vmem:[%s488] sm:%s4] %v487
    %s490 = smul.addr 4, 158
    %s491 = scalar_lea.vmem %s0, %s490
    %v492 = vld [vmem:[%s491] sm:%s4]
    %s493 = scalar_lea.vmem [#allocation0], 1264
    %494 = vst [vmem:[%s493] sm:%s4] %v492
    %s495 = smul.addr 4, 157
    %s496 = scalar_lea.vmem %s0, %s495
    %v497 = vld [vmem:[%s496] sm:%s4]
    %s498 = scalar_lea.vmem [#allocation0], 1256
    %499 = vst [vmem:[%s498] sm:%s4] %v497
    %s500 = smul.addr 4, 156
    %s501 = scalar_lea.vmem %s0, %s500
    %v502 = vld [vmem:[%s501] sm:%s4]
    %s503 = scalar_lea.vmem [#allocation0], 1248
    %504 = vst [vmem:[%s503] sm:%s4] %v502
    %s505 = smul.addr 4, 155
    %s506 = scalar_lea.vmem %s0, %s505
    %v507 = vld [vmem:[%s506] sm:%s4]
    %s508 = scalar_lea.vmem [#allocation0], 1240
    %509 = vst [vmem:[%s508] sm:%s4] %v507
    %s510 = smul.addr 4, 154
    %s511 = scalar_lea.vmem %s0, %s510
    %v512 = vld [vmem:[%s511] sm:%s4]
    %s513 = scalar_lea.vmem [#allocation0], 1232
    %514 = vst [vmem:[%s513] sm:%s4] %v512
    %s515 = smul.addr 4, 153
    %s516 = scalar_lea.vmem %s0, %s515
    %v517 = vld [vmem:[%s516] sm:%s4]
    %s518 = scalar_lea.vmem [#allocation0], 1224
    %519 = vst [vmem:[%s518] sm:%s4] %v517
    %s520 = smul.addr 4, 152
    %s521 = scalar_lea.vmem %s0, %s520
    %v522 = vld [vmem:[%s521] sm:%s4]
    %s523 = scalar_lea.vmem [#allocation0], 1216
    %524 = vst [vmem:[%s523] sm:%s4] %v522
    %s525 = smul.addr 4, 151
    %s526 = scalar_lea.vmem %s0, %s525
    %v527 = vld [vmem:[%s526] sm:%s4]
    %s528 = scalar_lea.vmem [#allocation0], 1208
    %529 = vst [vmem:[%s528] sm:%s4] %v527
    %s530 = smul.addr 4, 150
    %s531 = scalar_lea.vmem %s0, %s530
    %v532 = vld [vmem:[%s531] sm:%s4]
    %s533 = scalar_lea.vmem [#allocation0], 1200
    %534 = vst [vmem:[%s533] sm:%s4] %v532
    %s535 = smul.addr 4, 149
    %s536 = scalar_lea.vmem %s0, %s535
    %v537 = vld [vmem:[%s536] sm:%s4]
    %s538 = scalar_lea.vmem [#allocation0], 1192
    %539 = vst [vmem:[%s538] sm:%s4] %v537
    %s540 = smul.addr 4, 148
    %s541 = scalar_lea.vmem %s0, %s540
    %v542 = vld [vmem:[%s541] sm:%s4]
    %s543 = scalar_lea.vmem [#allocation0], 1184
    %544 = vst [vmem:[%s543] sm:%s4] %v542
    %s545 = smul.addr 4, 147
    %s546 = scalar_lea.vmem %s0, %s545
    %v547 = vld [vmem:[%s546] sm:%s4]
    %s548 = scalar_lea.vmem [#allocation0], 1176
    %549 = vst [vmem:[%s548] sm:%s4] %v547
    %s550 = smul.addr 4, 146
    %s551 = scalar_lea.vmem %s0, %s550
    %v552 = vld [vmem:[%s551] sm:%s4]
    %s553 = scalar_lea.vmem [#allocation0], 1168
    %554 = vst [vmem:[%s553] sm:%s4] %v552
    %s555 = smul.addr 4, 145
    %s556 = scalar_lea.vmem %s0, %s555
    %v557 = vld [vmem:[%s556] sm:%s4]
    %s558 = scalar_lea.vmem [#allocation0], 1160
    %559 = vst [vmem:[%s558] sm:%s4] %v557
    %s560 = smul.addr 4, 144
    %s561 = scalar_lea.vmem %s0, %s560
    %v562 = vld [vmem:[%s561] sm:%s4]
    %s563 = scalar_lea.vmem [#allocation0], 1152
    %564 = vst [vmem:[%s563] sm:%s4] %v562
    %s565 = smul.addr 4, 143
    %s566 = scalar_lea.vmem %s0, %s565
    %v567 = vld [vmem:[%s566] sm:%s4]
    %s568 = scalar_lea.vmem [#allocation0], 1144
    %569 = vst [vmem:[%s568] sm:%s4] %v567
    %s570 = smul.addr 4, 142
    %s571 = scalar_lea.vmem %s0, %s570
    %v572 = vld [vmem:[%s571] sm:%s4]
    %s573 = scalar_lea.vmem [#allocation0], 1136
    %574 = vst [vmem:[%s573] sm:%s4] %v572
    %s575 = smul.addr 4, 141
    %s576 = scalar_lea.vmem %s0, %s575
    %v577 = vld [vmem:[%s576] sm:%s4]
    %s578 = scalar_lea.vmem [#allocation0], 1128
    %579 = vst [vmem:[%s578] sm:%s4] %v577
    %s580 = smul.addr 4, 140
    %s581 = scalar_lea.vmem %s0, %s580
    %v582 = vld [vmem:[%s581] sm:%s4]
    %s583 = scalar_lea.vmem [#allocation0], 1120
    %584 = vst [vmem:[%s583] sm:%s4] %v582
    %s585 = smul.addr 4, 139
    %s586 = scalar_lea.vmem %s0, %s585
    %v587 = vld [vmem:[%s586] sm:%s4]
    %s588 = scalar_lea.vmem [#allocation0], 1112
    %589 = vst [vmem:[%s588] sm:%s4] %v587
    %s590 = smul.addr 4, 138
    %s591 = scalar_lea.vmem %s0, %s590
    %v592 = vld [vmem:[%s591] sm:%s4]
    %s593 = scalar_lea.vmem [#allocation0], 1104
    %594 = vst [vmem:[%s593] sm:%s4] %v592
    %s595 = smul.addr 4, 137
    %s596 = scalar_lea.vmem %s0, %s595
    %v597 = vld [vmem:[%s596] sm:%s4]
    %s598 = scalar_lea.vmem [#allocation0], 1096
    %599 = vst [vmem:[%s598] sm:%s4] %v597
    %s600 = smul.addr 4, 136
    %s601 = scalar_lea.vmem %s0, %s600
    %v602 = vld [vmem:[%s601] sm:%s4]
    %s603 = scalar_lea.vmem [#allocation0], 1088
    %604 = vst [vmem:[%s603] sm:%s4] %v602
    %s605 = smul.addr 4, 135
    %s606 = scalar_lea.vmem %s0, %s605
    %v607 = vld [vmem:[%s606] sm:%s4]
    %s608 = scalar_lea.vmem [#allocation0], 1080
    %609 = vst [vmem:[%s608] sm:%s4] %v607
    %s610 = smul.addr 4, 134
    %s611 = scalar_lea.vmem %s0, %s610
    %v612 = vld [vmem:[%s611] sm:%s4]
    %s613 = scalar_lea.vmem [#allocation0], 1072
    %614 = vst [vmem:[%s613] sm:%s4] %v612
    %s615 = smul.addr 4, 133
    %s616 = scalar_lea.vmem %s0, %s615
    %v617 = vld [vmem:[%s616] sm:%s4]
    %s618 = scalar_lea.vmem [#allocation0], 1064
    %619 = vst [vmem:[%s618] sm:%s4] %v617
    %s620 = smul.addr 4, 132
    %s621 = scalar_lea.vmem %s0, %s620
    %v622 = vld [vmem:[%s621] sm:%s4]
    %s623 = scalar_lea.vmem [#allocation0], 1056
    %624 = vst [vmem:[%s623] sm:%s4] %v622
    %s625 = smul.addr 4, 131
    %s626 = scalar_lea.vmem %s0, %s625
    %v627 = vld [vmem:[%s626] sm:%s4]
    %s628 = scalar_lea.vmem [#allocation0], 1048
    %629 = vst [vmem:[%s628] sm:%s4] %v627
    %s630 = smul.addr 4, 130
    %s631 = scalar_lea.vmem %s0, %s630
    %v632 = vld [vmem:[%s631] sm:%s4]
    %s633 = scalar_lea.vmem [#allocation0], 1040
    %634 = vst [vmem:[%s633] sm:%s4] %v632
    %s635 = smul.addr 4, 129
    %s636 = scalar_lea.vmem %s0, %s635
    %v637 = vld [vmem:[%s636] sm:%s4]
    %s638 = scalar_lea.vmem [#allocation0], 1032
    %639 = vst [vmem:[%s638] sm:%s4] %v637
    %s640 = smul.addr 4, 128
    %s641 = scalar_lea.vmem %s0, %s640
    %v642 = vld [vmem:[%s641] sm:%s4]
    %s643 = scalar_lea.vmem [#allocation0], 1024
    %644 = vst [vmem:[%s643] sm:%s4] %v642
    %s645 = smul.addr 4, 127
    %s646 = scalar_lea.vmem %s0, %s645
    %v647 = vld [vmem:[%s646] sm:%s4]
    %s648 = scalar_lea.vmem [#allocation0], 1016
    %649 = vst [vmem:[%s648] sm:%s4] %v647
    %s650 = smul.addr 4, 126
    %s651 = scalar_lea.vmem %s0, %s650
    %v652 = vld [vmem:[%s651] sm:%s4]
    %s653 = scalar_lea.vmem [#allocation0], 1008
    %654 = vst [vmem:[%s653] sm:%s4] %v652
    %s655 = smul.addr 4, 125
    %s656 = scalar_lea.vmem %s0, %s655
    %v657 = vld [vmem:[%s656] sm:%s4]
    %s658 = scalar_lea.vmem [#allocation0], 1000
    %659 = vst [vmem:[%s658] sm:%s4] %v657
    %s660 = smul.addr 4, 124
    %s661 = scalar_lea.vmem %s0, %s660
    %v662 = vld [vmem:[%s661] sm:%s4]
    %s663 = scalar_lea.vmem [#allocation0], 992
    %664 = vst [vmem:[%s663] sm:%s4] %v662
    %s665 = smul.addr 4, 123
    %s666 = scalar_lea.vmem %s0, %s665
    %v667 = vld [vmem:[%s666] sm:%s4]
    %s668 = scalar_lea.vmem [#allocation0], 984
    %669 = vst [vmem:[%s668] sm:%s4] %v667
    %s670 = smul.addr 4, 122
    %s671 = scalar_lea.vmem %s0, %s670
    %v672 = vld [vmem:[%s671] sm:%s4]
    %s673 = scalar_lea.vmem [#allocation0], 976
    %674 = vst [vmem:[%s673] sm:%s4] %v672
    %s675 = smul.addr 4, 121
    %s676 = scalar_lea.vmem %s0, %s675
    %v677 = vld [vmem:[%s676] sm:%s4]
    %s678 = scalar_lea.vmem [#allocation0], 968
    %679 = vst [vmem:[%s678] sm:%s4] %v677
    %s680 = smul.addr 4, 120
    %s681 = scalar_lea.vmem %s0, %s680
    %v682 = vld [vmem:[%s681] sm:%s4]
    %s683 = scalar_lea.vmem [#allocation0], 960
    %684 = vst [vmem:[%s683] sm:%s4] %v682
    %s685 = smul.addr 4, 119
    %s686 = scalar_lea.vmem %s0, %s685
    %v687 = vld [vmem:[%s686] sm:%s4]
    %s688 = scalar_lea.vmem [#allocation0], 952
    %689 = vst [vmem:[%s688] sm:%s4] %v687
    %s690 = smul.addr 4, 118
    %s691 = scalar_lea.vmem %s0, %s690
    %v692 = vld [vmem:[%s691] sm:%s4]
    %s693 = scalar_lea.vmem [#allocation0], 944
    %694 = vst [vmem:[%s693] sm:%s4] %v692
    %s695 = smul.addr 4, 117
    %s696 = scalar_lea.vmem %s0, %s695
    %v697 = vld [vmem:[%s696] sm:%s4]
    %s698 = scalar_lea.vmem [#allocation0], 936
    %699 = vst [vmem:[%s698] sm:%s4] %v697
    %s700 = smul.addr 4, 116
    %s701 = scalar_lea.vmem %s0, %s700
    %v702 = vld [vmem:[%s701] sm:%s4]
    %s703 = scalar_lea.vmem [#allocation0], 928
    %704 = vst [vmem:[%s703] sm:%s4] %v702
    %s705 = smul.addr 4, 115
    %s706 = scalar_lea.vmem %s0, %s705
    %v707 = vld [vmem:[%s706] sm:%s4]
    %s708 = scalar_lea.vmem [#allocation0], 920
    %709 = vst [vmem:[%s708] sm:%s4] %v707
    %s710 = smul.addr 4, 114
    %s711 = scalar_lea.vmem %s0, %s710
    %v712 = vld [vmem:[%s711] sm:%s4]
    %s713 = scalar_lea.vmem [#allocation0], 912
    %714 = vst [vmem:[%s713] sm:%s4] %v712
    %s715 = smul.addr 4, 113
    %s716 = scalar_lea.vmem %s0, %s715
    %v717 = vld [vmem:[%s716] sm:%s4]
    %s718 = scalar_lea.vmem [#allocation0], 904
    %719 = vst [vmem:[%s718] sm:%s4] %v717
    %s720 = smul.addr 4, 112
    %s721 = scalar_lea.vmem %s0, %s720
    %v722 = vld [vmem:[%s721] sm:%s4]
    %s723 = scalar_lea.vmem [#allocation0], 896
    %724 = vst [vmem:[%s723] sm:%s4] %v722
    %s725 = smul.addr 4, 111
    %s726 = scalar_lea.vmem %s0, %s725
    %v727 = vld [vmem:[%s726] sm:%s4]
    %s728 = scalar_lea.vmem [#allocation0], 888
    %729 = vst [vmem:[%s728] sm:%s4] %v727
    %s730 = smul.addr 4, 110
    %s731 = scalar_lea.vmem %s0, %s730
    %v732 = vld [vmem:[%s731] sm:%s4]
    %s733 = scalar_lea.vmem [#allocation0], 880
    %734 = vst [vmem:[%s733] sm:%s4] %v732
    %s735 = smul.addr 4, 109
    %s736 = scalar_lea.vmem %s0, %s735
    %v737 = vld [vmem:[%s736] sm:%s4]
    %s738 = scalar_lea.vmem [#allocation0], 872
    %739 = vst [vmem:[%s738] sm:%s4] %v737
    %s740 = smul.addr 4, 108
    %s741 = scalar_lea.vmem %s0, %s740
    %v742 = vld [vmem:[%s741] sm:%s4]
    %s743 = scalar_lea.vmem [#allocation0], 864
    %744 = vst [vmem:[%s743] sm:%s4] %v742
    %s745 = smul.addr 4, 107
    %s746 = scalar_lea.vmem %s0, %s745
    %v747 = vld [vmem:[%s746] sm:%s4]
    %s748 = scalar_lea.vmem [#allocation0], 856
    %749 = vst [vmem:[%s748] sm:%s4] %v747
    %s750 = smul.addr 4, 106
    %s751 = scalar_lea.vmem %s0, %s750
    %v752 = vld [vmem:[%s751] sm:%s4]
    %s753 = scalar_lea.vmem [#allocation0], 848
    %754 = vst [vmem:[%s753] sm:%s4] %v752
    %s755 = smul.addr 4, 105
    %s756 = scalar_lea.vmem %s0, %s755
    %v757 = vld [vmem:[%s756] sm:%s4]
    %s758 = scalar_lea.vmem [#allocation0], 840
    %759 = vst [vmem:[%s758] sm:%s4] %v757
    %s760 = smul.addr 4, 104
    %s761 = scalar_lea.vmem %s0, %s760
    %v762 = vld [vmem:[%s761] sm:%s4]
    %s763 = scalar_lea.vmem [#allocation0], 832
    %764 = vst [vmem:[%s763] sm:%s4] %v762
    %s765 = smul.addr 4, 103
    %s766 = scalar_lea.vmem %s0, %s765
    %v767 = vld [vmem:[%s766] sm:%s4]
    %s768 = scalar_lea.vmem [#allocation0], 824
    %769 = vst [vmem:[%s768] sm:%s4] %v767
    %s770 = smul.addr 4, 102
    %s771 = scalar_lea.vmem %s0, %s770
    %v772 = vld [vmem:[%s771] sm:%s4]
    %s773 = scalar_lea.vmem [#allocation0], 816
    %774 = vst [vmem:[%s773] sm:%s4] %v772
    %s775 = smul.addr 4, 101
    %s776 = scalar_lea.vmem %s0, %s775
    %v777 = vld [vmem:[%s776] sm:%s4]
    %s778 = scalar_lea.vmem [#allocation0], 808
    %779 = vst [vmem:[%s778] sm:%s4] %v777
    %s780 = smul.addr 4, 100
    %s781 = scalar_lea.vmem %s0, %s780
    %v782 = vld [vmem:[%s781] sm:%s4]
    %s783 = scalar_lea.vmem [#allocation0], 800
    %784 = vst [vmem:[%s783] sm:%s4] %v782
    %s785 = smul.addr 4, 99
    %s786 = scalar_lea.vmem %s0, %s785
    %v787 = vld [vmem:[%s786] sm:%s4]
    %s788 = scalar_lea.vmem [#allocation0], 792
    %789 = vst [vmem:[%s788] sm:%s4] %v787
    %s790 = smul.addr 4, 98
    %s791 = scalar_lea.vmem %s0, %s790
    %v792 = vld [vmem:[%s791] sm:%s4]
    %s793 = scalar_lea.vmem [#allocation0], 784
    %794 = vst [vmem:[%s793] sm:%s4] %v792
    %s795 = smul.addr 4, 97
    %s796 = scalar_lea.vmem %s0, %s795
    %v797 = vld [vmem:[%s796] sm:%s4]
    %s798 = scalar_lea.vmem [#allocation0], 776
    %799 = vst [vmem:[%s798] sm:%s4] %v797
    %s800 = smul.addr 4, 96
    %s801 = scalar_lea.vmem %s0, %s800
    %v802 = vld [vmem:[%s801] sm:%s4]
    %s803 = scalar_lea.vmem [#allocation0], 768
    %804 = vst [vmem:[%s803] sm:%s4] %v802
    %s805 = smul.addr 4, 95
    %s806 = scalar_lea.vmem %s0, %s805
    %v807 = vld [vmem:[%s806] sm:%s4]
    %s808 = scalar_lea.vmem [#allocation0], 760
    %809 = vst [vmem:[%s808] sm:%s4] %v807
    %s810 = smul.addr 4, 94
    %s811 = scalar_lea.vmem %s0, %s810
    %v812 = vld [vmem:[%s811] sm:%s4]
    %s813 = scalar_lea.vmem [#allocation0], 752
    %814 = vst [vmem:[%s813] sm:%s4] %v812
    %s815 = smul.addr 4, 93
    %s816 = scalar_lea.vmem %s0, %s815
    %v817 = vld [vmem:[%s816] sm:%s4]
    %s818 = scalar_lea.vmem [#allocation0], 744
    %819 = vst [vmem:[%s818] sm:%s4] %v817
    %s820 = smul.addr 4, 92
    %s821 = scalar_lea.vmem %s0, %s820
    %v822 = vld [vmem:[%s821] sm:%s4]
    %s823 = scalar_lea.vmem [#allocation0], 736
    %824 = vst [vmem:[%s823] sm:%s4] %v822
    %s825 = smul.addr 4, 91
    %s826 = scalar_lea.vmem %s0, %s825
    %v827 = vld [vmem:[%s826] sm:%s4]
    %s828 = scalar_lea.vmem [#allocation0], 728
    %829 = vst [vmem:[%s828] sm:%s4] %v827
    %s830 = smul.addr 4, 90
    %s831 = scalar_lea.vmem %s0, %s830
    %v832 = vld [vmem:[%s831] sm:%s4]
    %s833 = scalar_lea.vmem [#allocation0], 720
    %834 = vst [vmem:[%s833] sm:%s4] %v832
    %s835 = smul.addr 4, 89
    %s836 = scalar_lea.vmem %s0, %s835
    %v837 = vld [vmem:[%s836] sm:%s4]
    %s838 = scalar_lea.vmem [#allocation0], 712
    %839 = vst [vmem:[%s838] sm:%s4] %v837
    %s840 = smul.addr 4, 88
    %s841 = scalar_lea.vmem %s0, %s840
    %v842 = vld [vmem:[%s841] sm:%s4]
    %s843 = scalar_lea.vmem [#allocation0], 704
    %844 = vst [vmem:[%s843] sm:%s4] %v842
    %s845 = smul.addr 4, 87
    %s846 = scalar_lea.vmem %s0, %s845
    %v847 = vld [vmem:[%s846] sm:%s4]
    %s848 = scalar_lea.vmem [#allocation0], 696
    %849 = vst [vmem:[%s848] sm:%s4] %v847
    %s850 = smul.addr 4, 86
    %s851 = scalar_lea.vmem %s0, %s850
    %v852 = vld [vmem:[%s851] sm:%s4]
    %s853 = scalar_lea.vmem [#allocation0], 688
    %854 = vst [vmem:[%s853] sm:%s4] %v852
    %s855 = smul.addr 4, 85
    %s856 = scalar_lea.vmem %s0, %s855
    %v857 = vld [vmem:[%s856] sm:%s4]
    %s858 = scalar_lea.vmem [#allocation0], 680
    %859 = vst [vmem:[%s858] sm:%s4] %v857
    %s860 = smul.addr 4, 84
    %s861 = scalar_lea.vmem %s0, %s860
    %v862 = vld [vmem:[%s861] sm:%s4]
    %s863 = scalar_lea.vmem [#allocation0], 672
    %864 = vst [vmem:[%s863] sm:%s4] %v862
    %s865 = smul.addr 4, 83
    %s866 = scalar_lea.vmem %s0, %s865
    %v867 = vld [vmem:[%s866] sm:%s4]
    %s868 = scalar_lea.vmem [#allocation0], 664
    %869 = vst [vmem:[%s868] sm:%s4] %v867
    %s870 = smul.addr 4, 82
    %s871 = scalar_lea.vmem %s0, %s870
    %v872 = vld [vmem:[%s871] sm:%s4]
    %s873 = scalar_lea.vmem [#allocation0], 656
    %874 = vst [vmem:[%s873] sm:%s4] %v872
    %s875 = smul.addr 4, 81
    %s876 = scalar_lea.vmem %s0, %s875
    %v877 = vld [vmem:[%s876] sm:%s4]
    %s878 = scalar_lea.vmem [#allocation0], 648
    %879 = vst [vmem:[%s878] sm:%s4] %v877
    %s880 = smul.addr 4, 80
    %s881 = scalar_lea.vmem %s0, %s880
    %v882 = vld [vmem:[%s881] sm:%s4]
    %s883 = scalar_lea.vmem [#allocation0], 640
    %884 = vst [vmem:[%s883] sm:%s4] %v882
    %s885 = smul.addr 4, 79
    %s886 = scalar_lea.vmem %s0, %s885
    %v887 = vld [vmem:[%s886] sm:%s4]
    %s888 = scalar_lea.vmem [#allocation0], 632
    %889 = vst [vmem:[%s888] sm:%s4] %v887
    %s890 = smul.addr 4, 78
    %s891 = scalar_lea.vmem %s0, %s890
    %v892 = vld [vmem:[%s891] sm:%s4]
    %s893 = scalar_lea.vmem [#allocation0], 624
    %894 = vst [vmem:[%s893] sm:%s4] %v892
    %s895 = smul.addr 4, 77
    %s896 = scalar_lea.vmem %s0, %s895
    %v897 = vld [vmem:[%s896] sm:%s4]
    %s898 = scalar_lea.vmem [#allocation0], 616
    %899 = vst [vmem:[%s898] sm:%s4] %v897
    %s900 = smul.addr 4, 76
    %s901 = scalar_lea.vmem %s0, %s900
    %v902 = vld [vmem:[%s901] sm:%s4]
    %s903 = scalar_lea.vmem [#allocation0], 608
    %904 = vst [vmem:[%s903] sm:%s4] %v902
    %s905 = smul.addr 4, 75
    %s906 = scalar_lea.vmem %s0, %s905
    %v907 = vld [vmem:[%s906] sm:%s4]
    %s908 = scalar_lea.vmem [#allocation0], 600
    %909 = vst [vmem:[%s908] sm:%s4] %v907
    %s910 = smul.addr 4, 74
    %s911 = scalar_lea.vmem %s0, %s910
    %v912 = vld [vmem:[%s911] sm:%s4]
    %s913 = scalar_lea.vmem [#allocation0], 592
    %914 = vst [vmem:[%s913] sm:%s4] %v912
    %s915 = smul.addr 4, 73
    %s916 = scalar_lea.vmem %s0, %s915
    %v917 = vld [vmem:[%s916] sm:%s4]
    %s918 = scalar_lea.vmem [#allocation0], 584
    %919 = vst [vmem:[%s918] sm:%s4] %v917
    %s920 = smul.addr 4, 72
    %s921 = scalar_lea.vmem %s0, %s920
    %v922 = vld [vmem:[%s921] sm:%s4]
    %s923 = scalar_lea.vmem [#allocation0], 576
    %924 = vst [vmem:[%s923] sm:%s4] %v922
    %s925 = smul.addr 4, 71
    %s926 = scalar_lea.vmem %s0, %s925
    %v927 = vld [vmem:[%s926] sm:%s4]
    %s928 = scalar_lea.vmem [#allocation0], 568
    %929 = vst [vmem:[%s928] sm:%s4] %v927
    %s930 = smul.addr 4, 70
    %s931 = scalar_lea.vmem %s0, %s930
    %v932 = vld [vmem:[%s931] sm:%s4]
    %s933 = scalar_lea.vmem [#allocation0], 560
    %934 = vst [vmem:[%s933] sm:%s4] %v932
    %s935 = smul.addr 4, 69
    %s936 = scalar_lea.vmem %s0, %s935
    %v937 = vld [vmem:[%s936] sm:%s4]
    %s938 = scalar_lea.vmem [#allocation0], 552
    %939 = vst [vmem:[%s938] sm:%s4] %v937
    %s940 = smul.addr 4, 68
    %s941 = scalar_lea.vmem %s0, %s940
    %v942 = vld [vmem:[%s941] sm:%s4]
    %s943 = scalar_lea.vmem [#allocation0], 544
    %944 = vst [vmem:[%s943] sm:%s4] %v942
    %s945 = smul.addr 4, 67
    %s946 = scalar_lea.vmem %s0, %s945
    %v947 = vld [vmem:[%s946] sm:%s4]
    %s948 = scalar_lea.vmem [#allocation0], 536
    %949 = vst [vmem:[%s948] sm:%s4] %v947
    %s950 = smul.addr 4, 66
    %s951 = scalar_lea.vmem %s0, %s950
    %v952 = vld [vmem:[%s951] sm:%s4]
    %s953 = scalar_lea.vmem [#allocation0], 528
    %954 = vst [vmem:[%s953] sm:%s4] %v952
    %s955 = smul.addr 4, 65
    %s956 = scalar_lea.vmem %s0, %s955
    %v957 = vld [vmem:[%s956] sm:%s4]
    %s958 = scalar_lea.vmem [#allocation0], 520
    %959 = vst [vmem:[%s958] sm:%s4] %v957
    %s960 = smul.addr 4, 64
    %s961 = scalar_lea.vmem %s0, %s960
    %v962 = vld [vmem:[%s961] sm:%s4]
    %s963 = scalar_lea.vmem [#allocation0], 512
    %964 = vst [vmem:[%s963] sm:%s4] %v962
    %s965 = smul.addr 4, 63
    %s966 = scalar_lea.vmem %s0, %s965
    %v967 = vld [vmem:[%s966] sm:%s4]
    %s968 = scalar_lea.vmem [#allocation0], 504
    %969 = vst [vmem:[%s968] sm:%s4] %v967
    %s970 = smul.addr 4, 62
    %s971 = scalar_lea.vmem %s0, %s970
    %v972 = vld [vmem:[%s971] sm:%s4]
    %s973 = scalar_lea.vmem [#allocation0], 496
    %974 = vst [vmem:[%s973] sm:%s4] %v972
    %s975 = smul.addr 4, 61
    %s976 = scalar_lea.vmem %s0, %s975
    %v977 = vld [vmem:[%s976] sm:%s4]
    %s978 = scalar_lea.vmem [#allocation0], 488
    %979 = vst [vmem:[%s978] sm:%s4] %v977
    %s980 = smul.addr 4, 60
    %s981 = scalar_lea.vmem %s0, %s980
    %v982 = vld [vmem:[%s981] sm:%s4]
    %s983 = scalar_lea.vmem [#allocation0], 480
    %984 = vst [vmem:[%s983] sm:%s4] %v982
    %s985 = smul.addr 4, 59
    %s986 = scalar_lea.vmem %s0, %s985
    %v987 = vld [vmem:[%s986] sm:%s4]
    %s988 = scalar_lea.vmem [#allocation0], 472
    %989 = vst [vmem:[%s988] sm:%s4] %v987
    %s990 = smul.addr 4, 58
    %s991 = scalar_lea.vmem %s0, %s990
    %v992 = vld [vmem:[%s991] sm:%s4]
    %s993 = scalar_lea.vmem [#allocation0], 464
    %994 = vst [vmem:[%s993] sm:%s4] %v992
    %s995 = smul.addr 4, 57
    %s996 = scalar_lea.vmem %s0, %s995
    %v997 = vld [vmem:[%s996] sm:%s4]
    %s998 = scalar_lea.vmem [#allocation0], 456
    %999 = vst [vmem:[%s998] sm:%s4] %v997
    %s1000 = smul.addr 4, 56
    %s1001 = scalar_lea.vmem %s0, %s1000
    %v1002 = vld [vmem:[%s1001] sm:%s4]
    %s1003 = scalar_lea.vmem [#allocation0], 448
    %1004 = vst [vmem:[%s1003] sm:%s4] %v1002
    %s1005 = smul.addr 4, 55
    %s1006 = scalar_lea.vmem %s0, %s1005
    %v1007 = vld [vmem:[%s1006] sm:%s4]
    %s1008 = scalar_lea.vmem [#allocation0], 440
    %1009 = vst [vmem:[%s1008] sm:%s4] %v1007
    %s1010 = smul.addr 4, 54
    %s1011 = scalar_lea.vmem %s0, %s1010
    %v1012 = vld [vmem:[%s1011] sm:%s4]
    %s1013 = scalar_lea.vmem [#allocation0], 432
    %1014 = vst [vmem:[%s1013] sm:%s4] %v1012
    %s1015 = smul.addr 4, 53
    %s1016 = scalar_lea.vmem %s0, %s1015
    %v1017 = vld [vmem:[%s1016] sm:%s4]
    %s1018 = scalar_lea.vmem [#allocation0], 424
    %1019 = vst [vmem:[%s1018] sm:%s4] %v1017
    %s1020 = smul.addr 4, 52
    %s1021 = scalar_lea.vmem %s0, %s1020
    %v1022 = vld [vmem:[%s1021] sm:%s4]
    %s1023 = scalar_lea.vmem [#allocation0], 416
    %1024 = vst [vmem:[%s1023] sm:%s4] %v1022
    %s1025 = smul.addr 4, 51
    %s1026 = scalar_lea.vmem %s0, %s1025
    %v1027 = vld [vmem:[%s1026] sm:%s4]
    %s1028 = scalar_lea.vmem [#allocation0], 408
    %1029 = vst [vmem:[%s1028] sm:%s4] %v1027
    %s1030 = smul.addr 4, 50
    %s1031 = scalar_lea.vmem %s0, %s1030
    %v1032 = vld [vmem:[%s1031] sm:%s4]
    %s1033 = scalar_lea.vmem [#allocation0], 400
    %1034 = vst [vmem:[%s1033] sm:%s4] %v1032
    %s1035 = smul.addr 4, 49
    %s1036 = scalar_lea.vmem %s0, %s1035
    %v1037 = vld [vmem:[%s1036] sm:%s4]
    %s1038 = scalar_lea.vmem [#allocation0], 392
    %1039 = vst [vmem:[%s1038] sm:%s4] %v1037
    %s1040 = smul.addr 4, 48
    %s1041 = scalar_lea.vmem %s0, %s1040
    %v1042 = vld [vmem:[%s1041] sm:%s4]
    %s1043 = scalar_lea.vmem [#allocation0], 384
    %1044 = vst [vmem:[%s1043] sm:%s4] %v1042
    %s1045 = smul.addr 4, 47
    %s1046 = scalar_lea.vmem %s0, %s1045
    %v1047 = vld [vmem:[%s1046] sm:%s4]
    %s1048 = scalar_lea.vmem [#allocation0], 376
    %1049 = vst [vmem:[%s1048] sm:%s4] %v1047
    %s1050 = smul.addr 4, 46
    %s1051 = scalar_lea.vmem %s0, %s1050
    %v1052 = vld [vmem:[%s1051] sm:%s4]
    %s1053 = scalar_lea.vmem [#allocation0], 368
    %1054 = vst [vmem:[%s1053] sm:%s4] %v1052
    %s1055 = smul.addr 4, 45
    %s1056 = scalar_lea.vmem %s0, %s1055
    %v1057 = vld [vmem:[%s1056] sm:%s4]
    %s1058 = scalar_lea.vmem [#allocation0], 360
    %1059 = vst [vmem:[%s1058] sm:%s4] %v1057
    %s1060 = smul.addr 4, 44
    %s1061 = scalar_lea.vmem %s0, %s1060
    %v1062 = vld [vmem:[%s1061] sm:%s4]
    %s1063 = scalar_lea.vmem [#allocation0], 352
    %1064 = vst [vmem:[%s1063] sm:%s4] %v1062
    %s1065 = smul.addr 4, 43
    %s1066 = scalar_lea.vmem %s0, %s1065
    %v1067 = vld [vmem:[%s1066] sm:%s4]
    %s1068 = scalar_lea.vmem [#allocation0], 344
    %1069 = vst [vmem:[%s1068] sm:%s4] %v1067
    %s1070 = smul.addr 4, 42
    %s1071 = scalar_lea.vmem %s0, %s1070
    %v1072 = vld [vmem:[%s1071] sm:%s4]
    %s1073 = scalar_lea.vmem [#allocation0], 336
    %1074 = vst [vmem:[%s1073] sm:%s4] %v1072
    %s1075 = smul.addr 4, 41
    %s1076 = scalar_lea.vmem %s0, %s1075
    %v1077 = vld [vmem:[%s1076] sm:%s4]
    %s1078 = scalar_lea.vmem [#allocation0], 328
    %1079 = vst [vmem:[%s1078] sm:%s4] %v1077
    %s1080 = smul.addr 4, 40
    %s1081 = scalar_lea.vmem %s0, %s1080
    %v1082 = vld [vmem:[%s1081] sm:%s4]
    %s1083 = scalar_lea.vmem [#allocation0], 320
    %1084 = vst [vmem:[%s1083] sm:%s4] %v1082
    %s1085 = smul.addr 4, 39
    %s1086 = scalar_lea.vmem %s0, %s1085
    %v1087 = vld [vmem:[%s1086] sm:%s4]
    %s1088 = scalar_lea.vmem [#allocation0], 312
    %1089 = vst [vmem:[%s1088] sm:%s4] %v1087
    %s1090 = smul.addr 4, 38
    %s1091 = scalar_lea.vmem %s0, %s1090
    %v1092 = vld [vmem:[%s1091] sm:%s4]
    %s1093 = scalar_lea.vmem [#allocation0], 304
    %1094 = vst [vmem:[%s1093] sm:%s4] %v1092
    %s1095 = smul.addr 4, 37
    %s1096 = scalar_lea.vmem %s0, %s1095
    %v1097 = vld [vmem:[%s1096] sm:%s4]
    %s1098 = scalar_lea.vmem [#allocation0], 296
    %1099 = vst [vmem:[%s1098] sm:%s4] %v1097
    %s1100 = smul.addr 4, 36
    %s1101 = scalar_lea.vmem %s0, %s1100
    %v1102 = vld [vmem:[%s1101] sm:%s4]
    %s1103 = scalar_lea.vmem [#allocation0], 288
    %1104 = vst [vmem:[%s1103] sm:%s4] %v1102
    %s1105 = smul.addr 4, 35
    %s1106 = scalar_lea.vmem %s0, %s1105
    %v1107 = vld [vmem:[%s1106] sm:%s4]
    %s1108 = scalar_lea.vmem [#allocation0], 280
    %1109 = vst [vmem:[%s1108] sm:%s4] %v1107
    %s1110 = smul.addr 4, 34
    %s1111 = scalar_lea.vmem %s0, %s1110
    %v1112 = vld [vmem:[%s1111] sm:%s4]
    %s1113 = scalar_lea.vmem [#allocation0], 272
    %1114 = vst [vmem:[%s1113] sm:%s4] %v1112
    %s1115 = smul.addr 4, 33
    %s1116 = scalar_lea.vmem %s0, %s1115
    %v1117 = vld [vmem:[%s1116] sm:%s4]
    %s1118 = scalar_lea.vmem [#allocation0], 264
    %1119 = vst [vmem:[%s1118] sm:%s4] %v1117
    %s1120 = smul.addr 4, 32
    %s1121 = scalar_lea.vmem %s0, %s1120
    %v1122 = vld [vmem:[%s1121] sm:%s4]
    %s1123 = scalar_lea.vmem [#allocation0], 256
    %1124 = vst [vmem:[%s1123] sm:%s4] %v1122
    %s1125 = smul.addr 4, 31
    %s1126 = scalar_lea.vmem %s0, %s1125
    %v1127 = vld [vmem:[%s1126] sm:%s4]
    %s1128 = scalar_lea.vmem [#allocation0], 248
    %1129 = vst [vmem:[%s1128] sm:%s4] %v1127
    %s1130 = smul.addr 4, 30
    %s1131 = scalar_lea.vmem %s0, %s1130
    %v1132 = vld [vmem:[%s1131] sm:%s4]
    %s1133 = scalar_lea.vmem [#allocation0], 240
    %1134 = vst [vmem:[%s1133] sm:%s4] %v1132
    %s1135 = smul.addr 4, 29
    %s1136 = scalar_lea.vmem %s0, %s1135
    %v1137 = vld [vmem:[%s1136] sm:%s4]
    %s1138 = scalar_lea.vmem [#allocation0], 232
    %1139 = vst [vmem:[%s1138] sm:%s4] %v1137
    %s1140 = smul.addr 4, 28
    %s1141 = scalar_lea.vmem %s0, %s1140
    %v1142 = vld [vmem:[%s1141] sm:%s4]
    %s1143 = scalar_lea.vmem [#allocation0], 224
    %1144 = vst [vmem:[%s1143] sm:%s4] %v1142
    %s1145 = smul.addr 4, 27
    %s1146 = scalar_lea.vmem %s0, %s1145
    %v1147 = vld [vmem:[%s1146] sm:%s4]
    %s1148 = scalar_lea.vmem [#allocation0], 216
    %1149 = vst [vmem:[%s1148] sm:%s4] %v1147
    %s1150 = smul.addr 4, 26
    %s1151 = scalar_lea.vmem %s0, %s1150
    %v1152 = vld [vmem:[%s1151] sm:%s4]
    %s1153 = scalar_lea.vmem [#allocation0], 208
    %1154 = vst [vmem:[%s1153] sm:%s4] %v1152
    %s1155 = smul.addr 4, 25
    %s1156 = scalar_lea.vmem %s0, %s1155
    %v1157 = vld [vmem:[%s1156] sm:%s4]
    %s1158 = scalar_lea.vmem [#allocation0], 200
    %1159 = vst [vmem:[%s1158] sm:%s4] %v1157
    %s1160 = smul.addr 4, 24
    %s1161 = scalar_lea.vmem %s0, %s1160
    %v1162 = vld [vmem:[%s1161] sm:%s4]
    %s1163 = scalar_lea.vmem [#allocation0], 192
    %1164 = vst [vmem:[%s1163] sm:%s4] %v1162
    %s1165 = smul.addr 4, 23
    %s1166 = scalar_lea.vmem %s0, %s1165
    %v1167 = vld [vmem:[%s1166] sm:%s4]
    %s1168 = scalar_lea.vmem [#allocation0], 184
    %1169 = vst [vmem:[%s1168] sm:%s4] %v1167
    %s1170 = smul.addr 4, 22
    %s1171 = scalar_lea.vmem %s0, %s1170
    %v1172 = vld [vmem:[%s1171] sm:%s4]
    %s1173 = scalar_lea.vmem [#allocation0], 176
    %1174 = vst [vmem:[%s1173] sm:%s4] %v1172
    %s1175 = smul.addr 4, 21
    %s1176 = scalar_lea.vmem %s0, %s1175
    %v1177 = vld [vmem:[%s1176] sm:%s4]
    %s1178 = scalar_lea.vmem [#allocation0], 168
    %1179 = vst [vmem:[%s1178] sm:%s4] %v1177
    %s1180 = smul.addr 4, 20
    %s1181 = scalar_lea.vmem %s0, %s1180
    %v1182 = vld [vmem:[%s1181] sm:%s4]
    %s1183 = scalar_lea.vmem [#allocation0], 160
    %1184 = vst [vmem:[%s1183] sm:%s4] %v1182
    %s1185 = smul.addr 4, 19
    %s1186 = scalar_lea.vmem %s0, %s1185
    %v1187 = vld [vmem:[%s1186] sm:%s4]
    %s1188 = scalar_lea.vmem [#allocation0], 152
    %1189 = vst [vmem:[%s1188] sm:%s4] %v1187
    %s1190 = smul.addr 4, 18
    %s1191 = scalar_lea.vmem %s0, %s1190
    %v1192 = vld [vmem:[%s1191] sm:%s4]
    %s1193 = scalar_lea.vmem [#allocation0], 144
    %1194 = vst [vmem:[%s1193] sm:%s4] %v1192
    %s1195 = smul.addr 4, 17
    %s1196 = scalar_lea.vmem %s0, %s1195
    %v1197 = vld [vmem:[%s1196] sm:%s4]
    %s1198 = scalar_lea.vmem [#allocation0], 136
    %1199 = vst [vmem:[%s1198] sm:%s4] %v1197
    %s1200 = smul.addr 4, 16
    %s1201 = scalar_lea.vmem %s0, %s1200
    %v1202 = vld [vmem:[%s1201] sm:%s4]
    %s1203 = scalar_lea.vmem [#allocation0], 128
    %1204 = vst [vmem:[%s1203] sm:%s4] %v1202
    %s1205 = smul.addr 4, 15
    %s1206 = scalar_lea.vmem %s0, %s1205
    %v1207 = vld [vmem:[%s1206] sm:%s4]
    %s1208 = scalar_lea.vmem [#allocation0], 120
    %1209 = vst [vmem:[%s1208] sm:%s4] %v1207
    %s1210 = smul.addr 4, 14
    %s1211 = scalar_lea.vmem %s0, %s1210
    %v1212 = vld [vmem:[%s1211] sm:%s4]
    %s1213 = scalar_lea.vmem [#allocation0], 112
    %1214 = vst [vmem:[%s1213] sm:%s4] %v1212
    %s1215 = smul.addr 4, 13
    %s1216 = scalar_lea.vmem %s0, %s1215
    %v1217 = vld [vmem:[%s1216] sm:%s4]
    %s1218 = scalar_lea.vmem [#allocation0], 104
    %1219 = vst [vmem:[%s1218] sm:%s4] %v1217
    %s1220 = smul.addr 4, 12
    %s1221 = scalar_lea.vmem %s0, %s1220
    %v1222 = vld [vmem:[%s1221] sm:%s4]
    %s1223 = scalar_lea.vmem [#allocation0], 96
    %1224 = vst [vmem:[%s1223] sm:%s4] %v1222
    %s1225 = smul.addr 4, 11
    %s1226 = scalar_lea.vmem %s0, %s1225
    %v1227 = vld [vmem:[%s1226] sm:%s4]
    %s1228 = scalar_lea.vmem [#allocation0], 88
    %1229 = vst [vmem:[%s1228] sm:%s4] %v1227
    %s1230 = smul.addr 4, 10
    %s1231 = scalar_lea.vmem %s0, %s1230
    %v1232 = vld [vmem:[%s1231] sm:%s4]
    %s1233 = scalar_lea.vmem [#allocation0], 80
    %1234 = vst [vmem:[%s1233] sm:%s4] %v1232
    %s1235 = smul.addr 4, 9
    %s1236 = scalar_lea.vmem %s0, %s1235
    %v1237 = vld [vmem:[%s1236] sm:%s4]
    %s1238 = scalar_lea.vmem [#allocation0], 72
    %1239 = vst [vmem:[%s1238] sm:%s4] %v1237
    %s1240 = smul.addr 4, 8
    %s1241 = scalar_lea.vmem %s0, %s1240
    %v1242 = vld [vmem:[%s1241] sm:%s4]
    %s1243 = scalar_lea.vmem [#allocation0], 64
    %1244 = vst [vmem:[%s1243] sm:%s4] %v1242
    %s1245 = smul.addr 4, 7
    %s1246 = scalar_lea.vmem %s0, %s1245
    %v1247 = vld [vmem:[%s1246] sm:%s4]
    %s1248 = scalar_lea.vmem [#allocation0], 56
    %1249 = vst [vmem:[%s1248] sm:%s4] %v1247
    %s1250 = smul.addr 4, 6
    %s1251 = scalar_lea.vmem %s0, %s1250
    %v1252 = vld [vmem:[%s1251] sm:%s4]
    %s1253 = scalar_lea.vmem [#allocation0], 48
    %1254 = vst [vmem:[%s1253] sm:%s4] %v1252
    %s1255 = smul.addr 4, 5
    %s1256 = scalar_lea.vmem %s0, %s1255
    %v1257 = vld [vmem:[%s1256] sm:%s4]
    %s1258 = scalar_lea.vmem [#allocation0], 40
    %1259 = vst [vmem:[%s1258] sm:%s4] %v1257
    %s1260 = smul.addr 4, 4
    %s1261 = scalar_lea.vmem %s0, %s1260
    %v1262 = vld [vmem:[%s1261] sm:%s4]
    %s1263 = scalar_lea.vmem [#allocation0], 32
    %1264 = vst [vmem:[%s1263] sm:%s4] %v1262
    %s1265 = smul.addr 4, 3
    %s1266 = scalar_lea.vmem %s0, %s1265
    %v1267 = vld [vmem:[%s1266] sm:%s4]
    %s1268 = scalar_lea.vmem [#allocation0], 24
    %1269 = vst [vmem:[%s1268] sm:%s4] %v1267
    %s1270 = smul.addr 4, 2
    %s1271 = scalar_lea.vmem %s0, %s1270
    %v1272 = vld [vmem:[%s1271] sm:%s4]
    %s1273 = scalar_lea.vmem [#allocation0], 16
    %1274 = vst [vmem:[%s1273] sm:%s4] %v1272
    %s1275 = scalar_lea.vmem %s0, 4
    %v1276 = vld [vmem:[%s1275] sm:%s4]
    %s1277 = scalar_lea.vmem [#allocation0], 8
    %1278 = vst [vmem:[%s1277] sm:%s4] %v1276
    %v1279 = vld [vmem:[%s0] sm:%s4]
    %1280 = vst [vmem:[#allocation0] sm:%s4] %v1279
    %v1281 = vld [vmem:[#allocation0] sm:$0x7]
    %1282 = vst [vmem:[%s1] sm:$0x1] %v1281
    %s1283 = scalar_lea.vmem %s1, 255
    %1284 = vst [vmem:[%s1283] sm:$0x2] %v1281
    %s1285 = scalar_lea.vmem %s1, 510
    %1286 = vst [vmem:[%s1285] sm:$0x4] %v1281
    %s1287 = scalar_lea.vmem [#allocation0], 8
    %v1288 = vld [vmem:[%s1287] sm:$0x7]
    %s1289 = scalar_lea.vmem %s1, 1
    %1290 = vst [vmem:[%s1289] sm:$0x1] %v1288
    %s1291 = scalar_lea.vmem %s1, 256
    %1292 = vst [vmem:[%s1291] sm:$0x2] %v1288
    %s1293 = scalar_lea.vmem %s1, 511
    %1294 = vst [vmem:[%s1293] sm:$0x4] %v1288
    %s1295 = scalar_lea.vmem [#allocation0], 16
    %v1296 = vld [vmem:[%s1295] sm:$0x7]
    %s1297 = scalar_lea.vmem %s1, 2
    %1298 = vst [vmem:[%s1297] sm:$0x1] %v1296
    %s1299 = scalar_lea.vmem %s1, 257
    %1300 = vst [vmem:[%s1299] sm:$0x2] %v1296
    %s1301 = scalar_lea.vmem %s1, 512
    %1302 = vst [vmem:[%s1301] sm:$0x4] %v1296
    %s1303 = scalar_lea.vmem [#allocation0], 24
    %v1304 = vld [vmem:[%s1303] sm:$0x7]
    %s1305 = scalar_lea.vmem %s1, 3
    %1306 = vst [vmem:[%s1305] sm:$0x1] %v1304
    %s1307 = scalar_lea.vmem %s1, 258
    %1308 = vst [vmem:[%s1307] sm:$0x2] %v1304
    %s1309 = scalar_lea.vmem %s1, 513
    %1310 = vst [vmem:[%s1309] sm:$0x4] %v1304
    %s1311 = scalar_lea.vmem [#allocation0], 32
    %v1312 = vld [vmem:[%s1311] sm:$0x7]
    %s1313 = scalar_lea.vmem %s1, 4
    %1314 = vst [vmem:[%s1313] sm:$0x1] %v1312
    %s1315 = scalar_lea.vmem %s1, 259
    %1316 = vst [vmem:[%s1315] sm:$0x2] %v1312
    %s1317 = scalar_lea.vmem %s1, 514
    %1318 = vst [vmem:[%s1317] sm:$0x4] %v1312
    %s1319 = scalar_lea.vmem [#allocation0], 40
    %v1320 = vld [vmem:[%s1319] sm:$0x7]
    %s1321 = scalar_lea.vmem %s1, 5
    %1322 = vst [vmem:[%s1321] sm:$0x1] %v1320
    %s1323 = scalar_lea.vmem %s1, 260
    %1324 = vst [vmem:[%s1323] sm:$0x2] %v1320
    %s1325 = scalar_lea.vmem %s1, 515
    %1326 = vst [vmem:[%s1325] sm:$0x4] %v1320
    %s1327 = scalar_lea.vmem [#allocation0], 48
    %v1328 = vld [vmem:[%s1327] sm:$0x7]
    %s1329 = scalar_lea.vmem %s1, 6
    %1330 = vst [vmem:[%s1329] sm:$0x1] %v1328
    %s1331 = scalar_lea.vmem %s1, 261
    %1332 = vst [vmem:[%s1331] sm:$0x2] %v1328
    %s1333 = scalar_lea.vmem %s1, 516
    %1334 = vst [vmem:[%s1333] sm:$0x4] %v1328
    %s1335 = scalar_lea.vmem [#allocation0], 56
    %v1336 = vld [vmem:[%s1335] sm:$0x7]
    %s1337 = scalar_lea.vmem %s1, 7
    %1338 = vst [vmem:[%s1337] sm:$0x1] %v1336
    %s1339 = scalar_lea.vmem %s1, 262
    %1340 = vst [vmem:[%s1339] sm:$0x2] %v1336
    %s1341 = scalar_lea.vmem %s1, 517
    %1342 = vst [vmem:[%s1341] sm:$0x4] %v1336
    %s1343 = scalar_lea.vmem [#allocation0], 64
    %v1344 = vld [vmem:[%s1343] sm:$0x7]
    %s1345 = scalar_lea.vmem %s1, 8
    %1346 = vst [vmem:[%s1345] sm:$0x1] %v1344
    %s1347 = scalar_lea.vmem %s1, 263
    %1348 = vst [vmem:[%s1347] sm:$0x2] %v1344
    %s1349 = scalar_lea.vmem %s1, 518
    %1350 = vst [vmem:[%s1349] sm:$0x4] %v1344
    %s1351 = scalar_lea.vmem [#allocation0], 72
    %v1352 = vld [vmem:[%s1351] sm:$0x7]
    %s1353 = scalar_lea.vmem %s1, 9
    %1354 = vst [vmem:[%s1353] sm:$0x1] %v1352
    %s1355 = scalar_lea.vmem %s1, 264
    %1356 = vst [vmem:[%s1355] sm:$0x2] %v1352
    %s1357 = scalar_lea.vmem %s1, 519
    %1358 = vst [vmem:[%s1357] sm:$0x4] %v1352
    %s1359 = scalar_lea.vmem [#allocation0], 80
    %v1360 = vld [vmem:[%s1359] sm:$0x7]
    %s1361 = scalar_lea.vmem %s1, 10
    %1362 = vst [vmem:[%s1361] sm:$0x1] %v1360
    %s1363 = scalar_lea.vmem %s1, 265
    %1364 = vst [vmem:[%s1363] sm:$0x2] %v1360
    %s1365 = scalar_lea.vmem %s1, 520
    %1366 = vst [vmem:[%s1365] sm:$0x4] %v1360
    %s1367 = scalar_lea.vmem [#allocation0], 88
    %v1368 = vld [vmem:[%s1367] sm:$0x7]
    %s1369 = scalar_lea.vmem %s1, 11
    %1370 = vst [vmem:[%s1369] sm:$0x1] %v1368
    %s1371 = scalar_lea.vmem %s1, 266
    %1372 = vst [vmem:[%s1371] sm:$0x2] %v1368
    %s1373 = scalar_lea.vmem %s1, 521
    %1374 = vst [vmem:[%s1373] sm:$0x4] %v1368
    %s1375 = scalar_lea.vmem [#allocation0], 96
    %v1376 = vld [vmem:[%s1375] sm:$0x7]
    %s1377 = scalar_lea.vmem %s1, 12
    %1378 = vst [vmem:[%s1377] sm:$0x1] %v1376
    %s1379 = scalar_lea.vmem %s1, 267
    %1380 = vst [vmem:[%s1379] sm:$0x2] %v1376
    %s1381 = scalar_lea.vmem %s1, 522
    %1382 = vst [vmem:[%s1381] sm:$0x4] %v1376
    %s1383 = scalar_lea.vmem [#allocation0], 104
    %v1384 = vld [vmem:[%s1383] sm:$0x7]
    %s1385 = scalar_lea.vmem %s1, 13
    %1386 = vst [vmem:[%s1385] sm:$0x1] %v1384
    %s1387 = scalar_lea.vmem %s1, 268
    %1388 = vst [vmem:[%s1387] sm:$0x2] %v1384
    %s1389 = scalar_lea.vmem %s1, 523
    %1390 = vst [vmem:[%s1389] sm:$0x4] %v1384
    %s1391 = scalar_lea.vmem [#allocation0], 112
    %v1392 = vld [vmem:[%s1391] sm:$0x7]
    %s1393 = scalar_lea.vmem %s1, 14
    %1394 = vst [vmem:[%s1393] sm:$0x1] %v1392
    %s1395 = scalar_lea.vmem %s1, 269
    %1396 = vst [vmem:[%s1395] sm:$0x2] %v1392
    %s1397 = scalar_lea.vmem %s1, 524
    %1398 = vst [vmem:[%s1397] sm:$0x4] %v1392
    %s1399 = scalar_lea.vmem [#allocation0], 120
    %v1400 = vld [vmem:[%s1399] sm:$0x7]
    %s1401 = scalar_lea.vmem %s1, 15
    %1402 = vst [vmem:[%s1401] sm:$0x1] %v1400
    %s1403 = scalar_lea.vmem %s1, 270
    %1404 = vst [vmem:[%s1403] sm:$0x2] %v1400
    %s1405 = scalar_lea.vmem %s1, 525
    %1406 = vst [vmem:[%s1405] sm:$0x4] %v1400
    %s1407 = scalar_lea.vmem [#allocation0], 128
    %v1408 = vld [vmem:[%s1407] sm:$0x7]
    %s1409 = scalar_lea.vmem %s1, 16
    %1410 = vst [vmem:[%s1409] sm:$0x1] %v1408
    %s1411 = scalar_lea.vmem %s1, 271
    %1412 = vst [vmem:[%s1411] sm:$0x2] %v1408
    %s1413 = scalar_lea.vmem %s1, 526
    %1414 = vst [vmem:[%s1413] sm:$0x4] %v1408
    %s1415 = scalar_lea.vmem [#allocation0], 136
    %v1416 = vld [vmem:[%s1415] sm:$0x7]
    %s1417 = scalar_lea.vmem %s1, 17
    %1418 = vst [vmem:[%s1417] sm:$0x1] %v1416
    %s1419 = scalar_lea.vmem %s1, 272
    %1420 = vst [vmem:[%s1419] sm:$0x2] %v1416
    %s1421 = scalar_lea.vmem %s1, 527
    %1422 = vst [vmem:[%s1421] sm:$0x4] %v1416
    %s1423 = scalar_lea.vmem [#allocation0], 144
    %v1424 = vld [vmem:[%s1423] sm:$0x7]
    %s1425 = scalar_lea.vmem %s1, 18
    %1426 = vst [vmem:[%s1425] sm:$0x1] %v1424
    %s1427 = scalar_lea.vmem %s1, 273
    %1428 = vst [vmem:[%s1427] sm:$0x2] %v1424
    %s1429 = scalar_lea.vmem %s1, 528
    %1430 = vst [vmem:[%s1429] sm:$0x4] %v1424
    %s1431 = scalar_lea.vmem [#allocation0], 152
    %v1432 = vld [vmem:[%s1431] sm:$0x7]
    %s1433 = scalar_lea.vmem %s1, 19
    %1434 = vst [vmem:[%s1433] sm:$0x1] %v1432
    %s1435 = scalar_lea.vmem %s1, 274
    %1436 = vst [vmem:[%s1435] sm:$0x2] %v1432
    %s1437 = scalar_lea.vmem %s1, 529
    %1438 = vst [vmem:[%s1437] sm:$0x4] %v1432
    %s1439 = scalar_lea.vmem [#allocation0], 160
    %v1440 = vld [vmem:[%s1439] sm:$0x7]
    %s1441 = scalar_lea.vmem %s1, 20
    %1442 = vst [vmem:[%s1441] sm:$0x1] %v1440
    %s1443 = scalar_lea.vmem %s1, 275
    %1444 = vst [vmem:[%s1443] sm:$0x2] %v1440
    %s1445 = scalar_lea.vmem %s1, 530
    %1446 = vst [vmem:[%s1445] sm:$0x4] %v1440
    %s1447 = scalar_lea.vmem [#allocation0], 168
    %v1448 = vld [vmem:[%s1447] sm:$0x7]
    %s1449 = scalar_lea.vmem %s1, 21
    %1450 = vst [vmem:[%s1449] sm:$0x1] %v1448
    %s1451 = scalar_lea.vmem %s1, 276
    %1452 = vst [vmem:[%s1451] sm:$0x2] %v1448
    %s1453 = scalar_lea.vmem %s1, 531
    %1454 = vst [vmem:[%s1453] sm:$0x4] %v1448
    %s1455 = scalar_lea.vmem [#allocation0], 176
    %v1456 = vld [vmem:[%s1455] sm:$0x7]
    %s1457 = scalar_lea.vmem %s1, 22
    %1458 = vst [vmem:[%s1457] sm:$0x1] %v1456
    %s1459 = scalar_lea.vmem %s1, 277
    %1460 = vst [vmem:[%s1459] sm:$0x2] %v1456
    %s1461 = scalar_lea.vmem %s1, 532
    %1462 = vst [vmem:[%s1461] sm:$0x4] %v1456
    %s1463 = scalar_lea.vmem [#allocation0], 184
    %v1464 = vld [vmem:[%s1463] sm:$0x7]
    %s1465 = scalar_lea.vmem %s1, 23
    %1466 = vst [vmem:[%s1465] sm:$0x1] %v1464
    %s1467 = scalar_lea.vmem %s1, 278
    %1468 = vst [vmem:[%s1467] sm:$0x2] %v1464
    %s1469 = scalar_lea.vmem %s1, 533
    %1470 = vst [vmem:[%s1469] sm:$0x4] %v1464
    %s1471 = scalar_lea.vmem [#allocation0], 192
    %v1472 = vld [vmem:[%s1471] sm:$0x7]
    %s1473 = scalar_lea.vmem %s1, 24
    %1474 = vst [vmem:[%s1473] sm:$0x1] %v1472
    %s1475 = scalar_lea.vmem %s1, 279
    %1476 = vst [vmem:[%s1475] sm:$0x2] %v1472
    %s1477 = scalar_lea.vmem %s1, 534
    %1478 = vst [vmem:[%s1477] sm:$0x4] %v1472
    %s1479 = scalar_lea.vmem [#allocation0], 200
    %v1480 = vld [vmem:[%s1479] sm:$0x7]
    %s1481 = scalar_lea.vmem %s1, 25
    %1482 = vst [vmem:[%s1481] sm:$0x1] %v1480
    %s1483 = scalar_lea.vmem %s1, 280
    %1484 = vst [vmem:[%s1483] sm:$0x2] %v1480
    %s1485 = scalar_lea.vmem %s1, 535
    %1486 = vst [vmem:[%s1485] sm:$0x4] %v1480
    %s1487 = scalar_lea.vmem [#allocation0], 208
    %v1488 = vld [vmem:[%s1487] sm:$0x7]
    %s1489 = scalar_lea.vmem %s1, 26
    %1490 = vst [vmem:[%s1489] sm:$0x1] %v1488
    %s1491 = scalar_lea.vmem %s1, 281
    %1492 = vst [vmem:[%s1491] sm:$0x2] %v1488
    %s1493 = scalar_lea.vmem %s1, 536
    %1494 = vst [vmem:[%s1493] sm:$0x4] %v1488
    %s1495 = scalar_lea.vmem [#allocation0], 216
    %v1496 = vld [vmem:[%s1495] sm:$0x7]
    %s1497 = scalar_lea.vmem %s1, 27
    %1498 = vst [vmem:[%s1497] sm:$0x1] %v1496
    %s1499 = scalar_lea.vmem %s1, 282
    %1500 = vst [vmem:[%s1499] sm:$0x2] %v1496
    %s1501 = scalar_lea.vmem %s1, 537
    %1502 = vst [vmem:[%s1501] sm:$0x4] %v1496
    %s1503 = scalar_lea.vmem [#allocation0], 224
    %v1504 = vld [vmem:[%s1503] sm:$0x7]
    %s1505 = scalar_lea.vmem %s1, 28
    %1506 = vst [vmem:[%s1505] sm:$0x1] %v1504
    %s1507 = scalar_lea.vmem %s1, 283
    %1508 = vst [vmem:[%s1507] sm:$0x2] %v1504
    %s1509 = scalar_lea.vmem %s1, 538
    %1510 = vst [vmem:[%s1509] sm:$0x4] %v1504
    %s1511 = scalar_lea.vmem [#allocation0], 232
    %v1512 = vld [vmem:[%s1511] sm:$0x7]
    %s1513 = scalar_lea.vmem %s1, 29
    %1514 = vst [vmem:[%s1513] sm:$0x1] %v1512
    %s1515 = scalar_lea.vmem %s1, 284
    %1516 = vst [vmem:[%s1515] sm:$0x2] %v1512
    %s1517 = scalar_lea.vmem %s1, 539
    %1518 = vst [vmem:[%s1517] sm:$0x4] %v1512
    %s1519 = scalar_lea.vmem [#allocation0], 240
    %v1520 = vld [vmem:[%s1519] sm:$0x7]
    %s1521 = scalar_lea.vmem %s1, 30
    %1522 = vst [vmem:[%s1521] sm:$0x1] %v1520
    %s1523 = scalar_lea.vmem %s1, 285
    %1524 = vst [vmem:[%s1523] sm:$0x2] %v1520
    %s1525 = scalar_lea.vmem %s1, 540
    %1526 = vst [vmem:[%s1525] sm:$0x4] %v1520
    %s1527 = scalar_lea.vmem [#allocation0], 248
    %v1528 = vld [vmem:[%s1527] sm:$0x7]
    %s1529 = scalar_lea.vmem %s1, 31
    %1530 = vst [vmem:[%s1529] sm:$0x1] %v1528
    %s1531 = scalar_lea.vmem %s1, 286
    %1532 = vst [vmem:[%s1531] sm:$0x2] %v1528
    %s1533 = scalar_lea.vmem %s1, 541
    %1534 = vst [vmem:[%s1533] sm:$0x4] %v1528
    %s1535 = scalar_lea.vmem [#allocation0], 256
    %v1536 = vld [vmem:[%s1535] sm:$0x7]
    %s1537 = scalar_lea.vmem %s1, 32
    %1538 = vst [vmem:[%s1537] sm:$0x1] %v1536
    %s1539 = scalar_lea.vmem %s1, 287
    %1540 = vst [vmem:[%s1539] sm:$0x2] %v1536
    %s1541 = scalar_lea.vmem %s1, 542
    %1542 = vst [vmem:[%s1541] sm:$0x4] %v1536
    %s1543 = scalar_lea.vmem [#allocation0], 264
    %v1544 = vld [vmem:[%s1543] sm:$0x7]
    %s1545 = scalar_lea.vmem %s1, 33
    %1546 = vst [vmem:[%s1545] sm:$0x1] %v1544
    %s1547 = scalar_lea.vmem %s1, 288
    %1548 = vst [vmem:[%s1547] sm:$0x2] %v1544
    %s1549 = scalar_lea.vmem %s1, 543
    %1550 = vst [vmem:[%s1549] sm:$0x4] %v1544
    %s1551 = scalar_lea.vmem [#allocation0], 272
    %v1552 = vld [vmem:[%s1551] sm:$0x7]
    %s1553 = scalar_lea.vmem %s1, 34
    %1554 = vst [vmem:[%s1553] sm:$0x1] %v1552
    %s1555 = scalar_lea.vmem %s1, 289
    %1556 = vst [vmem:[%s1555] sm:$0x2] %v1552
    %s1557 = scalar_lea.vmem %s1, 544
    %1558 = vst [vmem:[%s1557] sm:$0x4] %v1552
    %s1559 = scalar_lea.vmem [#allocation0], 280
    %v1560 = vld [vmem:[%s1559] sm:$0x7]
    %s1561 = scalar_lea.vmem %s1, 35
    %1562 = vst [vmem:[%s1561] sm:$0x1] %v1560
    %s1563 = scalar_lea.vmem %s1, 290
    %1564 = vst [vmem:[%s1563] sm:$0x2] %v1560
    %s1565 = scalar_lea.vmem %s1, 545
    %1566 = vst [vmem:[%s1565] sm:$0x4] %v1560
    %s1567 = scalar_lea.vmem [#allocation0], 288
    %v1568 = vld [vmem:[%s1567] sm:$0x7]
    %s1569 = scalar_lea.vmem %s1, 36
    %1570 = vst [vmem:[%s1569] sm:$0x1] %v1568
    %s1571 = scalar_lea.vmem %s1, 291
    %1572 = vst [vmem:[%s1571] sm:$0x2] %v1568
    %s1573 = scalar_lea.vmem %s1, 546
    %1574 = vst [vmem:[%s1573] sm:$0x4] %v1568
    %s1575 = scalar_lea.vmem [#allocation0], 296
    %v1576 = vld [vmem:[%s1575] sm:$0x7]
    %s1577 = scalar_lea.vmem %s1, 37
    %1578 = vst [vmem:[%s1577] sm:$0x1] %v1576
    %s1579 = scalar_lea.vmem %s1, 292
    %1580 = vst [vmem:[%s1579] sm:$0x2] %v1576
    %s1581 = scalar_lea.vmem %s1, 547
    %1582 = vst [vmem:[%s1581] sm:$0x4] %v1576
    %s1583 = scalar_lea.vmem [#allocation0], 304
    %v1584 = vld [vmem:[%s1583] sm:$0x7]
    %s1585 = scalar_lea.vmem %s1, 38
    %1586 = vst [vmem:[%s1585] sm:$0x1] %v1584
    %s1587 = scalar_lea.vmem %s1, 293
    %1588 = vst [vmem:[%s1587] sm:$0x2] %v1584
    %s1589 = scalar_lea.vmem %s1, 548
    %1590 = vst [vmem:[%s1589] sm:$0x4] %v1584
    %s1591 = scalar_lea.vmem [#allocation0], 312
    %v1592 = vld [vmem:[%s1591] sm:$0x7]
    %s1593 = scalar_lea.vmem %s1, 39
    %1594 = vst [vmem:[%s1593] sm:$0x1] %v1592
    %s1595 = scalar_lea.vmem %s1, 294
    %1596 = vst [vmem:[%s1595] sm:$0x2] %v1592
    %s1597 = scalar_lea.vmem %s1, 549
    %1598 = vst [vmem:[%s1597] sm:$0x4] %v1592
    %s1599 = scalar_lea.vmem [#allocation0], 320
    %v1600 = vld [vmem:[%s1599] sm:$0x7]
    %s1601 = scalar_lea.vmem %s1, 40
    %1602 = vst [vmem:[%s1601] sm:$0x1] %v1600
    %s1603 = scalar_lea.vmem %s1, 295
    %1604 = vst [vmem:[%s1603] sm:$0x2] %v1600
    %s1605 = scalar_lea.vmem %s1, 550
    %1606 = vst [vmem:[%s1605] sm:$0x4] %v1600
    %s1607 = scalar_lea.vmem [#allocation0], 328
    %v1608 = vld [vmem:[%s1607] sm:$0x7]
    %s1609 = scalar_lea.vmem %s1, 41
    %1610 = vst [vmem:[%s1609] sm:$0x1] %v1608
    %s1611 = scalar_lea.vmem %s1, 296
    %1612 = vst [vmem:[%s1611] sm:$0x2] %v1608
    %s1613 = scalar_lea.vmem %s1, 551
    %1614 = vst [vmem:[%s1613] sm:$0x4] %v1608
    %s1615 = scalar_lea.vmem [#allocation0], 336
    %v1616 = vld [vmem:[%s1615] sm:$0x7]
    %s1617 = scalar_lea.vmem %s1, 42
    %1618 = vst [vmem:[%s1617] sm:$0x1] %v1616
    %s1619 = scalar_lea.vmem %s1, 297
    %1620 = vst [vmem:[%s1619] sm:$0x2] %v1616
    %s1621 = scalar_lea.vmem %s1, 552
    %1622 = vst [vmem:[%s1621] sm:$0x4] %v1616
    %s1623 = scalar_lea.vmem [#allocation0], 344
    %v1624 = vld [vmem:[%s1623] sm:$0x7]
    %s1625 = scalar_lea.vmem %s1, 43
    %1626 = vst [vmem:[%s1625] sm:$0x1] %v1624
    %s1627 = scalar_lea.vmem %s1, 298
    %1628 = vst [vmem:[%s1627] sm:$0x2] %v1624
    %s1629 = scalar_lea.vmem %s1, 553
    %1630 = vst [vmem:[%s1629] sm:$0x4] %v1624
    %s1631 = scalar_lea.vmem [#allocation0], 352
    %v1632 = vld [vmem:[%s1631] sm:$0x7]
    %s1633 = scalar_lea.vmem %s1, 44
    %1634 = vst [vmem:[%s1633] sm:$0x1] %v1632
    %s1635 = scalar_lea.vmem %s1, 299
    %1636 = vst [vmem:[%s1635] sm:$0x2] %v1632
    %s1637 = scalar_lea.vmem %s1, 554
    %1638 = vst [vmem:[%s1637] sm:$0x4] %v1632
    %s1639 = scalar_lea.vmem [#allocation0], 360
    %v1640 = vld [vmem:[%s1639] sm:$0x7]
    %s1641 = scalar_lea.vmem %s1, 45
    %1642 = vst [vmem:[%s1641] sm:$0x1] %v1640
    %s1643 = scalar_lea.vmem %s1, 300
    %1644 = vst [vmem:[%s1643] sm:$0x2] %v1640
    %s1645 = scalar_lea.vmem %s1, 555
    %1646 = vst [vmem:[%s1645] sm:$0x4] %v1640
    %s1647 = scalar_lea.vmem [#allocation0], 368
    %v1648 = vld [vmem:[%s1647] sm:$0x7]
    %s1649 = scalar_lea.vmem %s1, 46
    %1650 = vst [vmem:[%s1649] sm:$0x1] %v1648
    %s1651 = scalar_lea.vmem %s1, 301
    %1652 = vst [vmem:[%s1651] sm:$0x2] %v1648
    %s1653 = scalar_lea.vmem %s1, 556
    %1654 = vst [vmem:[%s1653] sm:$0x4] %v1648
    %s1655 = scalar_lea.vmem [#allocation0], 376
    %v1656 = vld [vmem:[%s1655] sm:$0x7]
    %s1657 = scalar_lea.vmem %s1, 47
    %1658 = vst [vmem:[%s1657] sm:$0x1] %v1656
    %s1659 = scalar_lea.vmem %s1, 302
    %1660 = vst [vmem:[%s1659] sm:$0x2] %v1656
    %s1661 = scalar_lea.vmem %s1, 557
    %1662 = vst [vmem:[%s1661] sm:$0x4] %v1656
    %s1663 = scalar_lea.vmem [#allocation0], 384
    %v1664 = vld [vmem:[%s1663] sm:$0x7]
    %s1665 = scalar_lea.vmem %s1, 48
    %1666 = vst [vmem:[%s1665] sm:$0x1] %v1664
    %s1667 = scalar_lea.vmem %s1, 303
    %1668 = vst [vmem:[%s1667] sm:$0x2] %v1664
    %s1669 = scalar_lea.vmem %s1, 558
    %1670 = vst [vmem:[%s1669] sm:$0x4] %v1664
    %s1671 = scalar_lea.vmem [#allocation0], 392
    %v1672 = vld [vmem:[%s1671] sm:$0x7]
    %s1673 = scalar_lea.vmem %s1, 49
    %1674 = vst [vmem:[%s1673] sm:$0x1] %v1672
    %s1675 = scalar_lea.vmem %s1, 304
    %1676 = vst [vmem:[%s1675] sm:$0x2] %v1672
    %s1677 = scalar_lea.vmem %s1, 559
    %1678 = vst [vmem:[%s1677] sm:$0x4] %v1672
    %s1679 = scalar_lea.vmem [#allocation0], 400
    %v1680 = vld [vmem:[%s1679] sm:$0x7]
    %s1681 = scalar_lea.vmem %s1, 50
    %1682 = vst [vmem:[%s1681] sm:$0x1] %v1680
    %s1683 = scalar_lea.vmem %s1, 305
    %1684 = vst [vmem:[%s1683] sm:$0x2] %v1680
    %s1685 = scalar_lea.vmem %s1, 560
    %1686 = vst [vmem:[%s1685] sm:$0x4] %v1680
    %s1687 = scalar_lea.vmem [#allocation0], 408
    %v1688 = vld [vmem:[%s1687] sm:$0x7]
    %s1689 = scalar_lea.vmem %s1, 51
    %1690 = vst [vmem:[%s1689] sm:$0x1] %v1688
    %s1691 = scalar_lea.vmem %s1, 306
    %1692 = vst [vmem:[%s1691] sm:$0x2] %v1688
    %s1693 = scalar_lea.vmem %s1, 561
    %1694 = vst [vmem:[%s1693] sm:$0x4] %v1688
    %s1695 = scalar_lea.vmem [#allocation0], 416
    %v1696 = vld [vmem:[%s1695] sm:$0x7]
    %s1697 = scalar_lea.vmem %s1, 52
    %1698 = vst [vmem:[%s1697] sm:$0x1] %v1696
    %s1699 = scalar_lea.vmem %s1, 307
    %1700 = vst [vmem:[%s1699] sm:$0x2] %v1696
    %s1701 = scalar_lea.vmem %s1, 562
    %1702 = vst [vmem:[%s1701] sm:$0x4] %v1696
    %s1703 = scalar_lea.vmem [#allocation0], 424
    %v1704 = vld [vmem:[%s1703] sm:$0x7]
    %s1705 = scalar_lea.vmem %s1, 53
    %1706 = vst [vmem:[%s1705] sm:$0x1] %v1704
    %s1707 = scalar_lea.vmem %s1, 308
    %1708 = vst [vmem:[%s1707] sm:$0x2] %v1704
    %s1709 = scalar_lea.vmem %s1, 563
    %1710 = vst [vmem:[%s1709] sm:$0x4] %v1704
    %s1711 = scalar_lea.vmem [#allocation0], 432
    %v1712 = vld [vmem:[%s1711] sm:$0x7]
    %s1713 = scalar_lea.vmem %s1, 54
    %1714 = vst [vmem:[%s1713] sm:$0x1] %v1712
    %s1715 = scalar_lea.vmem %s1, 309
    %1716 = vst [vmem:[%s1715] sm:$0x2] %v1712
    %s1717 = scalar_lea.vmem %s1, 564
    %1718 = vst [vmem:[%s1717] sm:$0x4] %v1712
    %s1719 = scalar_lea.vmem [#allocation0], 440
    %v1720 = vld [vmem:[%s1719] sm:$0x7]
    %s1721 = scalar_lea.vmem %s1, 55
    %1722 = vst [vmem:[%s1721] sm:$0x1] %v1720
    %s1723 = scalar_lea.vmem %s1, 310
    %1724 = vst [vmem:[%s1723] sm:$0x2] %v1720
    %s1725 = scalar_lea.vmem %s1, 565
    %1726 = vst [vmem:[%s1725] sm:$0x4] %v1720
    %s1727 = scalar_lea.vmem [#allocation0], 448
    %v1728 = vld [vmem:[%s1727] sm:$0x7]
    %s1729 = scalar_lea.vmem %s1, 56
    %1730 = vst [vmem:[%s1729] sm:$0x1] %v1728
    %s1731 = scalar_lea.vmem %s1, 311
    %1732 = vst [vmem:[%s1731] sm:$0x2] %v1728
    %s1733 = scalar_lea.vmem %s1, 566
    %1734 = vst [vmem:[%s1733] sm:$0x4] %v1728
    %s1735 = scalar_lea.vmem [#allocation0], 456
    %v1736 = vld [vmem:[%s1735] sm:$0x7]
    %s1737 = scalar_lea.vmem %s1, 57
    %1738 = vst [vmem:[%s1737] sm:$0x1] %v1736
    %s1739 = scalar_lea.vmem %s1, 312
    %1740 = vst [vmem:[%s1739] sm:$0x2] %v1736
    %s1741 = scalar_lea.vmem %s1, 567
    %1742 = vst [vmem:[%s1741] sm:$0x4] %v1736
    %s1743 = scalar_lea.vmem [#allocation0], 464
    %v1744 = vld [vmem:[%s1743] sm:$0x7]
    %s1745 = scalar_lea.vmem %s1, 58
    %1746 = vst [vmem:[%s1745] sm:$0x1] %v1744
    %s1747 = scalar_lea.vmem %s1, 313
    %1748 = vst [vmem:[%s1747] sm:$0x2] %v1744
    %s1749 = scalar_lea.vmem %s1, 568
    %1750 = vst [vmem:[%s1749] sm:$0x4] %v1744
    %s1751 = scalar_lea.vmem [#allocation0], 472
    %v1752 = vld [vmem:[%s1751] sm:$0x7]
    %s1753 = scalar_lea.vmem %s1, 59
    %1754 = vst [vmem:[%s1753] sm:$0x1] %v1752
    %s1755 = scalar_lea.vmem %s1, 314
    %1756 = vst [vmem:[%s1755] sm:$0x2] %v1752
    %s1757 = scalar_lea.vmem %s1, 569
    %1758 = vst [vmem:[%s1757] sm:$0x4] %v1752
    %s1759 = scalar_lea.vmem [#allocation0], 480
    %v1760 = vld [vmem:[%s1759] sm:$0x7]
    %s1761 = scalar_lea.vmem %s1, 60
    %1762 = vst [vmem:[%s1761] sm:$0x1] %v1760
    %s1763 = scalar_lea.vmem %s1, 315
    %1764 = vst [vmem:[%s1763] sm:$0x2] %v1760
    %s1765 = scalar_lea.vmem %s1, 570
    %1766 = vst [vmem:[%s1765] sm:$0x4] %v1760
    %s1767 = scalar_lea.vmem [#allocation0], 488
    %v1768 = vld [vmem:[%s1767] sm:$0x7]
    %s1769 = scalar_lea.vmem %s1, 61
    %1770 = vst [vmem:[%s1769] sm:$0x1] %v1768
    %s1771 = scalar_lea.vmem %s1, 316
    %1772 = vst [vmem:[%s1771] sm:$0x2] %v1768
    %s1773 = scalar_lea.vmem %s1, 571
    %1774 = vst [vmem:[%s1773] sm:$0x4] %v1768
    %s1775 = scalar_lea.vmem [#allocation0], 496
    %v1776 = vld [vmem:[%s1775] sm:$0x7]
    %s1777 = scalar_lea.vmem %s1, 62
    %1778 = vst [vmem:[%s1777] sm:$0x1] %v1776
    %s1779 = scalar_lea.vmem %s1, 317
    %1780 = vst [vmem:[%s1779] sm:$0x2] %v1776
    %s1781 = scalar_lea.vmem %s1, 572
    %1782 = vst [vmem:[%s1781] sm:$0x4] %v1776
    %s1783 = scalar_lea.vmem [#allocation0], 504
    %v1784 = vld [vmem:[%s1783] sm:$0x7]
    %s1785 = scalar_lea.vmem %s1, 63
    %1786 = vst [vmem:[%s1785] sm:$0x1] %v1784
    %s1787 = scalar_lea.vmem %s1, 318
    %1788 = vst [vmem:[%s1787] sm:$0x2] %v1784
    %s1789 = scalar_lea.vmem %s1, 573
    %1790 = vst [vmem:[%s1789] sm:$0x4] %v1784
    %s1791 = scalar_lea.vmem [#allocation0], 512
    %v1792 = vld [vmem:[%s1791] sm:$0x7]
    %s1793 = scalar_lea.vmem %s1, 64
    %1794 = vst [vmem:[%s1793] sm:$0x1] %v1792
    %s1795 = scalar_lea.vmem %s1, 319
    %1796 = vst [vmem:[%s1795] sm:$0x2] %v1792
    %s1797 = scalar_lea.vmem %s1, 574
    %1798 = vst [vmem:[%s1797] sm:$0x4] %v1792
    %s1799 = scalar_lea.vmem [#allocation0], 520
    %v1800 = vld [vmem:[%s1799] sm:$0x7]
    %s1801 = scalar_lea.vmem %s1, 65
    %1802 = vst [vmem:[%s1801] sm:$0x1] %v1800
    %s1803 = scalar_lea.vmem %s1, 320
    %1804 = vst [vmem:[%s1803] sm:$0x2] %v1800
    %s1805 = scalar_lea.vmem %s1, 575
    %1806 = vst [vmem:[%s1805] sm:$0x4] %v1800
    %s1807 = scalar_lea.vmem [#allocation0], 528
    %v1808 = vld [vmem:[%s1807] sm:$0x7]
    %s1809 = scalar_lea.vmem %s1, 66
    %1810 = vst [vmem:[%s1809] sm:$0x1] %v1808
    %s1811 = scalar_lea.vmem %s1, 321
    %1812 = vst [vmem:[%s1811] sm:$0x2] %v1808
    %s1813 = scalar_lea.vmem %s1, 576
    %1814 = vst [vmem:[%s1813] sm:$0x4] %v1808
    %s1815 = scalar_lea.vmem [#allocation0], 536
    %v1816 = vld [vmem:[%s1815] sm:$0x7]
    %s1817 = scalar_lea.vmem %s1, 67
    %1818 = vst [vmem:[%s1817] sm:$0x1] %v1816
    %s1819 = scalar_lea.vmem %s1, 322
    %1820 = vst [vmem:[%s1819] sm:$0x2] %v1816
    %s1821 = scalar_lea.vmem %s1, 577
    %1822 = vst [vmem:[%s1821] sm:$0x4] %v1816
    %s1823 = scalar_lea.vmem [#allocation0], 544
    %v1824 = vld [vmem:[%s1823] sm:$0x7]
    %s1825 = scalar_lea.vmem %s1, 68
    %1826 = vst [vmem:[%s1825] sm:$0x1] %v1824
    %s1827 = scalar_lea.vmem %s1, 323
    %1828 = vst [vmem:[%s1827] sm:$0x2] %v1824
    %s1829 = scalar_lea.vmem %s1, 578
    %1830 = vst [vmem:[%s1829] sm:$0x4] %v1824
    %s1831 = scalar_lea.vmem [#allocation0], 552
    %v1832 = vld [vmem:[%s1831] sm:$0x7]
    %s1833 = scalar_lea.vmem %s1, 69
    %1834 = vst [vmem:[%s1833] sm:$0x1] %v1832
    %s1835 = scalar_lea.vmem %s1, 324
    %1836 = vst [vmem:[%s1835] sm:$0x2] %v1832
    %s1837 = scalar_lea.vmem %s1, 579
    %1838 = vst [vmem:[%s1837] sm:$0x4] %v1832
    %s1839 = scalar_lea.vmem [#allocation0], 560
    %v1840 = vld [vmem:[%s1839] sm:$0x7]
    %s1841 = scalar_lea.vmem %s1, 70
    %1842 = vst [vmem:[%s1841] sm:$0x1] %v1840
    %s1843 = scalar_lea.vmem %s1, 325
    %1844 = vst [vmem:[%s1843] sm:$0x2] %v1840
    %s1845 = scalar_lea.vmem %s1, 580
    %1846 = vst [vmem:[%s1845] sm:$0x4] %v1840
    %s1847 = scalar_lea.vmem [#allocation0], 568
    %v1848 = vld [vmem:[%s1847] sm:$0x7]
    %s1849 = scalar_lea.vmem %s1, 71
    %1850 = vst [vmem:[%s1849] sm:$0x1] %v1848
    %s1851 = scalar_lea.vmem %s1, 326
    %1852 = vst [vmem:[%s1851] sm:$0x2] %v1848
    %s1853 = scalar_lea.vmem %s1, 581
    %1854 = vst [vmem:[%s1853] sm:$0x4] %v1848
    %s1855 = scalar_lea.vmem [#allocation0], 576
    %v1856 = vld [vmem:[%s1855] sm:$0x7]
    %s1857 = scalar_lea.vmem %s1, 72
    %1858 = vst [vmem:[%s1857] sm:$0x1] %v1856
    %s1859 = scalar_lea.vmem %s1, 327
    %1860 = vst [vmem:[%s1859] sm:$0x2] %v1856
    %s1861 = scalar_lea.vmem %s1, 582
    %1862 = vst [vmem:[%s1861] sm:$0x4] %v1856
    %s1863 = scalar_lea.vmem [#allocation0], 584
    %v1864 = vld [vmem:[%s1863] sm:$0x7]
    %s1865 = scalar_lea.vmem %s1, 73
    %1866 = vst [vmem:[%s1865] sm:$0x1] %v1864
    %s1867 = scalar_lea.vmem %s1, 328
    %1868 = vst [vmem:[%s1867] sm:$0x2] %v1864
    %s1869 = scalar_lea.vmem %s1, 583
    %1870 = vst [vmem:[%s1869] sm:$0x4] %v1864
    %s1871 = scalar_lea.vmem [#allocation0], 592
    %v1872 = vld [vmem:[%s1871] sm:$0x7]
    %s1873 = scalar_lea.vmem %s1, 74
    %1874 = vst [vmem:[%s1873] sm:$0x1] %v1872
    %s1875 = scalar_lea.vmem %s1, 329
    %1876 = vst [vmem:[%s1875] sm:$0x2] %v1872
    %s1877 = scalar_lea.vmem %s1, 584
    %1878 = vst [vmem:[%s1877] sm:$0x4] %v1872
    %s1879 = scalar_lea.vmem [#allocation0], 600
    %v1880 = vld [vmem:[%s1879] sm:$0x7]
    %s1881 = scalar_lea.vmem %s1, 75
    %1882 = vst [vmem:[%s1881] sm:$0x1] %v1880
    %s1883 = scalar_lea.vmem %s1, 330
    %1884 = vst [vmem:[%s1883] sm:$0x2] %v1880
    %s1885 = scalar_lea.vmem %s1, 585
    %1886 = vst [vmem:[%s1885] sm:$0x4] %v1880
    %s1887 = scalar_lea.vmem [#allocation0], 608
    %v1888 = vld [vmem:[%s1887] sm:$0x7]
    %s1889 = scalar_lea.vmem %s1, 76
    %1890 = vst [vmem:[%s1889] sm:$0x1] %v1888
    %s1891 = scalar_lea.vmem %s1, 331
    %1892 = vst [vmem:[%s1891] sm:$0x2] %v1888
    %s1893 = scalar_lea.vmem %s1, 586
    %1894 = vst [vmem:[%s1893] sm:$0x4] %v1888
    %s1895 = scalar_lea.vmem [#allocation0], 616
    %v1896 = vld [vmem:[%s1895] sm:$0x7]
    %s1897 = scalar_lea.vmem %s1, 77
    %1898 = vst [vmem:[%s1897] sm:$0x1] %v1896
    %s1899 = scalar_lea.vmem %s1, 332
    %1900 = vst [vmem:[%s1899] sm:$0x2] %v1896
    %s1901 = scalar_lea.vmem %s1, 587
    %1902 = vst [vmem:[%s1901] sm:$0x4] %v1896
    %s1903 = scalar_lea.vmem [#allocation0], 624
    %v1904 = vld [vmem:[%s1903] sm:$0x7]
    %s1905 = scalar_lea.vmem %s1, 78
    %1906 = vst [vmem:[%s1905] sm:$0x1] %v1904
    %s1907 = scalar_lea.vmem %s1, 333
    %1908 = vst [vmem:[%s1907] sm:$0x2] %v1904
    %s1909 = scalar_lea.vmem %s1, 588
    %1910 = vst [vmem:[%s1909] sm:$0x4] %v1904
    %s1911 = scalar_lea.vmem [#allocation0], 632
    %v1912 = vld [vmem:[%s1911] sm:$0x7]
    %s1913 = scalar_lea.vmem %s1, 79
    %1914 = vst [vmem:[%s1913] sm:$0x1] %v1912
    %s1915 = scalar_lea.vmem %s1, 334
    %1916 = vst [vmem:[%s1915] sm:$0x2] %v1912
    %s1917 = scalar_lea.vmem %s1, 589
    %1918 = vst [vmem:[%s1917] sm:$0x4] %v1912
    %s1919 = scalar_lea.vmem [#allocation0], 640
    %v1920 = vld [vmem:[%s1919] sm:$0x7]
    %s1921 = scalar_lea.vmem %s1, 80
    %1922 = vst [vmem:[%s1921] sm:$0x1] %v1920
    %s1923 = scalar_lea.vmem %s1, 335
    %1924 = vst [vmem:[%s1923] sm:$0x2] %v1920
    %s1925 = scalar_lea.vmem %s1, 590
    %1926 = vst [vmem:[%s1925] sm:$0x4] %v1920
    %s1927 = scalar_lea.vmem [#allocation0], 648
    %v1928 = vld [vmem:[%s1927] sm:$0x7]
    %s1929 = scalar_lea.vmem %s1, 81
    %1930 = vst [vmem:[%s1929] sm:$0x1] %v1928
    %s1931 = scalar_lea.vmem %s1, 336
    %1932 = vst [vmem:[%s1931] sm:$0x2] %v1928
    %s1933 = scalar_lea.vmem %s1, 591
    %1934 = vst [vmem:[%s1933] sm:$0x4] %v1928
    %s1935 = scalar_lea.vmem [#allocation0], 656
    %v1936 = vld [vmem:[%s1935] sm:$0x7]
    %s1937 = scalar_lea.vmem %s1, 82
    %1938 = vst [vmem:[%s1937] sm:$0x1] %v1936
    %s1939 = scalar_lea.vmem %s1, 337
    %1940 = vst [vmem:[%s1939] sm:$0x2] %v1936
    %s1941 = scalar_lea.vmem %s1, 592
    %1942 = vst [vmem:[%s1941] sm:$0x4] %v1936
    %s1943 = scalar_lea.vmem [#allocation0], 664
    %v1944 = vld [vmem:[%s1943] sm:$0x7]
    %s1945 = scalar_lea.vmem %s1, 83
    %1946 = vst [vmem:[%s1945] sm:$0x1] %v1944
    %s1947 = scalar_lea.vmem %s1, 338
    %1948 = vst [vmem:[%s1947] sm:$0x2] %v1944
    %s1949 = scalar_lea.vmem %s1, 593
    %1950 = vst [vmem:[%s1949] sm:$0x4] %v1944
    %s1951 = scalar_lea.vmem [#allocation0], 672
    %v1952 = vld [vmem:[%s1951] sm:$0x7]
    %s1953 = scalar_lea.vmem %s1, 84
    %1954 = vst [vmem:[%s1953] sm:$0x1] %v1952
    %s1955 = scalar_lea.vmem %s1, 339
    %1956 = vst [vmem:[%s1955] sm:$0x2] %v1952
    %s1957 = scalar_lea.vmem %s1, 594
    %1958 = vst [vmem:[%s1957] sm:$0x4] %v1952
    %s1959 = scalar_lea.vmem [#allocation0], 680
    %v1960 = vld [vmem:[%s1959] sm:$0x7]
    %s1961 = scalar_lea.vmem %s1, 85
    %1962 = vst [vmem:[%s1961] sm:$0x1] %v1960
    %s1963 = scalar_lea.vmem %s1, 340
    %1964 = vst [vmem:[%s1963] sm:$0x2] %v1960
    %s1965 = scalar_lea.vmem %s1, 595
    %1966 = vst [vmem:[%s1965] sm:$0x4] %v1960
    %s1967 = scalar_lea.vmem [#allocation0], 688
    %v1968 = vld [vmem:[%s1967] sm:$0x7]
    %s1969 = scalar_lea.vmem %s1, 86
    %1970 = vst [vmem:[%s1969] sm:$0x1] %v1968
    %s1971 = scalar_lea.vmem %s1, 341
    %1972 = vst [vmem:[%s1971] sm:$0x2] %v1968
    %s1973 = scalar_lea.vmem %s1, 596
    %1974 = vst [vmem:[%s1973] sm:$0x4] %v1968
    %s1975 = scalar_lea.vmem [#allocation0], 696
    %v1976 = vld [vmem:[%s1975] sm:$0x7]
    %s1977 = scalar_lea.vmem %s1, 87
    %1978 = vst [vmem:[%s1977] sm:$0x1] %v1976
    %s1979 = scalar_lea.vmem %s1, 342
    %1980 = vst [vmem:[%s1979] sm:$0x2] %v1976
    %s1981 = scalar_lea.vmem %s1, 597
    %1982 = vst [vmem:[%s1981] sm:$0x4] %v1976
    %s1983 = scalar_lea.vmem [#allocation0], 704
    %v1984 = vld [vmem:[%s1983] sm:$0x7]
    %s1985 = scalar_lea.vmem %s1, 88
    %1986 = vst [vmem:[%s1985] sm:$0x1] %v1984
    %s1987 = scalar_lea.vmem %s1, 343
    %1988 = vst [vmem:[%s1987] sm:$0x2] %v1984
    %s1989 = scalar_lea.vmem %s1, 598
    %1990 = vst [vmem:[%s1989] sm:$0x4] %v1984
    %s1991 = scalar_lea.vmem [#allocation0], 712
    %v1992 = vld [vmem:[%s1991] sm:$0x7]
    %s1993 = scalar_lea.vmem %s1, 89
    %1994 = vst [vmem:[%s1993] sm:$0x1] %v1992
    %s1995 = scalar_lea.vmem %s1, 344
    %1996 = vst [vmem:[%s1995] sm:$0x2] %v1992
    %s1997 = scalar_lea.vmem %s1, 599
    %1998 = vst [vmem:[%s1997] sm:$0x4] %v1992
    %s1999 = scalar_lea.vmem [#allocation0], 720
    %v2000 = vld [vmem:[%s1999] sm:$0x7]
    %s2001 = scalar_lea.vmem %s1, 90
    %2002 = vst [vmem:[%s2001] sm:$0x1] %v2000
    %s2003 = scalar_lea.vmem %s1, 345
    %2004 = vst [vmem:[%s2003] sm:$0x2] %v2000
    %s2005 = scalar_lea.vmem %s1, 600
    %2006 = vst [vmem:[%s2005] sm:$0x4] %v2000
    %s2007 = scalar_lea.vmem [#allocation0], 728
    %v2008 = vld [vmem:[%s2007] sm:$0x7]
    %s2009 = scalar_lea.vmem %s1, 91
    %2010 = vst [vmem:[%s2009] sm:$0x1] %v2008
    %s2011 = scalar_lea.vmem %s1, 346
    %2012 = vst [vmem:[%s2011] sm:$0x2] %v2008
    %s2013 = scalar_lea.vmem %s1, 601
    %2014 = vst [vmem:[%s2013] sm:$0x4] %v2008
    %s2015 = scalar_lea.vmem [#allocation0], 736
    %v2016 = vld [vmem:[%s2015] sm:$0x7]
    %s2017 = scalar_lea.vmem %s1, 92
    %2018 = vst [vmem:[%s2017] sm:$0x1] %v2016
    %s2019 = scalar_lea.vmem %s1, 347
    %2020 = vst [vmem:[%s2019] sm:$0x2] %v2016
    %s2021 = scalar_lea.vmem %s1, 602
    %2022 = vst [vmem:[%s2021] sm:$0x4] %v2016
    %s2023 = scalar_lea.vmem [#allocation0], 744
    %v2024 = vld [vmem:[%s2023] sm:$0x7]
    %s2025 = scalar_lea.vmem %s1, 93
    %2026 = vst [vmem:[%s2025] sm:$0x1] %v2024
    %s2027 = scalar_lea.vmem %s1, 348
    %2028 = vst [vmem:[%s2027] sm:$0x2] %v2024
    %s2029 = scalar_lea.vmem %s1, 603
    %2030 = vst [vmem:[%s2029] sm:$0x4] %v2024
    %s2031 = scalar_lea.vmem [#allocation0], 752
    %v2032 = vld [vmem:[%s2031] sm:$0x7]
    %s2033 = scalar_lea.vmem %s1, 94
    %2034 = vst [vmem:[%s2033] sm:$0x1] %v2032
    %s2035 = scalar_lea.vmem %s1, 349
    %2036 = vst [vmem:[%s2035] sm:$0x2] %v2032
    %s2037 = scalar_lea.vmem %s1, 604
    %2038 = vst [vmem:[%s2037] sm:$0x4] %v2032
    %s2039 = scalar_lea.vmem [#allocation0], 760
    %v2040 = vld [vmem:[%s2039] sm:$0x7]
    %s2041 = scalar_lea.vmem %s1, 95
    %2042 = vst [vmem:[%s2041] sm:$0x1] %v2040
    %s2043 = scalar_lea.vmem %s1, 350
    %2044 = vst [vmem:[%s2043] sm:$0x2] %v2040
    %s2045 = scalar_lea.vmem %s1, 605
    %2046 = vst [vmem:[%s2045] sm:$0x4] %v2040
    %s2047 = scalar_lea.vmem [#allocation0], 768
    %v2048 = vld [vmem:[%s2047] sm:$0x7]
    %s2049 = scalar_lea.vmem %s1, 96
    %2050 = vst [vmem:[%s2049] sm:$0x1] %v2048
    %s2051 = scalar_lea.vmem %s1, 351
    %2052 = vst [vmem:[%s2051] sm:$0x2] %v2048
    %s2053 = scalar_lea.vmem %s1, 606
    %2054 = vst [vmem:[%s2053] sm:$0x4] %v2048
    %s2055 = scalar_lea.vmem [#allocation0], 776
    %v2056 = vld [vmem:[%s2055] sm:$0x7]
    %s2057 = scalar_lea.vmem %s1, 97
    %2058 = vst [vmem:[%s2057] sm:$0x1] %v2056
    %s2059 = scalar_lea.vmem %s1, 352
    %2060 = vst [vmem:[%s2059] sm:$0x2] %v2056
    %s2061 = scalar_lea.vmem %s1, 607
    %2062 = vst [vmem:[%s2061] sm:$0x4] %v2056
    %s2063 = scalar_lea.vmem [#allocation0], 784
    %v2064 = vld [vmem:[%s2063] sm:$0x7]
    %s2065 = scalar_lea.vmem %s1, 98
    %2066 = vst [vmem:[%s2065] sm:$0x1] %v2064
    %s2067 = scalar_lea.vmem %s1, 353
    %2068 = vst [vmem:[%s2067] sm:$0x2] %v2064
    %s2069 = scalar_lea.vmem %s1, 608
    %2070 = vst [vmem:[%s2069] sm:$0x4] %v2064
    %s2071 = scalar_lea.vmem [#allocation0], 792
    %v2072 = vld [vmem:[%s2071] sm:$0x7]
    %s2073 = scalar_lea.vmem %s1, 99
    %2074 = vst [vmem:[%s2073] sm:$0x1] %v2072
    %s2075 = scalar_lea.vmem %s1, 354
    %2076 = vst [vmem:[%s2075] sm:$0x2] %v2072
    %s2077 = scalar_lea.vmem %s1, 609
    %2078 = vst [vmem:[%s2077] sm:$0x4] %v2072
    %s2079 = scalar_lea.vmem [#allocation0], 800
    %v2080 = vld [vmem:[%s2079] sm:$0x7]
    %s2081 = scalar_lea.vmem %s1, 100
    %2082 = vst [vmem:[%s2081] sm:$0x1] %v2080
    %s2083 = scalar_lea.vmem %s1, 355
    %2084 = vst [vmem:[%s2083] sm:$0x2] %v2080
    %s2085 = scalar_lea.vmem %s1, 610
    %2086 = vst [vmem:[%s2085] sm:$0x4] %v2080
    %s2087 = scalar_lea.vmem [#allocation0], 808
    %v2088 = vld [vmem:[%s2087] sm:$0x7]
    %s2089 = scalar_lea.vmem %s1, 101
    %2090 = vst [vmem:[%s2089] sm:$0x1] %v2088
    %s2091 = scalar_lea.vmem %s1, 356
    %2092 = vst [vmem:[%s2091] sm:$0x2] %v2088
    %s2093 = scalar_lea.vmem %s1, 611
    %2094 = vst [vmem:[%s2093] sm:$0x4] %v2088
    %s2095 = scalar_lea.vmem [#allocation0], 816
    %v2096 = vld [vmem:[%s2095] sm:$0x7]
    %s2097 = scalar_lea.vmem %s1, 102
    %2098 = vst [vmem:[%s2097] sm:$0x1] %v2096
    %s2099 = scalar_lea.vmem %s1, 357
    %2100 = vst [vmem:[%s2099] sm:$0x2] %v2096
    %s2101 = scalar_lea.vmem %s1, 612
    %2102 = vst [vmem:[%s2101] sm:$0x4] %v2096
    %s2103 = scalar_lea.vmem [#allocation0], 824
    %v2104 = vld [vmem:[%s2103] sm:$0x7]
    %s2105 = scalar_lea.vmem %s1, 103
    %2106 = vst [vmem:[%s2105] sm:$0x1] %v2104
    %s2107 = scalar_lea.vmem %s1, 358
    %2108 = vst [vmem:[%s2107] sm:$0x2] %v2104
    %s2109 = scalar_lea.vmem %s1, 613
    %2110 = vst [vmem:[%s2109] sm:$0x4] %v2104
    %s2111 = scalar_lea.vmem [#allocation0], 832
    %v2112 = vld [vmem:[%s2111] sm:$0x7]
    %s2113 = scalar_lea.vmem %s1, 104
    %2114 = vst [vmem:[%s2113] sm:$0x1] %v2112
    %s2115 = scalar_lea.vmem %s1, 359
    %2116 = vst [vmem:[%s2115] sm:$0x2] %v2112
    %s2117 = scalar_lea.vmem %s1, 614
    %2118 = vst [vmem:[%s2117] sm:$0x4] %v2112
    %s2119 = scalar_lea.vmem [#allocation0], 840
    %v2120 = vld [vmem:[%s2119] sm:$0x7]
    %s2121 = scalar_lea.vmem %s1, 105
    %2122 = vst [vmem:[%s2121] sm:$0x1] %v2120
    %s2123 = scalar_lea.vmem %s1, 360
    %2124 = vst [vmem:[%s2123] sm:$0x2] %v2120
    %s2125 = scalar_lea.vmem %s1, 615
    %2126 = vst [vmem:[%s2125] sm:$0x4] %v2120
    %s2127 = scalar_lea.vmem [#allocation0], 848
    %v2128 = vld [vmem:[%s2127] sm:$0x7]
    %s2129 = scalar_lea.vmem %s1, 106
    %2130 = vst [vmem:[%s2129] sm:$0x1] %v2128
    %s2131 = scalar_lea.vmem %s1, 361
    %2132 = vst [vmem:[%s2131] sm:$0x2] %v2128
    %s2133 = scalar_lea.vmem %s1, 616
    %2134 = vst [vmem:[%s2133] sm:$0x4] %v2128
    %s2135 = scalar_lea.vmem [#allocation0], 856
    %v2136 = vld [vmem:[%s2135] sm:$0x7]
    %s2137 = scalar_lea.vmem %s1, 107
    %2138 = vst [vmem:[%s2137] sm:$0x1] %v2136
    %s2139 = scalar_lea.vmem %s1, 362
    %2140 = vst [vmem:[%s2139] sm:$0x2] %v2136
    %s2141 = scalar_lea.vmem %s1, 617
    %2142 = vst [vmem:[%s2141] sm:$0x4] %v2136
    %s2143 = scalar_lea.vmem [#allocation0], 864
    %v2144 = vld [vmem:[%s2143] sm:$0x7]
    %s2145 = scalar_lea.vmem %s1, 108
    %2146 = vst [vmem:[%s2145] sm:$0x1] %v2144
    %s2147 = scalar_lea.vmem %s1, 363
    %2148 = vst [vmem:[%s2147] sm:$0x2] %v2144
    %s2149 = scalar_lea.vmem %s1, 618
    %2150 = vst [vmem:[%s2149] sm:$0x4] %v2144
    %s2151 = scalar_lea.vmem [#allocation0], 872
    %v2152 = vld [vmem:[%s2151] sm:$0x7]
    %s2153 = scalar_lea.vmem %s1, 109
    %2154 = vst [vmem:[%s2153] sm:$0x1] %v2152
    %s2155 = scalar_lea.vmem %s1, 364
    %2156 = vst [vmem:[%s2155] sm:$0x2] %v2152
    %s2157 = scalar_lea.vmem %s1, 619
    %2158 = vst [vmem:[%s2157] sm:$0x4] %v2152
    %s2159 = scalar_lea.vmem [#allocation0], 880
    %v2160 = vld [vmem:[%s2159] sm:$0x7]
    %s2161 = scalar_lea.vmem %s1, 110
    %2162 = vst [vmem:[%s2161] sm:$0x1] %v2160
    %s2163 = scalar_lea.vmem %s1, 365
    %2164 = vst [vmem:[%s2163] sm:$0x2] %v2160
    %s2165 = scalar_lea.vmem %s1, 620
    %2166 = vst [vmem:[%s2165] sm:$0x4] %v2160
    %s2167 = scalar_lea.vmem [#allocation0], 888
    %v2168 = vld [vmem:[%s2167] sm:$0x7]
    %s2169 = scalar_lea.vmem %s1, 111
    %2170 = vst [vmem:[%s2169] sm:$0x1] %v2168
    %s2171 = scalar_lea.vmem %s1, 366
    %2172 = vst [vmem:[%s2171] sm:$0x2] %v2168
    %s2173 = scalar_lea.vmem %s1, 621
    %2174 = vst [vmem:[%s2173] sm:$0x4] %v2168
    %s2175 = scalar_lea.vmem [#allocation0], 896
    %v2176 = vld [vmem:[%s2175] sm:$0x7]
    %s2177 = scalar_lea.vmem %s1, 112
    %2178 = vst [vmem:[%s2177] sm:$0x1] %v2176
    %s2179 = scalar_lea.vmem %s1, 367
    %2180 = vst [vmem:[%s2179] sm:$0x2] %v2176
    %s2181 = scalar_lea.vmem %s1, 622
    %2182 = vst [vmem:[%s2181] sm:$0x4] %v2176
    %s2183 = scalar_lea.vmem [#allocation0], 904
    %v2184 = vld [vmem:[%s2183] sm:$0x7]
    %s2185 = scalar_lea.vmem %s1, 113
    %2186 = vst [vmem:[%s2185] sm:$0x1] %v2184
    %s2187 = scalar_lea.vmem %s1, 368
    %2188 = vst [vmem:[%s2187] sm:$0x2] %v2184
    %s2189 = scalar_lea.vmem %s1, 623
    %2190 = vst [vmem:[%s2189] sm:$0x4] %v2184
    %s2191 = scalar_lea.vmem [#allocation0], 912
    %v2192 = vld [vmem:[%s2191] sm:$0x7]
    %s2193 = scalar_lea.vmem %s1, 114
    %2194 = vst [vmem:[%s2193] sm:$0x1] %v2192
    %s2195 = scalar_lea.vmem %s1, 369
    %2196 = vst [vmem:[%s2195] sm:$0x2] %v2192
    %s2197 = scalar_lea.vmem %s1, 624
    %2198 = vst [vmem:[%s2197] sm:$0x4] %v2192
    %s2199 = scalar_lea.vmem [#allocation0], 920
    %v2200 = vld [vmem:[%s2199] sm:$0x7]
    %s2201 = scalar_lea.vmem %s1, 115
    %2202 = vst [vmem:[%s2201] sm:$0x1] %v2200
    %s2203 = scalar_lea.vmem %s1, 370
    %2204 = vst [vmem:[%s2203] sm:$0x2] %v2200
    %s2205 = scalar_lea.vmem %s1, 625
    %2206 = vst [vmem:[%s2205] sm:$0x4] %v2200
    %s2207 = scalar_lea.vmem [#allocation0], 928
    %v2208 = vld [vmem:[%s2207] sm:$0x7]
    %s2209 = scalar_lea.vmem %s1, 116
    %2210 = vst [vmem:[%s2209] sm:$0x1] %v2208
    %s2211 = scalar_lea.vmem %s1, 371
    %2212 = vst [vmem:[%s2211] sm:$0x2] %v2208
    %s2213 = scalar_lea.vmem %s1, 626
    %2214 = vst [vmem:[%s2213] sm:$0x4] %v2208
    %s2215 = scalar_lea.vmem [#allocation0], 936
    %v2216 = vld [vmem:[%s2215] sm:$0x7]
    %s2217 = scalar_lea.vmem %s1, 117
    %2218 = vst [vmem:[%s2217] sm:$0x1] %v2216
    %s2219 = scalar_lea.vmem %s1, 372
    %2220 = vst [vmem:[%s2219] sm:$0x2] %v2216
    %s2221 = scalar_lea.vmem %s1, 627
    %2222 = vst [vmem:[%s2221] sm:$0x4] %v2216
    %s2223 = scalar_lea.vmem [#allocation0], 944
    %v2224 = vld [vmem:[%s2223] sm:$0x7]
    %s2225 = scalar_lea.vmem %s1, 118
    %2226 = vst [vmem:[%s2225] sm:$0x1] %v2224
    %s2227 = scalar_lea.vmem %s1, 373
    %2228 = vst [vmem:[%s2227] sm:$0x2] %v2224
    %s2229 = scalar_lea.vmem %s1, 628
    %2230 = vst [vmem:[%s2229] sm:$0x4] %v2224
    %s2231 = scalar_lea.vmem [#allocation0], 952
    %v2232 = vld [vmem:[%s2231] sm:$0x7]
    %s2233 = scalar_lea.vmem %s1, 119
    %2234 = vst [vmem:[%s2233] sm:$0x1] %v2232
    %s2235 = scalar_lea.vmem %s1, 374
    %2236 = vst [vmem:[%s2235] sm:$0x2] %v2232
    %s2237 = scalar_lea.vmem %s1, 629
    %2238 = vst [vmem:[%s2237] sm:$0x4] %v2232
    %s2239 = scalar_lea.vmem [#allocation0], 960
    %v2240 = vld [vmem:[%s2239] sm:$0x7]
    %s2241 = scalar_lea.vmem %s1, 120
    %2242 = vst [vmem:[%s2241] sm:$0x1] %v2240
    %s2243 = scalar_lea.vmem %s1, 375
    %2244 = vst [vmem:[%s2243] sm:$0x2] %v2240
    %s2245 = scalar_lea.vmem %s1, 630
    %2246 = vst [vmem:[%s2245] sm:$0x4] %v2240
    %s2247 = scalar_lea.vmem [#allocation0], 968
    %v2248 = vld [vmem:[%s2247] sm:$0x7]
    %s2249 = scalar_lea.vmem %s1, 121
    %2250 = vst [vmem:[%s2249] sm:$0x1] %v2248
    %s2251 = scalar_lea.vmem %s1, 376
    %2252 = vst [vmem:[%s2251] sm:$0x2] %v2248
    %s2253 = scalar_lea.vmem %s1, 631
    %2254 = vst [vmem:[%s2253] sm:$0x4] %v2248
    %s2255 = scalar_lea.vmem [#allocation0], 976
    %v2256 = vld [vmem:[%s2255] sm:$0x7]
    %s2257 = scalar_lea.vmem %s1, 122
    %2258 = vst [vmem:[%s2257] sm:$0x1] %v2256
    %s2259 = scalar_lea.vmem %s1, 377
    %2260 = vst [vmem:[%s2259] sm:$0x2] %v2256
    %s2261 = scalar_lea.vmem %s1, 632
    %2262 = vst [vmem:[%s2261] sm:$0x4] %v2256
    %s2263 = scalar_lea.vmem [#allocation0], 984
    %v2264 = vld [vmem:[%s2263] sm:$0x7]
    %s2265 = scalar_lea.vmem %s1, 123
    %2266 = vst [vmem:[%s2265] sm:$0x1] %v2264
    %s2267 = scalar_lea.vmem %s1, 378
    %2268 = vst [vmem:[%s2267] sm:$0x2] %v2264
    %s2269 = scalar_lea.vmem %s1, 633
    %2270 = vst [vmem:[%s2269] sm:$0x4] %v2264
    %s2271 = scalar_lea.vmem [#allocation0], 992
    %v2272 = vld [vmem:[%s2271] sm:$0x7]
    %s2273 = scalar_lea.vmem %s1, 124
    %2274 = vst [vmem:[%s2273] sm:$0x1] %v2272
    %s2275 = scalar_lea.vmem %s1, 379
    %2276 = vst [vmem:[%s2275] sm:$0x2] %v2272
    %s2277 = scalar_lea.vmem %s1, 634
    %2278 = vst [vmem:[%s2277] sm:$0x4] %v2272
    %s2279 = scalar_lea.vmem [#allocation0], 1000
    %v2280 = vld [vmem:[%s2279] sm:$0x7]
    %s2281 = scalar_lea.vmem %s1, 125
    %2282 = vst [vmem:[%s2281] sm:$0x1] %v2280
    %s2283 = scalar_lea.vmem %s1, 380
    %2284 = vst [vmem:[%s2283] sm:$0x2] %v2280
    %s2285 = scalar_lea.vmem %s1, 635
    %2286 = vst [vmem:[%s2285] sm:$0x4] %v2280
    %s2287 = scalar_lea.vmem [#allocation0], 1008
    %v2288 = vld [vmem:[%s2287] sm:$0x7]
    %s2289 = scalar_lea.vmem %s1, 126
    %2290 = vst [vmem:[%s2289] sm:$0x1] %v2288
    %s2291 = scalar_lea.vmem %s1, 381
    %2292 = vst [vmem:[%s2291] sm:$0x2] %v2288
    %s2293 = scalar_lea.vmem %s1, 636
    %2294 = vst [vmem:[%s2293] sm:$0x4] %v2288
    %s2295 = scalar_lea.vmem [#allocation0], 1016
    %v2296 = vld [vmem:[%s2295] sm:$0x7]
    %s2297 = scalar_lea.vmem %s1, 127
    %2298 = vst [vmem:[%s2297] sm:$0x1] %v2296
    %s2299 = scalar_lea.vmem %s1, 382
    %2300 = vst [vmem:[%s2299] sm:$0x2] %v2296
    %s2301 = scalar_lea.vmem %s1, 637
    %2302 = vst [vmem:[%s2301] sm:$0x4] %v2296
    %s2303 = scalar_lea.vmem [#allocation0], 1024
    %v2304 = vld [vmem:[%s2303] sm:$0x7]
    %s2305 = scalar_lea.vmem %s1, 128
    %2306 = vst [vmem:[%s2305] sm:$0x1] %v2304
    %s2307 = scalar_lea.vmem %s1, 383
    %2308 = vst [vmem:[%s2307] sm:$0x2] %v2304
    %s2309 = scalar_lea.vmem %s1, 638
    %2310 = vst [vmem:[%s2309] sm:$0x4] %v2304
    %s2311 = scalar_lea.vmem [#allocation0], 1032
    %v2312 = vld [vmem:[%s2311] sm:$0x7]
    %s2313 = scalar_lea.vmem %s1, 129
    %2314 = vst [vmem:[%s2313] sm:$0x1] %v2312
    %s2315 = scalar_lea.vmem %s1, 384
    %2316 = vst [vmem:[%s2315] sm:$0x2] %v2312
    %s2317 = scalar_lea.vmem %s1, 639
    %2318 = vst [vmem:[%s2317] sm:$0x4] %v2312
    %s2319 = scalar_lea.vmem [#allocation0], 1040
    %v2320 = vld [vmem:[%s2319] sm:$0x7]
    %s2321 = scalar_lea.vmem %s1, 130
    %2322 = vst [vmem:[%s2321] sm:$0x1] %v2320
    %s2323 = scalar_lea.vmem %s1, 385
    %2324 = vst [vmem:[%s2323] sm:$0x2] %v2320
    %s2325 = scalar_lea.vmem %s1, 640
    %2326 = vst [vmem:[%s2325] sm:$0x4] %v2320
    %s2327 = scalar_lea.vmem [#allocation0], 1048
    %v2328 = vld [vmem:[%s2327] sm:$0x7]
    %s2329 = scalar_lea.vmem %s1, 131
    %2330 = vst [vmem:[%s2329] sm:$0x1] %v2328
    %s2331 = scalar_lea.vmem %s1, 386
    %2332 = vst [vmem:[%s2331] sm:$0x2] %v2328
    %s2333 = scalar_lea.vmem %s1, 641
    %2334 = vst [vmem:[%s2333] sm:$0x4] %v2328
    %s2335 = scalar_lea.vmem [#allocation0], 1056
    %v2336 = vld [vmem:[%s2335] sm:$0x7]
    %s2337 = scalar_lea.vmem %s1, 132
    %2338 = vst [vmem:[%s2337] sm:$0x1] %v2336
    %s2339 = scalar_lea.vmem %s1, 387
    %2340 = vst [vmem:[%s2339] sm:$0x2] %v2336
    %s2341 = scalar_lea.vmem %s1, 642
    %2342 = vst [vmem:[%s2341] sm:$0x4] %v2336
    %s2343 = scalar_lea.vmem [#allocation0], 1064
    %v2344 = vld [vmem:[%s2343] sm:$0x7]
    %s2345 = scalar_lea.vmem %s1, 133
    %2346 = vst [vmem:[%s2345] sm:$0x1] %v2344
    %s2347 = scalar_lea.vmem %s1, 388
    %2348 = vst [vmem:[%s2347] sm:$0x2] %v2344
    %s2349 = scalar_lea.vmem %s1, 643
    %2350 = vst [vmem:[%s2349] sm:$0x4] %v2344
    %s2351 = scalar_lea.vmem [#allocation0], 1072
    %v2352 = vld [vmem:[%s2351] sm:$0x7]
    %s2353 = scalar_lea.vmem %s1, 134
    %2354 = vst [vmem:[%s2353] sm:$0x1] %v2352
    %s2355 = scalar_lea.vmem %s1, 389
    %2356 = vst [vmem:[%s2355] sm:$0x2] %v2352
    %s2357 = scalar_lea.vmem %s1, 644
    %2358 = vst [vmem:[%s2357] sm:$0x4] %v2352
    %s2359 = scalar_lea.vmem [#allocation0], 1080
    %v2360 = vld [vmem:[%s2359] sm:$0x7]
    %s2361 = scalar_lea.vmem %s1, 135
    %2362 = vst [vmem:[%s2361] sm:$0x1] %v2360
    %s2363 = scalar_lea.vmem %s1, 390
    %2364 = vst [vmem:[%s2363] sm:$0x2] %v2360
    %s2365 = scalar_lea.vmem %s1, 645
    %2366 = vst [vmem:[%s2365] sm:$0x4] %v2360
    %s2367 = scalar_lea.vmem [#allocation0], 1088
    %v2368 = vld [vmem:[%s2367] sm:$0x7]
    %s2369 = scalar_lea.vmem %s1, 136
    %2370 = vst [vmem:[%s2369] sm:$0x1] %v2368
    %s2371 = scalar_lea.vmem %s1, 391
    %2372 = vst [vmem:[%s2371] sm:$0x2] %v2368
    %s2373 = scalar_lea.vmem %s1, 646
    %2374 = vst [vmem:[%s2373] sm:$0x4] %v2368
    %s2375 = scalar_lea.vmem [#allocation0], 1096
    %v2376 = vld [vmem:[%s2375] sm:$0x7]
    %s2377 = scalar_lea.vmem %s1, 137
    %2378 = vst [vmem:[%s2377] sm:$0x1] %v2376
    %s2379 = scalar_lea.vmem %s1, 392
    %2380 = vst [vmem:[%s2379] sm:$0x2] %v2376
    %s2381 = scalar_lea.vmem %s1, 647
    %2382 = vst [vmem:[%s2381] sm:$0x4] %v2376
    %s2383 = scalar_lea.vmem [#allocation0], 1104
    %v2384 = vld [vmem:[%s2383] sm:$0x7]
    %s2385 = scalar_lea.vmem %s1, 138
    %2386 = vst [vmem:[%s2385] sm:$0x1] %v2384
    %s2387 = scalar_lea.vmem %s1, 393
    %2388 = vst [vmem:[%s2387] sm:$0x2] %v2384
    %s2389 = scalar_lea.vmem %s1, 648
    %2390 = vst [vmem:[%s2389] sm:$0x4] %v2384
    %s2391 = scalar_lea.vmem [#allocation0], 1112
    %v2392 = vld [vmem:[%s2391] sm:$0x7]
    %s2393 = scalar_lea.vmem %s1, 139
    %2394 = vst [vmem:[%s2393] sm:$0x1] %v2392
    %s2395 = scalar_lea.vmem %s1, 394
    %2396 = vst [vmem:[%s2395] sm:$0x2] %v2392
    %s2397 = scalar_lea.vmem %s1, 649
    %2398 = vst [vmem:[%s2397] sm:$0x4] %v2392
    %s2399 = scalar_lea.vmem [#allocation0], 1120
    %v2400 = vld [vmem:[%s2399] sm:$0x7]
    %s2401 = scalar_lea.vmem %s1, 140
    %2402 = vst [vmem:[%s2401] sm:$0x1] %v2400
    %s2403 = scalar_lea.vmem %s1, 395
    %2404 = vst [vmem:[%s2403] sm:$0x2] %v2400
    %s2405 = scalar_lea.vmem %s1, 650
    %2406 = vst [vmem:[%s2405] sm:$0x4] %v2400
    %s2407 = scalar_lea.vmem [#allocation0], 1128
    %v2408 = vld [vmem:[%s2407] sm:$0x7]
    %s2409 = scalar_lea.vmem %s1, 141
    %2410 = vst [vmem:[%s2409] sm:$0x1] %v2408
    %s2411 = scalar_lea.vmem %s1, 396
    %2412 = vst [vmem:[%s2411] sm:$0x2] %v2408
    %s2413 = scalar_lea.vmem %s1, 651
    %2414 = vst [vmem:[%s2413] sm:$0x4] %v2408
    %s2415 = scalar_lea.vmem [#allocation0], 1136
    %v2416 = vld [vmem:[%s2415] sm:$0x7]
    %s2417 = scalar_lea.vmem %s1, 142
    %2418 = vst [vmem:[%s2417] sm:$0x1] %v2416
    %s2419 = scalar_lea.vmem %s1, 397
    %2420 = vst [vmem:[%s2419] sm:$0x2] %v2416
    %s2421 = scalar_lea.vmem %s1, 652
    %2422 = vst [vmem:[%s2421] sm:$0x4] %v2416
    %s2423 = scalar_lea.vmem [#allocation0], 1144
    %v2424 = vld [vmem:[%s2423] sm:$0x7]
    %s2425 = scalar_lea.vmem %s1, 143
    %2426 = vst [vmem:[%s2425] sm:$0x1] %v2424
    %s2427 = scalar_lea.vmem %s1, 398
    %2428 = vst [vmem:[%s2427] sm:$0x2] %v2424
    %s2429 = scalar_lea.vmem %s1, 653
    %2430 = vst [vmem:[%s2429] sm:$0x4] %v2424
    %s2431 = scalar_lea.vmem [#allocation0], 1152
    %v2432 = vld [vmem:[%s2431] sm:$0x7]
    %s2433 = scalar_lea.vmem %s1, 144
    %2434 = vst [vmem:[%s2433] sm:$0x1] %v2432
    %s2435 = scalar_lea.vmem %s1, 399
    %2436 = vst [vmem:[%s2435] sm:$0x2] %v2432
    %s2437 = scalar_lea.vmem %s1, 654
    %2438 = vst [vmem:[%s2437] sm:$0x4] %v2432
    %s2439 = scalar_lea.vmem [#allocation0], 1160
    %v2440 = vld [vmem:[%s2439] sm:$0x7]
    %s2441 = scalar_lea.vmem %s1, 145
    %2442 = vst [vmem:[%s2441] sm:$0x1] %v2440
    %s2443 = scalar_lea.vmem %s1, 400
    %2444 = vst [vmem:[%s2443] sm:$0x2] %v2440
    %s2445 = scalar_lea.vmem %s1, 655
    %2446 = vst [vmem:[%s2445] sm:$0x4] %v2440
    %s2447 = scalar_lea.vmem [#allocation0], 1168
    %v2448 = vld [vmem:[%s2447] sm:$0x7]
    %s2449 = scalar_lea.vmem %s1, 146
    %2450 = vst [vmem:[%s2449] sm:$0x1] %v2448
    %s2451 = scalar_lea.vmem %s1, 401
    %2452 = vst [vmem:[%s2451] sm:$0x2] %v2448
    %s2453 = scalar_lea.vmem %s1, 656
    %2454 = vst [vmem:[%s2453] sm:$0x4] %v2448
    %s2455 = scalar_lea.vmem [#allocation0], 1176
    %v2456 = vld [vmem:[%s2455] sm:$0x7]
    %s2457 = scalar_lea.vmem %s1, 147
    %2458 = vst [vmem:[%s2457] sm:$0x1] %v2456
    %s2459 = scalar_lea.vmem %s1, 402
    %2460 = vst [vmem:[%s2459] sm:$0x2] %v2456
    %s2461 = scalar_lea.vmem %s1, 657
    %2462 = vst [vmem:[%s2461] sm:$0x4] %v2456
    %s2463 = scalar_lea.vmem [#allocation0], 1184
    %v2464 = vld [vmem:[%s2463] sm:$0x7]
    %s2465 = scalar_lea.vmem %s1, 148
    %2466 = vst [vmem:[%s2465] sm:$0x1] %v2464
    %s2467 = scalar_lea.vmem %s1, 403
    %2468 = vst [vmem:[%s2467] sm:$0x2] %v2464
    %s2469 = scalar_lea.vmem %s1, 658
    %2470 = vst [vmem:[%s2469] sm:$0x4] %v2464
    %s2471 = scalar_lea.vmem [#allocation0], 1192
    %v2472 = vld [vmem:[%s2471] sm:$0x7]
    %s2473 = scalar_lea.vmem %s1, 149
    %2474 = vst [vmem:[%s2473] sm:$0x1] %v2472
    %s2475 = scalar_lea.vmem %s1, 404
    %2476 = vst [vmem:[%s2475] sm:$0x2] %v2472
    %s2477 = scalar_lea.vmem %s1, 659
    %2478 = vst [vmem:[%s2477] sm:$0x4] %v2472
    %s2479 = scalar_lea.vmem [#allocation0], 1200
    %v2480 = vld [vmem:[%s2479] sm:$0x7]
    %s2481 = scalar_lea.vmem %s1, 150
    %2482 = vst [vmem:[%s2481] sm:$0x1] %v2480
    %s2483 = scalar_lea.vmem %s1, 405
    %2484 = vst [vmem:[%s2483] sm:$0x2] %v2480
    %s2485 = scalar_lea.vmem %s1, 660
    %2486 = vst [vmem:[%s2485] sm:$0x4] %v2480
    %s2487 = scalar_lea.vmem [#allocation0], 1208
    %v2488 = vld [vmem:[%s2487] sm:$0x7]
    %s2489 = scalar_lea.vmem %s1, 151
    %2490 = vst [vmem:[%s2489] sm:$0x1] %v2488
    %s2491 = scalar_lea.vmem %s1, 406
    %2492 = vst [vmem:[%s2491] sm:$0x2] %v2488
    %s2493 = scalar_lea.vmem %s1, 661
    %2494 = vst [vmem:[%s2493] sm:$0x4] %v2488
    %s2495 = scalar_lea.vmem [#allocation0], 1216
    %v2496 = vld [vmem:[%s2495] sm:$0x7]
    %s2497 = scalar_lea.vmem %s1, 152
    %2498 = vst [vmem:[%s2497] sm:$0x1] %v2496
    %s2499 = scalar_lea.vmem %s1, 407
    %2500 = vst [vmem:[%s2499] sm:$0x2] %v2496
    %s2501 = scalar_lea.vmem %s1, 662
    %2502 = vst [vmem:[%s2501] sm:$0x4] %v2496
    %s2503 = scalar_lea.vmem [#allocation0], 1224
    %v2504 = vld [vmem:[%s2503] sm:$0x7]
    %s2505 = scalar_lea.vmem %s1, 153
    %2506 = vst [vmem:[%s2505] sm:$0x1] %v2504
    %s2507 = scalar_lea.vmem %s1, 408
    %2508 = vst [vmem:[%s2507] sm:$0x2] %v2504
    %s2509 = scalar_lea.vmem %s1, 663
    %2510 = vst [vmem:[%s2509] sm:$0x4] %v2504
    %s2511 = scalar_lea.vmem [#allocation0], 1232
    %v2512 = vld [vmem:[%s2511] sm:$0x7]
    %s2513 = scalar_lea.vmem %s1, 154
    %2514 = vst [vmem:[%s2513] sm:$0x1] %v2512
    %s2515 = scalar_lea.vmem %s1, 409
    %2516 = vst [vmem:[%s2515] sm:$0x2] %v2512
    %s2517 = scalar_lea.vmem %s1, 664
    %2518 = vst [vmem:[%s2517] sm:$0x4] %v2512
    %s2519 = scalar_lea.vmem [#allocation0], 1240
    %v2520 = vld [vmem:[%s2519] sm:$0x7]
    %s2521 = scalar_lea.vmem %s1, 155
    %2522 = vst [vmem:[%s2521] sm:$0x1] %v2520
    %s2523 = scalar_lea.vmem %s1, 410
    %2524 = vst [vmem:[%s2523] sm:$0x2] %v2520
    %s2525 = scalar_lea.vmem %s1, 665
    %2526 = vst [vmem:[%s2525] sm:$0x4] %v2520
    %s2527 = scalar_lea.vmem [#allocation0], 1248
    %v2528 = vld [vmem:[%s2527] sm:$0x7]
    %s2529 = scalar_lea.vmem %s1, 156
    %2530 = vst [vmem:[%s2529] sm:$0x1] %v2528
    %s2531 = scalar_lea.vmem %s1, 411
    %2532 = vst [vmem:[%s2531] sm:$0x2] %v2528
    %s2533 = scalar_lea.vmem %s1, 666
    %2534 = vst [vmem:[%s2533] sm:$0x4] %v2528
    %s2535 = scalar_lea.vmem [#allocation0], 1256
    %v2536 = vld [vmem:[%s2535] sm:$0x7]
    %s2537 = scalar_lea.vmem %s1, 157
    %2538 = vst [vmem:[%s2537] sm:$0x1] %v2536
    %s2539 = scalar_lea.vmem %s1, 412
    %2540 = vst [vmem:[%s2539] sm:$0x2] %v2536
    %s2541 = scalar_lea.vmem %s1, 667
    %2542 = vst [vmem:[%s2541] sm:$0x4] %v2536
    %s2543 = scalar_lea.vmem [#allocation0], 1264
    %v2544 = vld [vmem:[%s2543] sm:$0x7]
    %s2545 = scalar_lea.vmem %s1, 158
    %2546 = vst [vmem:[%s2545] sm:$0x1] %v2544
    %s2547 = scalar_lea.vmem %s1, 413
    %2548 = vst [vmem:[%s2547] sm:$0x2] %v2544
    %s2549 = scalar_lea.vmem %s1, 668
    %2550 = vst [vmem:[%s2549] sm:$0x4] %v2544
    %s2551 = scalar_lea.vmem [#allocation0], 1272
    %v2552 = vld [vmem:[%s2551] sm:$0x7]
    %s2553 = scalar_lea.vmem %s1, 159
    %2554 = vst [vmem:[%s2553] sm:$0x1] %v2552
    %s2555 = scalar_lea.vmem %s1, 414
    %2556 = vst [vmem:[%s2555] sm:$0x2] %v2552
    %s2557 = scalar_lea.vmem %s1, 669
    %2558 = vst [vmem:[%s2557] sm:$0x4] %v2552
    %s2559 = scalar_lea.vmem [#allocation0], 1280
    %v2560 = vld [vmem:[%s2559] sm:$0x7]
    %s2561 = scalar_lea.vmem %s1, 160
    %2562 = vst [vmem:[%s2561] sm:$0x1] %v2560
    %s2563 = scalar_lea.vmem %s1, 415
    %2564 = vst [vmem:[%s2563] sm:$0x2] %v2560
    %s2565 = scalar_lea.vmem %s1, 670
    %2566 = vst [vmem:[%s2565] sm:$0x4] %v2560
    %s2567 = scalar_lea.vmem [#allocation0], 1288
    %v2568 = vld [vmem:[%s2567] sm:$0x7]
    %s2569 = scalar_lea.vmem %s1, 161
    %2570 = vst [vmem:[%s2569] sm:$0x1] %v2568
    %s2571 = scalar_lea.vmem %s1, 416
    %2572 = vst [vmem:[%s2571] sm:$0x2] %v2568
    %s2573 = scalar_lea.vmem %s1, 671
    %2574 = vst [vmem:[%s2573] sm:$0x4] %v2568
    %s2575 = scalar_lea.vmem [#allocation0], 1296
    %v2576 = vld [vmem:[%s2575] sm:$0x7]
    %s2577 = scalar_lea.vmem %s1, 162
    %2578 = vst [vmem:[%s2577] sm:$0x1] %v2576
    %s2579 = scalar_lea.vmem %s1, 417
    %2580 = vst [vmem:[%s2579] sm:$0x2] %v2576
    %s2581 = scalar_lea.vmem %s1, 672
    %2582 = vst [vmem:[%s2581] sm:$0x4] %v2576
    %s2583 = scalar_lea.vmem [#allocation0], 1304
    %v2584 = vld [vmem:[%s2583] sm:$0x7]
    %s2585 = scalar_lea.vmem %s1, 163
    %2586 = vst [vmem:[%s2585] sm:$0x1] %v2584
    %s2587 = scalar_lea.vmem %s1, 418
    %2588 = vst [vmem:[%s2587] sm:$0x2] %v2584
    %s2589 = scalar_lea.vmem %s1, 673
    %2590 = vst [vmem:[%s2589] sm:$0x4] %v2584
    %s2591 = scalar_lea.vmem [#allocation0], 1312
    %v2592 = vld [vmem:[%s2591] sm:$0x7]
    %s2593 = scalar_lea.vmem %s1, 164
    %2594 = vst [vmem:[%s2593] sm:$0x1] %v2592
    %s2595 = scalar_lea.vmem %s1, 419
    %2596 = vst [vmem:[%s2595] sm:$0x2] %v2592
    %s2597 = scalar_lea.vmem %s1, 674
    %2598 = vst [vmem:[%s2597] sm:$0x4] %v2592
    %s2599 = scalar_lea.vmem [#allocation0], 1320
    %v2600 = vld [vmem:[%s2599] sm:$0x7]
    %s2601 = scalar_lea.vmem %s1, 165
    %2602 = vst [vmem:[%s2601] sm:$0x1] %v2600
    %s2603 = scalar_lea.vmem %s1, 420
    %2604 = vst [vmem:[%s2603] sm:$0x2] %v2600
    %s2605 = scalar_lea.vmem %s1, 675
    %2606 = vst [vmem:[%s2605] sm:$0x4] %v2600
    %s2607 = scalar_lea.vmem [#allocation0], 1328
    %v2608 = vld [vmem:[%s2607] sm:$0x7]
    %s2609 = scalar_lea.vmem %s1, 166
    %2610 = vst [vmem:[%s2609] sm:$0x1] %v2608
    %s2611 = scalar_lea.vmem %s1, 421
    %2612 = vst [vmem:[%s2611] sm:$0x2] %v2608
    %s2613 = scalar_lea.vmem %s1, 676
    %2614 = vst [vmem:[%s2613] sm:$0x4] %v2608
    %s2615 = scalar_lea.vmem [#allocation0], 1336
    %v2616 = vld [vmem:[%s2615] sm:$0x7]
    %s2617 = scalar_lea.vmem %s1, 167
    %2618 = vst [vmem:[%s2617] sm:$0x1] %v2616
    %s2619 = scalar_lea.vmem %s1, 422
    %2620 = vst [vmem:[%s2619] sm:$0x2] %v2616
    %s2621 = scalar_lea.vmem %s1, 677
    %2622 = vst [vmem:[%s2621] sm:$0x4] %v2616
    %s2623 = scalar_lea.vmem [#allocation0], 1344
    %v2624 = vld [vmem:[%s2623] sm:$0x7]
    %s2625 = scalar_lea.vmem %s1, 168
    %2626 = vst [vmem:[%s2625] sm:$0x1] %v2624
    %s2627 = scalar_lea.vmem %s1, 423
    %2628 = vst [vmem:[%s2627] sm:$0x2] %v2624
    %s2629 = scalar_lea.vmem %s1, 678
    %2630 = vst [vmem:[%s2629] sm:$0x4] %v2624
    %s2631 = scalar_lea.vmem [#allocation0], 1352
    %v2632 = vld [vmem:[%s2631] sm:$0x7]
    %s2633 = scalar_lea.vmem %s1, 169
    %2634 = vst [vmem:[%s2633] sm:$0x1] %v2632
    %s2635 = scalar_lea.vmem %s1, 424
    %2636 = vst [vmem:[%s2635] sm:$0x2] %v2632
    %s2637 = scalar_lea.vmem %s1, 679
    %2638 = vst [vmem:[%s2637] sm:$0x4] %v2632
    %s2639 = scalar_lea.vmem [#allocation0], 1360
    %v2640 = vld [vmem:[%s2639] sm:$0x7]
    %s2641 = scalar_lea.vmem %s1, 170
    %2642 = vst [vmem:[%s2641] sm:$0x1] %v2640
    %s2643 = scalar_lea.vmem %s1, 425
    %2644 = vst [vmem:[%s2643] sm:$0x2] %v2640
    %s2645 = scalar_lea.vmem %s1, 680
    %2646 = vst [vmem:[%s2645] sm:$0x4] %v2640
    %s2647 = scalar_lea.vmem [#allocation0], 1368
    %v2648 = vld [vmem:[%s2647] sm:$0x7]
    %s2649 = scalar_lea.vmem %s1, 171
    %2650 = vst [vmem:[%s2649] sm:$0x1] %v2648
    %s2651 = scalar_lea.vmem %s1, 426
    %2652 = vst [vmem:[%s2651] sm:$0x2] %v2648
    %s2653 = scalar_lea.vmem %s1, 681
    %2654 = vst [vmem:[%s2653] sm:$0x4] %v2648
    %s2655 = scalar_lea.vmem [#allocation0], 1376
    %v2656 = vld [vmem:[%s2655] sm:$0x7]
    %s2657 = scalar_lea.vmem %s1, 172
    %2658 = vst [vmem:[%s2657] sm:$0x1] %v2656
    %s2659 = scalar_lea.vmem %s1, 427
    %2660 = vst [vmem:[%s2659] sm:$0x2] %v2656
    %s2661 = scalar_lea.vmem %s1, 682
    %2662 = vst [vmem:[%s2661] sm:$0x4] %v2656
    %s2663 = scalar_lea.vmem [#allocation0], 1384
    %v2664 = vld [vmem:[%s2663] sm:$0x7]
    %s2665 = scalar_lea.vmem %s1, 173
    %2666 = vst [vmem:[%s2665] sm:$0x1] %v2664
    %s2667 = scalar_lea.vmem %s1, 428
    %2668 = vst [vmem:[%s2667] sm:$0x2] %v2664
    %s2669 = scalar_lea.vmem %s1, 683
    %2670 = vst [vmem:[%s2669] sm:$0x4] %v2664
    %s2671 = scalar_lea.vmem [#allocation0], 1392
    %v2672 = vld [vmem:[%s2671] sm:$0x7]
    %s2673 = scalar_lea.vmem %s1, 174
    %2674 = vst [vmem:[%s2673] sm:$0x1] %v2672
    %s2675 = scalar_lea.vmem %s1, 429
    %2676 = vst [vmem:[%s2675] sm:$0x2] %v2672
    %s2677 = scalar_lea.vmem %s1, 684
    %2678 = vst [vmem:[%s2677] sm:$0x4] %v2672
    %s2679 = scalar_lea.vmem [#allocation0], 1400
    %v2680 = vld [vmem:[%s2679] sm:$0x7]
    %s2681 = scalar_lea.vmem %s1, 175
    %2682 = vst [vmem:[%s2681] sm:$0x1] %v2680
    %s2683 = scalar_lea.vmem %s1, 430
    %2684 = vst [vmem:[%s2683] sm:$0x2] %v2680
    %s2685 = scalar_lea.vmem %s1, 685
    %2686 = vst [vmem:[%s2685] sm:$0x4] %v2680
    %s2687 = scalar_lea.vmem [#allocation0], 1408
    %v2688 = vld [vmem:[%s2687] sm:$0x7]
    %s2689 = scalar_lea.vmem %s1, 176
    %2690 = vst [vmem:[%s2689] sm:$0x1] %v2688
    %s2691 = scalar_lea.vmem %s1, 431
    %2692 = vst [vmem:[%s2691] sm:$0x2] %v2688
    %s2693 = scalar_lea.vmem %s1, 686
    %2694 = vst [vmem:[%s2693] sm:$0x4] %v2688
    %s2695 = scalar_lea.vmem [#allocation0], 1416
    %v2696 = vld [vmem:[%s2695] sm:$0x7]
    %s2697 = scalar_lea.vmem %s1, 177
    %2698 = vst [vmem:[%s2697] sm:$0x1] %v2696
    %s2699 = scalar_lea.vmem %s1, 432
    %2700 = vst [vmem:[%s2699] sm:$0x2] %v2696
    %s2701 = scalar_lea.vmem %s1, 687
    %2702 = vst [vmem:[%s2701] sm:$0x4] %v2696
    %s2703 = scalar_lea.vmem [#allocation0], 1424
    %v2704 = vld [vmem:[%s2703] sm:$0x7]
    %s2705 = scalar_lea.vmem %s1, 178
    %2706 = vst [vmem:[%s2705] sm:$0x1] %v2704
    %s2707 = scalar_lea.vmem %s1, 433
    %2708 = vst [vmem:[%s2707] sm:$0x2] %v2704
    %s2709 = scalar_lea.vmem %s1, 688
    %2710 = vst [vmem:[%s2709] sm:$0x4] %v2704
    %s2711 = scalar_lea.vmem [#allocation0], 1432
    %v2712 = vld [vmem:[%s2711] sm:$0x7]
    %s2713 = scalar_lea.vmem %s1, 179
    %2714 = vst [vmem:[%s2713] sm:$0x1] %v2712
    %s2715 = scalar_lea.vmem %s1, 434
    %2716 = vst [vmem:[%s2715] sm:$0x2] %v2712
    %s2717 = scalar_lea.vmem %s1, 689
    %2718 = vst [vmem:[%s2717] sm:$0x4] %v2712
    %s2719 = scalar_lea.vmem [#allocation0], 1440
    %v2720 = vld [vmem:[%s2719] sm:$0x7]
    %s2721 = scalar_lea.vmem %s1, 180
    %2722 = vst [vmem:[%s2721] sm:$0x1] %v2720
    %s2723 = scalar_lea.vmem %s1, 435
    %2724 = vst [vmem:[%s2723] sm:$0x2] %v2720
    %s2725 = scalar_lea.vmem %s1, 690
    %2726 = vst [vmem:[%s2725] sm:$0x4] %v2720
    %s2727 = scalar_lea.vmem [#allocation0], 1448
    %v2728 = vld [vmem:[%s2727] sm:$0x7]
    %s2729 = scalar_lea.vmem %s1, 181
    %2730 = vst [vmem:[%s2729] sm:$0x1] %v2728
    %s2731 = scalar_lea.vmem %s1, 436
    %2732 = vst [vmem:[%s2731] sm:$0x2] %v2728
    %s2733 = scalar_lea.vmem %s1, 691
    %2734 = vst [vmem:[%s2733] sm:$0x4] %v2728
    %s2735 = scalar_lea.vmem [#allocation0], 1456
    %v2736 = vld [vmem:[%s2735] sm:$0x7]
    %s2737 = scalar_lea.vmem %s1, 182
    %2738 = vst [vmem:[%s2737] sm:$0x1] %v2736
    %s2739 = scalar_lea.vmem %s1, 437
    %2740 = vst [vmem:[%s2739] sm:$0x2] %v2736
    %s2741 = scalar_lea.vmem %s1, 692
    %2742 = vst [vmem:[%s2741] sm:$0x4] %v2736
    %s2743 = scalar_lea.vmem [#allocation0], 1464
    %v2744 = vld [vmem:[%s2743] sm:$0x7]
    %s2745 = scalar_lea.vmem %s1, 183
    %2746 = vst [vmem:[%s2745] sm:$0x1] %v2744
    %s2747 = scalar_lea.vmem %s1, 438
    %2748 = vst [vmem:[%s2747] sm:$0x2] %v2744
    %s2749 = scalar_lea.vmem %s1, 693
    %2750 = vst [vmem:[%s2749] sm:$0x4] %v2744
    %s2751 = scalar_lea.vmem [#allocation0], 1472
    %v2752 = vld [vmem:[%s2751] sm:$0x7]
    %s2753 = scalar_lea.vmem %s1, 184
    %2754 = vst [vmem:[%s2753] sm:$0x1] %v2752
    %s2755 = scalar_lea.vmem %s1, 439
    %2756 = vst [vmem:[%s2755] sm:$0x2] %v2752
    %s2757 = scalar_lea.vmem %s1, 694
    %2758 = vst [vmem:[%s2757] sm:$0x4] %v2752
    %s2759 = scalar_lea.vmem [#allocation0], 1480
    %v2760 = vld [vmem:[%s2759] sm:$0x7]
    %s2761 = scalar_lea.vmem %s1, 185
    %2762 = vst [vmem:[%s2761] sm:$0x1] %v2760
    %s2763 = scalar_lea.vmem %s1, 440
    %2764 = vst [vmem:[%s2763] sm:$0x2] %v2760
    %s2765 = scalar_lea.vmem %s1, 695
    %2766 = vst [vmem:[%s2765] sm:$0x4] %v2760
    %s2767 = scalar_lea.vmem [#allocation0], 1488
    %v2768 = vld [vmem:[%s2767] sm:$0x7]
    %s2769 = scalar_lea.vmem %s1, 186
    %2770 = vst [vmem:[%s2769] sm:$0x1] %v2768
    %s2771 = scalar_lea.vmem %s1, 441
    %2772 = vst [vmem:[%s2771] sm:$0x2] %v2768
    %s2773 = scalar_lea.vmem %s1, 696
    %2774 = vst [vmem:[%s2773] sm:$0x4] %v2768
    %s2775 = scalar_lea.vmem [#allocation0], 1496
    %v2776 = vld [vmem:[%s2775] sm:$0x7]
    %s2777 = scalar_lea.vmem %s1, 187
    %2778 = vst [vmem:[%s2777] sm:$0x1] %v2776
    %s2779 = scalar_lea.vmem %s1, 442
    %2780 = vst [vmem:[%s2779] sm:$0x2] %v2776
    %s2781 = scalar_lea.vmem %s1, 697
    %2782 = vst [vmem:[%s2781] sm:$0x4] %v2776
    %s2783 = scalar_lea.vmem [#allocation0], 1504
    %v2784 = vld [vmem:[%s2783] sm:$0x7]
    %s2785 = scalar_lea.vmem %s1, 188
    %2786 = vst [vmem:[%s2785] sm:$0x1] %v2784
    %s2787 = scalar_lea.vmem %s1, 443
    %2788 = vst [vmem:[%s2787] sm:$0x2] %v2784
    %s2789 = scalar_lea.vmem %s1, 698
    %2790 = vst [vmem:[%s2789] sm:$0x4] %v2784
    %s2791 = scalar_lea.vmem [#allocation0], 1512
    %v2792 = vld [vmem:[%s2791] sm:$0x7]
    %s2793 = scalar_lea.vmem %s1, 189
    %2794 = vst [vmem:[%s2793] sm:$0x1] %v2792
    %s2795 = scalar_lea.vmem %s1, 444
    %2796 = vst [vmem:[%s2795] sm:$0x2] %v2792
    %s2797 = scalar_lea.vmem %s1, 699
    %2798 = vst [vmem:[%s2797] sm:$0x4] %v2792
    %s2799 = scalar_lea.vmem [#allocation0], 1520
    %v2800 = vld [vmem:[%s2799] sm:$0x7]
    %s2801 = scalar_lea.vmem %s1, 190
    %2802 = vst [vmem:[%s2801] sm:$0x1] %v2800
    %s2803 = scalar_lea.vmem %s1, 445
    %2804 = vst [vmem:[%s2803] sm:$0x2] %v2800
    %s2805 = scalar_lea.vmem %s1, 700
    %2806 = vst [vmem:[%s2805] sm:$0x4] %v2800
    %s2807 = scalar_lea.vmem [#allocation0], 1528
    %v2808 = vld [vmem:[%s2807] sm:$0x7]
    %s2809 = scalar_lea.vmem %s1, 191
    %2810 = vst [vmem:[%s2809] sm:$0x1] %v2808
    %s2811 = scalar_lea.vmem %s1, 446
    %2812 = vst [vmem:[%s2811] sm:$0x2] %v2808
    %s2813 = scalar_lea.vmem %s1, 701
    %2814 = vst [vmem:[%s2813] sm:$0x4] %v2808
    %s2815 = scalar_lea.vmem [#allocation0], 1536
    %v2816 = vld [vmem:[%s2815] sm:$0x7]
    %s2817 = scalar_lea.vmem %s1, 192
    %2818 = vst [vmem:[%s2817] sm:$0x1] %v2816
    %s2819 = scalar_lea.vmem %s1, 447
    %2820 = vst [vmem:[%s2819] sm:$0x2] %v2816
    %s2821 = scalar_lea.vmem %s1, 702
    %2822 = vst [vmem:[%s2821] sm:$0x4] %v2816
    %s2823 = scalar_lea.vmem [#allocation0], 1544
    %v2824 = vld [vmem:[%s2823] sm:$0x7]
    %s2825 = scalar_lea.vmem %s1, 193
    %2826 = vst [vmem:[%s2825] sm:$0x1] %v2824
    %s2827 = scalar_lea.vmem %s1, 448
    %2828 = vst [vmem:[%s2827] sm:$0x2] %v2824
    %s2829 = scalar_lea.vmem %s1, 703
    %2830 = vst [vmem:[%s2829] sm:$0x4] %v2824
    %s2831 = scalar_lea.vmem [#allocation0], 1552
    %v2832 = vld [vmem:[%s2831] sm:$0x7]
    %s2833 = scalar_lea.vmem %s1, 194
    %2834 = vst [vmem:[%s2833] sm:$0x1] %v2832
    %s2835 = scalar_lea.vmem %s1, 449
    %2836 = vst [vmem:[%s2835] sm:$0x2] %v2832
    %s2837 = scalar_lea.vmem %s1, 704
    %2838 = vst [vmem:[%s2837] sm:$0x4] %v2832
    %s2839 = scalar_lea.vmem [#allocation0], 1560
    %v2840 = vld [vmem:[%s2839] sm:$0x7]
    %s2841 = scalar_lea.vmem %s1, 195
    %2842 = vst [vmem:[%s2841] sm:$0x1] %v2840
    %s2843 = scalar_lea.vmem %s1, 450
    %2844 = vst [vmem:[%s2843] sm:$0x2] %v2840
    %s2845 = scalar_lea.vmem %s1, 705
    %2846 = vst [vmem:[%s2845] sm:$0x4] %v2840
    %s2847 = scalar_lea.vmem [#allocation0], 1568
    %v2848 = vld [vmem:[%s2847] sm:$0x7]
    %s2849 = scalar_lea.vmem %s1, 196
    %2850 = vst [vmem:[%s2849] sm:$0x1] %v2848
    %s2851 = scalar_lea.vmem %s1, 451
    %2852 = vst [vmem:[%s2851] sm:$0x2] %v2848
    %s2853 = scalar_lea.vmem %s1, 706
    %2854 = vst [vmem:[%s2853] sm:$0x4] %v2848
    %s2855 = scalar_lea.vmem [#allocation0], 1576
    %v2856 = vld [vmem:[%s2855] sm:$0x7]
    %s2857 = scalar_lea.vmem %s1, 197
    %2858 = vst [vmem:[%s2857] sm:$0x1] %v2856
    %s2859 = scalar_lea.vmem %s1, 452
    %2860 = vst [vmem:[%s2859] sm:$0x2] %v2856
    %s2861 = scalar_lea.vmem %s1, 707
    %2862 = vst [vmem:[%s2861] sm:$0x4] %v2856
    %s2863 = scalar_lea.vmem [#allocation0], 1584
    %v2864 = vld [vmem:[%s2863] sm:$0x7]
    %s2865 = scalar_lea.vmem %s1, 198
    %2866 = vst [vmem:[%s2865] sm:$0x1] %v2864
    %s2867 = scalar_lea.vmem %s1, 453
    %2868 = vst [vmem:[%s2867] sm:$0x2] %v2864
    %s2869 = scalar_lea.vmem %s1, 708
    %2870 = vst [vmem:[%s2869] sm:$0x4] %v2864
    %s2871 = scalar_lea.vmem [#allocation0], 1592
    %v2872 = vld [vmem:[%s2871] sm:$0x7]
    %s2873 = scalar_lea.vmem %s1, 199
    %2874 = vst [vmem:[%s2873] sm:$0x1] %v2872
    %s2875 = scalar_lea.vmem %s1, 454
    %2876 = vst [vmem:[%s2875] sm:$0x2] %v2872
    %s2877 = scalar_lea.vmem %s1, 709
    %2878 = vst [vmem:[%s2877] sm:$0x4] %v2872
    %s2879 = scalar_lea.vmem [#allocation0], 1600
    %v2880 = vld [vmem:[%s2879] sm:$0x7]
    %s2881 = scalar_lea.vmem %s1, 200
    %2882 = vst [vmem:[%s2881] sm:$0x1] %v2880
    %s2883 = scalar_lea.vmem %s1, 455
    %2884 = vst [vmem:[%s2883] sm:$0x2] %v2880
    %s2885 = scalar_lea.vmem %s1, 710
    %2886 = vst [vmem:[%s2885] sm:$0x4] %v2880
    %s2887 = scalar_lea.vmem [#allocation0], 1608
    %v2888 = vld [vmem:[%s2887] sm:$0x7]
    %s2889 = scalar_lea.vmem %s1, 201
    %2890 = vst [vmem:[%s2889] sm:$0x1] %v2888
    %s2891 = scalar_lea.vmem %s1, 456
    %2892 = vst [vmem:[%s2891] sm:$0x2] %v2888
    %s2893 = scalar_lea.vmem %s1, 711
    %2894 = vst [vmem:[%s2893] sm:$0x4] %v2888
    %s2895 = scalar_lea.vmem [#allocation0], 1616
    %v2896 = vld [vmem:[%s2895] sm:$0x7]
    %s2897 = scalar_lea.vmem %s1, 202
    %2898 = vst [vmem:[%s2897] sm:$0x1] %v2896
    %s2899 = scalar_lea.vmem %s1, 457
    %2900 = vst [vmem:[%s2899] sm:$0x2] %v2896
    %s2901 = scalar_lea.vmem %s1, 712
    %2902 = vst [vmem:[%s2901] sm:$0x4] %v2896
    %s2903 = scalar_lea.vmem [#allocation0], 1624
    %v2904 = vld [vmem:[%s2903] sm:$0x7]
    %s2905 = scalar_lea.vmem %s1, 203
    %2906 = vst [vmem:[%s2905] sm:$0x1] %v2904
    %s2907 = scalar_lea.vmem %s1, 458
    %2908 = vst [vmem:[%s2907] sm:$0x2] %v2904
    %s2909 = scalar_lea.vmem %s1, 713
    %2910 = vst [vmem:[%s2909] sm:$0x4] %v2904
    %s2911 = scalar_lea.vmem [#allocation0], 1632
    %v2912 = vld [vmem:[%s2911] sm:$0x7]
    %s2913 = scalar_lea.vmem %s1, 204
    %2914 = vst [vmem:[%s2913] sm:$0x1] %v2912
    %s2915 = scalar_lea.vmem %s1, 459
    %2916 = vst [vmem:[%s2915] sm:$0x2] %v2912
    %s2917 = scalar_lea.vmem %s1, 714
    %2918 = vst [vmem:[%s2917] sm:$0x4] %v2912
    %s2919 = scalar_lea.vmem [#allocation0], 1640
    %v2920 = vld [vmem:[%s2919] sm:$0x7]
    %s2921 = scalar_lea.vmem %s1, 205
    %2922 = vst [vmem:[%s2921] sm:$0x1] %v2920
    %s2923 = scalar_lea.vmem %s1, 460
    %2924 = vst [vmem:[%s2923] sm:$0x2] %v2920
    %s2925 = scalar_lea.vmem %s1, 715
    %2926 = vst [vmem:[%s2925] sm:$0x4] %v2920
    %s2927 = scalar_lea.vmem [#allocation0], 1648
    %v2928 = vld [vmem:[%s2927] sm:$0x7]
    %s2929 = scalar_lea.vmem %s1, 206
    %2930 = vst [vmem:[%s2929] sm:$0x1] %v2928
    %s2931 = scalar_lea.vmem %s1, 461
    %2932 = vst [vmem:[%s2931] sm:$0x2] %v2928
    %s2933 = scalar_lea.vmem %s1, 716
    %2934 = vst [vmem:[%s2933] sm:$0x4] %v2928
    %s2935 = scalar_lea.vmem [#allocation0], 1656
    %v2936 = vld [vmem:[%s2935] sm:$0x7]
    %s2937 = scalar_lea.vmem %s1, 207
    %2938 = vst [vmem:[%s2937] sm:$0x1] %v2936
    %s2939 = scalar_lea.vmem %s1, 462
    %2940 = vst [vmem:[%s2939] sm:$0x2] %v2936
    %s2941 = scalar_lea.vmem %s1, 717
    %2942 = vst [vmem:[%s2941] sm:$0x4] %v2936
    %s2943 = scalar_lea.vmem [#allocation0], 1664
    %v2944 = vld [vmem:[%s2943] sm:$0x7]
    %s2945 = scalar_lea.vmem %s1, 208
    %2946 = vst [vmem:[%s2945] sm:$0x1] %v2944
    %s2947 = scalar_lea.vmem %s1, 463
    %2948 = vst [vmem:[%s2947] sm:$0x2] %v2944
    %s2949 = scalar_lea.vmem %s1, 718
    %2950 = vst [vmem:[%s2949] sm:$0x4] %v2944
    %s2951 = scalar_lea.vmem [#allocation0], 1672
    %v2952 = vld [vmem:[%s2951] sm:$0x7]
    %s2953 = scalar_lea.vmem %s1, 209
    %2954 = vst [vmem:[%s2953] sm:$0x1] %v2952
    %s2955 = scalar_lea.vmem %s1, 464
    %2956 = vst [vmem:[%s2955] sm:$0x2] %v2952
    %s2957 = scalar_lea.vmem %s1, 719
    %2958 = vst [vmem:[%s2957] sm:$0x4] %v2952
    %s2959 = scalar_lea.vmem [#allocation0], 1680
    %v2960 = vld [vmem:[%s2959] sm:$0x7]
    %s2961 = scalar_lea.vmem %s1, 210
    %2962 = vst [vmem:[%s2961] sm:$0x1] %v2960
    %s2963 = scalar_lea.vmem %s1, 465
    %2964 = vst [vmem:[%s2963] sm:$0x2] %v2960
    %s2965 = scalar_lea.vmem %s1, 720
    %2966 = vst [vmem:[%s2965] sm:$0x4] %v2960
    %s2967 = scalar_lea.vmem [#allocation0], 1688
    %v2968 = vld [vmem:[%s2967] sm:$0x7]
    %s2969 = scalar_lea.vmem %s1, 211
    %2970 = vst [vmem:[%s2969] sm:$0x1] %v2968
    %s2971 = scalar_lea.vmem %s1, 466
    %2972 = vst [vmem:[%s2971] sm:$0x2] %v2968
    %s2973 = scalar_lea.vmem %s1, 721
    %2974 = vst [vmem:[%s2973] sm:$0x4] %v2968
    %s2975 = scalar_lea.vmem [#allocation0], 1696
    %v2976 = vld [vmem:[%s2975] sm:$0x7]
    %s2977 = scalar_lea.vmem %s1, 212
    %2978 = vst [vmem:[%s2977] sm:$0x1] %v2976
    %s2979 = scalar_lea.vmem %s1, 467
    %2980 = vst [vmem:[%s2979] sm:$0x2] %v2976
    %s2981 = scalar_lea.vmem %s1, 722
    %2982 = vst [vmem:[%s2981] sm:$0x4] %v2976
    %s2983 = scalar_lea.vmem [#allocation0], 1704
    %v2984 = vld [vmem:[%s2983] sm:$0x7]
    %s2985 = scalar_lea.vmem %s1, 213
    %2986 = vst [vmem:[%s2985] sm:$0x1] %v2984
    %s2987 = scalar_lea.vmem %s1, 468
    %2988 = vst [vmem:[%s2987] sm:$0x2] %v2984
    %s2989 = scalar_lea.vmem %s1, 723
    %2990 = vst [vmem:[%s2989] sm:$0x4] %v2984
    %s2991 = scalar_lea.vmem [#allocation0], 1712
    %v2992 = vld [vmem:[%s2991] sm:$0x7]
    %s2993 = scalar_lea.vmem %s1, 214
    %2994 = vst [vmem:[%s2993] sm:$0x1] %v2992
    %s2995 = scalar_lea.vmem %s1, 469
    %2996 = vst [vmem:[%s2995] sm:$0x2] %v2992
    %s2997 = scalar_lea.vmem %s1, 724
    %2998 = vst [vmem:[%s2997] sm:$0x4] %v2992
    %s2999 = scalar_lea.vmem [#allocation0], 1720
    %v3000 = vld [vmem:[%s2999] sm:$0x7]
    %s3001 = scalar_lea.vmem %s1, 215
    %3002 = vst [vmem:[%s3001] sm:$0x1] %v3000
    %s3003 = scalar_lea.vmem %s1, 470
    %3004 = vst [vmem:[%s3003] sm:$0x2] %v3000
    %s3005 = scalar_lea.vmem %s1, 725
    %3006 = vst [vmem:[%s3005] sm:$0x4] %v3000
    %s3007 = scalar_lea.vmem [#allocation0], 1728
    %v3008 = vld [vmem:[%s3007] sm:$0x7]
    %s3009 = scalar_lea.vmem %s1, 216
    %3010 = vst [vmem:[%s3009] sm:$0x1] %v3008
    %s3011 = scalar_lea.vmem %s1, 471
    %3012 = vst [vmem:[%s3011] sm:$0x2] %v3008
    %s3013 = scalar_lea.vmem %s1, 726
    %3014 = vst [vmem:[%s3013] sm:$0x4] %v3008
    %s3015 = scalar_lea.vmem [#allocation0], 1736
    %v3016 = vld [vmem:[%s3015] sm:$0x7]
    %s3017 = scalar_lea.vmem %s1, 217
    %3018 = vst [vmem:[%s3017] sm:$0x1] %v3016
    %s3019 = scalar_lea.vmem %s1, 472
    %3020 = vst [vmem:[%s3019] sm:$0x2] %v3016
    %s3021 = scalar_lea.vmem %s1, 727
    %3022 = vst [vmem:[%s3021] sm:$0x4] %v3016
    %s3023 = scalar_lea.vmem [#allocation0], 1744
    %v3024 = vld [vmem:[%s3023] sm:$0x7]
    %s3025 = scalar_lea.vmem %s1, 218
    %3026 = vst [vmem:[%s3025] sm:$0x1] %v3024
    %s3027 = scalar_lea.vmem %s1, 473
    %3028 = vst [vmem:[%s3027] sm:$0x2] %v3024
    %s3029 = scalar_lea.vmem %s1, 728
    %3030 = vst [vmem:[%s3029] sm:$0x4] %v3024
    %s3031 = scalar_lea.vmem [#allocation0], 1752
    %v3032 = vld [vmem:[%s3031] sm:$0x7]
    %s3033 = scalar_lea.vmem %s1, 219
    %3034 = vst [vmem:[%s3033] sm:$0x1] %v3032
    %s3035 = scalar_lea.vmem %s1, 474
    %3036 = vst [vmem:[%s3035] sm:$0x2] %v3032
    %s3037 = scalar_lea.vmem %s1, 729
    %3038 = vst [vmem:[%s3037] sm:$0x4] %v3032
    %s3039 = scalar_lea.vmem [#allocation0], 1760
    %v3040 = vld [vmem:[%s3039] sm:$0x7]
    %s3041 = scalar_lea.vmem %s1, 220
    %3042 = vst [vmem:[%s3041] sm:$0x1] %v3040
    %s3043 = scalar_lea.vmem %s1, 475
    %3044 = vst [vmem:[%s3043] sm:$0x2] %v3040
    %s3045 = scalar_lea.vmem %s1, 730
    %3046 = vst [vmem:[%s3045] sm:$0x4] %v3040
    %s3047 = scalar_lea.vmem [#allocation0], 1768
    %v3048 = vld [vmem:[%s3047] sm:$0x7]
    %s3049 = scalar_lea.vmem %s1, 221
    %3050 = vst [vmem:[%s3049] sm:$0x1] %v3048
    %s3051 = scalar_lea.vmem %s1, 476
    %3052 = vst [vmem:[%s3051] sm:$0x2] %v3048
    %s3053 = scalar_lea.vmem %s1, 731
    %3054 = vst [vmem:[%s3053] sm:$0x4] %v3048
    %s3055 = scalar_lea.vmem [#allocation0], 1776
    %v3056 = vld [vmem:[%s3055] sm:$0x7]
    %s3057 = scalar_lea.vmem %s1, 222
    %3058 = vst [vmem:[%s3057] sm:$0x1] %v3056
    %s3059 = scalar_lea.vmem %s1, 477
    %3060 = vst [vmem:[%s3059] sm:$0x2] %v3056
    %s3061 = scalar_lea.vmem %s1, 732
    %3062 = vst [vmem:[%s3061] sm:$0x4] %v3056
    %s3063 = scalar_lea.vmem [#allocation0], 1784
    %v3064 = vld [vmem:[%s3063] sm:$0x7]
    %s3065 = scalar_lea.vmem %s1, 223
    %3066 = vst [vmem:[%s3065] sm:$0x1] %v3064
    %s3067 = scalar_lea.vmem %s1, 478
    %3068 = vst [vmem:[%s3067] sm:$0x2] %v3064
    %s3069 = scalar_lea.vmem %s1, 733
    %3070 = vst [vmem:[%s3069] sm:$0x4] %v3064
    %s3071 = scalar_lea.vmem [#allocation0], 1792
    %v3072 = vld [vmem:[%s3071] sm:$0x7]
    %s3073 = scalar_lea.vmem %s1, 224
    %3074 = vst [vmem:[%s3073] sm:$0x1] %v3072
    %s3075 = scalar_lea.vmem %s1, 479
    %3076 = vst [vmem:[%s3075] sm:$0x2] %v3072
    %s3077 = scalar_lea.vmem %s1, 734
    %3078 = vst [vmem:[%s3077] sm:$0x4] %v3072
    %s3079 = scalar_lea.vmem [#allocation0], 1800
    %v3080 = vld [vmem:[%s3079] sm:$0x7]
    %s3081 = scalar_lea.vmem %s1, 225
    %3082 = vst [vmem:[%s3081] sm:$0x1] %v3080
    %s3083 = scalar_lea.vmem %s1, 480
    %3084 = vst [vmem:[%s3083] sm:$0x2] %v3080
    %s3085 = scalar_lea.vmem %s1, 735
    %3086 = vst [vmem:[%s3085] sm:$0x4] %v3080
    %s3087 = scalar_lea.vmem [#allocation0], 1808
    %v3088 = vld [vmem:[%s3087] sm:$0x7]
    %s3089 = scalar_lea.vmem %s1, 226
    %3090 = vst [vmem:[%s3089] sm:$0x1] %v3088
    %s3091 = scalar_lea.vmem %s1, 481
    %3092 = vst [vmem:[%s3091] sm:$0x2] %v3088
    %s3093 = scalar_lea.vmem %s1, 736
    %3094 = vst [vmem:[%s3093] sm:$0x4] %v3088
    %s3095 = scalar_lea.vmem [#allocation0], 1816
    %v3096 = vld [vmem:[%s3095] sm:$0x7]
    %s3097 = scalar_lea.vmem %s1, 227
    %3098 = vst [vmem:[%s3097] sm:$0x1] %v3096
    %s3099 = scalar_lea.vmem %s1, 482
    %3100 = vst [vmem:[%s3099] sm:$0x2] %v3096
    %s3101 = scalar_lea.vmem %s1, 737
    %3102 = vst [vmem:[%s3101] sm:$0x4] %v3096
    %s3103 = scalar_lea.vmem [#allocation0], 1824
    %v3104 = vld [vmem:[%s3103] sm:$0x7]
    %s3105 = scalar_lea.vmem %s1, 228
    %3106 = vst [vmem:[%s3105] sm:$0x1] %v3104
    %s3107 = scalar_lea.vmem %s1, 483
    %3108 = vst [vmem:[%s3107] sm:$0x2] %v3104
    %s3109 = scalar_lea.vmem %s1, 738
    %3110 = vst [vmem:[%s3109] sm:$0x4] %v3104
    %s3111 = scalar_lea.vmem [#allocation0], 1832
    %v3112 = vld [vmem:[%s3111] sm:$0x7]
    %s3113 = scalar_lea.vmem %s1, 229
    %3114 = vst [vmem:[%s3113] sm:$0x1] %v3112
    %s3115 = scalar_lea.vmem %s1, 484
    %3116 = vst [vmem:[%s3115] sm:$0x2] %v3112
    %s3117 = scalar_lea.vmem %s1, 739
    %3118 = vst [vmem:[%s3117] sm:$0x4] %v3112
    %s3119 = scalar_lea.vmem [#allocation0], 1840
    %v3120 = vld [vmem:[%s3119] sm:$0x7]
    %s3121 = scalar_lea.vmem %s1, 230
    %3122 = vst [vmem:[%s3121] sm:$0x1] %v3120
    %s3123 = scalar_lea.vmem %s1, 485
    %3124 = vst [vmem:[%s3123] sm:$0x2] %v3120
    %s3125 = scalar_lea.vmem %s1, 740
    %3126 = vst [vmem:[%s3125] sm:$0x4] %v3120
    %s3127 = scalar_lea.vmem [#allocation0], 1848
    %v3128 = vld [vmem:[%s3127] sm:$0x7]
    %s3129 = scalar_lea.vmem %s1, 231
    %3130 = vst [vmem:[%s3129] sm:$0x1] %v3128
    %s3131 = scalar_lea.vmem %s1, 486
    %3132 = vst [vmem:[%s3131] sm:$0x2] %v3128
    %s3133 = scalar_lea.vmem %s1, 741
    %3134 = vst [vmem:[%s3133] sm:$0x4] %v3128
    %s3135 = scalar_lea.vmem [#allocation0], 1856
    %v3136 = vld [vmem:[%s3135] sm:$0x7]
    %s3137 = scalar_lea.vmem %s1, 232
    %3138 = vst [vmem:[%s3137] sm:$0x1] %v3136
    %s3139 = scalar_lea.vmem %s1, 487
    %3140 = vst [vmem:[%s3139] sm:$0x2] %v3136
    %s3141 = scalar_lea.vmem %s1, 742
    %3142 = vst [vmem:[%s3141] sm:$0x4] %v3136
    %s3143 = scalar_lea.vmem [#allocation0], 1864
    %v3144 = vld [vmem:[%s3143] sm:$0x7]
    %s3145 = scalar_lea.vmem %s1, 233
    %3146 = vst [vmem:[%s3145] sm:$0x1] %v3144
    %s3147 = scalar_lea.vmem %s1, 488
    %3148 = vst [vmem:[%s3147] sm:$0x2] %v3144
    %s3149 = scalar_lea.vmem %s1, 743
    %3150 = vst [vmem:[%s3149] sm:$0x4] %v3144
    %s3151 = scalar_lea.vmem [#allocation0], 1872
    %v3152 = vld [vmem:[%s3151] sm:$0x7]
    %s3153 = scalar_lea.vmem %s1, 234
    %3154 = vst [vmem:[%s3153] sm:$0x1] %v3152
    %s3155 = scalar_lea.vmem %s1, 489
    %3156 = vst [vmem:[%s3155] sm:$0x2] %v3152
    %s3157 = scalar_lea.vmem %s1, 744
    %3158 = vst [vmem:[%s3157] sm:$0x4] %v3152
    %s3159 = scalar_lea.vmem [#allocation0], 1880
    %v3160 = vld [vmem:[%s3159] sm:$0x7]
    %s3161 = scalar_lea.vmem %s1, 235
    %3162 = vst [vmem:[%s3161] sm:$0x1] %v3160
    %s3163 = scalar_lea.vmem %s1, 490
    %3164 = vst [vmem:[%s3163] sm:$0x2] %v3160
    %s3165 = scalar_lea.vmem %s1, 745
    %3166 = vst [vmem:[%s3165] sm:$0x4] %v3160
    %s3167 = scalar_lea.vmem [#allocation0], 1888
    %v3168 = vld [vmem:[%s3167] sm:$0x7]
    %s3169 = scalar_lea.vmem %s1, 236
    %3170 = vst [vmem:[%s3169] sm:$0x1] %v3168
    %s3171 = scalar_lea.vmem %s1, 491
    %3172 = vst [vmem:[%s3171] sm:$0x2] %v3168
    %s3173 = scalar_lea.vmem %s1, 746
    %3174 = vst [vmem:[%s3173] sm:$0x4] %v3168
    %s3175 = scalar_lea.vmem [#allocation0], 1896
    %v3176 = vld [vmem:[%s3175] sm:$0x7]
    %s3177 = scalar_lea.vmem %s1, 237
    %3178 = vst [vmem:[%s3177] sm:$0x1] %v3176
    %s3179 = scalar_lea.vmem %s1, 492
    %3180 = vst [vmem:[%s3179] sm:$0x2] %v3176
    %s3181 = scalar_lea.vmem %s1, 747
    %3182 = vst [vmem:[%s3181] sm:$0x4] %v3176
    %s3183 = scalar_lea.vmem [#allocation0], 1904
    %v3184 = vld [vmem:[%s3183] sm:$0x7]
    %s3185 = scalar_lea.vmem %s1, 238
    %3186 = vst [vmem:[%s3185] sm:$0x1] %v3184
    %s3187 = scalar_lea.vmem %s1, 493
    %3188 = vst [vmem:[%s3187] sm:$0x2] %v3184
    %s3189 = scalar_lea.vmem %s1, 748
    %3190 = vst [vmem:[%s3189] sm:$0x4] %v3184
    %s3191 = scalar_lea.vmem [#allocation0], 1912
    %v3192 = vld [vmem:[%s3191] sm:$0x7]
    %s3193 = scalar_lea.vmem %s1, 239
    %3194 = vst [vmem:[%s3193] sm:$0x1] %v3192
    %s3195 = scalar_lea.vmem %s1, 494
    %3196 = vst [vmem:[%s3195] sm:$0x2] %v3192
    %s3197 = scalar_lea.vmem %s1, 749
    %3198 = vst [vmem:[%s3197] sm:$0x4] %v3192
    %s3199 = scalar_lea.vmem [#allocation0], 1920
    %v3200 = vld [vmem:[%s3199] sm:$0x7]
    %s3201 = scalar_lea.vmem %s1, 240
    %3202 = vst [vmem:[%s3201] sm:$0x1] %v3200
    %s3203 = scalar_lea.vmem %s1, 495
    %3204 = vst [vmem:[%s3203] sm:$0x2] %v3200
    %s3205 = scalar_lea.vmem %s1, 750
    %3206 = vst [vmem:[%s3205] sm:$0x4] %v3200
    %s3207 = scalar_lea.vmem [#allocation0], 1928
    %v3208 = vld [vmem:[%s3207] sm:$0x7]
    %s3209 = scalar_lea.vmem %s1, 241
    %3210 = vst [vmem:[%s3209] sm:$0x1] %v3208
    %s3211 = scalar_lea.vmem %s1, 496
    %3212 = vst [vmem:[%s3211] sm:$0x2] %v3208
    %s3213 = scalar_lea.vmem %s1, 751
    %3214 = vst [vmem:[%s3213] sm:$0x4] %v3208
    %s3215 = scalar_lea.vmem [#allocation0], 1936
    %v3216 = vld [vmem:[%s3215] sm:$0x7]
    %s3217 = scalar_lea.vmem %s1, 242
    %3218 = vst [vmem:[%s3217] sm:$0x1] %v3216
    %s3219 = scalar_lea.vmem %s1, 497
    %3220 = vst [vmem:[%s3219] sm:$0x2] %v3216
    %s3221 = scalar_lea.vmem %s1, 752
    %3222 = vst [vmem:[%s3221] sm:$0x4] %v3216
    %s3223 = scalar_lea.vmem [#allocation0], 1944
    %v3224 = vld [vmem:[%s3223] sm:$0x7]
    %s3225 = scalar_lea.vmem %s1, 243
    %3226 = vst [vmem:[%s3225] sm:$0x1] %v3224
    %s3227 = scalar_lea.vmem %s1, 498
    %3228 = vst [vmem:[%s3227] sm:$0x2] %v3224
    %s3229 = scalar_lea.vmem %s1, 753
    %3230 = vst [vmem:[%s3229] sm:$0x4] %v3224
    %s3231 = scalar_lea.vmem [#allocation0], 1952
    %v3232 = vld [vmem:[%s3231] sm:$0x7]
    %s3233 = scalar_lea.vmem %s1, 244
    %3234 = vst [vmem:[%s3233] sm:$0x1] %v3232
    %s3235 = scalar_lea.vmem %s1, 499
    %3236 = vst [vmem:[%s3235] sm:$0x2] %v3232
    %s3237 = scalar_lea.vmem %s1, 754
    %3238 = vst [vmem:[%s3237] sm:$0x4] %v3232
    %s3239 = scalar_lea.vmem [#allocation0], 1960
    %v3240 = vld [vmem:[%s3239] sm:$0x7]
    %s3241 = scalar_lea.vmem %s1, 245
    %3242 = vst [vmem:[%s3241] sm:$0x1] %v3240
    %s3243 = scalar_lea.vmem %s1, 500
    %3244 = vst [vmem:[%s3243] sm:$0x2] %v3240
    %s3245 = scalar_lea.vmem %s1, 755
    %3246 = vst [vmem:[%s3245] sm:$0x4] %v3240
    %s3247 = scalar_lea.vmem [#allocation0], 1968
    %v3248 = vld [vmem:[%s3247] sm:$0x7]
    %s3249 = scalar_lea.vmem %s1, 246
    %3250 = vst [vmem:[%s3249] sm:$0x1] %v3248
    %s3251 = scalar_lea.vmem %s1, 501
    %3252 = vst [vmem:[%s3251] sm:$0x2] %v3248
    %s3253 = scalar_lea.vmem %s1, 756
    %3254 = vst [vmem:[%s3253] sm:$0x4] %v3248
    %s3255 = scalar_lea.vmem [#allocation0], 1976
    %v3256 = vld [vmem:[%s3255] sm:$0x7]
    %s3257 = scalar_lea.vmem %s1, 247
    %3258 = vst [vmem:[%s3257] sm:$0x1] %v3256
    %s3259 = scalar_lea.vmem %s1, 502
    %3260 = vst [vmem:[%s3259] sm:$0x2] %v3256
    %s3261 = scalar_lea.vmem %s1, 757
    %3262 = vst [vmem:[%s3261] sm:$0x4] %v3256
    %s3263 = scalar_lea.vmem [#allocation0], 1984
    %v3264 = vld [vmem:[%s3263] sm:$0x7]
    %s3265 = scalar_lea.vmem %s1, 248
    %3266 = vst [vmem:[%s3265] sm:$0x1] %v3264
    %s3267 = scalar_lea.vmem %s1, 503
    %3268 = vst [vmem:[%s3267] sm:$0x2] %v3264
    %s3269 = scalar_lea.vmem %s1, 758
    %3270 = vst [vmem:[%s3269] sm:$0x4] %v3264
    %s3271 = scalar_lea.vmem [#allocation0], 1992
    %v3272 = vld [vmem:[%s3271] sm:$0x7]
    %s3273 = scalar_lea.vmem %s1, 249
    %3274 = vst [vmem:[%s3273] sm:$0x1] %v3272
    %s3275 = scalar_lea.vmem %s1, 504
    %3276 = vst [vmem:[%s3275] sm:$0x2] %v3272
    %s3277 = scalar_lea.vmem %s1, 759
    %3278 = vst [vmem:[%s3277] sm:$0x4] %v3272
    %s3279 = scalar_lea.vmem [#allocation0], 2000
    %v3280 = vld [vmem:[%s3279] sm:$0x7]
    %s3281 = scalar_lea.vmem %s1, 250
    %3282 = vst [vmem:[%s3281] sm:$0x1] %v3280
    %s3283 = scalar_lea.vmem %s1, 505
    %3284 = vst [vmem:[%s3283] sm:$0x2] %v3280
    %s3285 = scalar_lea.vmem %s1, 760
    %3286 = vst [vmem:[%s3285] sm:$0x4] %v3280
    %s3287 = scalar_lea.vmem [#allocation0], 2008
    %v3288 = vld [vmem:[%s3287] sm:$0x7]
    %s3289 = scalar_lea.vmem %s1, 251
    %3290 = vst [vmem:[%s3289] sm:$0x1] %v3288
    %s3291 = scalar_lea.vmem %s1, 506
    %3292 = vst [vmem:[%s3291] sm:$0x2] %v3288
    %s3293 = scalar_lea.vmem %s1, 761
    %3294 = vst [vmem:[%s3293] sm:$0x4] %v3288
    %s3295 = scalar_lea.vmem [#allocation0], 2016
    %v3296 = vld [vmem:[%s3295] sm:$0x7]
    %s3297 = scalar_lea.vmem %s1, 252
    %3298 = vst [vmem:[%s3297] sm:$0x1] %v3296
    %s3299 = scalar_lea.vmem %s1, 507
    %3300 = vst [vmem:[%s3299] sm:$0x2] %v3296
    %s3301 = scalar_lea.vmem %s1, 762
    %3302 = vst [vmem:[%s3301] sm:$0x4] %v3296
    %s3303 = scalar_lea.vmem [#allocation0], 2024
    %v3304 = vld [vmem:[%s3303] sm:$0x7]
    %s3305 = scalar_lea.vmem %s1, 253
    %3306 = vst [vmem:[%s3305] sm:$0x1] %v3304
    %s3307 = scalar_lea.vmem %s1, 508
    %3308 = vst [vmem:[%s3307] sm:$0x2] %v3304
    %s3309 = scalar_lea.vmem %s1, 763
    %3310 = vst [vmem:[%s3309] sm:$0x4] %v3304
    %s3311 = scalar_lea.vmem [#allocation0], 2032
    %v3312 = vld [vmem:[%s3311] sm:$0x7]
    %s3313 = scalar_lea.vmem %s1, 254
    %3314 = vst [vmem:[%s3313] sm:$0x1] %v3312
    %s3315 = scalar_lea.vmem %s1, 509
    %3316 = vst [vmem:[%s3315] sm:$0x2] %v3312
    %s3317 = scalar_lea.vmem %s1, 764
    %3318 = vst [vmem:[%s3317] sm:$0x4] %v3312
    %s3319 = scalar_lea.vmem [#allocation0], 2040
    %v3320 = vld [vmem:[%s3319] sm:$0x7]
    %s3321 = scalar_lea.vmem %s1, 255
    %3322 = vst [vmem:[%s3321] sm:$0x1] %v3320
    %s3323 = scalar_lea.vmem %s1, 510
    %3324 = vst [vmem:[%s3323] sm:$0x2] %v3320
    %s3325 = scalar_lea.vmem %s1, 765
    %3326 = vst [vmem:[%s3325] sm:$0x4] %v3320

</llo_original>
